<compile_context>
chip_gen: v7x
topology: tpu7x:2x2x1
jax: 0.10.0
libtpu: 0.0.40
codegen_flags: <defaults>
</compile_context>

<pallas_src>
import jax
import jax.numpy as jnp
from jax.experimental import pallas as pl
from jax.experimental.pallas import tpu as pltpu


def rcu_kernel(x_ref, w1_ref, b1_ref, w2_ref, o_ref, pad1_ref, pad2_ref, acc_ref):
    Hp2, Wp2, C = pad1_ref.shape
    H, W = Hp2 - 2, Wp2 - 2

    x = x_ref[0]                                        # (H, W, C), loaded once

    # ---- zero only the 1-pixel halo of both padded scratch buffers ----
    for pad_ref in (pad1_ref, pad2_ref):
        pad_ref[0:1, :, :] = jnp.zeros((1, Wp2, C), jnp.float32)
        pad_ref[H + 1:H + 2, :, :] = jnp.zeros((1, Wp2, C), jnp.float32)
        pad_ref[:, 0:1, :] = jnp.zeros((Hp2, 1, C), jnp.float32)
        pad_ref[:, W + 1:W + 2, :] = jnp.zeros((Hp2, 1, C), jnp.float32)

    # ---- relu(x) into pad1 interior ----
    pad1_ref[1:H + 1, 1:W + 1, :] = jnp.maximum(x, 0.0)

    # ---- conv1 (3x3, stride 1, pad 1, bias) + relu ----
    # 9 whole-image matmuls; accumulator initialized with the (lane-aligned) bias.
    acc_ref[...] = jnp.broadcast_to(b1_ref[...], acc_ref.shape)
    for dy in range(3):
        for dx in range(3):
            slab = pad1_ref[dy:dy + H, dx:dx + W, :].reshape(H * W, C)
            acc_ref[...] += jnp.dot(slab, w1_ref[dy, dx],
                                    preferred_element_type=jnp.float32)
    # relu(conv1) written directly into pad2's interior (no intermediate buffer).
    pad2_ref[1:H + 1, 1:W + 1, :] = jnp.maximum(acc_ref[...], 0.0).reshape(H, W, C)

    # ---- conv2 (3x3, stride 1, pad 1, no bias) + residual ----
    # Accumulator initialized with the residual x (already in registers).
    acc_ref[...] = x.reshape(H * W, C).astype(jnp.float32)
    for dy in range(3):
        for dx in range(3):
            slab = pad2_ref[dy:dy + H, dx:dx + W, :].reshape(H * W, C)
            acc_ref[...] += jnp.dot(slab, w2_ref[dy, dx],
                                    preferred_element_type=jnp.float32)
    o_ref[0] = acc_ref[...].reshape(H, W, C).astype(o_ref.dtype)


def residual_conv_unit(x, w1, b1, w2):
    """x: (N, C, H, W) f32. w1, w2: (Cout, Cin, 3, 3) f32 (PyTorch OIHW). b1: (Cout,)."""
    N, C, H, W = x.shape
    assert w1.shape == (C, C, 3, 3) and w2.shape == (C, C, 3, 3), "RCU needs Cout == Cin"
    assert b1.shape == (C,)

    # Channels-last activations; weights as (kh, kw, Cin, Cout) so w[dy, dx] is (Cin, Cout).
    x_nhwc = jnp.transpose(x, (0, 2, 3, 1)).astype(jnp.float32)      # (N, H, W, C)
    w1t = jnp.transpose(w1, (2, 3, 1, 0)).astype(jnp.float32)        # (3, 3, Cin, Cout)
    w2t = jnp.transpose(w2, (2, 3, 1, 0)).astype(jnp.float32)
    b1r = b1.reshape(1, C).astype(jnp.float32)                       # lane row-vector

    out_nhwc = pl.pallas_call(
        rcu_kernel,
        out_shape=jax.ShapeDtypeStruct((N, H, W, C), x.dtype),
        grid_spec=pltpu.PrefetchScalarGridSpec(
            num_scalar_prefetch=0,
            grid=(N,),
            in_specs=[
                pl.BlockSpec((1, H, W, C), lambda n: (n, 0, 0, 0)),
                pl.BlockSpec((3, 3, C, C), lambda n: (0, 0, 0, 0)),
                pl.BlockSpec((1, C), lambda n: (0, 0)),
                pl.BlockSpec((3, 3, C, C), lambda n: (0, 0, 0, 0)),
            ],
            out_specs=pl.BlockSpec((1, H, W, C), lambda n: (n, 0, 0, 0)),
            scratch_shapes=[
                pltpu.VMEM((H + 2, W + 2, C), jnp.float32),   # padded relu(x)
                pltpu.VMEM((H + 2, W + 2, C), jnp.float32),   # padded relu(conv1)
                pltpu.VMEM((H * W, C), jnp.float32),          # f32 matmul accumulator
            ],
        ),
        compiler_params=pltpu.CompilerParams(
            dimension_semantics=("parallel",)),
    )(x_nhwc, w1t, b1r, w2t)

    return jnp.transpose(out_nhwc, (0, 3, 1, 2))                     # back to NCHW


def reference(x, w1, b1, w2):
    dn = jax.lax.conv_dimension_numbers(x.shape, w1.shape, ("NCHW", "OIHW", "NCHW"))
    h = jax.nn.relu(x)
    h = jax.lax.conv_general_dilated(h, w1, (1, 1), ((1, 1), (1, 1)),
                                     dimension_numbers=dn) + b1.reshape(1, -1, 1, 1)
    h = jax.nn.relu(h)
    h = jax.lax.conv_general_dilated(h, w2, (1, 1), ((1, 1), (1, 1)),
                                     dimension_numbers=dn)
    return h + x


if __name__ == "__main__":
    N, C, H, W = 2, 8, 16, 16   # small shapes consistent with Conv2d(features, features, 3, 1, 1)
    key = jax.random.PRNGKey(0)
    kx, k1, kb, k2 = jax.random.split(key, 4)

    x = jax.random.normal(kx, (N, C, H, W), dtype=jnp.float32)
    w1 = 0.1 * jax.random.normal(k1, (C, C, 3, 3), dtype=jnp.float32)   # conv1 weight (OIHW)
    b1 = 0.1 * jax.random.normal(kb, (C,), dtype=jnp.float32)           # conv1 bias
    w2 = 0.1 * jax.random.normal(k2, (C, C, 3, 3), dtype=jnp.float32)   # conv2 weight (no bias)

    out = residual_conv_unit(x, w1, b1, w2)
    out = jax.block_until_ready(out)

    ref = jax.block_until_ready(reference(x, w1, b1, w2))
    assert out.shape == ref.shape and out.dtype == ref.dtype
    assert jnp.allclose(out, ref, rtol=1e-3, atol=1e-3), "mismatch vs JAX conv reference"

    print("KERNEL_OK")
</pallas_src>

<mosaic_0001>
module attributes {stable_mosaic.version = 11 : i64} {
  func.func @rcu_kernel(%arg0: i32, %arg1: memref<1x16x16x8xf32, #tpu.memory_space<vmem>>, %arg2: memref<3x3x8x8xf32, #tpu.memory_space<vmem>>, %arg3: memref<1x8xf32, #tpu.memory_space<vmem>>, %arg4: memref<3x3x8x8xf32, #tpu.memory_space<vmem>>, %arg5: memref<1x16x16x8xf32, #tpu.memory_space<vmem>>, %arg6: memref<18x18x8xf32, #tpu.memory_space<vmem>>, %arg7: memref<18x18x8xf32, #tpu.memory_space<vmem>>, %arg8: memref<256x8xf32, #tpu.memory_space<vmem>>) attributes {dimension_semantics = [#tpu.dimension_semantics<parallel>], iteration_bounds = array<i64: 2>, scalar_prefetch = 0 : i64, scratch_operands = 3 : i64, tpu.core_type = #tpu.core_type<tc>, window_params = [{transform_indices = @transform_0, window_bounds = array<i64: 1, 16, 16, 8>}, {pipeline_mode = #tpu.pipeline_mode<synchronous>, transform_indices = @transform_1, window_bounds = array<i64: 3, 3, 8, 8>}, {pipeline_mode = #tpu.pipeline_mode<synchronous>, transform_indices = @transform_2, window_bounds = array<i64: 1, 8>}, {pipeline_mode = #tpu.pipeline_mode<synchronous>, transform_indices = @transform_3, window_bounds = array<i64: 3, 3, 8, 8>}, {transform_indices = @transform_4, window_bounds = array<i64: 1, 16, 16, 8>}]} {
    %c0 = arith.constant 0 : index
    %c0_0 = arith.constant 0 : index
    %c0_1 = arith.constant 0 : index
    %c0_2 = arith.constant 0 : index
    %0 = vector.load %arg1[%c0, %c0_0, %c0_1, %c0_2] : memref<1x16x16x8xf32, #tpu.memory_space<vmem>>, vector<1x16x16x8xf32>
    %1 = vector.shape_cast %0 : vector<1x16x16x8xf32> to vector<16x16x8xf32>
    %cst = arith.constant 0.000000e+00 : f32
    %2 = vector.broadcast %cst : f32 to vector<1x18x8xf32>
    %c0_3 = arith.constant 0 : index
    %c0_4 = arith.constant 0 : index
    %c0_5 = arith.constant 0 : index
    %3 = vector.load %arg6[%c0_3, %c0_4, %c0_5] : memref<18x18x8xf32, #tpu.memory_space<vmem>>, vector<1x18x8xf32>
    tpu.vector_store %arg6[%c0_3, %c0_4, %c0_5], %2 {strides = array<i32>} : memref<18x18x8xf32, #tpu.memory_space<vmem>>, vector<1x18x8xf32>,
    %cst_6 = arith.constant 0.000000e+00 : f32
    %4 = vector.broadcast %cst_6 : f32 to vector<1x18x8xf32>
    %c17 = arith.constant 17 : index
    %c0_7 = arith.constant 0 : index
    %c0_8 = arith.constant 0 : index
    %5 = vector.load %arg6[%c17, %c0_7, %c0_8] : memref<18x18x8xf32, #tpu.memory_space<vmem>>, vector<1x18x8xf32>
    tpu.vector_store %arg6[%c17, %c0_7, %c0_8], %4 {strides = array<i32>} : memref<18x18x8xf32, #tpu.memory_space<vmem>>, vector<1x18x8xf32>,
    %cst_9 = arith.constant 0.000000e+00 : f32
    %6 = vector.broadcast %cst_9 : f32 to vector<18x1x8xf32>
    %c0_10 = arith.constant 0 : index
    %c0_11 = arith.constant 0 : index
    %c0_12 = arith.constant 0 : index
    %7 = vector.load %arg6[%c0_10, %c0_11, %c0_12] : memref<18x18x8xf32, #tpu.memory_space<vmem>>, vector<18x1x8xf32>
    tpu.vector_store %arg6[%c0_10, %c0_11, %c0_12], %6 {strides = array<i32>} : memref<18x18x8xf32, #tpu.memory_space<vmem>>, vector<18x1x8xf32>,
    %cst_13 = arith.constant 0.000000e+00 : f32
    %8 = vector.broadcast %cst_13 : f32 to vector<18x1x8xf32>
    %c0_14 = arith.constant 0 : index
    %c17_15 = arith.constant 17 : index
    %c0_16 = arith.constant 0 : index
    %9 = vector.load %arg6[%c0_14, %c17_15, %c0_16] : memref<18x18x8xf32, #tpu.memory_space<vmem>>, vector<18x1x8xf32>
    tpu.vector_store %arg6[%c0_14, %c17_15, %c0_16], %8 {strides = array<i32>} : memref<18x18x8xf32, #tpu.memory_space<vmem>>, vector<18x1x8xf32>,
    %cst_17 = arith.constant 0.000000e+00 : f32
    %10 = vector.broadcast %cst_17 : f32 to vector<1x18x8xf32>
    %c0_18 = arith.constant 0 : index
    %c0_19 = arith.constant 0 : index
    %c0_20 = arith.constant 0 : index
    %11 = vector.load %arg7[%c0_18, %c0_19, %c0_20] : memref<18x18x8xf32, #tpu.memory_space<vmem>>, vector<1x18x8xf32>
    tpu.vector_store %arg7[%c0_18, %c0_19, %c0_20], %10 {strides = array<i32>} : memref<18x18x8xf32, #tpu.memory_space<vmem>>, vector<1x18x8xf32>,
    %cst_21 = arith.constant 0.000000e+00 : f32
    %12 = vector.broadcast %cst_21 : f32 to vector<1x18x8xf32>
    %c17_22 = arith.constant 17 : index
    %c0_23 = arith.constant 0 : index
    %c0_24 = arith.constant 0 : index
    %13 = vector.load %arg7[%c17_22, %c0_23, %c0_24] : memref<18x18x8xf32, #tpu.memory_space<vmem>>, vector<1x18x8xf32>
    tpu.vector_store %arg7[%c17_22, %c0_23, %c0_24], %12 {strides = array<i32>} : memref<18x18x8xf32, #tpu.memory_space<vmem>>, vector<1x18x8xf32>,
    %cst_25 = arith.constant 0.000000e+00 : f32
    %14 = vector.broadcast %cst_25 : f32 to vector<18x1x8xf32>
    %c0_26 = arith.constant 0 : index
    %c0_27 = arith.constant 0 : index
    %c0_28 = arith.constant 0 : index
    %15 = vector.load %arg7[%c0_26, %c0_27, %c0_28] : memref<18x18x8xf32, #tpu.memory_space<vmem>>, vector<18x1x8xf32>
    tpu.vector_store %arg7[%c0_26, %c0_27, %c0_28], %14 {strides = array<i32>} : memref<18x18x8xf32, #tpu.memory_space<vmem>>, vector<18x1x8xf32>,
    %cst_29 = arith.constant 0.000000e+00 : f32
    %16 = vector.broadcast %cst_29 : f32 to vector<18x1x8xf32>
    %c0_30 = arith.constant 0 : index
    %c17_31 = arith.constant 17 : index
    %c0_32 = arith.constant 0 : index
    %17 = vector.load %arg7[%c0_30, %c17_31, %c0_32] : memref<18x18x8xf32, #tpu.memory_space<vmem>>, vector<18x1x8xf32>
    tpu.vector_store %arg7[%c0_30, %c17_31, %c0_32], %16 {strides = array<i32>} : memref<18x18x8xf32, #tpu.memory_space<vmem>>, vector<18x1x8xf32>,
    %cst_33 = arith.constant 0.000000e+00 : f32
    %18 = vector.broadcast %cst_33 : f32 to vector<16x16x8xf32>
    %19 = arith.maximumf %1, %18 : vector<16x16x8xf32>
    %c1 = arith.constant 1 : index
    %c1_34 = arith.constant 1 : index
    %c0_35 = arith.constant 0 : index
    %20 = vector.load %arg6[%c1, %c1_34, %c0_35] : memref<18x18x8xf32, #tpu.memory_space<vmem>>, vector<16x16x8xf32>
    tpu.vector_store %arg6[%c1, %c1_34, %c0_35], %19 {strides = array<i32>} : memref<18x18x8xf32, #tpu.memory_space<vmem>>, vector<16x16x8xf32>,
    %c0_36 = arith.constant 0 : index
    %c0_37 = arith.constant 0 : index
    %21 = vector.load %arg3[%c0_36, %c0_37] : memref<1x8xf32, #tpu.memory_space<vmem>>, vector<1x8xf32>
    %22 = vector.shape_cast %21 : vector<1x8xf32> to vector<1x8xf32>
    %23 = vector.broadcast %22 : vector<1x8xf32> to vector<256x8xf32>
    %c0_38 = arith.constant 0 : index
    %c0_39 = arith.constant 0 : index
    %24 = vector.load %arg8[%c0_38, %c0_39] : memref<256x8xf32, #tpu.memory_space<vmem>>, vector<256x8xf32>
    tpu.vector_store %arg8[%c0_38, %c0_39], %23 {strides = array<i32>} : memref<256x8xf32, #tpu.memory_space<vmem>>, vector<256x8xf32>,
    %c0_40 = arith.constant 0 : index
    %c0_41 = arith.constant 0 : index
    %c0_42 = arith.constant 0 : index
    %25 = vector.load %arg6[%c0_40, %c0_41, %c0_42] : memref<18x18x8xf32, #tpu.memory_space<vmem>>, vector<16x16x8xf32>
    %26 = vector.shape_cast %25 : vector<16x16x8xf32> to vector<256x8xf32>
    %c0_43 = arith.constant 0 : index
    %c0_44 = arith.constant 0 : index
    %27 = vector.load %arg8[%c0_43, %c0_44] : memref<256x8xf32, #tpu.memory_space<vmem>>, vector<256x8xf32>
    %c0_45 = arith.constant 0 : index
    %c0_46 = arith.constant 0 : index
    %c0_47 = arith.constant 0 : index
    %c0_48 = arith.constant 0 : index
    %28 = vector.load %arg2[%c0_45, %c0_46, %c0_47, %c0_48] : memref<3x3x8x8xf32, #tpu.memory_space<vmem>>, vector<1x1x8x8xf32>
    %29 = vector.shape_cast %28 : vector<1x1x8x8xf32> to vector<8x8xf32>
    %cst_49 = arith.constant dense<0.000000e+00> : vector<256x8xf32>
    %30 = tpu.matmul %26, %29, %cst_49 {dimension_numbers = #tpu.dot_dimension_numbers<[1], [0], [0], [1], [0, 0, 1, 1], [], []>} : vector<256x8xf32>, vector<8x8xf32>, vector<256x8xf32> -> vector<256x8xf32>
    %31 = arith.addf %27, %30 : vector<256x8xf32>
    %c0_50 = arith.constant 0 : index
    %c0_51 = arith.constant 0 : index
    %32 = vector.load %arg8[%c0_50, %c0_51] : memref<256x8xf32, #tpu.memory_space<vmem>>, vector<256x8xf32>
    tpu.vector_store %arg8[%c0_50, %c0_51], %31 {strides = array<i32>} : memref<256x8xf32, #tpu.memory_space<vmem>>, vector<256x8xf32>,
    %c0_52 = arith.constant 0 : index
    %c1_53 = arith.constant 1 : index
    %c0_54 = arith.constant 0 : index
    %33 = vector.load %arg6[%c0_52, %c1_53, %c0_54] : memref<18x18x8xf32, #tpu.memory_space<vmem>>, vector<16x16x8xf32>
    %34 = vector.shape_cast %33 : vector<16x16x8xf32> to vector<256x8xf32>
    %c0_55 = arith.constant 0 : index
    %c0_56 = arith.constant 0 : index
    %35 = vector.load %arg8[%c0_55, %c0_56] : memref<256x8xf32, #tpu.memory_space<vmem>>, vector<256x8xf32>
    %c0_57 = arith.constant 0 : index
    %c1_58 = arith.constant 1 : index
    %c0_59 = arith.constant 0 : index
    %c0_60 = arith.constant 0 : index
    %36 = vector.load %arg2[%c0_57, %c1_58, %c0_59, %c0_60] : memref<3x3x8x8xf32, #tpu.memory_space<vmem>>, vector<1x1x8x8xf32>
    %37 = vector.shape_cast %36 : vector<1x1x8x8xf32> to vector<8x8xf32>
    %cst_61 = arith.constant dense<0.000000e+00> : vector<256x8xf32>
    %38 = tpu.matmul %34, %37, %cst_61 {dimension_numbers = #tpu.dot_dimension_numbers<[1], [0], [0], [1], [0, 0, 1, 1], [], []>} : vector<256x8xf32>, vector<8x8xf32>, vector<256x8xf32> -> vector<256x8xf32>
    %39 = arith.addf %35, %38 : vector<256x8xf32>
    %c0_62 = arith.constant 0 : index
    %c0_63 = arith.constant 0 : index
    %40 = vector.load %arg8[%c0_62, %c0_63] : memref<256x8xf32, #tpu.memory_space<vmem>>, vector<256x8xf32>
    tpu.vector_store %arg8[%c0_62, %c0_63], %39 {strides = array<i32>} : memref<256x8xf32, #tpu.memory_space<vmem>>, vector<256x8xf32>,
    %c0_64 = arith.constant 0 : index
    %c2 = arith.constant 2 : index
    %c0_65 = arith.constant 0 : index
    %41 = vector.load %arg6[%c0_64, %c2, %c0_65] : memref<18x18x8xf32, #tpu.memory_space<vmem>>, vector<16x16x8xf32>
    %42 = vector.shape_cast %41 : vector<16x16x8xf32> to vector<256x8xf32>
    %c0_66 = arith.constant 0 : index
    %c0_67 = arith.constant 0 : index
    %43 = vector.load %arg8[%c0_66, %c0_67] : memref<256x8xf32, #tpu.memory_space<vmem>>, vector<256x8xf32>
    %c0_68 = arith.constant 0 : index
    %c2_69 = arith.constant 2 : index
    %c0_70 = arith.constant 0 : index
    %c0_71 = arith.constant 0 : index
    %44 = vector.load %arg2[%c0_68, %c2_69, %c0_70, %c0_71] : memref<3x3x8x8xf32, #tpu.memory_space<vmem>>, vector<1x1x8x8xf32>
    %45 = vector.shape_cast %44 : vector<1x1x8x8xf32> to vector<8x8xf32>
    %cst_72 = arith.constant dense<0.000000e+00> : vector<256x8xf32>
    %46 = tpu.matmul %42, %45, %cst_72 {dimension_numbers = #tpu.dot_dimension_numbers<[1], [0], [0], [1], [0, 0, 1, 1], [], []>} : vector<256x8xf32>, vector<8x8xf32>, vector<256x8xf32> -> vector<256x8xf32>
    %47 = arith.addf %43, %46 : vector<256x8xf32>
    %c0_73 = arith.constant 0 : index
    %c0_74 = arith.constant 0 : index
    %48 = vector.load %arg8[%c0_73, %c0_74] : memref<256x8xf32, #tpu.memory_space<vmem>>, vector<256x8xf32>
    tpu.vector_store %arg8[%c0_73, %c0_74], %47 {strides = array<i32>} : memref<256x8xf32, #tpu.memory_space<vmem>>, vector<256x8xf32>,
    %c1_75 = arith.constant 1 : index
    %c0_76 = arith.constant 0 : index
    %c0_77 = arith.constant 0 : index
    %49 = vector.load %arg6[%c1_75, %c0_76, %c0_77] : memref<18x18x8xf32, #tpu.memory_space<vmem>>, vector<16x16x8xf32>
    %50 = vector.shape_cast %49 : vector<16x16x8xf32> to vector<256x8xf32>
    %c0_78 = arith.constant 0 : index
    %c0_79 = arith.constant 0 : index
    %51 = vector.load %arg8[%c0_78, %c0_79] : memref<256x8xf32, #tpu.memory_space<vmem>>, vector<256x8xf32>
    %c1_80 = arith.constant 1 : index
    %c0_81 = arith.constant 0 : index
    %c0_82 = arith.constant 0 : index
    %c0_83 = arith.constant 0 : index
    %52 = vector.load %arg2[%c1_80, %c0_81, %c0_82, %c0_83] : memref<3x3x8x8xf32, #tpu.memory_space<vmem>>, vector<1x1x8x8xf32>
    %53 = vector.shape_cast %52 : vector<1x1x8x8xf32> to vector<8x8xf32>
    %cst_84 = arith.constant dense<0.000000e+00> : vector<256x8xf32>
    %54 = tpu.matmul %50, %53, %cst_84 {dimension_numbers = #tpu.dot_dimension_numbers<[1], [0], [0], [1], [0, 0, 1, 1], [], []>} : vector<256x8xf32>, vector<8x8xf32>, vector<256x8xf32> -> vector<256x8xf32>
    %55 = arith.addf %51, %54 : vector<256x8xf32>
    %c0_85 = arith.constant 0 : index
    %c0_86 = arith.constant 0 : index
    %56 = vector.load %arg8[%c0_85, %c0_86] : memref<256x8xf32, #tpu.memory_space<vmem>>, vector<256x8xf32>
    tpu.vector_store %arg8[%c0_85, %c0_86], %55 {strides = array<i32>} : memref<256x8xf32, #tpu.memory_space<vmem>>, vector<256x8xf32>,
    %c1_87 = arith.constant 1 : index
    %c1_88 = arith.constant 1 : index
    %c0_89 = arith.constant 0 : index
    %57 = vector.load %arg6[%c1_87, %c1_88, %c0_89] : memref<18x18x8xf32, #tpu.memory_space<vmem>>, vector<16x16x8xf32>
    %58 = vector.shape_cast %57 : vector<16x16x8xf32> to vector<256x8xf32>
    %c0_90 = arith.constant 0 : index
    %c0_91 = arith.constant 0 : index
    %59 = vector.load %arg8[%c0_90, %c0_91] : memref<256x8xf32, #tpu.memory_space<vmem>>, vector<256x8xf32>
    %c1_92 = arith.constant 1 : index
    %c1_93 = arith.constant 1 : index
    %c0_94 = arith.constant 0 : index
    %c0_95 = arith.constant 0 : index
    %60 = vector.load %arg2[%c1_92, %c1_93, %c0_94, %c0_95] : memref<3x3x8x8xf32, #tpu.memory_space<vmem>>, vector<1x1x8x8xf32>
    %61 = vector.shape_cast %60 : vector<1x1x8x8xf32> to vector<8x8xf32>
    %cst_96 = arith.constant dense<0.000000e+00> : vector<256x8xf32>
    %62 = tpu.matmul %58, %61, %cst_96 {dimension_numbers = #tpu.dot_dimension_numbers<[1], [0], [0], [1], [0, 0, 1, 1], [], []>} : vector<256x8xf32>, vector<8x8xf32>, vector<256x8xf32> -> vector<256x8xf32>
    %63 = arith.addf %59, %62 : vector<256x8xf32>
    %c0_97 = arith.constant 0 : index
    %c0_98 = arith.constant 0 : index
    %64 = vector.load %arg8[%c0_97, %c0_98] : memref<256x8xf32, #tpu.memory_space<vmem>>, vector<256x8xf32>
    tpu.vector_store %arg8[%c0_97, %c0_98], %63 {strides = array<i32>} : memref<256x8xf32, #tpu.memory_space<vmem>>, vector<256x8xf32>,
    %c1_99 = arith.constant 1 : index
    %c2_100 = arith.constant 2 : index
    %c0_101 = arith.constant 0 : index
    %65 = vector.load %arg6[%c1_99, %c2_100, %c0_101] : memref<18x18x8xf32, #tpu.memory_space<vmem>>, vector<16x16x8xf32>
    %66 = vector.shape_cast %65 : vector<16x16x8xf32> to vector<256x8xf32>
    %c0_102 = arith.constant 0 : index
    %c0_103 = arith.constant 0 : index
    %67 = vector.load %arg8[%c0_102, %c0_103] : memref<256x8xf32, #tpu.memory_space<vmem>>, vector<256x8xf32>
    %c1_104 = arith.constant 1 : index
    %c2_105 = arith.constant 2 : index
    %c0_106 = arith.constant 0 : index
    %c0_107 = arith.constant 0 : index
    %68 = vector.load %arg2[%c1_104, %c2_105, %c0_106, %c0_107] : memref<3x3x8x8xf32, #tpu.memory_space<vmem>>, vector<1x1x8x8xf32>
    %69 = vector.shape_cast %68 : vector<1x1x8x8xf32> to vector<8x8xf32>
    %cst_108 = arith.constant dense<0.000000e+00> : vector<256x8xf32>
    %70 = tpu.matmul %66, %69, %cst_108 {dimension_numbers = #tpu.dot_dimension_numbers<[1], [0], [0], [1], [0, 0, 1, 1], [], []>} : vector<256x8xf32>, vector<8x8xf32>, vector<256x8xf32> -> vector<256x8xf32>
    %71 = arith.addf %67, %70 : vector<256x8xf32>
    %c0_109 = arith.constant 0 : index
    %c0_110 = arith.constant 0 : index
    %72 = vector.load %arg8[%c0_109, %c0_110] : memref<256x8xf32, #tpu.memory_space<vmem>>, vector<256x8xf32>
    tpu.vector_store %arg8[%c0_109, %c0_110], %71 {strides = array<i32>} : memref<256x8xf32, #tpu.memory_space<vmem>>, vector<256x8xf32>,
    %c2_111 = arith.constant 2 : index
    %c0_112 = arith.constant 0 : index
    %c0_113 = arith.constant 0 : index
    %73 = vector.load %arg6[%c2_111, %c0_112, %c0_113] : memref<18x18x8xf32, #tpu.memory_space<vmem>>, vector<16x16x8xf32>
    %74 = vector.shape_cast %73 : vector<16x16x8xf32> to vector<256x8xf32>
    %c0_114 = arith.constant 0 : index
    %c0_115 = arith.constant 0 : index
    %75 = vector.load %arg8[%c0_114, %c0_115] : memref<256x8xf32, #tpu.memory_space<vmem>>, vector<256x8xf32>
    %c2_116 = arith.constant 2 : index
    %c0_117 = arith.constant 0 : index
    %c0_118 = arith.constant 0 : index
    %c0_119 = arith.constant 0 : index
    %76 = vector.load %arg2[%c2_116, %c0_117, %c0_118, %c0_119] : memref<3x3x8x8xf32, #tpu.memory_space<vmem>>, vector<1x1x8x8xf32>
    %77 = vector.shape_cast %76 : vector<1x1x8x8xf32> to vector<8x8xf32>
    %cst_120 = arith.constant dense<0.000000e+00> : vector<256x8xf32>
    %78 = tpu.matmul %74, %77, %cst_120 {dimension_numbers = #tpu.dot_dimension_numbers<[1], [0], [0], [1], [0, 0, 1, 1], [], []>} : vector<256x8xf32>, vector<8x8xf32>, vector<256x8xf32> -> vector<256x8xf32>
    %79 = arith.addf %75, %78 : vector<256x8xf32>
    %c0_121 = arith.constant 0 : index
    %c0_122 = arith.constant 0 : index
    %80 = vector.load %arg8[%c0_121, %c0_122] : memref<256x8xf32, #tpu.memory_space<vmem>>, vector<256x8xf32>
    tpu.vector_store %arg8[%c0_121, %c0_122], %79 {strides = array<i32>} : memref<256x8xf32, #tpu.memory_space<vmem>>, vector<256x8xf32>,
    %c2_123 = arith.constant 2 : index
    %c1_124 = arith.constant 1 : index
    %c0_125 = arith.constant 0 : index
    %81 = vector.load %arg6[%c2_123, %c1_124, %c0_125] : memref<18x18x8xf32, #tpu.memory_space<vmem>>, vector<16x16x8xf32>
    %82 = vector.shape_cast %81 : vector<16x16x8xf32> to vector<256x8xf32>
    %c0_126 = arith.constant 0 : index
    %c0_127 = arith.constant 0 : index
    %83 = vector.load %arg8[%c0_126, %c0_127] : memref<256x8xf32, #tpu.memory_space<vmem>>, vector<256x8xf32>
    %c2_128 = arith.constant 2 : index
    %c1_129 = arith.constant 1 : index
    %c0_130 = arith.constant 0 : index
    %c0_131 = arith.constant 0 : index
    %84 = vector.load %arg2[%c2_128, %c1_129, %c0_130, %c0_131] : memref<3x3x8x8xf32, #tpu.memory_space<vmem>>, vector<1x1x8x8xf32>
    %85 = vector.shape_cast %84 : vector<1x1x8x8xf32> to vector<8x8xf32>
    %cst_132 = arith.constant dense<0.000000e+00> : vector<256x8xf32>
    %86 = tpu.matmul %82, %85, %cst_132 {dimension_numbers = #tpu.dot_dimension_numbers<[1], [0], [0], [1], [0, 0, 1, 1], [], []>} : vector<256x8xf32>, vector<8x8xf32>, vector<256x8xf32> -> vector<256x8xf32>
    %87 = arith.addf %83, %86 : vector<256x8xf32>
    %c0_133 = arith.constant 0 : index
    %c0_134 = arith.constant 0 : index
    %88 = vector.load %arg8[%c0_133, %c0_134] : memref<256x8xf32, #tpu.memory_space<vmem>>, vector<256x8xf32>
    tpu.vector_store %arg8[%c0_133, %c0_134], %87 {strides = array<i32>} : memref<256x8xf32, #tpu.memory_space<vmem>>, vector<256x8xf32>,
    %c2_135 = arith.constant 2 : index
    %c2_136 = arith.constant 2 : index
    %c0_137 = arith.constant 0 : index
    %89 = vector.load %arg6[%c2_135, %c2_136, %c0_137] : memref<18x18x8xf32, #tpu.memory_space<vmem>>, vector<16x16x8xf32>
    %90 = vector.shape_cast %89 : vector<16x16x8xf32> to vector<256x8xf32>
    %c0_138 = arith.constant 0 : index
    %c0_139 = arith.constant 0 : index
    %91 = vector.load %arg8[%c0_138, %c0_139] : memref<256x8xf32, #tpu.memory_space<vmem>>, vector<256x8xf32>
    %c2_140 = arith.constant 2 : index
    %c2_141 = arith.constant 2 : index
    %c0_142 = arith.constant 0 : index
    %c0_143 = arith.constant 0 : index
    %92 = vector.load %arg2[%c2_140, %c2_141, %c0_142, %c0_143] : memref<3x3x8x8xf32, #tpu.memory_space<vmem>>, vector<1x1x8x8xf32>
    %93 = vector.shape_cast %92 : vector<1x1x8x8xf32> to vector<8x8xf32>
    %cst_144 = arith.constant dense<0.000000e+00> : vector<256x8xf32>
    %94 = tpu.matmul %90, %93, %cst_144 {dimension_numbers = #tpu.dot_dimension_numbers<[1], [0], [0], [1], [0, 0, 1, 1], [], []>} : vector<256x8xf32>, vector<8x8xf32>, vector<256x8xf32> -> vector<256x8xf32>
    %95 = arith.addf %91, %94 : vector<256x8xf32>
    %c0_145 = arith.constant 0 : index
    %c0_146 = arith.constant 0 : index
    %96 = vector.load %arg8[%c0_145, %c0_146] : memref<256x8xf32, #tpu.memory_space<vmem>>, vector<256x8xf32>
    tpu.vector_store %arg8[%c0_145, %c0_146], %95 {strides = array<i32>} : memref<256x8xf32, #tpu.memory_space<vmem>>, vector<256x8xf32>,
    %c0_147 = arith.constant 0 : index
    %c0_148 = arith.constant 0 : index
    %97 = vector.load %arg8[%c0_147, %c0_148] : memref<256x8xf32, #tpu.memory_space<vmem>>, vector<256x8xf32>
    %cst_149 = arith.constant 0.000000e+00 : f32
    %98 = vector.broadcast %cst_149 : f32 to vector<256x8xf32>
    %99 = arith.maximumf %97, %98 : vector<256x8xf32>
    %100 = vector.shape_cast %99 : vector<256x8xf32> to vector<16x16x8xf32>
    %c1_150 = arith.constant 1 : index
    %c1_151 = arith.constant 1 : index
    %c0_152 = arith.constant 0 : index
    %101 = vector.load %arg7[%c1_150, %c1_151, %c0_152] : memref<18x18x8xf32, #tpu.memory_space<vmem>>, vector<16x16x8xf32>
    tpu.vector_store %arg7[%c1_150, %c1_151, %c0_152], %100 {strides = array<i32>} : memref<18x18x8xf32, #tpu.memory_space<vmem>>, vector<16x16x8xf32>,
    %102 = vector.shape_cast %1 : vector<16x16x8xf32> to vector<256x8xf32>
    %c0_153 = arith.constant 0 : index
    %c0_154 = arith.constant 0 : index
    %103 = vector.load %arg8[%c0_153, %c0_154] : memref<256x8xf32, #tpu.memory_space<vmem>>, vector<256x8xf32>
    tpu.vector_store %arg8[%c0_153, %c0_154], %102 {strides = array<i32>} : memref<256x8xf32, #tpu.memory_space<vmem>>, vector<256x8xf32>,
    %c0_155 = arith.constant 0 : index
    %c0_156 = arith.constant 0 : index
    %c0_157 = arith.constant 0 : index
    %104 = vector.load %arg7[%c0_155, %c0_156, %c0_157] : memref<18x18x8xf32, #tpu.memory_space<vmem>>, vector<16x16x8xf32>
    %105 = vector.shape_cast %104 : vector<16x16x8xf32> to vector<256x8xf32>
    %c0_158 = arith.constant 0 : index
    %c0_159 = arith.constant 0 : index
    %106 = vector.load %arg8[%c0_158, %c0_159] : memref<256x8xf32, #tpu.memory_space<vmem>>, vector<256x8xf32>
    %c0_160 = arith.constant 0 : index
    %c0_161 = arith.constant 0 : index
    %c0_162 = arith.constant 0 : index
    %c0_163 = arith.constant 0 : index
    %107 = vector.load %arg4[%c0_160, %c0_161, %c0_162, %c0_163] : memref<3x3x8x8xf32, #tpu.memory_space<vmem>>, vector<1x1x8x8xf32>
    %108 = vector.shape_cast %107 : vector<1x1x8x8xf32> to vector<8x8xf32>
    %cst_164 = arith.constant dense<0.000000e+00> : vector<256x8xf32>
    %109 = tpu.matmul %105, %108, %cst_164 {dimension_numbers = #tpu.dot_dimension_numbers<[1], [0], [0], [1], [0, 0, 1, 1], [], []>} : vector<256x8xf32>, vector<8x8xf32>, vector<256x8xf32> -> vector<256x8xf32>
    %110 = arith.addf %106, %109 : vector<256x8xf32>
    %c0_165 = arith.constant 0 : index
    %c0_166 = arith.constant 0 : index
    %111 = vector.load %arg8[%c0_165, %c0_166] : memref<256x8xf32, #tpu.memory_space<vmem>>, vector<256x8xf32>
    tpu.vector_store %arg8[%c0_165, %c0_166], %110 {strides = array<i32>} : memref<256x8xf32, #tpu.memory_space<vmem>>, vector<256x8xf32>,
    %c0_167 = arith.constant 0 : index
    %c1_168 = arith.constant 1 : index
    %c0_169 = arith.constant 0 : index
    %112 = vector.load %arg7[%c0_167, %c1_168, %c0_169] : memref<18x18x8xf32, #tpu.memory_space<vmem>>, vector<16x16x8xf32>
    %113 = vector.shape_cast %112 : vector<16x16x8xf32> to vector<256x8xf32>
    %c0_170 = arith.constant 0 : index
    %c0_171 = arith.constant 0 : index
    %114 = vector.load %arg8[%c0_170, %c0_171] : memref<256x8xf32, #tpu.memory_space<vmem>>, vector<256x8xf32>
    %c0_172 = arith.constant 0 : index
    %c1_173 = arith.constant 1 : index
    %c0_174 = arith.constant 0 : index
    %c0_175 = arith.constant 0 : index
    %115 = vector.load %arg4[%c0_172, %c1_173, %c0_174, %c0_175] : memref<3x3x8x8xf32, #tpu.memory_space<vmem>>, vector<1x1x8x8xf32>
    %116 = vector.shape_cast %115 : vector<1x1x8x8xf32> to vector<8x8xf32>
    %cst_176 = arith.constant dense<0.000000e+00> : vector<256x8xf32>
    %117 = tpu.matmul %113, %116, %cst_176 {dimension_numbers = #tpu.dot_dimension_numbers<[1], [0], [0], [1], [0, 0, 1, 1], [], []>} : vector<256x8xf32>, vector<8x8xf32>, vector<256x8xf32> -> vector<256x8xf32>
    %118 = arith.addf %114, %117 : vector<256x8xf32>
    %c0_177 = arith.constant 0 : index
    %c0_178 = arith.constant 0 : index
    %119 = vector.load %arg8[%c0_177, %c0_178] : memref<256x8xf32, #tpu.memory_space<vmem>>, vector<256x8xf32>
    tpu.vector_store %arg8[%c0_177, %c0_178], %118 {strides = array<i32>} : memref<256x8xf32, #tpu.memory_space<vmem>>, vector<256x8xf32>,
    %c0_179 = arith.constant 0 : index
    %c2_180 = arith.constant 2 : index
    %c0_181 = arith.constant 0 : index
    %120 = vector.load %arg7[%c0_179, %c2_180, %c0_181] : memref<18x18x8xf32, #tpu.memory_space<vmem>>, vector<16x16x8xf32>
    %121 = vector.shape_cast %120 : vector<16x16x8xf32> to vector<256x8xf32>
    %c0_182 = arith.constant 0 : index
    %c0_183 = arith.constant 0 : index
    %122 = vector.load %arg8[%c0_182, %c0_183] : memref<256x8xf32, #tpu.memory_space<vmem>>, vector<256x8xf32>
    %c0_184 = arith.constant 0 : index
    %c2_185 = arith.constant 2 : index
    %c0_186 = arith.constant 0 : index
    %c0_187 = arith.constant 0 : index
    %123 = vector.load %arg4[%c0_184, %c2_185, %c0_186, %c0_187] : memref<3x3x8x8xf32, #tpu.memory_space<vmem>>, vector<1x1x8x8xf32>
    %124 = vector.shape_cast %123 : vector<1x1x8x8xf32> to vector<8x8xf32>
    %cst_188 = arith.constant dense<0.000000e+00> : vector<256x8xf32>
    %125 = tpu.matmul %121, %124, %cst_188 {dimension_numbers = #tpu.dot_dimension_numbers<[1], [0], [0], [1], [0, 0, 1, 1], [], []>} : vector<256x8xf32>, vector<8x8xf32>, vector<256x8xf32> -> vector<256x8xf32>
    %126 = arith.addf %122, %125 : vector<256x8xf32>
    %c0_189 = arith.constant 0 : index
    %c0_190 = arith.constant 0 : index
    %127 = vector.load %arg8[%c0_189, %c0_190] : memref<256x8xf32, #tpu.memory_space<vmem>>, vector<256x8xf32>
    tpu.vector_store %arg8[%c0_189, %c0_190], %126 {strides = array<i32>} : memref<256x8xf32, #tpu.memory_space<vmem>>, vector<256x8xf32>,
    %c1_191 = arith.constant 1 : index
    %c0_192 = arith.constant 0 : index
    %c0_193 = arith.constant 0 : index
    %128 = vector.load %arg7[%c1_191, %c0_192, %c0_193] : memref<18x18x8xf32, #tpu.memory_space<vmem>>, vector<16x16x8xf32>
    %129 = vector.shape_cast %128 : vector<16x16x8xf32> to vector<256x8xf32>
    %c0_194 = arith.constant 0 : index
    %c0_195 = arith.constant 0 : index
    %130 = vector.load %arg8[%c0_194, %c0_195] : memref<256x8xf32, #tpu.memory_space<vmem>>, vector<256x8xf32>
    %c1_196 = arith.constant 1 : index
    %c0_197 = arith.constant 0 : index
    %c0_198 = arith.constant 0 : index
    %c0_199 = arith.constant 0 : index
    %131 = vector.load %arg4[%c1_196, %c0_197, %c0_198, %c0_199] : memref<3x3x8x8xf32, #tpu.memory_space<vmem>>, vector<1x1x8x8xf32>
    %132 = vector.shape_cast %131 : vector<1x1x8x8xf32> to vector<8x8xf32>
    %cst_200 = arith.constant dense<0.000000e+00> : vector<256x8xf32>
    %133 = tpu.matmul %129, %132, %cst_200 {dimension_numbers = #tpu.dot_dimension_numbers<[1], [0], [0], [1], [0, 0, 1, 1], [], []>} : vector<256x8xf32>, vector<8x8xf32>, vector<256x8xf32> -> vector<256x8xf32>
    %134 = arith.addf %130, %133 : vector<256x8xf32>
    %c0_201 = arith.constant 0 : index
    %c0_202 = arith.constant 0 : index
    %135 = vector.load %arg8[%c0_201, %c0_202] : memref<256x8xf32, #tpu.memory_space<vmem>>, vector<256x8xf32>
    tpu.vector_store %arg8[%c0_201, %c0_202], %134 {strides = array<i32>} : memref<256x8xf32, #tpu.memory_space<vmem>>, vector<256x8xf32>,
    %c1_203 = arith.constant 1 : index
    %c1_204 = arith.constant 1 : index
    %c0_205 = arith.constant 0 : index
    %136 = vector.load %arg7[%c1_203, %c1_204, %c0_205] : memref<18x18x8xf32, #tpu.memory_space<vmem>>, vector<16x16x8xf32>
    %137 = vector.shape_cast %136 : vector<16x16x8xf32> to vector<256x8xf32>
    %c0_206 = arith.constant 0 : index
    %c0_207 = arith.constant 0 : index
    %138 = vector.load %arg8[%c0_206, %c0_207] : memref<256x8xf32, #tpu.memory_space<vmem>>, vector<256x8xf32>
    %c1_208 = arith.constant 1 : index
    %c1_209 = arith.constant 1 : index
    %c0_210 = arith.constant 0 : index
    %c0_211 = arith.constant 0 : index
    %139 = vector.load %arg4[%c1_208, %c1_209, %c0_210, %c0_211] : memref<3x3x8x8xf32, #tpu.memory_space<vmem>>, vector<1x1x8x8xf32>
    %140 = vector.shape_cast %139 : vector<1x1x8x8xf32> to vector<8x8xf32>
    %cst_212 = arith.constant dense<0.000000e+00> : vector<256x8xf32>
    %141 = tpu.matmul %137, %140, %cst_212 {dimension_numbers = #tpu.dot_dimension_numbers<[1], [0], [0], [1], [0, 0, 1, 1], [], []>} : vector<256x8xf32>, vector<8x8xf32>, vector<256x8xf32> -> vector<256x8xf32>
    %142 = arith.addf %138, %141 : vector<256x8xf32>
    %c0_213 = arith.constant 0 : index
    %c0_214 = arith.constant 0 : index
    %143 = vector.load %arg8[%c0_213, %c0_214] : memref<256x8xf32, #tpu.memory_space<vmem>>, vector<256x8xf32>
    tpu.vector_store %arg8[%c0_213, %c0_214], %142 {strides = array<i32>} : memref<256x8xf32, #tpu.memory_space<vmem>>, vector<256x8xf32>,
    %c1_215 = arith.constant 1 : index
    %c2_216 = arith.constant 2 : index
    %c0_217 = arith.constant 0 : index
    %144 = vector.load %arg7[%c1_215, %c2_216, %c0_217] : memref<18x18x8xf32, #tpu.memory_space<vmem>>, vector<16x16x8xf32>
    %145 = vector.shape_cast %144 : vector<16x16x8xf32> to vector<256x8xf32>
    %c0_218 = arith.constant 0 : index
    %c0_219 = arith.constant 0 : index
    %146 = vector.load %arg8[%c0_218, %c0_219] : memref<256x8xf32, #tpu.memory_space<vmem>>, vector<256x8xf32>
    %c1_220 = arith.constant 1 : index
    %c2_221 = arith.constant 2 : index
    %c0_222 = arith.constant 0 : index
    %c0_223 = arith.constant 0 : index
    %147 = vector.load %arg4[%c1_220, %c2_221, %c0_222, %c0_223] : memref<3x3x8x8xf32, #tpu.memory_space<vmem>>, vector<1x1x8x8xf32>
    %148 = vector.shape_cast %147 : vector<1x1x8x8xf32> to vector<8x8xf32>
    %cst_224 = arith.constant dense<0.000000e+00> : vector<256x8xf32>
    %149 = tpu.matmul %145, %148, %cst_224 {dimension_numbers = #tpu.dot_dimension_numbers<[1], [0], [0], [1], [0, 0, 1, 1], [], []>} : vector<256x8xf32>, vector<8x8xf32>, vector<256x8xf32> -> vector<256x8xf32>
    %150 = arith.addf %146, %149 : vector<256x8xf32>
    %c0_225 = arith.constant 0 : index
    %c0_226 = arith.constant 0 : index
    %151 = vector.load %arg8[%c0_225, %c0_226] : memref<256x8xf32, #tpu.memory_space<vmem>>, vector<256x8xf32>
    tpu.vector_store %arg8[%c0_225, %c0_226], %150 {strides = array<i32>} : memref<256x8xf32, #tpu.memory_space<vmem>>, vector<256x8xf32>,
    %c2_227 = arith.constant 2 : index
    %c0_228 = arith.constant 0 : index
    %c0_229 = arith.constant 0 : index
    %152 = vector.load %arg7[%c2_227, %c0_228, %c0_229] : memref<18x18x8xf32, #tpu.memory_space<vmem>>, vector<16x16x8xf32>
    %153 = vector.shape_cast %152 : vector<16x16x8xf32> to vector<256x8xf32>
    %c0_230 = arith.constant 0 : index
    %c0_231 = arith.constant 0 : index
    %154 = vector.load %arg8[%c0_230, %c0_231] : memref<256x8xf32, #tpu.memory_space<vmem>>, vector<256x8xf32>
    %c2_232 = arith.constant 2 : index
    %c0_233 = arith.constant 0 : index
    %c0_234 = arith.constant 0 : index
    %c0_235 = arith.constant 0 : index
    %155 = vector.load %arg4[%c2_232, %c0_233, %c0_234, %c0_235] : memref<3x3x8x8xf32, #tpu.memory_space<vmem>>, vector<1x1x8x8xf32>
    %156 = vector.shape_cast %155 : vector<1x1x8x8xf32> to vector<8x8xf32>
    %cst_236 = arith.constant dense<0.000000e+00> : vector<256x8xf32>
    %157 = tpu.matmul %153, %156, %cst_236 {dimension_numbers = #tpu.dot_dimension_numbers<[1], [0], [0], [1], [0, 0, 1, 1], [], []>} : vector<256x8xf32>, vector<8x8xf32>, vector<256x8xf32> -> vector<256x8xf32>
    %158 = arith.addf %154, %157 : vector<256x8xf32>
    %c0_237 = arith.constant 0 : index
    %c0_238 = arith.constant 0 : index
    %159 = vector.load %arg8[%c0_237, %c0_238] : memref<256x8xf32, #tpu.memory_space<vmem>>, vector<256x8xf32>
    tpu.vector_store %arg8[%c0_237, %c0_238], %158 {strides = array<i32>} : memref<256x8xf32, #tpu.memory_space<vmem>>, vector<256x8xf32>,
    %c2_239 = arith.constant 2 : index
    %c1_240 = arith.constant 1 : index
    %c0_241 = arith.constant 0 : index
    %160 = vector.load %arg7[%c2_239, %c1_240, %c0_241] : memref<18x18x8xf32, #tpu.memory_space<vmem>>, vector<16x16x8xf32>
    %161 = vector.shape_cast %160 : vector<16x16x8xf32> to vector<256x8xf32>
    %c0_242 = arith.constant 0 : index
    %c0_243 = arith.constant 0 : index
    %162 = vector.load %arg8[%c0_242, %c0_243] : memref<256x8xf32, #tpu.memory_space<vmem>>, vector<256x8xf32>
    %c2_244 = arith.constant 2 : index
    %c1_245 = arith.constant 1 : index
    %c0_246 = arith.constant 0 : index
    %c0_247 = arith.constant 0 : index
    %163 = vector.load %arg4[%c2_244, %c1_245, %c0_246, %c0_247] : memref<3x3x8x8xf32, #tpu.memory_space<vmem>>, vector<1x1x8x8xf32>
    %164 = vector.shape_cast %163 : vector<1x1x8x8xf32> to vector<8x8xf32>
    %cst_248 = arith.constant dense<0.000000e+00> : vector<256x8xf32>
    %165 = tpu.matmul %161, %164, %cst_248 {dimension_numbers = #tpu.dot_dimension_numbers<[1], [0], [0], [1], [0, 0, 1, 1], [], []>} : vector<256x8xf32>, vector<8x8xf32>, vector<256x8xf32> -> vector<256x8xf32>
    %166 = arith.addf %162, %165 : vector<256x8xf32>
    %c0_249 = arith.constant 0 : index
    %c0_250 = arith.constant 0 : index
    %167 = vector.load %arg8[%c0_249, %c0_250] : memref<256x8xf32, #tpu.memory_space<vmem>>, vector<256x8xf32>
    tpu.vector_store %arg8[%c0_249, %c0_250], %166 {strides = array<i32>} : memref<256x8xf32, #tpu.memory_space<vmem>>, vector<256x8xf32>,
    %c2_251 = arith.constant 2 : index
    %c2_252 = arith.constant 2 : index
    %c0_253 = arith.constant 0 : index
    %168 = vector.load %arg7[%c2_251, %c2_252, %c0_253] : memref<18x18x8xf32, #tpu.memory_space<vmem>>, vector<16x16x8xf32>
    %169 = vector.shape_cast %168 : vector<16x16x8xf32> to vector<256x8xf32>
    %c0_254 = arith.constant 0 : index
    %c0_255 = arith.constant 0 : index
    %170 = vector.load %arg8[%c0_254, %c0_255] : memref<256x8xf32, #tpu.memory_space<vmem>>, vector<256x8xf32>
    %c2_256 = arith.constant 2 : index
    %c2_257 = arith.constant 2 : index
    %c0_258 = arith.constant 0 : index
    %c0_259 = arith.constant 0 : index
    %171 = vector.load %arg4[%c2_256, %c2_257, %c0_258, %c0_259] : memref<3x3x8x8xf32, #tpu.memory_space<vmem>>, vector<1x1x8x8xf32>
    %172 = vector.shape_cast %171 : vector<1x1x8x8xf32> to vector<8x8xf32>
    %cst_260 = arith.constant dense<0.000000e+00> : vector<256x8xf32>
    %173 = tpu.matmul %169, %172, %cst_260 {dimension_numbers = #tpu.dot_dimension_numbers<[1], [0], [0], [1], [0, 0, 1, 1], [], []>} : vector<256x8xf32>, vector<8x8xf32>, vector<256x8xf32> -> vector<256x8xf32>
    %174 = arith.addf %170, %173 : vector<256x8xf32>
    %c0_261 = arith.constant 0 : index
    %c0_262 = arith.constant 0 : index
    %175 = vector.load %arg8[%c0_261, %c0_262] : memref<256x8xf32, #tpu.memory_space<vmem>>, vector<256x8xf32>
    tpu.vector_store %arg8[%c0_261, %c0_262], %174 {strides = array<i32>} : memref<256x8xf32, #tpu.memory_space<vmem>>, vector<256x8xf32>,
    %c0_263 = arith.constant 0 : index
    %c0_264 = arith.constant 0 : index
    %176 = vector.load %arg8[%c0_263, %c0_264] : memref<256x8xf32, #tpu.memory_space<vmem>>, vector<256x8xf32>
    %177 = vector.shape_cast %176 : vector<256x8xf32> to vector<16x16x8xf32>
    %c0_265 = arith.constant 0 : index
    %c0_266 = arith.constant 0 : index
    %c0_267 = arith.constant 0 : index
    %c0_268 = arith.constant 0 : index
    %178 = vector.load %arg5[%c0_265, %c0_266, %c0_267, %c0_268] : memref<1x16x16x8xf32, #tpu.memory_space<vmem>>, vector<1x16x16x8xf32>
    %179 = vector.shape_cast %178 : vector<1x16x16x8xf32> to vector<16x16x8xf32>
    %180 = vector.shape_cast %177 : vector<16x16x8xf32> to vector<1x16x16x8xf32>
    tpu.vector_store %arg5[%c0_265, %c0_266, %c0_267, %c0_268], %180 {strides = array<i32>} : memref<1x16x16x8xf32, #tpu.memory_space<vmem>>, vector<1x16x16x8xf32>,
    return
  }
  func.func @transform_0(%arg0: i32) -> (i32, i32, i32, i32) {
    %c0_i32 = arith.constant 0 : i32
    %c0_i32_0 = arith.constant 0 : i32
    %c0_i32_1 = arith.constant 0 : i32
    %c0_i32_2 = arith.constant 0 : i32
    return %arg0, %c0_i32, %c0_i32_0, %c0_i32_1 : i32, i32, i32, i32
  }
  func.func @transform_1(%arg0: i32) -> (i32, i32, i32, i32) {
    %c0_i32 = arith.constant 0 : i32
    %c0_i32_0 = arith.constant 0 : i32
    %c0_i32_1 = arith.constant 0 : i32
    %c0_i32_2 = arith.constant 0 : i32
    %c0_i32_3 = arith.constant 0 : i32
    return %c0_i32, %c0_i32_0, %c0_i32_1, %c0_i32_2 : i32, i32, i32, i32
  }
  func.func @transform_2(%arg0: i32) -> (i32, i32) {
    %c0_i32 = arith.constant 0 : i32
    %c0_i32_0 = arith.constant 0 : i32
    %c0_i32_1 = arith.constant 0 : i32
    return %c0_i32, %c0_i32_0 : i32, i32
  }
  func.func @transform_3(%arg0: i32) -> (i32, i32, i32, i32) {
    %c0_i32 = arith.constant 0 : i32
    %c0_i32_0 = arith.constant 0 : i32
    %c0_i32_1 = arith.constant 0 : i32
    %c0_i32_2 = arith.constant 0 : i32
    %c0_i32_3 = arith.constant 0 : i32
    return %c0_i32, %c0_i32_0, %c0_i32_1, %c0_i32_2 : i32, i32, i32, i32
  }
  func.func @transform_4(%arg0: i32) -> (i32, i32, i32, i32) {
    %c0_i32 = arith.constant 0 : i32
    %c0_i32_0 = arith.constant 0 : i32
    %c0_i32_1 = arith.constant 0 : i32
    %c0_i32_2 = arith.constant 0 : i32
    return %arg0, %c0_i32, %c0_i32_0, %c0_i32_1 : i32, i32, i32, i32
  }
}

</mosaic_0001>

<llo_original>
// kernel: tpu_custom_call.1
$region0: #{tpu_custom_call.1}
  #allocation0 [shape = 'u32[]', space=smem, size = 0x4, offset = 0x4, fixed_abs, tag = 'smem constant byte address 0x4 - core index']
  #allocation1 [shape = 'u32[144,128]{1,0:T(1,128)}', space=vmem, size = 0x12000, scoped, tag = 'internal scratch']
  #allocation2 [shape = 'f32[18,18,8]{2,1,0:T(8,128)}', space=vmem, size = 0x36000, scoped, tag = 'scratch operand']
  #allocation3 [shape = 'f32[18,18,8]{2,1,0:T(8,128)}', space=vmem, size = 0x36000, scoped, tag = 'scratch operand']
  #allocation4 [shape = 'f32[256,8]{1,0:T(8,128)}', space=vmem, size = 0x20000, scoped, tag = 'scratch operand']
  %s0 = inlined_call_operand.vmem [shape: f32[2,16,16,8], index: 0, kind: input, shape index: {}]
  %s1 = inlined_call_operand.vmem [shape: f32[3,3,8,8], index: 1, kind: input, shape index: {}]
  %s2 = inlined_call_operand.vmem [shape: f32[1,8], index: 2, kind: input, shape index: {}]
  %s3 = inlined_call_operand.vmem [shape: f32[3,3,8,8], index: 3, kind: input, shape index: {}]
  %s4 = inlined_call_operand.vmem [shape: f32[2,16,16,8], index: 4, kind: output, shape index: {}]
  %s5 = sld [smem:[#allocation0]]
  $region49: #{tpu_custom_call.1} parent=0
    _
  %s7 = ssub.s32 1, %s5
  %s8 = scalar_select 0, %s7, %s5
  loop: start=0, step=1, limit=4
  $region2: #{tpu_custom_call.1} parent=0 // loop_pre_header
    _
  $region3: #{tpu_custom_call.1} parent=0 // loop_header
    %s10 = sphi 0, %s14
    %p11 = scmp.ge.s32.totalorder %s10, 4
    %s20 = sphi 0, %s22
    %s23 = sphi 0, %s20
    %s24 = sphi 0, %s23
    %s40 = sphi 0, %s24
    %s44 = sphi 0, %s44
    %s46 = sphi 0, %s44
    %s47 = sphi 0, %s46
    %s61 = sphi 0, %s47
    %s65 = sphi 0, %s65
    %s67 = sphi 0, %s65
    %s68 = sphi 0, %s67
    %s82 = sphi 0, %s68
    %s86 = sphi 0, %s86
    %s88 = sphi 0, %s86
    %s89 = sphi 0, %s88
    %s103 = sphi 0, %s89
    %s109 = sphi 0, %s111
    %s112 = sphi 0, %s109
    %s113 = sphi 0, %s112
    %s129 = sphi 0, %s113
  $region4: #{tpu_custom_call.1} parent=0 // loop_header_branch
    %13 = sbr.rel (%p11) target = $region8
  $region5: #{tpu_custom_call.1} parent=0 // loop_body
    %s15 = ssub.s32 %s10, 1
    %s16 = ssub.s32 %s10, 2
    %s17 = sadd.s32 %s10, 1
    %s18 = ssub.s32 %s10, %s17
    %p19 = scmp.eq.s32.totalorder %s18, 0
    %s21 = sadd.s32 %s20, 1
    %s22 = scalar_select %p19, %s20, %s21
    %p25 = pneg %p19
    %p26 = scmp.eq.s32.totalorder %s10, 1
    %p27 = por %p25, %p26
    %p28 = scmp.ne.s32.totalorder %s20, %s23
    %p29 = scmp.eq.s32.totalorder %s10, 0
    %p30 = por %p28, %p29
    %p31 = scmp.ne.s32.totalorder %s20, %s23
    %p32 = scmp.eq.s32.totalorder %s15, 1
    %p33 = por %p31, %p32
    %p34 = scmp.ne.s32.totalorder %s23, %s24
    %p35 = scmp.eq.s32.totalorder %s15, 0
    %p36 = por %p34, %p35
    %p37 = scmp.ne.s32.totalorder %s23, %s24
    %p38 = scmp.eq.s32.totalorder %s16, 1
    %p39 = por %p37, %p38
    %p41 = scmp.ne.s32.totalorder %s24, %s40
    %p42 = scmp.eq.s32.totalorder %s16, 0
    %p43 = por %p41, %p42
    %s45 = sadd.s32 %s44, 1
    %p48 = scmp.eq.s32.totalorder %s10, 1
    %p49 = scmp.ne.s32.totalorder %s44, %s46
    %p50 = scmp.eq.s32.totalorder %s10, 0
    %p51 = por %p49, %p50
    %p52 = scmp.ne.s32.totalorder %s44, %s46
    %p53 = scmp.eq.s32.totalorder %s15, 1
    %p54 = por %p52, %p53
    %p55 = scmp.ne.s32.totalorder %s46, %s47
    %p56 = scmp.eq.s32.totalorder %s15, 0
    %p57 = por %p55, %p56
    %p58 = scmp.ne.s32.totalorder %s46, %s47
    %p59 = scmp.eq.s32.totalorder %s16, 1
    %p60 = por %p58, %p59
    %p62 = scmp.ne.s32.totalorder %s47, %s61
    %p63 = scmp.eq.s32.totalorder %s16, 0
    %p64 = por %p62, %p63
    %s66 = sadd.s32 %s65, 1
    %p69 = scmp.eq.s32.totalorder %s10, 1
    %p70 = scmp.ne.s32.totalorder %s65, %s67
    %p71 = scmp.eq.s32.totalorder %s10, 0
    %p72 = por %p70, %p71
    %p73 = scmp.ne.s32.totalorder %s65, %s67
    %p74 = scmp.eq.s32.totalorder %s15, 1
    %p75 = por %p73, %p74
    %p76 = scmp.ne.s32.totalorder %s67, %s68
    %p77 = scmp.eq.s32.totalorder %s15, 0
    %p78 = por %p76, %p77
    %p79 = scmp.ne.s32.totalorder %s67, %s68
    %p80 = scmp.eq.s32.totalorder %s16, 1
    %p81 = por %p79, %p80
    %p83 = scmp.ne.s32.totalorder %s68, %s82
    %p84 = scmp.eq.s32.totalorder %s16, 0
    %p85 = por %p83, %p84
    %s87 = sadd.s32 %s86, 1
    %p90 = scmp.eq.s32.totalorder %s10, 1
    %p91 = scmp.ne.s32.totalorder %s86, %s88
    %p92 = scmp.eq.s32.totalorder %s10, 0
    %p93 = por %p91, %p92
    %p94 = scmp.ne.s32.totalorder %s86, %s88
    %p95 = scmp.eq.s32.totalorder %s15, 1
    %p96 = por %p94, %p95
    %p97 = scmp.ne.s32.totalorder %s88, %s89
    %p98 = scmp.eq.s32.totalorder %s15, 0
    %p99 = por %p97, %p98
    %p100 = scmp.ne.s32.totalorder %s88, %s89
    %p101 = scmp.eq.s32.totalorder %s16, 1
    %p102 = por %p100, %p101
    %p104 = scmp.ne.s32.totalorder %s89, %s103
    %p105 = scmp.eq.s32.totalorder %s16, 0
    %p106 = por %p104, %p105
    %s107 = ssub.s32 %s10, %s17
    %p108 = scmp.eq.s32.totalorder %s107, 0
    %s110 = sadd.s32 %s109, 1
    %s111 = scalar_select %p108, %s109, %s110
    %p114 = pneg %p108
    %p115 = scmp.eq.s32.totalorder %s10, 1
    %p116 = por %p114, %p115
    %p117 = scmp.ne.s32.totalorder %s109, %s112
    %p118 = scmp.eq.s32.totalorder %s10, 0
    %p119 = por %p117, %p118
    %p120 = scmp.ne.s32.totalorder %s109, %s112
    %p121 = scmp.eq.s32.totalorder %s15, 1
    %p122 = por %p120, %p121
    %p123 = scmp.ne.s32.totalorder %s112, %s113
    %p124 = scmp.eq.s32.totalorder %s15, 0
    %p125 = por %p123, %p124
    %p126 = scmp.ne.s32.totalorder %s112, %s113
    %p127 = scmp.eq.s32.totalorder %s16, 1
    %p128 = por %p126, %p127
    %p130 = scmp.ne.s32.totalorder %s113, %s129
    %p131 = scmp.eq.s32.totalorder %s16, 0
    %p132 = por %p130, %p131
    %p133 = scmp.le.s32.totalorder 1, %s10
    %p134 = scmp.lt.s32.totalorder %s10, 3
    %p135 = pnand %p133, %p134
    %p136 = pneg %p135
    // Predicated region
    $region9: #{tpu_custom_call.1} parent=5 // pred_check
      _
    $region10: #{tpu_custom_call.1} parent=5 // pred_check_branch
      %138 = sbr.rel (%p135) target = $region12
    $region11: #{tpu_custom_call.1} parent=5 // pred_region
      %s139 = ssub.s32 %s10, 1
      // Predicated region
      $region13: #{tpu_custom_call.1} parent=11 // pred_check
        %p140 = pneg %p57
      $region14: #{tpu_custom_call.1} parent=11 // pred_check_branch
        %142 = sbr.rel (%p140) target = $region16
      $region15: #{tpu_custom_call.1} parent=11 // pred_region
        _
      $region16: #{tpu_custom_call.1} parent=11 // pred_fallthru
        _
      // Predicated region
      $region17: #{tpu_custom_call.1} parent=11 // pred_check
        %p143 = pneg %p78
      $region18: #{tpu_custom_call.1} parent=11 // pred_check_branch
        %145 = sbr.rel (%p143) target = $region20
      $region19: #{tpu_custom_call.1} parent=11 // pred_region
        _
      $region20: #{tpu_custom_call.1} parent=11 // pred_fallthru
        _
      // Predicated region
      $region21: #{tpu_custom_call.1} parent=11 // pred_check
        %p146 = pneg %p99
      $region22: #{tpu_custom_call.1} parent=11 // pred_check_branch
        %148 = sbr.rel (%p146) target = $region24
      $region23: #{tpu_custom_call.1} parent=11 // pred_region
        _
      $region24: #{tpu_custom_call.1} parent=11 // pred_fallthru
        _
    $region12: #{tpu_custom_call.1} parent=5 // pred_fallthru
      _
    %p149 = scmp.lt.s32.totalorder %s10, 2
    // Predicated region
    $region25: #{tpu_custom_call.1} parent=5 // pred_check
      %p150 = pneg %p149
    $region26: #{tpu_custom_call.1} parent=5 // pred_check_branch
      %152 = sbr.rel (%p150) target = $region28
    $region27: #{tpu_custom_call.1} parent=5 // pred_region
      // Predicated region
      $region29: #{tpu_custom_call.1} parent=27 // pred_check
        %p153 = pneg %p30
      $region30: #{tpu_custom_call.1} parent=27 // pred_check_branch
        %155 = sbr.rel (%p153) target = $region32
      $region31: #{tpu_custom_call.1} parent=27 // pred_region
        %p156 = scmp.lt.s32.totalorder %s10, 1
        %s157 = scalar_select %p156, %s10, 1
        %s158 = smul.addr %s157, 32
        %s159 = smul.addr %s158, 8
        %s160 = scalar_lea.vmem %s0, %s159
      $region32: #{tpu_custom_call.1} parent=27 // pred_fallthru
        _
    $region28: #{tpu_custom_call.1} parent=5 // pred_fallthru
      _
    %p161 = scmp.le.s32.totalorder 1, %s10
    %p162 = scmp.lt.s32.totalorder %s10, 3
    %p163 = pnand %p161, %p162
    %p164 = pneg %p163
    // Predicated region
    $region33: #{tpu_custom_call.1} parent=5 // pred_check
      _
    $region34: #{tpu_custom_call.1} parent=5 // pred_check_branch
      %166 = sbr.rel (%p163) target = $region36
    $region35: #{tpu_custom_call.1} parent=5 // pred_region
      %s167 = ssub.s32 %s10, 1
      %p168 = scmp.lt.s32.totalorder %s15, 1
      %s169 = scalar_select %p168, %s15, 1
      %s170 = smul.addr %s169, 32
      %s171 = smul.addr %s170, 8
      %s172 = scalar_lea.vmem %s0, %s171
      %p173 = pneg %p36
      %p174 = pneg %p33
      %p175 = pneg %p57
      %p176 = pneg %p54
      %p177 = pneg %p78
      %p178 = pneg %p75
      %p179 = pneg %p99
      %p180 = pneg %p96
      %p181 = pneg %p125
      %p182 = pneg %p122
      %p183 = scmp.lt.s32.totalorder %s15, 1
      %s184 = scalar_select %p183, %s15, 1
      %s185 = smul.addr %s184, 32
      %s186 = smul.addr %s185, 8
      %s187 = scalar_lea.vmem %s4, %s186
      %p188 = scmp.lt.s32.totalorder %s15, 1
      %s189 = scalar_select %p188, %s15, 1
      %s190 = smul.addr %s189, 32
      %s191 = smul.addr %s190, 8
      %s192 = scalar_lea.vmem %s0, %s191
      %p193 = scmp.lt.s32.totalorder %s15, 1
      %s194 = scalar_select %p193, %s15, 1
      %s195 = smul.addr %s194, 32
      %s196 = smul.addr %s195, 8
      %s197 = scalar_lea.vmem %s4, %s196
      %v198 = vld [vmem:[%s192] sm:$0xff]
      %v199 = vld [vmem:[%s192 + $0x8] sm:$0xff]
      %v200 = vld [vmem:[%s192 + $0x10] sm:$0xff]
      %v201 = vld [vmem:[%s192 + $0x18] sm:$0xff]
      %v202 = vld [vmem:[%s192 + $0x20] sm:$0xff]
      %v203 = vld [vmem:[%s192 + $0x28] sm:$0xff]
      %v204 = vld [vmem:[%s192 + $0x30] sm:$0xff]
      %v205 = vld [vmem:[%s192 + $0x38] sm:$0xff]
      %v206 = vld [vmem:[%s192 + $0x40] sm:$0xff]
      %v207 = vld [vmem:[%s192 + $0x48] sm:$0xff]
      %v208 = vld [vmem:[%s192 + $0x50] sm:$0xff]
      %v209 = vld [vmem:[%s192 + $0x58] sm:$0xff]
      %v210 = vld [vmem:[%s192 + $0x60] sm:$0xff]
      %v211 = vld [vmem:[%s192 + $0x68] sm:$0xff]
      %v212 = vld [vmem:[%s192 + $0x70] sm:$0xff]
      %v213 = vld [vmem:[%s192 + $0x78] sm:$0xff]
      %v214 = vld [vmem:[%s192 + $0x80] sm:$0xff]
      %v215 = vld [vmem:[%s192 + $0x88] sm:$0xff]
      %v216 = vld [vmem:[%s192 + $0x90] sm:$0xff]
      %v217 = vld [vmem:[%s192 + $0x98] sm:$0xff]
      %v218 = vld [vmem:[%s192 + $0xa0] sm:$0xff]
      %v219 = vld [vmem:[%s192 + $0xa8] sm:$0xff]
      %v220 = vld [vmem:[%s192 + $0xb0] sm:$0xff]
      %v221 = vld [vmem:[%s192 + $0xb8] sm:$0xff]
      %v222 = vld [vmem:[%s192 + $0xc0] sm:$0xff]
      %v223 = vld [vmem:[%s192 + $0xc8] sm:$0xff]
      %v224 = vld [vmem:[%s192 + $0xd0] sm:$0xff]
      %v225 = vld [vmem:[%s192 + $0xd8] sm:$0xff]
      %v226 = vld [vmem:[%s192 + $0xe0] sm:$0xff]
      %v227 = vld [vmem:[%s192 + $0xe8] sm:$0xff]
      %v228 = vld [vmem:[%s192 + $0xf0] sm:$0xff]
      %v229 = vld [vmem:[%s192 + $0xf8] sm:$0xff]
      %vm230 = vcmask 64512
      %231 = vst.msk [vmem:[#allocation2] sm:$0xff] %vm230, 0.0
      %232 = vst.msk [vmem:[#allocation2 + $0x8] sm:$0xff] %vm230, 0.0
      %vm233 = vcmask 58368
      %234 = vst.msk [vmem:[#allocation2 + $0x10] sm:$0x3] %vm233, 0.0
      %s235 = scalar_lea.vmem [#allocation2], 408
      %236 = vst.msk [vmem:[%s235] sm:$0xff] %vm230, 0.0
      %237 = vst.msk [vmem:[%s235 + $0x8] sm:$0xff] %vm230, 0.0
      %238 = vst.msk [vmem:[%s235 + $0x10] sm:$0x3] %vm233, 0.0
      %vm239 = vcmask 57344
      %240 = vst.msk [vmem:[#allocation2] sm:$0x1] %vm239, 0.0
      %241 = vst.msk [vmem:[#allocation2 + $0x18] sm:$0x1] %vm239, 0.0
      %242 = vst.msk [vmem:[#allocation2 + $0x30] sm:$0x1] %vm239, 0.0
      %243 = vst.msk [vmem:[#allocation2 + $0x48] sm:$0x1] %vm239, 0.0
      %244 = vst.msk [vmem:[#allocation2 + $0x60] sm:$0x1] %vm239, 0.0
      %245 = vst.msk [vmem:[#allocation2 + $0x78] sm:$0x1] %vm239, 0.0
      %246 = vst.msk [vmem:[#allocation2 + $0x90] sm:$0x1] %vm239, 0.0
      %247 = vst.msk [vmem:[#allocation2 + $0xa8] sm:$0x1] %vm239, 0.0
      %248 = vst.msk [vmem:[#allocation2 + $0xc0] sm:$0x1] %vm239, 0.0
      %249 = vst.msk [vmem:[#allocation2 + $0xd8] sm:$0x1] %vm239, 0.0
      %250 = vst.msk [vmem:[#allocation2 + $0xf0] sm:$0x1] %vm239, 0.0
      %251 = vst.msk [vmem:[#allocation2 + $0x108] sm:$0x1] %vm239, 0.0
      %252 = vst.msk [vmem:[#allocation2 + $0x120] sm:$0x1] %vm239, 0.0
      %253 = vst.msk [vmem:[#allocation2 + $0x138] sm:$0x1] %vm239, 0.0
      %254 = vst.msk [vmem:[#allocation2 + $0x150] sm:$0x1] %vm239, 0.0
      %255 = vst.msk [vmem:[#allocation2 + $0x168] sm:$0x1] %vm239, 0.0
      %256 = vst.msk [vmem:[#allocation2 + $0x180] sm:$0x1] %vm239, 0.0
      %257 = vst.msk [vmem:[#allocation2 + $0x198] sm:$0x1] %vm239, 0.0
      %258 = vst.msk [vmem:[#allocation2 + $0x11] sm:$0x1] %vm239, 0.0
      %259 = vst.msk [vmem:[#allocation2 + $0x29] sm:$0x1] %vm239, 0.0
      %260 = vst.msk [vmem:[#allocation2 + $0x41] sm:$0x1] %vm239, 0.0
      %261 = vst.msk [vmem:[#allocation2 + $0x59] sm:$0x1] %vm239, 0.0
      %262 = vst.msk [vmem:[#allocation2 + $0x71] sm:$0x1] %vm239, 0.0
      %263 = vst.msk [vmem:[#allocation2 + $0x89] sm:$0x1] %vm239, 0.0
      %264 = vst.msk [vmem:[#allocation2 + $0xa1] sm:$0x1] %vm239, 0.0
      %265 = vst.msk [vmem:[#allocation2 + $0xb9] sm:$0x1] %vm239, 0.0
      %266 = vst.msk [vmem:[#allocation2 + $0xd1] sm:$0x1] %vm239, 0.0
      %267 = vst.msk [vmem:[#allocation2 + $0xe9] sm:$0x1] %vm239, 0.0
      %268 = vst.msk [vmem:[#allocation2 + $0x101] sm:$0x1] %vm239, 0.0
      %269 = vst.msk [vmem:[#allocation2 + $0x119] sm:$0x1] %vm239, 0.0
      %270 = vst.msk [vmem:[#allocation2 + $0x131] sm:$0x1] %vm239, 0.0
      %271 = vst.msk [vmem:[#allocation2 + $0x149] sm:$0x1] %vm239, 0.0
      %272 = vst.msk [vmem:[#allocation2 + $0x161] sm:$0x1] %vm239, 0.0
      %273 = vst.msk [vmem:[#allocation2 + $0x179] sm:$0x1] %vm239, 0.0
      %274 = vst.msk [vmem:[#allocation2 + $0x191] sm:$0x1] %vm239, 0.0
      %275 = vst.msk [vmem:[#allocation2 + $0x1a9] sm:$0x1] %vm239, 0.0
      %276 = vst.msk [vmem:[#allocation3] sm:$0xff] %vm230, 0.0
      %277 = vst.msk [vmem:[#allocation3 + $0x8] sm:$0xff] %vm230, 0.0
      %278 = vst.msk [vmem:[#allocation3 + $0x10] sm:$0x3] %vm233, 0.0
      %s279 = scalar_lea.vmem [#allocation3], 408
      %280 = vst.msk [vmem:[%s279] sm:$0xff] %vm230, 0.0
      %281 = vst.msk [vmem:[%s279 + $0x8] sm:$0xff] %vm230, 0.0
      %282 = vst.msk [vmem:[%s279 + $0x10] sm:$0x3] %vm233, 0.0
      %283 = vst.msk [vmem:[#allocation3] sm:$0x1] %vm239, 0.0
      %284 = vst.msk [vmem:[#allocation3 + $0x18] sm:$0x1] %vm239, 0.0
      %285 = vst.msk [vmem:[#allocation3 + $0x30] sm:$0x1] %vm239, 0.0
      %286 = vst.msk [vmem:[#allocation3 + $0x48] sm:$0x1] %vm239, 0.0
      %287 = vst.msk [vmem:[#allocation3 + $0x60] sm:$0x1] %vm239, 0.0
      %288 = vst.msk [vmem:[#allocation3 + $0x78] sm:$0x1] %vm239, 0.0
      %289 = vst.msk [vmem:[#allocation3 + $0x90] sm:$0x1] %vm239, 0.0
      %290 = vst.msk [vmem:[#allocation3 + $0xa8] sm:$0x1] %vm239, 0.0
      %291 = vst.msk [vmem:[#allocation3 + $0xc0] sm:$0x1] %vm239, 0.0
      %292 = vst.msk [vmem:[#allocation3 + $0xd8] sm:$0x1] %vm239, 0.0
      %293 = vst.msk [vmem:[#allocation3 + $0xf0] sm:$0x1] %vm239, 0.0
      %294 = vst.msk [vmem:[#allocation3 + $0x108] sm:$0x1] %vm239, 0.0
      %295 = vst.msk [vmem:[#allocation3 + $0x120] sm:$0x1] %vm239, 0.0
      %296 = vst.msk [vmem:[#allocation3 + $0x138] sm:$0x1] %vm239, 0.0
      %297 = vst.msk [vmem:[#allocation3 + $0x150] sm:$0x1] %vm239, 0.0
      %298 = vst.msk [vmem:[#allocation3 + $0x168] sm:$0x1] %vm239, 0.0
      %299 = vst.msk [vmem:[#allocation3 + $0x180] sm:$0x1] %vm239, 0.0
      %300 = vst.msk [vmem:[#allocation3 + $0x198] sm:$0x1] %vm239, 0.0
      %301 = vst.msk [vmem:[#allocation3 + $0x11] sm:$0x1] %vm239, 0.0
      %302 = vst.msk [vmem:[#allocation3 + $0x29] sm:$0x1] %vm239, 0.0
      %303 = vst.msk [vmem:[#allocation3 + $0x41] sm:$0x1] %vm239, 0.0
      %304 = vst.msk [vmem:[#allocation3 + $0x59] sm:$0x1] %vm239, 0.0
      %305 = vst.msk [vmem:[#allocation3 + $0x71] sm:$0x1] %vm239, 0.0
      %306 = vst.msk [vmem:[#allocation3 + $0x89] sm:$0x1] %vm239, 0.0
      %307 = vst.msk [vmem:[#allocation3 + $0xa1] sm:$0x1] %vm239, 0.0
      %308 = vst.msk [vmem:[#allocation3 + $0xb9] sm:$0x1] %vm239, 0.0
      %309 = vst.msk [vmem:[#allocation3 + $0xd1] sm:$0x1] %vm239, 0.0
      %310 = vst.msk [vmem:[#allocation3 + $0xe9] sm:$0x1] %vm239, 0.0
      %311 = vst.msk [vmem:[#allocation3 + $0x101] sm:$0x1] %vm239, 0.0
      %312 = vst.msk [vmem:[#allocation3 + $0x119] sm:$0x1] %vm239, 0.0
      %313 = vst.msk [vmem:[#allocation3 + $0x131] sm:$0x1] %vm239, 0.0
      %314 = vst.msk [vmem:[#allocation3 + $0x149] sm:$0x1] %vm239, 0.0
      %315 = vst.msk [vmem:[#allocation3 + $0x161] sm:$0x1] %vm239, 0.0
      %316 = vst.msk [vmem:[#allocation3 + $0x179] sm:$0x1] %vm239, 0.0
      %317 = vst.msk [vmem:[#allocation3 + $0x191] sm:$0x1] %vm239, 0.0
      %318 = vst.msk [vmem:[#allocation3 + $0x1a9] sm:$0x1] %vm239, 0.0
      %v319 = vmax.f32 %v198, 0.0
      %v320 = vmax.f32 %v199, 0.0
      %v321 = vmax.f32 %v200, 0.0
      %v322 = vmax.f32 %v201, 0.0
      %v323 = vmax.f32 %v202, 0.0
      %v324 = vmax.f32 %v203, 0.0
      %v325 = vmax.f32 %v204, 0.0
      %v326 = vmax.f32 %v205, 0.0
      %v327 = vmax.f32 %v206, 0.0
      %v328 = vmax.f32 %v207, 0.0
      %v329 = vmax.f32 %v208, 0.0
      %v330 = vmax.f32 %v209, 0.0
      %v331 = vmax.f32 %v210, 0.0
      %v332 = vmax.f32 %v211, 0.0
      %v333 = vmax.f32 %v212, 0.0
      %v334 = vmax.f32 %v213, 0.0
      %v335 = vmax.f32 %v214, 0.0
      %v336 = vmax.f32 %v215, 0.0
      %v337 = vmax.f32 %v216, 0.0
      %v338 = vmax.f32 %v217, 0.0
      %v339 = vmax.f32 %v218, 0.0
      %v340 = vmax.f32 %v219, 0.0
      %v341 = vmax.f32 %v220, 0.0
      %v342 = vmax.f32 %v221, 0.0
      %v343 = vmax.f32 %v222, 0.0
      %v344 = vmax.f32 %v223, 0.0
      %v345 = vmax.f32 %v224, 0.0
      %v346 = vmax.f32 %v225, 0.0
      %v347 = vmax.f32 %v226, 0.0
      %v348 = vmax.f32 %v227, 0.0
      %v349 = vmax.f32 %v228, 0.0
      %v350 = vmax.f32 %v229, 0.0
      %s351 = scalar_lea.vmem [#allocation2], 24
      %352 = vst.msk [vmem:[%s351 + $0x1] sm:$0xff] %vm230, %v319
      %353 = vst.msk [vmem:[%s351 + $0x9] sm:$0xff] %vm230, %v320
      %354 = vst.msk [vmem:[%s351 + $0x19] sm:$0xff] %vm230, %v321
      %355 = vst.msk [vmem:[%s351 + $0x21] sm:$0xff] %vm230, %v322
      %356 = vst.msk [vmem:[%s351 + $0x31] sm:$0xff] %vm230, %v323
      %357 = vst.msk [vmem:[%s351 + $0x39] sm:$0xff] %vm230, %v324
      %358 = vst.msk [vmem:[%s351 + $0x49] sm:$0xff] %vm230, %v325
      %359 = vst.msk [vmem:[%s351 + $0x51] sm:$0xff] %vm230, %v326
      %360 = vst.msk [vmem:[%s351 + $0x61] sm:$0xff] %vm230, %v327
      %361 = vst.msk [vmem:[%s351 + $0x69] sm:$0xff] %vm230, %v328
      %362 = vst.msk [vmem:[%s351 + $0x79] sm:$0xff] %vm230, %v329
      %363 = vst.msk [vmem:[%s351 + $0x81] sm:$0xff] %vm230, %v330
      %364 = vst.msk [vmem:[%s351 + $0x91] sm:$0xff] %vm230, %v331
      %365 = vst.msk [vmem:[%s351 + $0x99] sm:$0xff] %vm230, %v332
      %366 = vst.msk [vmem:[%s351 + $0xa9] sm:$0xff] %vm230, %v333
      %367 = vst.msk [vmem:[%s351 + $0xb1] sm:$0xff] %vm230, %v334
      %368 = vst.msk [vmem:[%s351 + $0xc1] sm:$0xff] %vm230, %v335
      %369 = vst.msk [vmem:[%s351 + $0xc9] sm:$0xff] %vm230, %v336
      %370 = vst.msk [vmem:[%s351 + $0xd9] sm:$0xff] %vm230, %v337
      %371 = vst.msk [vmem:[%s351 + $0xe1] sm:$0xff] %vm230, %v338
      %372 = vst.msk [vmem:[%s351 + $0xf1] sm:$0xff] %vm230, %v339
      %373 = vst.msk [vmem:[%s351 + $0xf9] sm:$0xff] %vm230, %v340
      %374 = vst.msk [vmem:[%s351 + $0x109] sm:$0xff] %vm230, %v341
      %375 = vst.msk [vmem:[%s351 + $0x111] sm:$0xff] %vm230, %v342
      %376 = vst.msk [vmem:[%s351 + $0x121] sm:$0xff] %vm230, %v343
      %377 = vst.msk [vmem:[%s351 + $0x129] sm:$0xff] %vm230, %v344
      %378 = vst.msk [vmem:[%s351 + $0x139] sm:$0xff] %vm230, %v345
      %379 = vst.msk [vmem:[%s351 + $0x141] sm:$0xff] %vm230, %v346
      %380 = vst.msk [vmem:[%s351 + $0x151] sm:$0xff] %vm230, %v347
      %381 = vst.msk [vmem:[%s351 + $0x159] sm:$0xff] %vm230, %v348
      %382 = vst.msk [vmem:[%s351 + $0x169] sm:$0xff] %vm230, %v349
      %383 = vst.msk [vmem:[%s351 + $0x171] sm:$0xff] %vm230, %v350
      %v384 = vld [vmem:[%s2] sm:$0x1]
      %v386 = vlaneseq
      %v387 = vshrl.u32 %v386, 7
      %v388 = vsub.s32 0, %v387
      %v389 = vrot.slane %v384, %v388
      %391 = vst.msk [vmem:[#allocation4] sm:$0xff] %vm230, %v389
      %392 = vst.msk [vmem:[#allocation4 + $0x8] sm:$0xff] %vm230, %v389
      %393 = vst.msk [vmem:[#allocation4 + $0x10] sm:$0xff] %vm230, %v389
      %394 = vst.msk [vmem:[#allocation4 + $0x18] sm:$0xff] %vm230, %v389
      %395 = vst.msk [vmem:[#allocation4 + $0x20] sm:$0xff] %vm230, %v389
      %396 = vst.msk [vmem:[#allocation4 + $0x28] sm:$0xff] %vm230, %v389
      %397 = vst.msk [vmem:[#allocation4 + $0x30] sm:$0xff] %vm230, %v389
      %398 = vst.msk [vmem:[#allocation4 + $0x38] sm:$0xff] %vm230, %v389
      %399 = vst.msk [vmem:[#allocation4 + $0x40] sm:$0xff] %vm230, %v389
      %400 = vst.msk [vmem:[#allocation4 + $0x48] sm:$0xff] %vm230, %v389
      %401 = vst.msk [vmem:[#allocation4 + $0x50] sm:$0xff] %vm230, %v389
      %402 = vst.msk [vmem:[#allocation4 + $0x58] sm:$0xff] %vm230, %v389
      %403 = vst.msk [vmem:[#allocation4 + $0x60] sm:$0xff] %vm230, %v389
      %404 = vst.msk [vmem:[#allocation4 + $0x68] sm:$0xff] %vm230, %v389
      %405 = vst.msk [vmem:[#allocation4 + $0x70] sm:$0xff] %vm230, %v389
      %406 = vst.msk [vmem:[#allocation4 + $0x78] sm:$0xff] %vm230, %v389
      %407 = vst.msk [vmem:[#allocation4 + $0x80] sm:$0xff] %vm230, %v389
      %408 = vst.msk [vmem:[#allocation4 + $0x88] sm:$0xff] %vm230, %v389
      %409 = vst.msk [vmem:[#allocation4 + $0x90] sm:$0xff] %vm230, %v389
      %410 = vst.msk [vmem:[#allocation4 + $0x98] sm:$0xff] %vm230, %v389
      %411 = vst.msk [vmem:[#allocation4 + $0xa0] sm:$0xff] %vm230, %v389
      %412 = vst.msk [vmem:[#allocation4 + $0xa8] sm:$0xff] %vm230, %v389
      %413 = vst.msk [vmem:[#allocation4 + $0xb0] sm:$0xff] %vm230, %v389
      %414 = vst.msk [vmem:[#allocation4 + $0xb8] sm:$0xff] %vm230, %v389
      %415 = vst.msk [vmem:[#allocation4 + $0xc0] sm:$0xff] %vm230, %v389
      %416 = vst.msk [vmem:[#allocation4 + $0xc8] sm:$0xff] %vm230, %v389
      %417 = vst.msk [vmem:[#allocation4 + $0xd0] sm:$0xff] %vm230, %v389
      %418 = vst.msk [vmem:[#allocation4 + $0xd8] sm:$0xff] %vm230, %v389
      %419 = vst.msk [vmem:[#allocation4 + $0xe0] sm:$0xff] %vm230, %v389
      %420 = vst.msk [vmem:[#allocation4 + $0xe8] sm:$0xff] %vm230, %v389
      %421 = vst.msk [vmem:[#allocation4 + $0xf0] sm:$0xff] %vm230, %v389
      %422 = vst.msk [vmem:[#allocation4 + $0xf8] sm:$0xff] %vm230, %v389
      %v423 = vld [vmem:[#allocation2] sm:$0xff]
      %v424 = vld [vmem:[#allocation2 + $0x8] sm:$0xff]
      %v425 = vld [vmem:[#allocation2 + $0x18] sm:$0xff]
      %v426 = vld [vmem:[#allocation2 + $0x20] sm:$0xff]
      %v427 = vld [vmem:[#allocation2 + $0x30] sm:$0xff]
      %v428 = vld [vmem:[#allocation2 + $0x38] sm:$0xff]
      %v429 = vld [vmem:[#allocation2 + $0x48] sm:$0xff]
      %v430 = vld [vmem:[#allocation2 + $0x50] sm:$0xff]
      %v431 = vld [vmem:[#allocation2 + $0x60] sm:$0xff]
      %v432 = vld [vmem:[#allocation2 + $0x68] sm:$0xff]
      %v433 = vld [vmem:[#allocation2 + $0x78] sm:$0xff]
      %v434 = vld [vmem:[#allocation2 + $0x80] sm:$0xff]
      %v435 = vld [vmem:[#allocation2 + $0x90] sm:$0xff]
      %v436 = vld [vmem:[#allocation2 + $0x98] sm:$0xff]
      %v437 = vld [vmem:[#allocation2 + $0xa8] sm:$0xff]
      %v438 = vld [vmem:[#allocation2 + $0xb0] sm:$0xff]
      %v439 = vld [vmem:[#allocation2 + $0xc0] sm:$0xff]
      %v440 = vld [vmem:[#allocation2 + $0xc8] sm:$0xff]
      %v441 = vld [vmem:[#allocation2 + $0xd8] sm:$0xff]
      %v442 = vld [vmem:[#allocation2 + $0xe0] sm:$0xff]
      %v443 = vld [vmem:[#allocation2 + $0xf0] sm:$0xff]
      %v444 = vld [vmem:[#allocation2 + $0xf8] sm:$0xff]
      %v445 = vld [vmem:[#allocation2 + $0x108] sm:$0xff]
      %v446 = vld [vmem:[#allocation2 + $0x110] sm:$0xff]
      %v447 = vld [vmem:[#allocation2 + $0x120] sm:$0xff]
      %v448 = vld [vmem:[#allocation2 + $0x128] sm:$0xff]
      %v449 = vld [vmem:[#allocation2 + $0x138] sm:$0xff]
      %v450 = vld [vmem:[#allocation2 + $0x140] sm:$0xff]
      %v451 = vld [vmem:[#allocation2 + $0x150] sm:$0xff]
      %v452 = vld [vmem:[#allocation2 + $0x158] sm:$0xff]
      %v453 = vld [vmem:[#allocation2 + $0x168] sm:$0xff]
      %v454 = vld [vmem:[#allocation2 + $0x170] sm:$0xff]
      %v455 = vld [vmem:[#allocation4] sm:$0xff]
      %v456 = vld [vmem:[#allocation4 + $0x8] sm:$0xff]
      %v457 = vld [vmem:[#allocation4 + $0x10] sm:$0xff]
      %v458 = vld [vmem:[#allocation4 + $0x18] sm:$0xff]
      %v459 = vld [vmem:[#allocation4 + $0x20] sm:$0xff]
      %v460 = vld [vmem:[#allocation4 + $0x28] sm:$0xff]
      %v461 = vld [vmem:[#allocation4 + $0x30] sm:$0xff]
      %v462 = vld [vmem:[#allocation4 + $0x38] sm:$0xff]
      %v463 = vld [vmem:[#allocation4 + $0x40] sm:$0xff]
      %v464 = vld [vmem:[#allocation4 + $0x48] sm:$0xff]
      %v465 = vld [vmem:[#allocation4 + $0x50] sm:$0xff]
      %v466 = vld [vmem:[#allocation4 + $0x58] sm:$0xff]
      %v467 = vld [vmem:[#allocation4 + $0x60] sm:$0xff]
      %v468 = vld [vmem:[#allocation4 + $0x68] sm:$0xff]
      %v469 = vld [vmem:[#allocation4 + $0x70] sm:$0xff]
      %v470 = vld [vmem:[#allocation4 + $0x78] sm:$0xff]
      %v471 = vld [vmem:[#allocation4 + $0x80] sm:$0xff]
      %v472 = vld [vmem:[#allocation4 + $0x88] sm:$0xff]
      %v473 = vld [vmem:[#allocation4 + $0x90] sm:$0xff]
      %v474 = vld [vmem:[#allocation4 + $0x98] sm:$0xff]
      %v475 = vld [vmem:[#allocation4 + $0xa0] sm:$0xff]
      %v476 = vld [vmem:[#allocation4 + $0xa8] sm:$0xff]
      %v477 = vld [vmem:[#allocation4 + $0xb0] sm:$0xff]
      %v478 = vld [vmem:[#allocation4 + $0xb8] sm:$0xff]
      %v479 = vld [vmem:[#allocation4 + $0xc0] sm:$0xff]
      %v480 = vld [vmem:[#allocation4 + $0xc8] sm:$0xff]
      %v481 = vld [vmem:[#allocation4 + $0xd0] sm:$0xff]
      %v482 = vld [vmem:[#allocation4 + $0xd8] sm:$0xff]
      %v483 = vld [vmem:[#allocation4 + $0xe0] sm:$0xff]
      %v484 = vld [vmem:[#allocation4 + $0xe8] sm:$0xff]
      %v485 = vld [vmem:[#allocation4 + $0xf0] sm:$0xff]
      %v486 = vld [vmem:[#allocation4 + $0xf8] sm:$0xff]
      %v487 = vld [vmem:[%s1] sm:$0xff]
      %v489 = vsel %vm230, %v423, 0
      %v492 = vsel %vm230, %v424, 0
      %v495 = vsel %vm230, %v425, 0
      %v498 = vsel %vm230, %v426, 0
      %v501 = vsel %vm230, %v427, 0
      %v504 = vsel %vm230, %v428, 0
      %v507 = vsel %vm230, %v429, 0
      %v510 = vsel %vm230, %v430, 0
      %v513 = vsel %vm230, %v431, 0
      %v516 = vsel %vm230, %v432, 0
      %v519 = vsel %vm230, %v433, 0
      %v522 = vsel %vm230, %v434, 0
      %v525 = vsel %vm230, %v435, 0
      %v528 = vsel %vm230, %v436, 0
      %v531 = vsel %vm230, %v437, 0
      %v534 = vsel %vm230, %v438, 0
      %v537 = vsel %vm230, %v439, 0
      %v540 = vsel %vm230, %v440, 0
      %v543 = vsel %vm230, %v441, 0
      %v546 = vsel %vm230, %v442, 0
      %v549 = vsel %vm230, %v443, 0
      %v552 = vsel %vm230, %v444, 0
      %v555 = vsel %vm230, %v445, 0
      %v558 = vsel %vm230, %v446, 0
      %v561 = vsel %vm230, %v447, 0
      %v564 = vsel %vm230, %v448, 0
      %v567 = vsel %vm230, %v449, 0
      %v570 = vsel %vm230, %v450, 0
      %v573 = vsel %vm230, %v451, 0
      %v576 = vsel %vm230, %v452, 0
      %v579 = vsel %vm230, %v453, 0
      %v582 = vsel %vm230, %v454, 0
      %584 = vmatprep.subr.mxu0 0.0
      %585 = vmatpush1.msra.mxu0 %v487
      %586 = vmatprep.subr.mxu0 0.0
      %587 = vmatpush1.msra.mxu0 0.0
      %588 = vmatprep.subr.mxu0 0.0
      %589 = vmatpush1.msra.mxu0 0.0
      %590 = vmatprep.subr.mxu0 0.0
      %591 = vmatpush1.msra.mxu0 0.0
      %592 = vmatprep.subr.mxu0 0.0
      %593 = vmatpush1.msra.mxu0 0.0
      %594 = vmatprep.subr.mxu0 0.0
      %595 = vmatpush1.msra.mxu0 0.0
      %596 = vmatprep.subr.mxu0 0.0
      %597 = vmatpush1.msra.mxu0 0.0
      %598 = vmatprep.subr.mxu0 0.0
      %599 = vmatpush1.msra.mxu0 0.0
      %600 = vmatprep.subr.mxu0 0.0
      %601 = vmatpush1.msra.mxu0 0.0
      %602 = vmatprep.subr.mxu0 0.0
      %603 = vmatpush1.msra.mxu0 0.0
      %604 = vmatprep.subr.mxu0 0.0
      %605 = vmatpush1.msra.mxu0 0.0
      %606 = vmatprep.subr.mxu0 0.0
      %607 = vmatpush1.msra.mxu0 0.0
      %608 = vmatprep.subr.mxu0 0.0
      %609 = vmatpush1.msra.mxu0 0.0
      %610 = vmatprep.subr.mxu0 0.0
      %611 = vmatpush1.msra.mxu0 0.0
      %612 = vmatprep.subr.mxu0 0.0
      %613 = vmatpush1.msra.mxu0 0.0
      %614 = vmatprep.subr.mxu0 0.0
      %615 = vmatpush1.msra.mxu0 0.0
      %616 = vmatprep.subr.mxu0 0.0
      %617 = vmatpush1.msra.mxu0 0.0
      %618 = vmatprep.subr.mxu0 0.0
      %619 = vmatpush1.msra.mxu0 0.0
      %620 = vmatprep.subr.mxu0 0.0
      %621 = vmatpush1.msra.mxu0 0.0
      %622 = vmatprep.subr.mxu0 0.0
      %623 = vmatpush1.msra.mxu0 0.0
      %624 = vmatprep.subr.mxu0 0.0
      %625 = vmatpush1.msra.mxu0 0.0
      %626 = vmatprep.subr.mxu0 0.0
      %627 = vmatpush1.msra.mxu0 0.0
      %628 = vmatprep.subr.mxu0 0.0
      %629 = vmatpush1.msra.mxu0 0.0
      %630 = vmatprep.subr.mxu0 0.0
      %631 = vmatpush1.msra.mxu0 0.0
      %632 = vmatprep.subr.mxu0 0.0
      %633 = vmatpush1.msra.mxu0 0.0
      %634 = vmatprep.subr.mxu0 0.0
      %635 = vmatpush1.msra.mxu0 0.0
      %636 = vmatprep.subr.mxu0 0.0
      %637 = vmatpush1.msra.mxu0 0.0
      %638 = vmatprep.subr.mxu0 0.0
      %639 = vmatpush1.msra.mxu0 0.0
      %640 = vmatprep.subr.mxu0 0.0
      %641 = vmatpush1.msra.mxu0 0.0
      %642 = vmatprep.subr.mxu0 0.0
      %643 = vmatpush1.msra.mxu0 0.0
      %644 = vmatprep.subr.mxu0 0.0
      %645 = vmatpush1.msra.mxu0 0.0
      %646 = vmatprep.subr.mxu0 0.0
      %647 = vmatpush1.msra.mxu0 0.0
      %648 = vmatprep.mubr.f32.mxu0 0.0
      %649 = vmatmul.mubr.f32.gmra.mrb[0].mxu0 %v489
      %v650 = vpop.f32.mrb[0].mxu0
      %v651 = vadd.f32 0.0, %v650
      %v652 = vpop.f32.mrb[0].mxu0
      %653 = vmatprep.mubr.f32.mxu0 0.0
      %654 = vmatmul.mubr.f32.gmra.mrb[0].mxu0 %v492
      %v655 = vpop.f32.mrb[0].mxu0
      %v656 = vadd.f32 0.0, %v655
      %v657 = vpop.f32.mrb[0].mxu0
      %658 = vmatprep.mubr.f32.mxu0 0.0
      %659 = vmatmul.mubr.f32.gmra.mrb[0].mxu0 %v495
      %v660 = vpop.f32.mrb[0].mxu0
      %v661 = vadd.f32 0.0, %v660
      %v662 = vpop.f32.mrb[0].mxu0
      %663 = vmatprep.mubr.f32.mxu0 0.0
      %664 = vmatmul.mubr.f32.gmra.mrb[0].mxu0 %v498
      %v665 = vpop.f32.mrb[0].mxu0
      %v666 = vadd.f32 0.0, %v665
      %v667 = vpop.f32.mrb[0].mxu0
      %668 = vmatprep.mubr.f32.mxu0 0.0
      %669 = vmatmul.mubr.f32.gmra.mrb[0].mxu0 %v501
      %v670 = vpop.f32.mrb[0].mxu0
      %v671 = vadd.f32 0.0, %v670
      %v672 = vpop.f32.mrb[0].mxu0
      %673 = vmatprep.mubr.f32.mxu0 0.0
      %674 = vmatmul.mubr.f32.gmra.mrb[0].mxu0 %v504
      %v675 = vpop.f32.mrb[0].mxu0
      %v676 = vadd.f32 0.0, %v675
      %v677 = vpop.f32.mrb[0].mxu0
      %678 = vmatprep.mubr.f32.mxu0 0.0
      %679 = vmatmul.mubr.f32.gmra.mrb[0].mxu0 %v507
      %v680 = vpop.f32.mrb[0].mxu0
      %v681 = vadd.f32 0.0, %v680
      %v682 = vpop.f32.mrb[0].mxu0
      %683 = vmatprep.mubr.f32.mxu0 0.0
      %684 = vmatmul.mubr.f32.gmra.mrb[0].mxu0 %v510
      %v685 = vpop.f32.mrb[0].mxu0
      %v686 = vadd.f32 0.0, %v685
      %v687 = vpop.f32.mrb[0].mxu0
      %688 = vmatprep.mubr.f32.mxu0 0.0
      %689 = vmatmul.mubr.f32.gmra.mrb[0].mxu0 %v513
      %v690 = vpop.f32.mrb[0].mxu0
      %v691 = vadd.f32 0.0, %v690
      %v692 = vpop.f32.mrb[0].mxu0
      %693 = vmatprep.mubr.f32.mxu0 0.0
      %694 = vmatmul.mubr.f32.gmra.mrb[0].mxu0 %v516
      %v695 = vpop.f32.mrb[0].mxu0
      %v696 = vadd.f32 0.0, %v695
      %v697 = vpop.f32.mrb[0].mxu0
      %698 = vmatprep.mubr.f32.mxu0 0.0
      %699 = vmatmul.mubr.f32.gmra.mrb[0].mxu0 %v519
      %v700 = vpop.f32.mrb[0].mxu0
      %v701 = vadd.f32 0.0, %v700
      %v702 = vpop.f32.mrb[0].mxu0
      %703 = vmatprep.mubr.f32.mxu0 0.0
      %704 = vmatmul.mubr.f32.gmra.mrb[0].mxu0 %v522
      %v705 = vpop.f32.mrb[0].mxu0
      %v706 = vadd.f32 0.0, %v705
      %v707 = vpop.f32.mrb[0].mxu0
      %708 = vmatprep.mubr.f32.mxu0 0.0
      %709 = vmatmul.mubr.f32.gmra.mrb[0].mxu0 %v525
      %v710 = vpop.f32.mrb[0].mxu0
      %v711 = vadd.f32 0.0, %v710
      %v712 = vpop.f32.mrb[0].mxu0
      %713 = vmatprep.mubr.f32.mxu0 0.0
      %714 = vmatmul.mubr.f32.gmra.mrb[0].mxu0 %v528
      %v715 = vpop.f32.mrb[0].mxu0
      %v716 = vadd.f32 0.0, %v715
      %v717 = vpop.f32.mrb[0].mxu0
      %718 = vmatprep.mubr.f32.mxu0 0.0
      %719 = vmatmul.mubr.f32.gmra.mrb[0].mxu0 %v531
      %v720 = vpop.f32.mrb[0].mxu0
      %v721 = vadd.f32 0.0, %v720
      %v722 = vpop.f32.mrb[0].mxu0
      %723 = vmatprep.mubr.f32.mxu0 0.0
      %724 = vmatmul.mubr.f32.gmra.mrb[0].mxu0 %v534
      %v725 = vpop.f32.mrb[0].mxu0
      %v726 = vadd.f32 0.0, %v725
      %v727 = vpop.f32.mrb[0].mxu0
      %728 = vmatprep.mubr.f32.mxu0 0.0
      %729 = vmatmul.mubr.f32.gmra.mrb[0].mxu0 %v537
      %v730 = vpop.f32.mrb[0].mxu0
      %v731 = vadd.f32 0.0, %v730
      %v732 = vpop.f32.mrb[0].mxu0
      %733 = vmatprep.mubr.f32.mxu0 0.0
      %734 = vmatmul.mubr.f32.gmra.mrb[0].mxu0 %v540
      %v735 = vpop.f32.mrb[0].mxu0
      %v736 = vadd.f32 0.0, %v735
      %v737 = vpop.f32.mrb[0].mxu0
      %738 = vmatprep.mubr.f32.mxu0 0.0
      %739 = vmatmul.mubr.f32.gmra.mrb[0].mxu0 %v543
      %v740 = vpop.f32.mrb[0].mxu0
      %v741 = vadd.f32 0.0, %v740
      %v742 = vpop.f32.mrb[0].mxu0
      %743 = vmatprep.mubr.f32.mxu0 0.0
      %744 = vmatmul.mubr.f32.gmra.mrb[0].mxu0 %v546
      %v745 = vpop.f32.mrb[0].mxu0
      %v746 = vadd.f32 0.0, %v745
      %v747 = vpop.f32.mrb[0].mxu0
      %748 = vmatprep.mubr.f32.mxu0 0.0
      %749 = vmatmul.mubr.f32.gmra.mrb[0].mxu0 %v549
      %v750 = vpop.f32.mrb[0].mxu0
      %v751 = vadd.f32 0.0, %v750
      %v752 = vpop.f32.mrb[0].mxu0
      %753 = vmatprep.mubr.f32.mxu0 0.0
      %754 = vmatmul.mubr.f32.gmra.mrb[0].mxu0 %v552
      %v755 = vpop.f32.mrb[0].mxu0
      %v756 = vadd.f32 0.0, %v755
      %v757 = vpop.f32.mrb[0].mxu0
      %758 = vmatprep.mubr.f32.mxu0 0.0
      %759 = vmatmul.mubr.f32.gmra.mrb[0].mxu0 %v555
      %v760 = vpop.f32.mrb[0].mxu0
      %v761 = vadd.f32 0.0, %v760
      %v762 = vpop.f32.mrb[0].mxu0
      %763 = vmatprep.mubr.f32.mxu0 0.0
      %764 = vmatmul.mubr.f32.gmra.mrb[0].mxu0 %v558
      %v765 = vpop.f32.mrb[0].mxu0
      %v766 = vadd.f32 0.0, %v765
      %v767 = vpop.f32.mrb[0].mxu0
      %768 = vmatprep.mubr.f32.mxu0 0.0
      %769 = vmatmul.mubr.f32.gmra.mrb[0].mxu0 %v561
      %v770 = vpop.f32.mrb[0].mxu0
      %v771 = vadd.f32 0.0, %v770
      %v772 = vpop.f32.mrb[0].mxu0
      %773 = vmatprep.mubr.f32.mxu0 0.0
      %774 = vmatmul.mubr.f32.gmra.mrb[0].mxu0 %v564
      %v775 = vpop.f32.mrb[0].mxu0
      %v776 = vadd.f32 0.0, %v775
      %v777 = vpop.f32.mrb[0].mxu0
      %778 = vmatprep.mubr.f32.mxu0 0.0
      %779 = vmatmul.mubr.f32.gmra.mrb[0].mxu0 %v567
      %v780 = vpop.f32.mrb[0].mxu0
      %v781 = vadd.f32 0.0, %v780
      %v782 = vpop.f32.mrb[0].mxu0
      %783 = vmatprep.mubr.f32.mxu0 0.0
      %784 = vmatmul.mubr.f32.gmra.mrb[0].mxu0 %v570
      %v785 = vpop.f32.mrb[0].mxu0
      %v786 = vadd.f32 0.0, %v785
      %v787 = vpop.f32.mrb[0].mxu0
      %788 = vmatprep.mubr.f32.mxu0 0.0
      %789 = vmatmul.mubr.f32.gmra.mrb[0].mxu0 %v573
      %v790 = vpop.f32.mrb[0].mxu0
      %v791 = vadd.f32 0.0, %v790
      %v792 = vpop.f32.mrb[0].mxu0
      %793 = vmatprep.mubr.f32.mxu0 0.0
      %794 = vmatmul.mubr.f32.gmra.mrb[0].mxu0 %v576
      %v795 = vpop.f32.mrb[0].mxu0
      %v796 = vadd.f32 0.0, %v795
      %v797 = vpop.f32.mrb[0].mxu0
      %798 = vmatprep.mubr.f32.mxu0 0.0
      %799 = vmatmul.mubr.f32.gmra.mrb[0].mxu0 %v579
      %v800 = vpop.f32.mrb[0].mxu0
      %v801 = vadd.f32 0.0, %v800
      %v802 = vpop.f32.mrb[0].mxu0
      %803 = vmatprep.mubr.f32.mxu0 0.0
      %804 = vmatmul.mubr.f32.gmra.mrb[0].mxu0 %v582
      %v805 = vpop.f32.mrb[0].mxu0
      %v806 = vadd.f32 0.0, %v805
      %v807 = vpop.f32.mrb[0].mxu0
      %808 = vdwg.mxu0
      %v809 = vadd.f32 %v455, %v651
      %v810 = vadd.f32 %v456, %v656
      %v811 = vadd.f32 %v457, %v661
      %v812 = vadd.f32 %v458, %v666
      %v813 = vadd.f32 %v459, %v671
      %v814 = vadd.f32 %v460, %v676
      %v815 = vadd.f32 %v461, %v681
      %v816 = vadd.f32 %v462, %v686
      %v817 = vadd.f32 %v463, %v691
      %v818 = vadd.f32 %v464, %v696
      %v819 = vadd.f32 %v465, %v701
      %v820 = vadd.f32 %v466, %v706
      %v821 = vadd.f32 %v467, %v711
      %v822 = vadd.f32 %v468, %v716
      %v823 = vadd.f32 %v469, %v721
      %v824 = vadd.f32 %v470, %v726
      %v825 = vadd.f32 %v471, %v731
      %v826 = vadd.f32 %v472, %v736
      %v827 = vadd.f32 %v473, %v741
      %v828 = vadd.f32 %v474, %v746
      %v829 = vadd.f32 %v475, %v751
      %v830 = vadd.f32 %v476, %v756
      %v831 = vadd.f32 %v477, %v761
      %v832 = vadd.f32 %v478, %v766
      %v833 = vadd.f32 %v479, %v771
      %v834 = vadd.f32 %v480, %v776
      %v835 = vadd.f32 %v481, %v781
      %v836 = vadd.f32 %v482, %v786
      %v837 = vadd.f32 %v483, %v791
      %v838 = vadd.f32 %v484, %v796
      %v839 = vadd.f32 %v485, %v801
      %v840 = vadd.f32 %v486, %v806
      %841 = vst.msk [vmem:[#allocation4] sm:$0xff] %vm230, %v809
      %842 = vst.msk [vmem:[#allocation4 + $0x8] sm:$0xff] %vm230, %v810
      %843 = vst.msk [vmem:[#allocation4 + $0x10] sm:$0xff] %vm230, %v811
      %844 = vst.msk [vmem:[#allocation4 + $0x18] sm:$0xff] %vm230, %v812
      %845 = vst.msk [vmem:[#allocation4 + $0x20] sm:$0xff] %vm230, %v813
      %846 = vst.msk [vmem:[#allocation4 + $0x28] sm:$0xff] %vm230, %v814
      %847 = vst.msk [vmem:[#allocation4 + $0x30] sm:$0xff] %vm230, %v815
      %848 = vst.msk [vmem:[#allocation4 + $0x38] sm:$0xff] %vm230, %v816
      %849 = vst.msk [vmem:[#allocation4 + $0x40] sm:$0xff] %vm230, %v817
      %850 = vst.msk [vmem:[#allocation4 + $0x48] sm:$0xff] %vm230, %v818
      %851 = vst.msk [vmem:[#allocation4 + $0x50] sm:$0xff] %vm230, %v819
      %852 = vst.msk [vmem:[#allocation4 + $0x58] sm:$0xff] %vm230, %v820
      %853 = vst.msk [vmem:[#allocation4 + $0x60] sm:$0xff] %vm230, %v821
      %854 = vst.msk [vmem:[#allocation4 + $0x68] sm:$0xff] %vm230, %v822
      %855 = vst.msk [vmem:[#allocation4 + $0x70] sm:$0xff] %vm230, %v823
      %856 = vst.msk [vmem:[#allocation4 + $0x78] sm:$0xff] %vm230, %v824
      %857 = vst.msk [vmem:[#allocation4 + $0x80] sm:$0xff] %vm230, %v825
      %858 = vst.msk [vmem:[#allocation4 + $0x88] sm:$0xff] %vm230, %v826
      %859 = vst.msk [vmem:[#allocation4 + $0x90] sm:$0xff] %vm230, %v827
      %860 = vst.msk [vmem:[#allocation4 + $0x98] sm:$0xff] %vm230, %v828
      %861 = vst.msk [vmem:[#allocation4 + $0xa0] sm:$0xff] %vm230, %v829
      %862 = vst.msk [vmem:[#allocation4 + $0xa8] sm:$0xff] %vm230, %v830
      %863 = vst.msk [vmem:[#allocation4 + $0xb0] sm:$0xff] %vm230, %v831
      %864 = vst.msk [vmem:[#allocation4 + $0xb8] sm:$0xff] %vm230, %v832
      %865 = vst.msk [vmem:[#allocation4 + $0xc0] sm:$0xff] %vm230, %v833
      %866 = vst.msk [vmem:[#allocation4 + $0xc8] sm:$0xff] %vm230, %v834
      %867 = vst.msk [vmem:[#allocation4 + $0xd0] sm:$0xff] %vm230, %v835
      %868 = vst.msk [vmem:[#allocation4 + $0xd8] sm:$0xff] %vm230, %v836
      %869 = vst.msk [vmem:[#allocation4 + $0xe0] sm:$0xff] %vm230, %v837
      %870 = vst.msk [vmem:[#allocation4 + $0xe8] sm:$0xff] %vm230, %v838
      %871 = vst.msk [vmem:[#allocation4 + $0xf0] sm:$0xff] %vm230, %v839
      %872 = vst.msk [vmem:[#allocation4 + $0xf8] sm:$0xff] %vm230, %v840
      %v873 = vld [vmem:[#allocation2 + $0x1] sm:$0xff]
      %v874 = vld [vmem:[#allocation2 + $0x9] sm:$0xff]
      %v875 = vld [vmem:[#allocation2 + $0x19] sm:$0xff]
      %v876 = vld [vmem:[#allocation2 + $0x21] sm:$0xff]
      %v877 = vld [vmem:[#allocation2 + $0x31] sm:$0xff]
      %v878 = vld [vmem:[#allocation2 + $0x39] sm:$0xff]
      %v879 = vld [vmem:[#allocation2 + $0x49] sm:$0xff]
      %v880 = vld [vmem:[#allocation2 + $0x51] sm:$0xff]
      %v881 = vld [vmem:[#allocation2 + $0x61] sm:$0xff]
      %v882 = vld [vmem:[#allocation2 + $0x69] sm:$0xff]
      %v883 = vld [vmem:[#allocation2 + $0x79] sm:$0xff]
      %v884 = vld [vmem:[#allocation2 + $0x81] sm:$0xff]
      %v885 = vld [vmem:[#allocation2 + $0x91] sm:$0xff]
      %v886 = vld [vmem:[#allocation2 + $0x99] sm:$0xff]
      %v887 = vld [vmem:[#allocation2 + $0xa9] sm:$0xff]
      %v888 = vld [vmem:[#allocation2 + $0xb1] sm:$0xff]
      %v889 = vld [vmem:[#allocation2 + $0xc1] sm:$0xff]
      %v890 = vld [vmem:[#allocation2 + $0xc9] sm:$0xff]
      %v891 = vld [vmem:[#allocation2 + $0xd9] sm:$0xff]
      %v892 = vld [vmem:[#allocation2 + $0xe1] sm:$0xff]
      %v893 = vld [vmem:[#allocation2 + $0xf1] sm:$0xff]
      %v894 = vld [vmem:[#allocation2 + $0xf9] sm:$0xff]
      %v895 = vld [vmem:[#allocation2 + $0x109] sm:$0xff]
      %v896 = vld [vmem:[#allocation2 + $0x111] sm:$0xff]
      %v897 = vld [vmem:[#allocation2 + $0x121] sm:$0xff]
      %v898 = vld [vmem:[#allocation2 + $0x129] sm:$0xff]
      %v899 = vld [vmem:[#allocation2 + $0x139] sm:$0xff]
      %v900 = vld [vmem:[#allocation2 + $0x141] sm:$0xff]
      %v901 = vld [vmem:[#allocation2 + $0x151] sm:$0xff]
      %v902 = vld [vmem:[#allocation2 + $0x159] sm:$0xff]
      %v903 = vld [vmem:[#allocation2 + $0x169] sm:$0xff]
      %v904 = vld [vmem:[#allocation2 + $0x171] sm:$0xff]
      %v905 = vld [vmem:[#allocation4] sm:$0xff]
      %v906 = vld [vmem:[#allocation4 + $0x8] sm:$0xff]
      %v907 = vld [vmem:[#allocation4 + $0x10] sm:$0xff]
      %v908 = vld [vmem:[#allocation4 + $0x18] sm:$0xff]
      %v909 = vld [vmem:[#allocation4 + $0x20] sm:$0xff]
      %v910 = vld [vmem:[#allocation4 + $0x28] sm:$0xff]
      %v911 = vld [vmem:[#allocation4 + $0x30] sm:$0xff]
      %v912 = vld [vmem:[#allocation4 + $0x38] sm:$0xff]
      %v913 = vld [vmem:[#allocation4 + $0x40] sm:$0xff]
      %v914 = vld [vmem:[#allocation4 + $0x48] sm:$0xff]
      %v915 = vld [vmem:[#allocation4 + $0x50] sm:$0xff]
      %v916 = vld [vmem:[#allocation4 + $0x58] sm:$0xff]
      %v917 = vld [vmem:[#allocation4 + $0x60] sm:$0xff]
      %v918 = vld [vmem:[#allocation4 + $0x68] sm:$0xff]
      %v919 = vld [vmem:[#allocation4 + $0x70] sm:$0xff]
      %v920 = vld [vmem:[#allocation4 + $0x78] sm:$0xff]
      %v921 = vld [vmem:[#allocation4 + $0x80] sm:$0xff]
      %v922 = vld [vmem:[#allocation4 + $0x88] sm:$0xff]
      %v923 = vld [vmem:[#allocation4 + $0x90] sm:$0xff]
      %v924 = vld [vmem:[#allocation4 + $0x98] sm:$0xff]
      %v925 = vld [vmem:[#allocation4 + $0xa0] sm:$0xff]
      %v926 = vld [vmem:[#allocation4 + $0xa8] sm:$0xff]
      %v927 = vld [vmem:[#allocation4 + $0xb0] sm:$0xff]
      %v928 = vld [vmem:[#allocation4 + $0xb8] sm:$0xff]
      %v929 = vld [vmem:[#allocation4 + $0xc0] sm:$0xff]
      %v930 = vld [vmem:[#allocation4 + $0xc8] sm:$0xff]
      %v931 = vld [vmem:[#allocation4 + $0xd0] sm:$0xff]
      %v932 = vld [vmem:[#allocation4 + $0xd8] sm:$0xff]
      %v933 = vld [vmem:[#allocation4 + $0xe0] sm:$0xff]
      %v934 = vld [vmem:[#allocation4 + $0xe8] sm:$0xff]
      %v935 = vld [vmem:[#allocation4 + $0xf0] sm:$0xff]
      %v936 = vld [vmem:[#allocation4 + $0xf8] sm:$0xff]
      %s937 = scalar_lea.vmem %s1, 8
      %v938 = vld [vmem:[%s937] sm:$0xff]
      %v940 = vsel %vm230, %v873, 0
      %v943 = vsel %vm230, %v874, 0
      %v946 = vsel %vm230, %v875, 0
      %v949 = vsel %vm230, %v876, 0
      %v952 = vsel %vm230, %v877, 0
      %v955 = vsel %vm230, %v878, 0
      %v958 = vsel %vm230, %v879, 0
      %v961 = vsel %vm230, %v880, 0
      %v964 = vsel %vm230, %v881, 0
      %v967 = vsel %vm230, %v882, 0
      %v970 = vsel %vm230, %v883, 0
      %v973 = vsel %vm230, %v884, 0
      %v976 = vsel %vm230, %v885, 0
      %v979 = vsel %vm230, %v886, 0
      %v982 = vsel %vm230, %v887, 0
      %v985 = vsel %vm230, %v888, 0
      %v988 = vsel %vm230, %v889, 0
      %v991 = vsel %vm230, %v890, 0
      %v994 = vsel %vm230, %v891, 0
      %v997 = vsel %vm230, %v892, 0
      %v1000 = vsel %vm230, %v893, 0
      %v1003 = vsel %vm230, %v894, 0
      %v1006 = vsel %vm230, %v895, 0
      %v1009 = vsel %vm230, %v896, 0
      %v1012 = vsel %vm230, %v897, 0
      %v1015 = vsel %vm230, %v898, 0
      %v1018 = vsel %vm230, %v899, 0
      %v1021 = vsel %vm230, %v900, 0
      %v1024 = vsel %vm230, %v901, 0
      %v1027 = vsel %vm230, %v902, 0
      %v1030 = vsel %vm230, %v903, 0
      %v1033 = vsel %vm230, %v904, 0
      %1035 = vmatprep.subr.mxu0 0.0
      %1036 = vmatpush1.msra.mxu0 %v938
      %1037 = vmatprep.subr.mxu0 0.0
      %1038 = vmatpush1.msra.mxu0 0.0
      %1039 = vmatprep.subr.mxu0 0.0
      %1040 = vmatpush1.msra.mxu0 0.0
      %1041 = vmatprep.subr.mxu0 0.0
      %1042 = vmatpush1.msra.mxu0 0.0
      %1043 = vmatprep.subr.mxu0 0.0
      %1044 = vmatpush1.msra.mxu0 0.0
      %1045 = vmatprep.subr.mxu0 0.0
      %1046 = vmatpush1.msra.mxu0 0.0
      %1047 = vmatprep.subr.mxu0 0.0
      %1048 = vmatpush1.msra.mxu0 0.0
      %1049 = vmatprep.subr.mxu0 0.0
      %1050 = vmatpush1.msra.mxu0 0.0
      %1051 = vmatprep.subr.mxu0 0.0
      %1052 = vmatpush1.msra.mxu0 0.0
      %1053 = vmatprep.subr.mxu0 0.0
      %1054 = vmatpush1.msra.mxu0 0.0
      %1055 = vmatprep.subr.mxu0 0.0
      %1056 = vmatpush1.msra.mxu0 0.0
      %1057 = vmatprep.subr.mxu0 0.0
      %1058 = vmatpush1.msra.mxu0 0.0
      %1059 = vmatprep.subr.mxu0 0.0
      %1060 = vmatpush1.msra.mxu0 0.0
      %1061 = vmatprep.subr.mxu0 0.0
      %1062 = vmatpush1.msra.mxu0 0.0
      %1063 = vmatprep.subr.mxu0 0.0
      %1064 = vmatpush1.msra.mxu0 0.0
      %1065 = vmatprep.subr.mxu0 0.0
      %1066 = vmatpush1.msra.mxu0 0.0
      %1067 = vmatprep.subr.mxu0 0.0
      %1068 = vmatpush1.msra.mxu0 0.0
      %1069 = vmatprep.subr.mxu0 0.0
      %1070 = vmatpush1.msra.mxu0 0.0
      %1071 = vmatprep.subr.mxu0 0.0
      %1072 = vmatpush1.msra.mxu0 0.0
      %1073 = vmatprep.subr.mxu0 0.0
      %1074 = vmatpush1.msra.mxu0 0.0
      %1075 = vmatprep.subr.mxu0 0.0
      %1076 = vmatpush1.msra.mxu0 0.0
      %1077 = vmatprep.subr.mxu0 0.0
      %1078 = vmatpush1.msra.mxu0 0.0
      %1079 = vmatprep.subr.mxu0 0.0
      %1080 = vmatpush1.msra.mxu0 0.0
      %1081 = vmatprep.subr.mxu0 0.0
      %1082 = vmatpush1.msra.mxu0 0.0
      %1083 = vmatprep.subr.mxu0 0.0
      %1084 = vmatpush1.msra.mxu0 0.0
      %1085 = vmatprep.subr.mxu0 0.0
      %1086 = vmatpush1.msra.mxu0 0.0
      %1087 = vmatprep.subr.mxu0 0.0
      %1088 = vmatpush1.msra.mxu0 0.0
      %1089 = vmatprep.subr.mxu0 0.0
      %1090 = vmatpush1.msra.mxu0 0.0
      %1091 = vmatprep.subr.mxu0 0.0
      %1092 = vmatpush1.msra.mxu0 0.0
      %1093 = vmatprep.subr.mxu0 0.0
      %1094 = vmatpush1.msra.mxu0 0.0
      %1095 = vmatprep.subr.mxu0 0.0
      %1096 = vmatpush1.msra.mxu0 0.0
      %1097 = vmatprep.subr.mxu0 0.0
      %1098 = vmatpush1.msra.mxu0 0.0
      %1099 = vmatprep.mubr.f32.mxu0 0.0
      %1100 = vmatmul.mubr.f32.gmra.mrb[0].mxu0 %v940
      %v1101 = vpop.f32.mrb[0].mxu0
      %v1102 = vadd.f32 0.0, %v1101
      %v1103 = vpop.f32.mrb[0].mxu0
      %1104 = vmatprep.mubr.f32.mxu0 0.0
      %1105 = vmatmul.mubr.f32.gmra.mrb[0].mxu0 %v943
      %v1106 = vpop.f32.mrb[0].mxu0
      %v1107 = vadd.f32 0.0, %v1106
      %v1108 = vpop.f32.mrb[0].mxu0
      %1109 = vmatprep.mubr.f32.mxu0 0.0
      %1110 = vmatmul.mubr.f32.gmra.mrb[0].mxu0 %v946
      %v1111 = vpop.f32.mrb[0].mxu0
      %v1112 = vadd.f32 0.0, %v1111
      %v1113 = vpop.f32.mrb[0].mxu0
      %1114 = vmatprep.mubr.f32.mxu0 0.0
      %1115 = vmatmul.mubr.f32.gmra.mrb[0].mxu0 %v949
      %v1116 = vpop.f32.mrb[0].mxu0
      %v1117 = vadd.f32 0.0, %v1116
      %v1118 = vpop.f32.mrb[0].mxu0
      %1119 = vmatprep.mubr.f32.mxu0 0.0
      %1120 = vmatmul.mubr.f32.gmra.mrb[0].mxu0 %v952
      %v1121 = vpop.f32.mrb[0].mxu0
      %v1122 = vadd.f32 0.0, %v1121
      %v1123 = vpop.f32.mrb[0].mxu0
      %1124 = vmatprep.mubr.f32.mxu0 0.0
      %1125 = vmatmul.mubr.f32.gmra.mrb[0].mxu0 %v955
      %v1126 = vpop.f32.mrb[0].mxu0
      %v1127 = vadd.f32 0.0, %v1126
      %v1128 = vpop.f32.mrb[0].mxu0
      %1129 = vmatprep.mubr.f32.mxu0 0.0
      %1130 = vmatmul.mubr.f32.gmra.mrb[0].mxu0 %v958
      %v1131 = vpop.f32.mrb[0].mxu0
      %v1132 = vadd.f32 0.0, %v1131
      %v1133 = vpop.f32.mrb[0].mxu0
      %1134 = vmatprep.mubr.f32.mxu0 0.0
      %1135 = vmatmul.mubr.f32.gmra.mrb[0].mxu0 %v961
      %v1136 = vpop.f32.mrb[0].mxu0
      %v1137 = vadd.f32 0.0, %v1136
      %v1138 = vpop.f32.mrb[0].mxu0
      %1139 = vmatprep.mubr.f32.mxu0 0.0
      %1140 = vmatmul.mubr.f32.gmra.mrb[0].mxu0 %v964
      %v1141 = vpop.f32.mrb[0].mxu0
      %v1142 = vadd.f32 0.0, %v1141
      %v1143 = vpop.f32.mrb[0].mxu0
      %1144 = vmatprep.mubr.f32.mxu0 0.0
      %1145 = vmatmul.mubr.f32.gmra.mrb[0].mxu0 %v967
      %v1146 = vpop.f32.mrb[0].mxu0
      %v1147 = vadd.f32 0.0, %v1146
      %v1148 = vpop.f32.mrb[0].mxu0
      %1149 = vmatprep.mubr.f32.mxu0 0.0
      %1150 = vmatmul.mubr.f32.gmra.mrb[0].mxu0 %v970
      %v1151 = vpop.f32.mrb[0].mxu0
      %v1152 = vadd.f32 0.0, %v1151
      %v1153 = vpop.f32.mrb[0].mxu0
      %1154 = vmatprep.mubr.f32.mxu0 0.0
      %1155 = vmatmul.mubr.f32.gmra.mrb[0].mxu0 %v973
      %v1156 = vpop.f32.mrb[0].mxu0
      %v1157 = vadd.f32 0.0, %v1156
      %v1158 = vpop.f32.mrb[0].mxu0
      %1159 = vmatprep.mubr.f32.mxu0 0.0
      %1160 = vmatmul.mubr.f32.gmra.mrb[0].mxu0 %v976
      %v1161 = vpop.f32.mrb[0].mxu0
      %v1162 = vadd.f32 0.0, %v1161
      %v1163 = vpop.f32.mrb[0].mxu0
      %1164 = vmatprep.mubr.f32.mxu0 0.0
      %1165 = vmatmul.mubr.f32.gmra.mrb[0].mxu0 %v979
      %v1166 = vpop.f32.mrb[0].mxu0
      %v1167 = vadd.f32 0.0, %v1166
      %v1168 = vpop.f32.mrb[0].mxu0
      %1169 = vmatprep.mubr.f32.mxu0 0.0
      %1170 = vmatmul.mubr.f32.gmra.mrb[0].mxu0 %v982
      %v1171 = vpop.f32.mrb[0].mxu0
      %v1172 = vadd.f32 0.0, %v1171
      %v1173 = vpop.f32.mrb[0].mxu0
      %1174 = vmatprep.mubr.f32.mxu0 0.0
      %1175 = vmatmul.mubr.f32.gmra.mrb[0].mxu0 %v985
      %v1176 = vpop.f32.mrb[0].mxu0
      %v1177 = vadd.f32 0.0, %v1176
      %v1178 = vpop.f32.mrb[0].mxu0
      %1179 = vmatprep.mubr.f32.mxu0 0.0
      %1180 = vmatmul.mubr.f32.gmra.mrb[0].mxu0 %v988
      %v1181 = vpop.f32.mrb[0].mxu0
      %v1182 = vadd.f32 0.0, %v1181
      %v1183 = vpop.f32.mrb[0].mxu0
      %1184 = vmatprep.mubr.f32.mxu0 0.0
      %1185 = vmatmul.mubr.f32.gmra.mrb[0].mxu0 %v991
      %v1186 = vpop.f32.mrb[0].mxu0
      %v1187 = vadd.f32 0.0, %v1186
      %v1188 = vpop.f32.mrb[0].mxu0
      %1189 = vmatprep.mubr.f32.mxu0 0.0
      %1190 = vmatmul.mubr.f32.gmra.mrb[0].mxu0 %v994
      %v1191 = vpop.f32.mrb[0].mxu0
      %v1192 = vadd.f32 0.0, %v1191
      %v1193 = vpop.f32.mrb[0].mxu0
      %1194 = vmatprep.mubr.f32.mxu0 0.0
      %1195 = vmatmul.mubr.f32.gmra.mrb[0].mxu0 %v997
      %v1196 = vpop.f32.mrb[0].mxu0
      %v1197 = vadd.f32 0.0, %v1196
      %v1198 = vpop.f32.mrb[0].mxu0
      %1199 = vmatprep.mubr.f32.mxu0 0.0
      %1200 = vmatmul.mubr.f32.gmra.mrb[0].mxu0 %v1000
      %v1201 = vpop.f32.mrb[0].mxu0
      %v1202 = vadd.f32 0.0, %v1201
      %v1203 = vpop.f32.mrb[0].mxu0
      %1204 = vmatprep.mubr.f32.mxu0 0.0
      %1205 = vmatmul.mubr.f32.gmra.mrb[0].mxu0 %v1003
      %v1206 = vpop.f32.mrb[0].mxu0
      %v1207 = vadd.f32 0.0, %v1206
      %v1208 = vpop.f32.mrb[0].mxu0
      %1209 = vmatprep.mubr.f32.mxu0 0.0
      %1210 = vmatmul.mubr.f32.gmra.mrb[0].mxu0 %v1006
      %v1211 = vpop.f32.mrb[0].mxu0
      %v1212 = vadd.f32 0.0, %v1211
      %v1213 = vpop.f32.mrb[0].mxu0
      %1214 = vmatprep.mubr.f32.mxu0 0.0
      %1215 = vmatmul.mubr.f32.gmra.mrb[0].mxu0 %v1009
      %v1216 = vpop.f32.mrb[0].mxu0
      %v1217 = vadd.f32 0.0, %v1216
      %v1218 = vpop.f32.mrb[0].mxu0
      %1219 = vmatprep.mubr.f32.mxu0 0.0
      %1220 = vmatmul.mubr.f32.gmra.mrb[0].mxu0 %v1012
      %v1221 = vpop.f32.mrb[0].mxu0
      %v1222 = vadd.f32 0.0, %v1221
      %v1223 = vpop.f32.mrb[0].mxu0
      %1224 = vmatprep.mubr.f32.mxu0 0.0
      %1225 = vmatmul.mubr.f32.gmra.mrb[0].mxu0 %v1015
      %v1226 = vpop.f32.mrb[0].mxu0
      %v1227 = vadd.f32 0.0, %v1226
      %v1228 = vpop.f32.mrb[0].mxu0
      %1229 = vmatprep.mubr.f32.mxu0 0.0
      %1230 = vmatmul.mubr.f32.gmra.mrb[0].mxu0 %v1018
      %v1231 = vpop.f32.mrb[0].mxu0
      %v1232 = vadd.f32 0.0, %v1231
      %v1233 = vpop.f32.mrb[0].mxu0
      %1234 = vmatprep.mubr.f32.mxu0 0.0
      %1235 = vmatmul.mubr.f32.gmra.mrb[0].mxu0 %v1021
      %v1236 = vpop.f32.mrb[0].mxu0
      %v1237 = vadd.f32 0.0, %v1236
      %v1238 = vpop.f32.mrb[0].mxu0
      %1239 = vmatprep.mubr.f32.mxu0 0.0
      %1240 = vmatmul.mubr.f32.gmra.mrb[0].mxu0 %v1024
      %v1241 = vpop.f32.mrb[0].mxu0
      %v1242 = vadd.f32 0.0, %v1241
      %v1243 = vpop.f32.mrb[0].mxu0
      %1244 = vmatprep.mubr.f32.mxu0 0.0
      %1245 = vmatmul.mubr.f32.gmra.mrb[0].mxu0 %v1027
      %v1246 = vpop.f32.mrb[0].mxu0
      %v1247 = vadd.f32 0.0, %v1246
      %v1248 = vpop.f32.mrb[0].mxu0
      %1249 = vmatprep.mubr.f32.mxu0 0.0
      %1250 = vmatmul.mubr.f32.gmra.mrb[0].mxu0 %v1030
      %v1251 = vpop.f32.mrb[0].mxu0
      %v1252 = vadd.f32 0.0, %v1251
      %v1253 = vpop.f32.mrb[0].mxu0
      %1254 = vmatprep.mubr.f32.mxu0 0.0
      %1255 = vmatmul.mubr.f32.gmra.mrb[0].mxu0 %v1033
      %v1256 = vpop.f32.mrb[0].mxu0
      %v1257 = vadd.f32 0.0, %v1256
      %v1258 = vpop.f32.mrb[0].mxu0
      %1259 = vdwg.mxu0
      %v1260 = vadd.f32 %v905, %v1102
      %v1261 = vadd.f32 %v906, %v1107
      %v1262 = vadd.f32 %v907, %v1112
      %v1263 = vadd.f32 %v908, %v1117
      %v1264 = vadd.f32 %v909, %v1122
      %v1265 = vadd.f32 %v910, %v1127
      %v1266 = vadd.f32 %v911, %v1132
      %v1267 = vadd.f32 %v912, %v1137
      %v1268 = vadd.f32 %v913, %v1142
      %v1269 = vadd.f32 %v914, %v1147
      %v1270 = vadd.f32 %v915, %v1152
      %v1271 = vadd.f32 %v916, %v1157
      %v1272 = vadd.f32 %v917, %v1162
      %v1273 = vadd.f32 %v918, %v1167
      %v1274 = vadd.f32 %v919, %v1172
      %v1275 = vadd.f32 %v920, %v1177
      %v1276 = vadd.f32 %v921, %v1182
      %v1277 = vadd.f32 %v922, %v1187
      %v1278 = vadd.f32 %v923, %v1192
      %v1279 = vadd.f32 %v924, %v1197
      %v1280 = vadd.f32 %v925, %v1202
      %v1281 = vadd.f32 %v926, %v1207
      %v1282 = vadd.f32 %v927, %v1212
      %v1283 = vadd.f32 %v928, %v1217
      %v1284 = vadd.f32 %v929, %v1222
      %v1285 = vadd.f32 %v930, %v1227
      %v1286 = vadd.f32 %v931, %v1232
      %v1287 = vadd.f32 %v932, %v1237
      %v1288 = vadd.f32 %v933, %v1242
      %v1289 = vadd.f32 %v934, %v1247
      %v1290 = vadd.f32 %v935, %v1252
      %v1291 = vadd.f32 %v936, %v1257
      %1292 = vst.msk [vmem:[#allocation4] sm:$0xff] %vm230, %v1260
      %1293 = vst.msk [vmem:[#allocation4 + $0x8] sm:$0xff] %vm230, %v1261
      %1294 = vst.msk [vmem:[#allocation4 + $0x10] sm:$0xff] %vm230, %v1262
      %1295 = vst.msk [vmem:[#allocation4 + $0x18] sm:$0xff] %vm230, %v1263
      %1296 = vst.msk [vmem:[#allocation4 + $0x20] sm:$0xff] %vm230, %v1264
      %1297 = vst.msk [vmem:[#allocation4 + $0x28] sm:$0xff] %vm230, %v1265
      %1298 = vst.msk [vmem:[#allocation4 + $0x30] sm:$0xff] %vm230, %v1266
      %1299 = vst.msk [vmem:[#allocation4 + $0x38] sm:$0xff] %vm230, %v1267
      %1300 = vst.msk [vmem:[#allocation4 + $0x40] sm:$0xff] %vm230, %v1268
      %1301 = vst.msk [vmem:[#allocation4 + $0x48] sm:$0xff] %vm230, %v1269
      %1302 = vst.msk [vmem:[#allocation4 + $0x50] sm:$0xff] %vm230, %v1270
      %1303 = vst.msk [vmem:[#allocation4 + $0x58] sm:$0xff] %vm230, %v1271
      %1304 = vst.msk [vmem:[#allocation4 + $0x60] sm:$0xff] %vm230, %v1272
      %1305 = vst.msk [vmem:[#allocation4 + $0x68] sm:$0xff] %vm230, %v1273
      %1306 = vst.msk [vmem:[#allocation4 + $0x70] sm:$0xff] %vm230, %v1274
      %1307 = vst.msk [vmem:[#allocation4 + $0x78] sm:$0xff] %vm230, %v1275
      %1308 = vst.msk [vmem:[#allocation4 + $0x80] sm:$0xff] %vm230, %v1276
      %1309 = vst.msk [vmem:[#allocation4 + $0x88] sm:$0xff] %vm230, %v1277
      %1310 = vst.msk [vmem:[#allocation4 + $0x90] sm:$0xff] %vm230, %v1278
      %1311 = vst.msk [vmem:[#allocation4 + $0x98] sm:$0xff] %vm230, %v1279
      %1312 = vst.msk [vmem:[#allocation4 + $0xa0] sm:$0xff] %vm230, %v1280
      %1313 = vst.msk [vmem:[#allocation4 + $0xa8] sm:$0xff] %vm230, %v1281
      %1314 = vst.msk [vmem:[#allocation4 + $0xb0] sm:$0xff] %vm230, %v1282
      %1315 = vst.msk [vmem:[#allocation4 + $0xb8] sm:$0xff] %vm230, %v1283
      %1316 = vst.msk [vmem:[#allocation4 + $0xc0] sm:$0xff] %vm230, %v1284
      %1317 = vst.msk [vmem:[#allocation4 + $0xc8] sm:$0xff] %vm230, %v1285
      %1318 = vst.msk [vmem:[#allocation4 + $0xd0] sm:$0xff] %vm230, %v1286
      %1319 = vst.msk [vmem:[#allocation4 + $0xd8] sm:$0xff] %vm230, %v1287
      %1320 = vst.msk [vmem:[#allocation4 + $0xe0] sm:$0xff] %vm230, %v1288
      %1321 = vst.msk [vmem:[#allocation4 + $0xe8] sm:$0xff] %vm230, %v1289
      %1322 = vst.msk [vmem:[#allocation4 + $0xf0] sm:$0xff] %vm230, %v1290
      %1323 = vst.msk [vmem:[#allocation4 + $0xf8] sm:$0xff] %vm230, %v1291
      %v1324 = vld [vmem:[#allocation2 + $0x2] sm:$0xff]
      %v1325 = vld [vmem:[#allocation2 + $0xa] sm:$0xff]
      %v1326 = vld [vmem:[#allocation2 + $0x1a] sm:$0xff]
      %v1327 = vld [vmem:[#allocation2 + $0x22] sm:$0xff]
      %v1328 = vld [vmem:[#allocation2 + $0x32] sm:$0xff]
      %v1329 = vld [vmem:[#allocation2 + $0x3a] sm:$0xff]
      %v1330 = vld [vmem:[#allocation2 + $0x4a] sm:$0xff]
      %v1331 = vld [vmem:[#allocation2 + $0x52] sm:$0xff]
      %v1332 = vld [vmem:[#allocation2 + $0x62] sm:$0xff]
      %v1333 = vld [vmem:[#allocation2 + $0x6a] sm:$0xff]
      %v1334 = vld [vmem:[#allocation2 + $0x7a] sm:$0xff]
      %v1335 = vld [vmem:[#allocation2 + $0x82] sm:$0xff]
      %v1336 = vld [vmem:[#allocation2 + $0x92] sm:$0xff]
      %v1337 = vld [vmem:[#allocation2 + $0x9a] sm:$0xff]
      %v1338 = vld [vmem:[#allocation2 + $0xaa] sm:$0xff]
      %v1339 = vld [vmem:[#allocation2 + $0xb2] sm:$0xff]
      %v1340 = vld [vmem:[#allocation2 + $0xc2] sm:$0xff]
      %v1341 = vld [vmem:[#allocation2 + $0xca] sm:$0xff]
      %v1342 = vld [vmem:[#allocation2 + $0xda] sm:$0xff]
      %v1343 = vld [vmem:[#allocation2 + $0xe2] sm:$0xff]
      %v1344 = vld [vmem:[#allocation2 + $0xf2] sm:$0xff]
      %v1345 = vld [vmem:[#allocation2 + $0xfa] sm:$0xff]
      %v1346 = vld [vmem:[#allocation2 + $0x10a] sm:$0xff]
      %v1347 = vld [vmem:[#allocation2 + $0x112] sm:$0xff]
      %v1348 = vld [vmem:[#allocation2 + $0x122] sm:$0xff]
      %v1349 = vld [vmem:[#allocation2 + $0x12a] sm:$0xff]
      %v1350 = vld [vmem:[#allocation2 + $0x13a] sm:$0xff]
      %v1351 = vld [vmem:[#allocation2 + $0x142] sm:$0xff]
      %v1352 = vld [vmem:[#allocation2 + $0x152] sm:$0xff]
      %v1353 = vld [vmem:[#allocation2 + $0x15a] sm:$0xff]
      %v1354 = vld [vmem:[#allocation2 + $0x16a] sm:$0xff]
      %v1355 = vld [vmem:[#allocation2 + $0x172] sm:$0xff]
      %v1356 = vld [vmem:[#allocation4] sm:$0xff]
      %v1357 = vld [vmem:[#allocation4 + $0x8] sm:$0xff]
      %v1358 = vld [vmem:[#allocation4 + $0x10] sm:$0xff]
      %v1359 = vld [vmem:[#allocation4 + $0x18] sm:$0xff]
      %v1360 = vld [vmem:[#allocation4 + $0x20] sm:$0xff]
      %v1361 = vld [vmem:[#allocation4 + $0x28] sm:$0xff]
      %v1362 = vld [vmem:[#allocation4 + $0x30] sm:$0xff]
      %v1363 = vld [vmem:[#allocation4 + $0x38] sm:$0xff]
      %v1364 = vld [vmem:[#allocation4 + $0x40] sm:$0xff]
      %v1365 = vld [vmem:[#allocation4 + $0x48] sm:$0xff]
      %v1366 = vld [vmem:[#allocation4 + $0x50] sm:$0xff]
      %v1367 = vld [vmem:[#allocation4 + $0x58] sm:$0xff]
      %v1368 = vld [vmem:[#allocation4 + $0x60] sm:$0xff]
      %v1369 = vld [vmem:[#allocation4 + $0x68] sm:$0xff]
      %v1370 = vld [vmem:[#allocation4 + $0x70] sm:$0xff]
      %v1371 = vld [vmem:[#allocation4 + $0x78] sm:$0xff]
      %v1372 = vld [vmem:[#allocation4 + $0x80] sm:$0xff]
      %v1373 = vld [vmem:[#allocation4 + $0x88] sm:$0xff]
      %v1374 = vld [vmem:[#allocation4 + $0x90] sm:$0xff]
      %v1375 = vld [vmem:[#allocation4 + $0x98] sm:$0xff]
      %v1376 = vld [vmem:[#allocation4 + $0xa0] sm:$0xff]
      %v1377 = vld [vmem:[#allocation4 + $0xa8] sm:$0xff]
      %v1378 = vld [vmem:[#allocation4 + $0xb0] sm:$0xff]
      %v1379 = vld [vmem:[#allocation4 + $0xb8] sm:$0xff]
      %v1380 = vld [vmem:[#allocation4 + $0xc0] sm:$0xff]
      %v1381 = vld [vmem:[#allocation4 + $0xc8] sm:$0xff]
      %v1382 = vld [vmem:[#allocation4 + $0xd0] sm:$0xff]
      %v1383 = vld [vmem:[#allocation4 + $0xd8] sm:$0xff]
      %v1384 = vld [vmem:[#allocation4 + $0xe0] sm:$0xff]
      %v1385 = vld [vmem:[#allocation4 + $0xe8] sm:$0xff]
      %v1386 = vld [vmem:[#allocation4 + $0xf0] sm:$0xff]
      %v1387 = vld [vmem:[#allocation4 + $0xf8] sm:$0xff]
      %s1388 = scalar_lea.vmem %s1, 16
      %v1389 = vld [vmem:[%s1388] sm:$0xff]
      %v1391 = vsel %vm230, %v1324, 0
      %v1394 = vsel %vm230, %v1325, 0
      %v1397 = vsel %vm230, %v1326, 0
      %v1400 = vsel %vm230, %v1327, 0
      %v1403 = vsel %vm230, %v1328, 0
      %v1406 = vsel %vm230, %v1329, 0
      %v1409 = vsel %vm230, %v1330, 0
      %v1412 = vsel %vm230, %v1331, 0
      %v1415 = vsel %vm230, %v1332, 0
      %v1418 = vsel %vm230, %v1333, 0
      %v1421 = vsel %vm230, %v1334, 0
      %v1424 = vsel %vm230, %v1335, 0
      %v1427 = vsel %vm230, %v1336, 0
      %v1430 = vsel %vm230, %v1337, 0
      %v1433 = vsel %vm230, %v1338, 0
      %v1436 = vsel %vm230, %v1339, 0
      %v1439 = vsel %vm230, %v1340, 0
      %v1442 = vsel %vm230, %v1341, 0
      %v1445 = vsel %vm230, %v1342, 0
      %v1448 = vsel %vm230, %v1343, 0
      %v1451 = vsel %vm230, %v1344, 0
      %v1454 = vsel %vm230, %v1345, 0
      %v1457 = vsel %vm230, %v1346, 0
      %v1460 = vsel %vm230, %v1347, 0
      %v1463 = vsel %vm230, %v1348, 0
      %v1466 = vsel %vm230, %v1349, 0
      %v1469 = vsel %vm230, %v1350, 0
      %v1472 = vsel %vm230, %v1351, 0
      %v1475 = vsel %vm230, %v1352, 0
      %v1478 = vsel %vm230, %v1353, 0
      %v1481 = vsel %vm230, %v1354, 0
      %v1484 = vsel %vm230, %v1355, 0
      %1486 = vmatprep.subr.mxu0 0.0
      %1487 = vmatpush1.msra.mxu0 %v1389
      %1488 = vmatprep.subr.mxu0 0.0
      %1489 = vmatpush1.msra.mxu0 0.0
      %1490 = vmatprep.subr.mxu0 0.0
      %1491 = vmatpush1.msra.mxu0 0.0
      %1492 = vmatprep.subr.mxu0 0.0
      %1493 = vmatpush1.msra.mxu0 0.0
      %1494 = vmatprep.subr.mxu0 0.0
      %1495 = vmatpush1.msra.mxu0 0.0
      %1496 = vmatprep.subr.mxu0 0.0
      %1497 = vmatpush1.msra.mxu0 0.0
      %1498 = vmatprep.subr.mxu0 0.0
      %1499 = vmatpush1.msra.mxu0 0.0
      %1500 = vmatprep.subr.mxu0 0.0
      %1501 = vmatpush1.msra.mxu0 0.0
      %1502 = vmatprep.subr.mxu0 0.0
      %1503 = vmatpush1.msra.mxu0 0.0
      %1504 = vmatprep.subr.mxu0 0.0
      %1505 = vmatpush1.msra.mxu0 0.0
      %1506 = vmatprep.subr.mxu0 0.0
      %1507 = vmatpush1.msra.mxu0 0.0
      %1508 = vmatprep.subr.mxu0 0.0
      %1509 = vmatpush1.msra.mxu0 0.0
      %1510 = vmatprep.subr.mxu0 0.0
      %1511 = vmatpush1.msra.mxu0 0.0
      %1512 = vmatprep.subr.mxu0 0.0
      %1513 = vmatpush1.msra.mxu0 0.0
      %1514 = vmatprep.subr.mxu0 0.0
      %1515 = vmatpush1.msra.mxu0 0.0
      %1516 = vmatprep.subr.mxu0 0.0
      %1517 = vmatpush1.msra.mxu0 0.0
      %1518 = vmatprep.subr.mxu0 0.0
      %1519 = vmatpush1.msra.mxu0 0.0
      %1520 = vmatprep.subr.mxu0 0.0
      %1521 = vmatpush1.msra.mxu0 0.0
      %1522 = vmatprep.subr.mxu0 0.0
      %1523 = vmatpush1.msra.mxu0 0.0
      %1524 = vmatprep.subr.mxu0 0.0
      %1525 = vmatpush1.msra.mxu0 0.0
      %1526 = vmatprep.subr.mxu0 0.0
      %1527 = vmatpush1.msra.mxu0 0.0
      %1528 = vmatprep.subr.mxu0 0.0
      %1529 = vmatpush1.msra.mxu0 0.0
      %1530 = vmatprep.subr.mxu0 0.0
      %1531 = vmatpush1.msra.mxu0 0.0
      %1532 = vmatprep.subr.mxu0 0.0
      %1533 = vmatpush1.msra.mxu0 0.0
      %1534 = vmatprep.subr.mxu0 0.0
      %1535 = vmatpush1.msra.mxu0 0.0
      %1536 = vmatprep.subr.mxu0 0.0
      %1537 = vmatpush1.msra.mxu0 0.0
      %1538 = vmatprep.subr.mxu0 0.0
      %1539 = vmatpush1.msra.mxu0 0.0
      %1540 = vmatprep.subr.mxu0 0.0
      %1541 = vmatpush1.msra.mxu0 0.0
      %1542 = vmatprep.subr.mxu0 0.0
      %1543 = vmatpush1.msra.mxu0 0.0
      %1544 = vmatprep.subr.mxu0 0.0
      %1545 = vmatpush1.msra.mxu0 0.0
      %1546 = vmatprep.subr.mxu0 0.0
      %1547 = vmatpush1.msra.mxu0 0.0
      %1548 = vmatprep.subr.mxu0 0.0
      %1549 = vmatpush1.msra.mxu0 0.0
      %1550 = vmatprep.mubr.f32.mxu0 0.0
      %1551 = vmatmul.mubr.f32.gmra.mrb[0].mxu0 %v1391
      %v1552 = vpop.f32.mrb[0].mxu0
      %v1553 = vadd.f32 0.0, %v1552
      %v1554 = vpop.f32.mrb[0].mxu0
      %1555 = vmatprep.mubr.f32.mxu0 0.0
      %1556 = vmatmul.mubr.f32.gmra.mrb[0].mxu0 %v1394
      %v1557 = vpop.f32.mrb[0].mxu0
      %v1558 = vadd.f32 0.0, %v1557
      %v1559 = vpop.f32.mrb[0].mxu0
      %1560 = vmatprep.mubr.f32.mxu0 0.0
      %1561 = vmatmul.mubr.f32.gmra.mrb[0].mxu0 %v1397
      %v1562 = vpop.f32.mrb[0].mxu0
      %v1563 = vadd.f32 0.0, %v1562
      %v1564 = vpop.f32.mrb[0].mxu0
      %1565 = vmatprep.mubr.f32.mxu0 0.0
      %1566 = vmatmul.mubr.f32.gmra.mrb[0].mxu0 %v1400
      %v1567 = vpop.f32.mrb[0].mxu0
      %v1568 = vadd.f32 0.0, %v1567
      %v1569 = vpop.f32.mrb[0].mxu0
      %1570 = vmatprep.mubr.f32.mxu0 0.0
      %1571 = vmatmul.mubr.f32.gmra.mrb[0].mxu0 %v1403
      %v1572 = vpop.f32.mrb[0].mxu0
      %v1573 = vadd.f32 0.0, %v1572
      %v1574 = vpop.f32.mrb[0].mxu0
      %1575 = vmatprep.mubr.f32.mxu0 0.0
      %1576 = vmatmul.mubr.f32.gmra.mrb[0].mxu0 %v1406
      %v1577 = vpop.f32.mrb[0].mxu0
      %v1578 = vadd.f32 0.0, %v1577
      %v1579 = vpop.f32.mrb[0].mxu0
      %1580 = vmatprep.mubr.f32.mxu0 0.0
      %1581 = vmatmul.mubr.f32.gmra.mrb[0].mxu0 %v1409
      %v1582 = vpop.f32.mrb[0].mxu0
      %v1583 = vadd.f32 0.0, %v1582
      %v1584 = vpop.f32.mrb[0].mxu0
      %1585 = vmatprep.mubr.f32.mxu0 0.0
      %1586 = vmatmul.mubr.f32.gmra.mrb[0].mxu0 %v1412
      %v1587 = vpop.f32.mrb[0].mxu0
      %v1588 = vadd.f32 0.0, %v1587
      %v1589 = vpop.f32.mrb[0].mxu0
      %1590 = vmatprep.mubr.f32.mxu0 0.0
      %1591 = vmatmul.mubr.f32.gmra.mrb[0].mxu0 %v1415
      %v1592 = vpop.f32.mrb[0].mxu0
      %v1593 = vadd.f32 0.0, %v1592
      %v1594 = vpop.f32.mrb[0].mxu0
      %1595 = vmatprep.mubr.f32.mxu0 0.0
      %1596 = vmatmul.mubr.f32.gmra.mrb[0].mxu0 %v1418
      %v1597 = vpop.f32.mrb[0].mxu0
      %v1598 = vadd.f32 0.0, %v1597
      %v1599 = vpop.f32.mrb[0].mxu0
      %1600 = vmatprep.mubr.f32.mxu0 0.0
      %1601 = vmatmul.mubr.f32.gmra.mrb[0].mxu0 %v1421
      %v1602 = vpop.f32.mrb[0].mxu0
      %v1603 = vadd.f32 0.0, %v1602
      %v1604 = vpop.f32.mrb[0].mxu0
      %1605 = vmatprep.mubr.f32.mxu0 0.0
      %1606 = vmatmul.mubr.f32.gmra.mrb[0].mxu0 %v1424
      %v1607 = vpop.f32.mrb[0].mxu0
      %v1608 = vadd.f32 0.0, %v1607
      %v1609 = vpop.f32.mrb[0].mxu0
      %1610 = vmatprep.mubr.f32.mxu0 0.0
      %1611 = vmatmul.mubr.f32.gmra.mrb[0].mxu0 %v1427
      %v1612 = vpop.f32.mrb[0].mxu0
      %v1613 = vadd.f32 0.0, %v1612
      %v1614 = vpop.f32.mrb[0].mxu0
      %1615 = vmatprep.mubr.f32.mxu0 0.0
      %1616 = vmatmul.mubr.f32.gmra.mrb[0].mxu0 %v1430
      %v1617 = vpop.f32.mrb[0].mxu0
      %v1618 = vadd.f32 0.0, %v1617
      %v1619 = vpop.f32.mrb[0].mxu0
      %1620 = vmatprep.mubr.f32.mxu0 0.0
      %1621 = vmatmul.mubr.f32.gmra.mrb[0].mxu0 %v1433
      %v1622 = vpop.f32.mrb[0].mxu0
      %v1623 = vadd.f32 0.0, %v1622
      %v1624 = vpop.f32.mrb[0].mxu0
      %1625 = vmatprep.mubr.f32.mxu0 0.0
      %1626 = vmatmul.mubr.f32.gmra.mrb[0].mxu0 %v1436
      %v1627 = vpop.f32.mrb[0].mxu0
      %v1628 = vadd.f32 0.0, %v1627
      %v1629 = vpop.f32.mrb[0].mxu0
      %1630 = vmatprep.mubr.f32.mxu0 0.0
      %1631 = vmatmul.mubr.f32.gmra.mrb[0].mxu0 %v1439
      %v1632 = vpop.f32.mrb[0].mxu0
      %v1633 = vadd.f32 0.0, %v1632
      %v1634 = vpop.f32.mrb[0].mxu0
      %1635 = vmatprep.mubr.f32.mxu0 0.0
      %1636 = vmatmul.mubr.f32.gmra.mrb[0].mxu0 %v1442
      %v1637 = vpop.f32.mrb[0].mxu0
      %v1638 = vadd.f32 0.0, %v1637
      %v1639 = vpop.f32.mrb[0].mxu0
      %1640 = vmatprep.mubr.f32.mxu0 0.0
      %1641 = vmatmul.mubr.f32.gmra.mrb[0].mxu0 %v1445
      %v1642 = vpop.f32.mrb[0].mxu0
      %v1643 = vadd.f32 0.0, %v1642
      %v1644 = vpop.f32.mrb[0].mxu0
      %1645 = vmatprep.mubr.f32.mxu0 0.0
      %1646 = vmatmul.mubr.f32.gmra.mrb[0].mxu0 %v1448
      %v1647 = vpop.f32.mrb[0].mxu0
      %v1648 = vadd.f32 0.0, %v1647
      %v1649 = vpop.f32.mrb[0].mxu0
      %1650 = vmatprep.mubr.f32.mxu0 0.0
      %1651 = vmatmul.mubr.f32.gmra.mrb[0].mxu0 %v1451
      %v1652 = vpop.f32.mrb[0].mxu0
      %v1653 = vadd.f32 0.0, %v1652
      %v1654 = vpop.f32.mrb[0].mxu0
      %1655 = vmatprep.mubr.f32.mxu0 0.0
      %1656 = vmatmul.mubr.f32.gmra.mrb[0].mxu0 %v1454
      %v1657 = vpop.f32.mrb[0].mxu0
      %v1658 = vadd.f32 0.0, %v1657
      %v1659 = vpop.f32.mrb[0].mxu0
      %1660 = vmatprep.mubr.f32.mxu0 0.0
      %1661 = vmatmul.mubr.f32.gmra.mrb[0].mxu0 %v1457
      %v1662 = vpop.f32.mrb[0].mxu0
      %v1663 = vadd.f32 0.0, %v1662
      %v1664 = vpop.f32.mrb[0].mxu0
      %1665 = vmatprep.mubr.f32.mxu0 0.0
      %1666 = vmatmul.mubr.f32.gmra.mrb[0].mxu0 %v1460
      %v1667 = vpop.f32.mrb[0].mxu0
      %v1668 = vadd.f32 0.0, %v1667
      %v1669 = vpop.f32.mrb[0].mxu0
      %1670 = vmatprep.mubr.f32.mxu0 0.0
      %1671 = vmatmul.mubr.f32.gmra.mrb[0].mxu0 %v1463
      %v1672 = vpop.f32.mrb[0].mxu0
      %v1673 = vadd.f32 0.0, %v1672
      %v1674 = vpop.f32.mrb[0].mxu0
      %1675 = vmatprep.mubr.f32.mxu0 0.0
      %1676 = vmatmul.mubr.f32.gmra.mrb[0].mxu0 %v1466
      %v1677 = vpop.f32.mrb[0].mxu0
      %v1678 = vadd.f32 0.0, %v1677
      %v1679 = vpop.f32.mrb[0].mxu0
      %1680 = vmatprep.mubr.f32.mxu0 0.0
      %1681 = vmatmul.mubr.f32.gmra.mrb[0].mxu0 %v1469
      %v1682 = vpop.f32.mrb[0].mxu0
      %v1683 = vadd.f32 0.0, %v1682
      %v1684 = vpop.f32.mrb[0].mxu0
      %1685 = vmatprep.mubr.f32.mxu0 0.0
      %1686 = vmatmul.mubr.f32.gmra.mrb[0].mxu0 %v1472
      %v1687 = vpop.f32.mrb[0].mxu0
      %v1688 = vadd.f32 0.0, %v1687
      %v1689 = vpop.f32.mrb[0].mxu0
      %1690 = vmatprep.mubr.f32.mxu0 0.0
      %1691 = vmatmul.mubr.f32.gmra.mrb[0].mxu0 %v1475
      %v1692 = vpop.f32.mrb[0].mxu0
      %v1693 = vadd.f32 0.0, %v1692
      %v1694 = vpop.f32.mrb[0].mxu0
      %1695 = vmatprep.mubr.f32.mxu0 0.0
      %1696 = vmatmul.mubr.f32.gmra.mrb[0].mxu0 %v1478
      %v1697 = vpop.f32.mrb[0].mxu0
      %v1698 = vadd.f32 0.0, %v1697
      %v1699 = vpop.f32.mrb[0].mxu0
      %1700 = vmatprep.mubr.f32.mxu0 0.0
      %1701 = vmatmul.mubr.f32.gmra.mrb[0].mxu0 %v1481
      %v1702 = vpop.f32.mrb[0].mxu0
      %v1703 = vadd.f32 0.0, %v1702
      %v1704 = vpop.f32.mrb[0].mxu0
      %1705 = vmatprep.mubr.f32.mxu0 0.0
      %1706 = vmatmul.mubr.f32.gmra.mrb[0].mxu0 %v1484
      %v1707 = vpop.f32.mrb[0].mxu0
      %v1708 = vadd.f32 0.0, %v1707
      %v1709 = vpop.f32.mrb[0].mxu0
      %1710 = vdwg.mxu0
      %v1711 = vadd.f32 %v1356, %v1553
      %v1712 = vadd.f32 %v1357, %v1558
      %v1713 = vadd.f32 %v1358, %v1563
      %v1714 = vadd.f32 %v1359, %v1568
      %v1715 = vadd.f32 %v1360, %v1573
      %v1716 = vadd.f32 %v1361, %v1578
      %v1717 = vadd.f32 %v1362, %v1583
      %v1718 = vadd.f32 %v1363, %v1588
      %v1719 = vadd.f32 %v1364, %v1593
      %v1720 = vadd.f32 %v1365, %v1598
      %v1721 = vadd.f32 %v1366, %v1603
      %v1722 = vadd.f32 %v1367, %v1608
      %v1723 = vadd.f32 %v1368, %v1613
      %v1724 = vadd.f32 %v1369, %v1618
      %v1725 = vadd.f32 %v1370, %v1623
      %v1726 = vadd.f32 %v1371, %v1628
      %v1727 = vadd.f32 %v1372, %v1633
      %v1728 = vadd.f32 %v1373, %v1638
      %v1729 = vadd.f32 %v1374, %v1643
      %v1730 = vadd.f32 %v1375, %v1648
      %v1731 = vadd.f32 %v1376, %v1653
      %v1732 = vadd.f32 %v1377, %v1658
      %v1733 = vadd.f32 %v1378, %v1663
      %v1734 = vadd.f32 %v1379, %v1668
      %v1735 = vadd.f32 %v1380, %v1673
      %v1736 = vadd.f32 %v1381, %v1678
      %v1737 = vadd.f32 %v1382, %v1683
      %v1738 = vadd.f32 %v1383, %v1688
      %v1739 = vadd.f32 %v1384, %v1693
      %v1740 = vadd.f32 %v1385, %v1698
      %v1741 = vadd.f32 %v1386, %v1703
      %v1742 = vadd.f32 %v1387, %v1708
      %1743 = vst.msk [vmem:[#allocation4] sm:$0xff] %vm230, %v1711
      %1744 = vst.msk [vmem:[#allocation4 + $0x8] sm:$0xff] %vm230, %v1712
      %1745 = vst.msk [vmem:[#allocation4 + $0x10] sm:$0xff] %vm230, %v1713
      %1746 = vst.msk [vmem:[#allocation4 + $0x18] sm:$0xff] %vm230, %v1714
      %1747 = vst.msk [vmem:[#allocation4 + $0x20] sm:$0xff] %vm230, %v1715
      %1748 = vst.msk [vmem:[#allocation4 + $0x28] sm:$0xff] %vm230, %v1716
      %1749 = vst.msk [vmem:[#allocation4 + $0x30] sm:$0xff] %vm230, %v1717
      %1750 = vst.msk [vmem:[#allocation4 + $0x38] sm:$0xff] %vm230, %v1718
      %1751 = vst.msk [vmem:[#allocation4 + $0x40] sm:$0xff] %vm230, %v1719
      %1752 = vst.msk [vmem:[#allocation4 + $0x48] sm:$0xff] %vm230, %v1720
      %1753 = vst.msk [vmem:[#allocation4 + $0x50] sm:$0xff] %vm230, %v1721
      %1754 = vst.msk [vmem:[#allocation4 + $0x58] sm:$0xff] %vm230, %v1722
      %1755 = vst.msk [vmem:[#allocation4 + $0x60] sm:$0xff] %vm230, %v1723
      %1756 = vst.msk [vmem:[#allocation4 + $0x68] sm:$0xff] %vm230, %v1724
      %1757 = vst.msk [vmem:[#allocation4 + $0x70] sm:$0xff] %vm230, %v1725
      %1758 = vst.msk [vmem:[#allocation4 + $0x78] sm:$0xff] %vm230, %v1726
      %1759 = vst.msk [vmem:[#allocation4 + $0x80] sm:$0xff] %vm230, %v1727
      %1760 = vst.msk [vmem:[#allocation4 + $0x88] sm:$0xff] %vm230, %v1728
      %1761 = vst.msk [vmem:[#allocation4 + $0x90] sm:$0xff] %vm230, %v1729
      %1762 = vst.msk [vmem:[#allocation4 + $0x98] sm:$0xff] %vm230, %v1730
      %1763 = vst.msk [vmem:[#allocation4 + $0xa0] sm:$0xff] %vm230, %v1731
      %1764 = vst.msk [vmem:[#allocation4 + $0xa8] sm:$0xff] %vm230, %v1732
      %1765 = vst.msk [vmem:[#allocation4 + $0xb0] sm:$0xff] %vm230, %v1733
      %1766 = vst.msk [vmem:[#allocation4 + $0xb8] sm:$0xff] %vm230, %v1734
      %1767 = vst.msk [vmem:[#allocation4 + $0xc0] sm:$0xff] %vm230, %v1735
      %1768 = vst.msk [vmem:[#allocation4 + $0xc8] sm:$0xff] %vm230, %v1736
      %1769 = vst.msk [vmem:[#allocation4 + $0xd0] sm:$0xff] %vm230, %v1737
      %1770 = vst.msk [vmem:[#allocation4 + $0xd8] sm:$0xff] %vm230, %v1738
      %1771 = vst.msk [vmem:[#allocation4 + $0xe0] sm:$0xff] %vm230, %v1739
      %1772 = vst.msk [vmem:[#allocation4 + $0xe8] sm:$0xff] %vm230, %v1740
      %1773 = vst.msk [vmem:[#allocation4 + $0xf0] sm:$0xff] %vm230, %v1741
      %1774 = vst.msk [vmem:[#allocation4 + $0xf8] sm:$0xff] %vm230, %v1742
      %v1775 = vld [vmem:[%s351] sm:$0xff]
      %v1776 = vld [vmem:[%s351 + $0x8] sm:$0xff]
      %v1777 = vld [vmem:[%s351 + $0x18] sm:$0xff]
      %v1778 = vld [vmem:[%s351 + $0x20] sm:$0xff]
      %v1779 = vld [vmem:[%s351 + $0x30] sm:$0xff]
      %v1780 = vld [vmem:[%s351 + $0x38] sm:$0xff]
      %v1781 = vld [vmem:[%s351 + $0x48] sm:$0xff]
      %v1782 = vld [vmem:[%s351 + $0x50] sm:$0xff]
      %v1783 = vld [vmem:[%s351 + $0x60] sm:$0xff]
      %v1784 = vld [vmem:[%s351 + $0x68] sm:$0xff]
      %v1785 = vld [vmem:[%s351 + $0x78] sm:$0xff]
      %v1786 = vld [vmem:[%s351 + $0x80] sm:$0xff]
      %v1787 = vld [vmem:[%s351 + $0x90] sm:$0xff]
      %v1788 = vld [vmem:[%s351 + $0x98] sm:$0xff]
      %v1789 = vld [vmem:[%s351 + $0xa8] sm:$0xff]
      %v1790 = vld [vmem:[%s351 + $0xb0] sm:$0xff]
      %v1791 = vld [vmem:[%s351 + $0xc0] sm:$0xff]
      %v1792 = vld [vmem:[%s351 + $0xc8] sm:$0xff]
      %v1793 = vld [vmem:[%s351 + $0xd8] sm:$0xff]
      %v1794 = vld [vmem:[%s351 + $0xe0] sm:$0xff]
      %v1795 = vld [vmem:[%s351 + $0xf0] sm:$0xff]
      %v1796 = vld [vmem:[%s351 + $0xf8] sm:$0xff]
      %v1797 = vld [vmem:[%s351 + $0x108] sm:$0xff]
      %v1798 = vld [vmem:[%s351 + $0x110] sm:$0xff]
      %v1799 = vld [vmem:[%s351 + $0x120] sm:$0xff]
      %v1800 = vld [vmem:[%s351 + $0x128] sm:$0xff]
      %v1801 = vld [vmem:[%s351 + $0x138] sm:$0xff]
      %v1802 = vld [vmem:[%s351 + $0x140] sm:$0xff]
      %v1803 = vld [vmem:[%s351 + $0x150] sm:$0xff]
      %v1804 = vld [vmem:[%s351 + $0x158] sm:$0xff]
      %v1805 = vld [vmem:[%s351 + $0x168] sm:$0xff]
      %v1806 = vld [vmem:[%s351 + $0x170] sm:$0xff]
      %v1807 = vld [vmem:[#allocation4] sm:$0xff]
      %v1808 = vld [vmem:[#allocation4 + $0x8] sm:$0xff]
      %v1809 = vld [vmem:[#allocation4 + $0x10] sm:$0xff]
      %v1810 = vld [vmem:[#allocation4 + $0x18] sm:$0xff]
      %v1811 = vld [vmem:[#allocation4 + $0x20] sm:$0xff]
      %v1812 = vld [vmem:[#allocation4 + $0x28] sm:$0xff]
      %v1813 = vld [vmem:[#allocation4 + $0x30] sm:$0xff]
      %v1814 = vld [vmem:[#allocation4 + $0x38] sm:$0xff]
      %v1815 = vld [vmem:[#allocation4 + $0x40] sm:$0xff]
      %v1816 = vld [vmem:[#allocation4 + $0x48] sm:$0xff]
      %v1817 = vld [vmem:[#allocation4 + $0x50] sm:$0xff]
      %v1818 = vld [vmem:[#allocation4 + $0x58] sm:$0xff]
      %v1819 = vld [vmem:[#allocation4 + $0x60] sm:$0xff]
      %v1820 = vld [vmem:[#allocation4 + $0x68] sm:$0xff]
      %v1821 = vld [vmem:[#allocation4 + $0x70] sm:$0xff]
      %v1822 = vld [vmem:[#allocation4 + $0x78] sm:$0xff]
      %v1823 = vld [vmem:[#allocation4 + $0x80] sm:$0xff]
      %v1824 = vld [vmem:[#allocation4 + $0x88] sm:$0xff]
      %v1825 = vld [vmem:[#allocation4 + $0x90] sm:$0xff]
      %v1826 = vld [vmem:[#allocation4 + $0x98] sm:$0xff]
      %v1827 = vld [vmem:[#allocation4 + $0xa0] sm:$0xff]
      %v1828 = vld [vmem:[#allocation4 + $0xa8] sm:$0xff]
      %v1829 = vld [vmem:[#allocation4 + $0xb0] sm:$0xff]
      %v1830 = vld [vmem:[#allocation4 + $0xb8] sm:$0xff]
      %v1831 = vld [vmem:[#allocation4 + $0xc0] sm:$0xff]
      %v1832 = vld [vmem:[#allocation4 + $0xc8] sm:$0xff]
      %v1833 = vld [vmem:[#allocation4 + $0xd0] sm:$0xff]
      %v1834 = vld [vmem:[#allocation4 + $0xd8] sm:$0xff]
      %v1835 = vld [vmem:[#allocation4 + $0xe0] sm:$0xff]
      %v1836 = vld [vmem:[#allocation4 + $0xe8] sm:$0xff]
      %v1837 = vld [vmem:[#allocation4 + $0xf0] sm:$0xff]
      %v1838 = vld [vmem:[#allocation4 + $0xf8] sm:$0xff]
      %s1839 = scalar_lea.vmem %s1, 24
      %v1840 = vld [vmem:[%s1839] sm:$0xff]
      %v1842 = vsel %vm230, %v1775, 0
      %v1845 = vsel %vm230, %v1776, 0
      %v1848 = vsel %vm230, %v1777, 0
      %v1851 = vsel %vm230, %v1778, 0
      %v1854 = vsel %vm230, %v1779, 0
      %v1857 = vsel %vm230, %v1780, 0
      %v1860 = vsel %vm230, %v1781, 0
      %v1863 = vsel %vm230, %v1782, 0
      %v1866 = vsel %vm230, %v1783, 0
      %v1869 = vsel %vm230, %v1784, 0
      %v1872 = vsel %vm230, %v1785, 0
      %v1875 = vsel %vm230, %v1786, 0
      %v1878 = vsel %vm230, %v1787, 0
      %v1881 = vsel %vm230, %v1788, 0
      %v1884 = vsel %vm230, %v1789, 0
      %v1887 = vsel %vm230, %v1790, 0
      %v1890 = vsel %vm230, %v1791, 0
      %v1893 = vsel %vm230, %v1792, 0
      %v1896 = vsel %vm230, %v1793, 0
      %v1899 = vsel %vm230, %v1794, 0
      %v1902 = vsel %vm230, %v1795, 0
      %v1905 = vsel %vm230, %v1796, 0
      %v1908 = vsel %vm230, %v1797, 0
      %v1911 = vsel %vm230, %v1798, 0
      %v1914 = vsel %vm230, %v1799, 0
      %v1917 = vsel %vm230, %v1800, 0
      %v1920 = vsel %vm230, %v1801, 0
      %v1923 = vsel %vm230, %v1802, 0
      %v1926 = vsel %vm230, %v1803, 0
      %v1929 = vsel %vm230, %v1804, 0
      %v1932 = vsel %vm230, %v1805, 0
      %v1935 = vsel %vm230, %v1806, 0
      %1937 = vmatprep.subr.mxu0 0.0
      %1938 = vmatpush1.msra.mxu0 %v1840
      %1939 = vmatprep.subr.mxu0 0.0
      %1940 = vmatpush1.msra.mxu0 0.0
      %1941 = vmatprep.subr.mxu0 0.0
      %1942 = vmatpush1.msra.mxu0 0.0
      %1943 = vmatprep.subr.mxu0 0.0
      %1944 = vmatpush1.msra.mxu0 0.0
      %1945 = vmatprep.subr.mxu0 0.0
      %1946 = vmatpush1.msra.mxu0 0.0
      %1947 = vmatprep.subr.mxu0 0.0
      %1948 = vmatpush1.msra.mxu0 0.0
      %1949 = vmatprep.subr.mxu0 0.0
      %1950 = vmatpush1.msra.mxu0 0.0
      %1951 = vmatprep.subr.mxu0 0.0
      %1952 = vmatpush1.msra.mxu0 0.0
      %1953 = vmatprep.subr.mxu0 0.0
      %1954 = vmatpush1.msra.mxu0 0.0
      %1955 = vmatprep.subr.mxu0 0.0
      %1956 = vmatpush1.msra.mxu0 0.0
      %1957 = vmatprep.subr.mxu0 0.0
      %1958 = vmatpush1.msra.mxu0 0.0
      %1959 = vmatprep.subr.mxu0 0.0
      %1960 = vmatpush1.msra.mxu0 0.0
      %1961 = vmatprep.subr.mxu0 0.0
      %1962 = vmatpush1.msra.mxu0 0.0
      %1963 = vmatprep.subr.mxu0 0.0
      %1964 = vmatpush1.msra.mxu0 0.0
      %1965 = vmatprep.subr.mxu0 0.0
      %1966 = vmatpush1.msra.mxu0 0.0
      %1967 = vmatprep.subr.mxu0 0.0
      %1968 = vmatpush1.msra.mxu0 0.0
      %1969 = vmatprep.subr.mxu0 0.0
      %1970 = vmatpush1.msra.mxu0 0.0
      %1971 = vmatprep.subr.mxu0 0.0
      %1972 = vmatpush1.msra.mxu0 0.0
      %1973 = vmatprep.subr.mxu0 0.0
      %1974 = vmatpush1.msra.mxu0 0.0
      %1975 = vmatprep.subr.mxu0 0.0
      %1976 = vmatpush1.msra.mxu0 0.0
      %1977 = vmatprep.subr.mxu0 0.0
      %1978 = vmatpush1.msra.mxu0 0.0
      %1979 = vmatprep.subr.mxu0 0.0
      %1980 = vmatpush1.msra.mxu0 0.0
      %1981 = vmatprep.subr.mxu0 0.0
      %1982 = vmatpush1.msra.mxu0 0.0
      %1983 = vmatprep.subr.mxu0 0.0
      %1984 = vmatpush1.msra.mxu0 0.0
      %1985 = vmatprep.subr.mxu0 0.0
      %1986 = vmatpush1.msra.mxu0 0.0
      %1987 = vmatprep.subr.mxu0 0.0
      %1988 = vmatpush1.msra.mxu0 0.0
      %1989 = vmatprep.subr.mxu0 0.0
      %1990 = vmatpush1.msra.mxu0 0.0
      %1991 = vmatprep.subr.mxu0 0.0
      %1992 = vmatpush1.msra.mxu0 0.0
      %1993 = vmatprep.subr.mxu0 0.0
      %1994 = vmatpush1.msra.mxu0 0.0
      %1995 = vmatprep.subr.mxu0 0.0
      %1996 = vmatpush1.msra.mxu0 0.0
      %1997 = vmatprep.subr.mxu0 0.0
      %1998 = vmatpush1.msra.mxu0 0.0
      %1999 = vmatprep.subr.mxu0 0.0
      %2000 = vmatpush1.msra.mxu0 0.0
      %2001 = vmatprep.mubr.f32.mxu0 0.0
      %2002 = vmatmul.mubr.f32.gmra.mrb[0].mxu0 %v1842
      %v2003 = vpop.f32.mrb[0].mxu0
      %v2004 = vadd.f32 0.0, %v2003
      %v2005 = vpop.f32.mrb[0].mxu0
      %2006 = vmatprep.mubr.f32.mxu0 0.0
      %2007 = vmatmul.mubr.f32.gmra.mrb[0].mxu0 %v1845
      %v2008 = vpop.f32.mrb[0].mxu0
      %v2009 = vadd.f32 0.0, %v2008
      %v2010 = vpop.f32.mrb[0].mxu0
      %2011 = vmatprep.mubr.f32.mxu0 0.0
      %2012 = vmatmul.mubr.f32.gmra.mrb[0].mxu0 %v1848
      %v2013 = vpop.f32.mrb[0].mxu0
      %v2014 = vadd.f32 0.0, %v2013
      %v2015 = vpop.f32.mrb[0].mxu0
      %2016 = vmatprep.mubr.f32.mxu0 0.0
      %2017 = vmatmul.mubr.f32.gmra.mrb[0].mxu0 %v1851
      %v2018 = vpop.f32.mrb[0].mxu0
      %v2019 = vadd.f32 0.0, %v2018
      %v2020 = vpop.f32.mrb[0].mxu0
      %2021 = vmatprep.mubr.f32.mxu0 0.0
      %2022 = vmatmul.mubr.f32.gmra.mrb[0].mxu0 %v1854
      %v2023 = vpop.f32.mrb[0].mxu0
      %v2024 = vadd.f32 0.0, %v2023
      %v2025 = vpop.f32.mrb[0].mxu0
      %2026 = vmatprep.mubr.f32.mxu0 0.0
      %2027 = vmatmul.mubr.f32.gmra.mrb[0].mxu0 %v1857
      %v2028 = vpop.f32.mrb[0].mxu0
      %v2029 = vadd.f32 0.0, %v2028
      %v2030 = vpop.f32.mrb[0].mxu0
      %2031 = vmatprep.mubr.f32.mxu0 0.0
      %2032 = vmatmul.mubr.f32.gmra.mrb[0].mxu0 %v1860
      %v2033 = vpop.f32.mrb[0].mxu0
      %v2034 = vadd.f32 0.0, %v2033
      %v2035 = vpop.f32.mrb[0].mxu0
      %2036 = vmatprep.mubr.f32.mxu0 0.0
      %2037 = vmatmul.mubr.f32.gmra.mrb[0].mxu0 %v1863
      %v2038 = vpop.f32.mrb[0].mxu0
      %v2039 = vadd.f32 0.0, %v2038
      %v2040 = vpop.f32.mrb[0].mxu0
      %2041 = vmatprep.mubr.f32.mxu0 0.0
      %2042 = vmatmul.mubr.f32.gmra.mrb[0].mxu0 %v1866
      %v2043 = vpop.f32.mrb[0].mxu0
      %v2044 = vadd.f32 0.0, %v2043
      %v2045 = vpop.f32.mrb[0].mxu0
      %2046 = vmatprep.mubr.f32.mxu0 0.0
      %2047 = vmatmul.mubr.f32.gmra.mrb[0].mxu0 %v1869
      %v2048 = vpop.f32.mrb[0].mxu0
      %v2049 = vadd.f32 0.0, %v2048
      %v2050 = vpop.f32.mrb[0].mxu0
      %2051 = vmatprep.mubr.f32.mxu0 0.0
      %2052 = vmatmul.mubr.f32.gmra.mrb[0].mxu0 %v1872
      %v2053 = vpop.f32.mrb[0].mxu0
      %v2054 = vadd.f32 0.0, %v2053
      %v2055 = vpop.f32.mrb[0].mxu0
      %2056 = vmatprep.mubr.f32.mxu0 0.0
      %2057 = vmatmul.mubr.f32.gmra.mrb[0].mxu0 %v1875
      %v2058 = vpop.f32.mrb[0].mxu0
      %v2059 = vadd.f32 0.0, %v2058
      %v2060 = vpop.f32.mrb[0].mxu0
      %2061 = vmatprep.mubr.f32.mxu0 0.0
      %2062 = vmatmul.mubr.f32.gmra.mrb[0].mxu0 %v1878
      %v2063 = vpop.f32.mrb[0].mxu0
      %v2064 = vadd.f32 0.0, %v2063
      %v2065 = vpop.f32.mrb[0].mxu0
      %2066 = vmatprep.mubr.f32.mxu0 0.0
      %2067 = vmatmul.mubr.f32.gmra.mrb[0].mxu0 %v1881
      %v2068 = vpop.f32.mrb[0].mxu0
      %v2069 = vadd.f32 0.0, %v2068
      %v2070 = vpop.f32.mrb[0].mxu0
      %2071 = vmatprep.mubr.f32.mxu0 0.0
      %2072 = vmatmul.mubr.f32.gmra.mrb[0].mxu0 %v1884
      %v2073 = vpop.f32.mrb[0].mxu0
      %v2074 = vadd.f32 0.0, %v2073
      %v2075 = vpop.f32.mrb[0].mxu0
      %2076 = vmatprep.mubr.f32.mxu0 0.0
      %2077 = vmatmul.mubr.f32.gmra.mrb[0].mxu0 %v1887
      %v2078 = vpop.f32.mrb[0].mxu0
      %v2079 = vadd.f32 0.0, %v2078
      %v2080 = vpop.f32.mrb[0].mxu0
      %2081 = vmatprep.mubr.f32.mxu0 0.0
      %2082 = vmatmul.mubr.f32.gmra.mrb[0].mxu0 %v1890
      %v2083 = vpop.f32.mrb[0].mxu0
      %v2084 = vadd.f32 0.0, %v2083
      %v2085 = vpop.f32.mrb[0].mxu0
      %2086 = vmatprep.mubr.f32.mxu0 0.0
      %2087 = vmatmul.mubr.f32.gmra.mrb[0].mxu0 %v1893
      %v2088 = vpop.f32.mrb[0].mxu0
      %v2089 = vadd.f32 0.0, %v2088
      %v2090 = vpop.f32.mrb[0].mxu0
      %2091 = vmatprep.mubr.f32.mxu0 0.0
      %2092 = vmatmul.mubr.f32.gmra.mrb[0].mxu0 %v1896
      %v2093 = vpop.f32.mrb[0].mxu0
      %v2094 = vadd.f32 0.0, %v2093
      %v2095 = vpop.f32.mrb[0].mxu0
      %2096 = vmatprep.mubr.f32.mxu0 0.0
      %2097 = vmatmul.mubr.f32.gmra.mrb[0].mxu0 %v1899
      %v2098 = vpop.f32.mrb[0].mxu0
      %v2099 = vadd.f32 0.0, %v2098
      %v2100 = vpop.f32.mrb[0].mxu0
      %2101 = vmatprep.mubr.f32.mxu0 0.0
      %2102 = vmatmul.mubr.f32.gmra.mrb[0].mxu0 %v1902
      %v2103 = vpop.f32.mrb[0].mxu0
      %v2104 = vadd.f32 0.0, %v2103
      %v2105 = vpop.f32.mrb[0].mxu0
      %2106 = vmatprep.mubr.f32.mxu0 0.0
      %2107 = vmatmul.mubr.f32.gmra.mrb[0].mxu0 %v1905
      %v2108 = vpop.f32.mrb[0].mxu0
      %v2109 = vadd.f32 0.0, %v2108
      %v2110 = vpop.f32.mrb[0].mxu0
      %2111 = vmatprep.mubr.f32.mxu0 0.0
      %2112 = vmatmul.mubr.f32.gmra.mrb[0].mxu0 %v1908
      %v2113 = vpop.f32.mrb[0].mxu0
      %v2114 = vadd.f32 0.0, %v2113
      %v2115 = vpop.f32.mrb[0].mxu0
      %2116 = vmatprep.mubr.f32.mxu0 0.0
      %2117 = vmatmul.mubr.f32.gmra.mrb[0].mxu0 %v1911
      %v2118 = vpop.f32.mrb[0].mxu0
      %v2119 = vadd.f32 0.0, %v2118
      %v2120 = vpop.f32.mrb[0].mxu0
      %2121 = vmatprep.mubr.f32.mxu0 0.0
      %2122 = vmatmul.mubr.f32.gmra.mrb[0].mxu0 %v1914
      %v2123 = vpop.f32.mrb[0].mxu0
      %v2124 = vadd.f32 0.0, %v2123
      %v2125 = vpop.f32.mrb[0].mxu0
      %2126 = vmatprep.mubr.f32.mxu0 0.0
      %2127 = vmatmul.mubr.f32.gmra.mrb[0].mxu0 %v1917
      %v2128 = vpop.f32.mrb[0].mxu0
      %v2129 = vadd.f32 0.0, %v2128
      %v2130 = vpop.f32.mrb[0].mxu0
      %2131 = vmatprep.mubr.f32.mxu0 0.0
      %2132 = vmatmul.mubr.f32.gmra.mrb[0].mxu0 %v1920
      %v2133 = vpop.f32.mrb[0].mxu0
      %v2134 = vadd.f32 0.0, %v2133
      %v2135 = vpop.f32.mrb[0].mxu0
      %2136 = vmatprep.mubr.f32.mxu0 0.0
      %2137 = vmatmul.mubr.f32.gmra.mrb[0].mxu0 %v1923
      %v2138 = vpop.f32.mrb[0].mxu0
      %v2139 = vadd.f32 0.0, %v2138
      %v2140 = vpop.f32.mrb[0].mxu0
      %2141 = vmatprep.mubr.f32.mxu0 0.0
      %2142 = vmatmul.mubr.f32.gmra.mrb[0].mxu0 %v1926
      %v2143 = vpop.f32.mrb[0].mxu0
      %v2144 = vadd.f32 0.0, %v2143
      %v2145 = vpop.f32.mrb[0].mxu0
      %2146 = vmatprep.mubr.f32.mxu0 0.0
      %2147 = vmatmul.mubr.f32.gmra.mrb[0].mxu0 %v1929
      %v2148 = vpop.f32.mrb[0].mxu0
      %v2149 = vadd.f32 0.0, %v2148
      %v2150 = vpop.f32.mrb[0].mxu0
      %2151 = vmatprep.mubr.f32.mxu0 0.0
      %2152 = vmatmul.mubr.f32.gmra.mrb[0].mxu0 %v1932
      %v2153 = vpop.f32.mrb[0].mxu0
      %v2154 = vadd.f32 0.0, %v2153
      %v2155 = vpop.f32.mrb[0].mxu0
      %2156 = vmatprep.mubr.f32.mxu0 0.0
      %2157 = vmatmul.mubr.f32.gmra.mrb[0].mxu0 %v1935
      %v2158 = vpop.f32.mrb[0].mxu0
      %v2159 = vadd.f32 0.0, %v2158
      %v2160 = vpop.f32.mrb[0].mxu0
      %2161 = vdwg.mxu0
      %v2162 = vadd.f32 %v1807, %v2004
      %v2163 = vadd.f32 %v1808, %v2009
      %v2164 = vadd.f32 %v1809, %v2014
      %v2165 = vadd.f32 %v1810, %v2019
      %v2166 = vadd.f32 %v1811, %v2024
      %v2167 = vadd.f32 %v1812, %v2029
      %v2168 = vadd.f32 %v1813, %v2034
      %v2169 = vadd.f32 %v1814, %v2039
      %v2170 = vadd.f32 %v1815, %v2044
      %v2171 = vadd.f32 %v1816, %v2049
      %v2172 = vadd.f32 %v1817, %v2054
      %v2173 = vadd.f32 %v1818, %v2059
      %v2174 = vadd.f32 %v1819, %v2064
      %v2175 = vadd.f32 %v1820, %v2069
      %v2176 = vadd.f32 %v1821, %v2074
      %v2177 = vadd.f32 %v1822, %v2079
      %v2178 = vadd.f32 %v1823, %v2084
      %v2179 = vadd.f32 %v1824, %v2089
      %v2180 = vadd.f32 %v1825, %v2094
      %v2181 = vadd.f32 %v1826, %v2099
      %v2182 = vadd.f32 %v1827, %v2104
      %v2183 = vadd.f32 %v1828, %v2109
      %v2184 = vadd.f32 %v1829, %v2114
      %v2185 = vadd.f32 %v1830, %v2119
      %v2186 = vadd.f32 %v1831, %v2124
      %v2187 = vadd.f32 %v1832, %v2129
      %v2188 = vadd.f32 %v1833, %v2134
      %v2189 = vadd.f32 %v1834, %v2139
      %v2190 = vadd.f32 %v1835, %v2144
      %v2191 = vadd.f32 %v1836, %v2149
      %v2192 = vadd.f32 %v1837, %v2154
      %v2193 = vadd.f32 %v1838, %v2159
      %2194 = vst.msk [vmem:[#allocation4] sm:$0xff] %vm230, %v2162
      %2195 = vst.msk [vmem:[#allocation4 + $0x8] sm:$0xff] %vm230, %v2163
      %2196 = vst.msk [vmem:[#allocation4 + $0x10] sm:$0xff] %vm230, %v2164
      %2197 = vst.msk [vmem:[#allocation4 + $0x18] sm:$0xff] %vm230, %v2165
      %2198 = vst.msk [vmem:[#allocation4 + $0x20] sm:$0xff] %vm230, %v2166
      %2199 = vst.msk [vmem:[#allocation4 + $0x28] sm:$0xff] %vm230, %v2167
      %2200 = vst.msk [vmem:[#allocation4 + $0x30] sm:$0xff] %vm230, %v2168
      %2201 = vst.msk [vmem:[#allocation4 + $0x38] sm:$0xff] %vm230, %v2169
      %2202 = vst.msk [vmem:[#allocation4 + $0x40] sm:$0xff] %vm230, %v2170
      %2203 = vst.msk [vmem:[#allocation4 + $0x48] sm:$0xff] %vm230, %v2171
      %2204 = vst.msk [vmem:[#allocation4 + $0x50] sm:$0xff] %vm230, %v2172
      %2205 = vst.msk [vmem:[#allocation4 + $0x58] sm:$0xff] %vm230, %v2173
      %2206 = vst.msk [vmem:[#allocation4 + $0x60] sm:$0xff] %vm230, %v2174
      %2207 = vst.msk [vmem:[#allocation4 + $0x68] sm:$0xff] %vm230, %v2175
      %2208 = vst.msk [vmem:[#allocation4 + $0x70] sm:$0xff] %vm230, %v2176
      %2209 = vst.msk [vmem:[#allocation4 + $0x78] sm:$0xff] %vm230, %v2177
      %2210 = vst.msk [vmem:[#allocation4 + $0x80] sm:$0xff] %vm230, %v2178
      %2211 = vst.msk [vmem:[#allocation4 + $0x88] sm:$0xff] %vm230, %v2179
      %2212 = vst.msk [vmem:[#allocation4 + $0x90] sm:$0xff] %vm230, %v2180
      %2213 = vst.msk [vmem:[#allocation4 + $0x98] sm:$0xff] %vm230, %v2181
      %2214 = vst.msk [vmem:[#allocation4 + $0xa0] sm:$0xff] %vm230, %v2182
      %2215 = vst.msk [vmem:[#allocation4 + $0xa8] sm:$0xff] %vm230, %v2183
      %2216 = vst.msk [vmem:[#allocation4 + $0xb0] sm:$0xff] %vm230, %v2184
      %2217 = vst.msk [vmem:[#allocation4 + $0xb8] sm:$0xff] %vm230, %v2185
      %2218 = vst.msk [vmem:[#allocation4 + $0xc0] sm:$0xff] %vm230, %v2186
      %2219 = vst.msk [vmem:[#allocation4 + $0xc8] sm:$0xff] %vm230, %v2187
      %2220 = vst.msk [vmem:[#allocation4 + $0xd0] sm:$0xff] %vm230, %v2188
      %2221 = vst.msk [vmem:[#allocation4 + $0xd8] sm:$0xff] %vm230, %v2189
      %2222 = vst.msk [vmem:[#allocation4 + $0xe0] sm:$0xff] %vm230, %v2190
      %2223 = vst.msk [vmem:[#allocation4 + $0xe8] sm:$0xff] %vm230, %v2191
      %2224 = vst.msk [vmem:[#allocation4 + $0xf0] sm:$0xff] %vm230, %v2192
      %2225 = vst.msk [vmem:[#allocation4 + $0xf8] sm:$0xff] %vm230, %v2193
      %v2226 = vld [vmem:[%s351 + $0x1] sm:$0xff]
      %v2227 = vld [vmem:[%s351 + $0x9] sm:$0xff]
      %v2228 = vld [vmem:[%s351 + $0x19] sm:$0xff]
      %v2229 = vld [vmem:[%s351 + $0x21] sm:$0xff]
      %v2230 = vld [vmem:[%s351 + $0x31] sm:$0xff]
      %v2231 = vld [vmem:[%s351 + $0x39] sm:$0xff]
      %v2232 = vld [vmem:[%s351 + $0x49] sm:$0xff]
      %v2233 = vld [vmem:[%s351 + $0x51] sm:$0xff]
      %v2234 = vld [vmem:[%s351 + $0x61] sm:$0xff]
      %v2235 = vld [vmem:[%s351 + $0x69] sm:$0xff]
      %v2236 = vld [vmem:[%s351 + $0x79] sm:$0xff]
      %v2237 = vld [vmem:[%s351 + $0x81] sm:$0xff]
      %v2238 = vld [vmem:[%s351 + $0x91] sm:$0xff]
      %v2239 = vld [vmem:[%s351 + $0x99] sm:$0xff]
      %v2240 = vld [vmem:[%s351 + $0xa9] sm:$0xff]
      %v2241 = vld [vmem:[%s351 + $0xb1] sm:$0xff]
      %v2242 = vld [vmem:[%s351 + $0xc1] sm:$0xff]
      %v2243 = vld [vmem:[%s351 + $0xc9] sm:$0xff]
      %v2244 = vld [vmem:[%s351 + $0xd9] sm:$0xff]
      %v2245 = vld [vmem:[%s351 + $0xe1] sm:$0xff]
      %v2246 = vld [vmem:[%s351 + $0xf1] sm:$0xff]
      %v2247 = vld [vmem:[%s351 + $0xf9] sm:$0xff]
      %v2248 = vld [vmem:[%s351 + $0x109] sm:$0xff]
      %v2249 = vld [vmem:[%s351 + $0x111] sm:$0xff]
      %v2250 = vld [vmem:[%s351 + $0x121] sm:$0xff]
      %v2251 = vld [vmem:[%s351 + $0x129] sm:$0xff]
      %v2252 = vld [vmem:[%s351 + $0x139] sm:$0xff]
      %v2253 = vld [vmem:[%s351 + $0x141] sm:$0xff]
      %v2254 = vld [vmem:[%s351 + $0x151] sm:$0xff]
      %v2255 = vld [vmem:[%s351 + $0x159] sm:$0xff]
      %v2256 = vld [vmem:[%s351 + $0x169] sm:$0xff]
      %v2257 = vld [vmem:[%s351 + $0x171] sm:$0xff]
      %v2258 = vld [vmem:[#allocation4] sm:$0xff]
      %v2259 = vld [vmem:[#allocation4 + $0x8] sm:$0xff]
      %v2260 = vld [vmem:[#allocation4 + $0x10] sm:$0xff]
      %v2261 = vld [vmem:[#allocation4 + $0x18] sm:$0xff]
      %v2262 = vld [vmem:[#allocation4 + $0x20] sm:$0xff]
      %v2263 = vld [vmem:[#allocation4 + $0x28] sm:$0xff]
      %v2264 = vld [vmem:[#allocation4 + $0x30] sm:$0xff]
      %v2265 = vld [vmem:[#allocation4 + $0x38] sm:$0xff]
      %v2266 = vld [vmem:[#allocation4 + $0x40] sm:$0xff]
      %v2267 = vld [vmem:[#allocation4 + $0x48] sm:$0xff]
      %v2268 = vld [vmem:[#allocation4 + $0x50] sm:$0xff]
      %v2269 = vld [vmem:[#allocation4 + $0x58] sm:$0xff]
      %v2270 = vld [vmem:[#allocation4 + $0x60] sm:$0xff]
      %v2271 = vld [vmem:[#allocation4 + $0x68] sm:$0xff]
      %v2272 = vld [vmem:[#allocation4 + $0x70] sm:$0xff]
      %v2273 = vld [vmem:[#allocation4 + $0x78] sm:$0xff]
      %v2274 = vld [vmem:[#allocation4 + $0x80] sm:$0xff]
      %v2275 = vld [vmem:[#allocation4 + $0x88] sm:$0xff]
      %v2276 = vld [vmem:[#allocation4 + $0x90] sm:$0xff]
      %v2277 = vld [vmem:[#allocation4 + $0x98] sm:$0xff]
      %v2278 = vld [vmem:[#allocation4 + $0xa0] sm:$0xff]
      %v2279 = vld [vmem:[#allocation4 + $0xa8] sm:$0xff]
      %v2280 = vld [vmem:[#allocation4 + $0xb0] sm:$0xff]
      %v2281 = vld [vmem:[#allocation4 + $0xb8] sm:$0xff]
      %v2282 = vld [vmem:[#allocation4 + $0xc0] sm:$0xff]
      %v2283 = vld [vmem:[#allocation4 + $0xc8] sm:$0xff]
      %v2284 = vld [vmem:[#allocation4 + $0xd0] sm:$0xff]
      %v2285 = vld [vmem:[#allocation4 + $0xd8] sm:$0xff]
      %v2286 = vld [vmem:[#allocation4 + $0xe0] sm:$0xff]
      %v2287 = vld [vmem:[#allocation4 + $0xe8] sm:$0xff]
      %v2288 = vld [vmem:[#allocation4 + $0xf0] sm:$0xff]
      %v2289 = vld [vmem:[#allocation4 + $0xf8] sm:$0xff]
      %s2290 = scalar_lea.vmem %s1, 32
      %v2291 = vld [vmem:[%s2290] sm:$0xff]
      %v2293 = vsel %vm230, %v2226, 0
      %v2296 = vsel %vm230, %v2227, 0
      %v2299 = vsel %vm230, %v2228, 0
      %v2302 = vsel %vm230, %v2229, 0
      %v2305 = vsel %vm230, %v2230, 0
      %v2308 = vsel %vm230, %v2231, 0
      %v2311 = vsel %vm230, %v2232, 0
      %v2314 = vsel %vm230, %v2233, 0
      %v2317 = vsel %vm230, %v2234, 0
      %v2320 = vsel %vm230, %v2235, 0
      %v2323 = vsel %vm230, %v2236, 0
      %v2326 = vsel %vm230, %v2237, 0
      %v2329 = vsel %vm230, %v2238, 0
      %v2332 = vsel %vm230, %v2239, 0
      %v2335 = vsel %vm230, %v2240, 0
      %v2338 = vsel %vm230, %v2241, 0
      %v2341 = vsel %vm230, %v2242, 0
      %v2344 = vsel %vm230, %v2243, 0
      %v2347 = vsel %vm230, %v2244, 0
      %v2350 = vsel %vm230, %v2245, 0
      %v2353 = vsel %vm230, %v2246, 0
      %v2356 = vsel %vm230, %v2247, 0
      %v2359 = vsel %vm230, %v2248, 0
      %v2362 = vsel %vm230, %v2249, 0
      %v2365 = vsel %vm230, %v2250, 0
      %v2368 = vsel %vm230, %v2251, 0
      %v2371 = vsel %vm230, %v2252, 0
      %v2374 = vsel %vm230, %v2253, 0
      %v2377 = vsel %vm230, %v2254, 0
      %v2380 = vsel %vm230, %v2255, 0
      %v2383 = vsel %vm230, %v2256, 0
      %v2386 = vsel %vm230, %v2257, 0
      %2388 = vmatprep.subr.mxu0 0.0
      %2389 = vmatpush1.msra.mxu0 %v2291
      %2390 = vmatprep.subr.mxu0 0.0
      %2391 = vmatpush1.msra.mxu0 0.0
      %2392 = vmatprep.subr.mxu0 0.0
      %2393 = vmatpush1.msra.mxu0 0.0
      %2394 = vmatprep.subr.mxu0 0.0
      %2395 = vmatpush1.msra.mxu0 0.0
      %2396 = vmatprep.subr.mxu0 0.0
      %2397 = vmatpush1.msra.mxu0 0.0
      %2398 = vmatprep.subr.mxu0 0.0
      %2399 = vmatpush1.msra.mxu0 0.0
      %2400 = vmatprep.subr.mxu0 0.0
      %2401 = vmatpush1.msra.mxu0 0.0
      %2402 = vmatprep.subr.mxu0 0.0
      %2403 = vmatpush1.msra.mxu0 0.0
      %2404 = vmatprep.subr.mxu0 0.0
      %2405 = vmatpush1.msra.mxu0 0.0
      %2406 = vmatprep.subr.mxu0 0.0
      %2407 = vmatpush1.msra.mxu0 0.0
      %2408 = vmatprep.subr.mxu0 0.0
      %2409 = vmatpush1.msra.mxu0 0.0
      %2410 = vmatprep.subr.mxu0 0.0
      %2411 = vmatpush1.msra.mxu0 0.0
      %2412 = vmatprep.subr.mxu0 0.0
      %2413 = vmatpush1.msra.mxu0 0.0
      %2414 = vmatprep.subr.mxu0 0.0
      %2415 = vmatpush1.msra.mxu0 0.0
      %2416 = vmatprep.subr.mxu0 0.0
      %2417 = vmatpush1.msra.mxu0 0.0
      %2418 = vmatprep.subr.mxu0 0.0
      %2419 = vmatpush1.msra.mxu0 0.0
      %2420 = vmatprep.subr.mxu0 0.0
      %2421 = vmatpush1.msra.mxu0 0.0
      %2422 = vmatprep.subr.mxu0 0.0
      %2423 = vmatpush1.msra.mxu0 0.0
      %2424 = vmatprep.subr.mxu0 0.0
      %2425 = vmatpush1.msra.mxu0 0.0
      %2426 = vmatprep.subr.mxu0 0.0
      %2427 = vmatpush1.msra.mxu0 0.0
      %2428 = vmatprep.subr.mxu0 0.0
      %2429 = vmatpush1.msra.mxu0 0.0
      %2430 = vmatprep.subr.mxu0 0.0
      %2431 = vmatpush1.msra.mxu0 0.0
      %2432 = vmatprep.subr.mxu0 0.0
      %2433 = vmatpush1.msra.mxu0 0.0
      %2434 = vmatprep.subr.mxu0 0.0
      %2435 = vmatpush1.msra.mxu0 0.0
      %2436 = vmatprep.subr.mxu0 0.0
      %2437 = vmatpush1.msra.mxu0 0.0
      %2438 = vmatprep.subr.mxu0 0.0
      %2439 = vmatpush1.msra.mxu0 0.0
      %2440 = vmatprep.subr.mxu0 0.0
      %2441 = vmatpush1.msra.mxu0 0.0
      %2442 = vmatprep.subr.mxu0 0.0
      %2443 = vmatpush1.msra.mxu0 0.0
      %2444 = vmatprep.subr.mxu0 0.0
      %2445 = vmatpush1.msra.mxu0 0.0
      %2446 = vmatprep.subr.mxu0 0.0
      %2447 = vmatpush1.msra.mxu0 0.0
      %2448 = vmatprep.subr.mxu0 0.0
      %2449 = vmatpush1.msra.mxu0 0.0
      %2450 = vmatprep.subr.mxu0 0.0
      %2451 = vmatpush1.msra.mxu0 0.0
      %2452 = vmatprep.mubr.f32.mxu0 0.0
      %2453 = vmatmul.mubr.f32.gmra.mrb[0].mxu0 %v2293
      %v2454 = vpop.f32.mrb[0].mxu0
      %v2455 = vadd.f32 0.0, %v2454
      %v2456 = vpop.f32.mrb[0].mxu0
      %2457 = vmatprep.mubr.f32.mxu0 0.0
      %2458 = vmatmul.mubr.f32.gmra.mrb[0].mxu0 %v2296
      %v2459 = vpop.f32.mrb[0].mxu0
      %v2460 = vadd.f32 0.0, %v2459
      %v2461 = vpop.f32.mrb[0].mxu0
      %2462 = vmatprep.mubr.f32.mxu0 0.0
      %2463 = vmatmul.mubr.f32.gmra.mrb[0].mxu0 %v2299
      %v2464 = vpop.f32.mrb[0].mxu0
      %v2465 = vadd.f32 0.0, %v2464
      %v2466 = vpop.f32.mrb[0].mxu0
      %2467 = vmatprep.mubr.f32.mxu0 0.0
      %2468 = vmatmul.mubr.f32.gmra.mrb[0].mxu0 %v2302
      %v2469 = vpop.f32.mrb[0].mxu0
      %v2470 = vadd.f32 0.0, %v2469
      %v2471 = vpop.f32.mrb[0].mxu0
      %2472 = vmatprep.mubr.f32.mxu0 0.0
      %2473 = vmatmul.mubr.f32.gmra.mrb[0].mxu0 %v2305
      %v2474 = vpop.f32.mrb[0].mxu0
      %v2475 = vadd.f32 0.0, %v2474
      %v2476 = vpop.f32.mrb[0].mxu0
      %2477 = vmatprep.mubr.f32.mxu0 0.0
      %2478 = vmatmul.mubr.f32.gmra.mrb[0].mxu0 %v2308
      %v2479 = vpop.f32.mrb[0].mxu0
      %v2480 = vadd.f32 0.0, %v2479
      %v2481 = vpop.f32.mrb[0].mxu0
      %2482 = vmatprep.mubr.f32.mxu0 0.0
      %2483 = vmatmul.mubr.f32.gmra.mrb[0].mxu0 %v2311
      %v2484 = vpop.f32.mrb[0].mxu0
      %v2485 = vadd.f32 0.0, %v2484
      %v2486 = vpop.f32.mrb[0].mxu0
      %2487 = vmatprep.mubr.f32.mxu0 0.0
      %2488 = vmatmul.mubr.f32.gmra.mrb[0].mxu0 %v2314
      %v2489 = vpop.f32.mrb[0].mxu0
      %v2490 = vadd.f32 0.0, %v2489
      %v2491 = vpop.f32.mrb[0].mxu0
      %2492 = vmatprep.mubr.f32.mxu0 0.0
      %2493 = vmatmul.mubr.f32.gmra.mrb[0].mxu0 %v2317
      %v2494 = vpop.f32.mrb[0].mxu0
      %v2495 = vadd.f32 0.0, %v2494
      %v2496 = vpop.f32.mrb[0].mxu0
      %2497 = vmatprep.mubr.f32.mxu0 0.0
      %2498 = vmatmul.mubr.f32.gmra.mrb[0].mxu0 %v2320
      %v2499 = vpop.f32.mrb[0].mxu0
      %v2500 = vadd.f32 0.0, %v2499
      %v2501 = vpop.f32.mrb[0].mxu0
      %2502 = vmatprep.mubr.f32.mxu0 0.0
      %2503 = vmatmul.mubr.f32.gmra.mrb[0].mxu0 %v2323
      %v2504 = vpop.f32.mrb[0].mxu0
      %v2505 = vadd.f32 0.0, %v2504
      %v2506 = vpop.f32.mrb[0].mxu0
      %2507 = vmatprep.mubr.f32.mxu0 0.0
      %2508 = vmatmul.mubr.f32.gmra.mrb[0].mxu0 %v2326
      %v2509 = vpop.f32.mrb[0].mxu0
      %v2510 = vadd.f32 0.0, %v2509
      %v2511 = vpop.f32.mrb[0].mxu0
      %2512 = vmatprep.mubr.f32.mxu0 0.0
      %2513 = vmatmul.mubr.f32.gmra.mrb[0].mxu0 %v2329
      %v2514 = vpop.f32.mrb[0].mxu0
      %v2515 = vadd.f32 0.0, %v2514
      %v2516 = vpop.f32.mrb[0].mxu0
      %2517 = vmatprep.mubr.f32.mxu0 0.0
      %2518 = vmatmul.mubr.f32.gmra.mrb[0].mxu0 %v2332
      %v2519 = vpop.f32.mrb[0].mxu0
      %v2520 = vadd.f32 0.0, %v2519
      %v2521 = vpop.f32.mrb[0].mxu0
      %2522 = vmatprep.mubr.f32.mxu0 0.0
      %2523 = vmatmul.mubr.f32.gmra.mrb[0].mxu0 %v2335
      %v2524 = vpop.f32.mrb[0].mxu0
      %v2525 = vadd.f32 0.0, %v2524
      %v2526 = vpop.f32.mrb[0].mxu0
      %2527 = vmatprep.mubr.f32.mxu0 0.0
      %2528 = vmatmul.mubr.f32.gmra.mrb[0].mxu0 %v2338
      %v2529 = vpop.f32.mrb[0].mxu0
      %v2530 = vadd.f32 0.0, %v2529
      %v2531 = vpop.f32.mrb[0].mxu0
      %2532 = vmatprep.mubr.f32.mxu0 0.0
      %2533 = vmatmul.mubr.f32.gmra.mrb[0].mxu0 %v2341
      %v2534 = vpop.f32.mrb[0].mxu0
      %v2535 = vadd.f32 0.0, %v2534
      %v2536 = vpop.f32.mrb[0].mxu0
      %2537 = vmatprep.mubr.f32.mxu0 0.0
      %2538 = vmatmul.mubr.f32.gmra.mrb[0].mxu0 %v2344
      %v2539 = vpop.f32.mrb[0].mxu0
      %v2540 = vadd.f32 0.0, %v2539
      %v2541 = vpop.f32.mrb[0].mxu0
      %2542 = vmatprep.mubr.f32.mxu0 0.0
      %2543 = vmatmul.mubr.f32.gmra.mrb[0].mxu0 %v2347
      %v2544 = vpop.f32.mrb[0].mxu0
      %v2545 = vadd.f32 0.0, %v2544
      %v2546 = vpop.f32.mrb[0].mxu0
      %2547 = vmatprep.mubr.f32.mxu0 0.0
      %2548 = vmatmul.mubr.f32.gmra.mrb[0].mxu0 %v2350
      %v2549 = vpop.f32.mrb[0].mxu0
      %v2550 = vadd.f32 0.0, %v2549
      %v2551 = vpop.f32.mrb[0].mxu0
      %2552 = vmatprep.mubr.f32.mxu0 0.0
      %2553 = vmatmul.mubr.f32.gmra.mrb[0].mxu0 %v2353
      %v2554 = vpop.f32.mrb[0].mxu0
      %v2555 = vadd.f32 0.0, %v2554
      %v2556 = vpop.f32.mrb[0].mxu0
      %2557 = vmatprep.mubr.f32.mxu0 0.0
      %2558 = vmatmul.mubr.f32.gmra.mrb[0].mxu0 %v2356
      %v2559 = vpop.f32.mrb[0].mxu0
      %v2560 = vadd.f32 0.0, %v2559
      %v2561 = vpop.f32.mrb[0].mxu0
      %2562 = vmatprep.mubr.f32.mxu0 0.0
      %2563 = vmatmul.mubr.f32.gmra.mrb[0].mxu0 %v2359
      %v2564 = vpop.f32.mrb[0].mxu0
      %v2565 = vadd.f32 0.0, %v2564
      %v2566 = vpop.f32.mrb[0].mxu0
      %2567 = vmatprep.mubr.f32.mxu0 0.0
      %2568 = vmatmul.mubr.f32.gmra.mrb[0].mxu0 %v2362
      %v2569 = vpop.f32.mrb[0].mxu0
      %v2570 = vadd.f32 0.0, %v2569
      %v2571 = vpop.f32.mrb[0].mxu0
      %2572 = vmatprep.mubr.f32.mxu0 0.0
      %2573 = vmatmul.mubr.f32.gmra.mrb[0].mxu0 %v2365
      %v2574 = vpop.f32.mrb[0].mxu0
      %v2575 = vadd.f32 0.0, %v2574
      %v2576 = vpop.f32.mrb[0].mxu0
      %2577 = vmatprep.mubr.f32.mxu0 0.0
      %2578 = vmatmul.mubr.f32.gmra.mrb[0].mxu0 %v2368
      %v2579 = vpop.f32.mrb[0].mxu0
      %v2580 = vadd.f32 0.0, %v2579
      %v2581 = vpop.f32.mrb[0].mxu0
      %2582 = vmatprep.mubr.f32.mxu0 0.0
      %2583 = vmatmul.mubr.f32.gmra.mrb[0].mxu0 %v2371
      %v2584 = vpop.f32.mrb[0].mxu0
      %v2585 = vadd.f32 0.0, %v2584
      %v2586 = vpop.f32.mrb[0].mxu0
      %2587 = vmatprep.mubr.f32.mxu0 0.0
      %2588 = vmatmul.mubr.f32.gmra.mrb[0].mxu0 %v2374
      %v2589 = vpop.f32.mrb[0].mxu0
      %v2590 = vadd.f32 0.0, %v2589
      %v2591 = vpop.f32.mrb[0].mxu0
      %2592 = vmatprep.mubr.f32.mxu0 0.0
      %2593 = vmatmul.mubr.f32.gmra.mrb[0].mxu0 %v2377
      %v2594 = vpop.f32.mrb[0].mxu0
      %v2595 = vadd.f32 0.0, %v2594
      %v2596 = vpop.f32.mrb[0].mxu0
      %2597 = vmatprep.mubr.f32.mxu0 0.0
      %2598 = vmatmul.mubr.f32.gmra.mrb[0].mxu0 %v2380
      %v2599 = vpop.f32.mrb[0].mxu0
      %v2600 = vadd.f32 0.0, %v2599
      %v2601 = vpop.f32.mrb[0].mxu0
      %2602 = vmatprep.mubr.f32.mxu0 0.0
      %2603 = vmatmul.mubr.f32.gmra.mrb[0].mxu0 %v2383
      %v2604 = vpop.f32.mrb[0].mxu0
      %v2605 = vadd.f32 0.0, %v2604
      %v2606 = vpop.f32.mrb[0].mxu0
      %2607 = vmatprep.mubr.f32.mxu0 0.0
      %2608 = vmatmul.mubr.f32.gmra.mrb[0].mxu0 %v2386
      %v2609 = vpop.f32.mrb[0].mxu0
      %v2610 = vadd.f32 0.0, %v2609
      %v2611 = vpop.f32.mrb[0].mxu0
      %2612 = vdwg.mxu0
      %v2613 = vadd.f32 %v2258, %v2455
      %v2614 = vadd.f32 %v2259, %v2460
      %v2615 = vadd.f32 %v2260, %v2465
      %v2616 = vadd.f32 %v2261, %v2470
      %v2617 = vadd.f32 %v2262, %v2475
      %v2618 = vadd.f32 %v2263, %v2480
      %v2619 = vadd.f32 %v2264, %v2485
      %v2620 = vadd.f32 %v2265, %v2490
      %v2621 = vadd.f32 %v2266, %v2495
      %v2622 = vadd.f32 %v2267, %v2500
      %v2623 = vadd.f32 %v2268, %v2505
      %v2624 = vadd.f32 %v2269, %v2510
      %v2625 = vadd.f32 %v2270, %v2515
      %v2626 = vadd.f32 %v2271, %v2520
      %v2627 = vadd.f32 %v2272, %v2525
      %v2628 = vadd.f32 %v2273, %v2530
      %v2629 = vadd.f32 %v2274, %v2535
      %v2630 = vadd.f32 %v2275, %v2540
      %v2631 = vadd.f32 %v2276, %v2545
      %v2632 = vadd.f32 %v2277, %v2550
      %v2633 = vadd.f32 %v2278, %v2555
      %v2634 = vadd.f32 %v2279, %v2560
      %v2635 = vadd.f32 %v2280, %v2565
      %v2636 = vadd.f32 %v2281, %v2570
      %v2637 = vadd.f32 %v2282, %v2575
      %v2638 = vadd.f32 %v2283, %v2580
      %v2639 = vadd.f32 %v2284, %v2585
      %v2640 = vadd.f32 %v2285, %v2590
      %v2641 = vadd.f32 %v2286, %v2595
      %v2642 = vadd.f32 %v2287, %v2600
      %v2643 = vadd.f32 %v2288, %v2605
      %v2644 = vadd.f32 %v2289, %v2610
      %2645 = vst.msk [vmem:[#allocation4] sm:$0xff] %vm230, %v2613
      %2646 = vst.msk [vmem:[#allocation4 + $0x8] sm:$0xff] %vm230, %v2614
      %2647 = vst.msk [vmem:[#allocation4 + $0x10] sm:$0xff] %vm230, %v2615
      %2648 = vst.msk [vmem:[#allocation4 + $0x18] sm:$0xff] %vm230, %v2616
      %2649 = vst.msk [vmem:[#allocation4 + $0x20] sm:$0xff] %vm230, %v2617
      %2650 = vst.msk [vmem:[#allocation4 + $0x28] sm:$0xff] %vm230, %v2618
      %2651 = vst.msk [vmem:[#allocation4 + $0x30] sm:$0xff] %vm230, %v2619
      %2652 = vst.msk [vmem:[#allocation4 + $0x38] sm:$0xff] %vm230, %v2620
      %2653 = vst.msk [vmem:[#allocation4 + $0x40] sm:$0xff] %vm230, %v2621
      %2654 = vst.msk [vmem:[#allocation4 + $0x48] sm:$0xff] %vm230, %v2622
      %2655 = vst.msk [vmem:[#allocation4 + $0x50] sm:$0xff] %vm230, %v2623
      %2656 = vst.msk [vmem:[#allocation4 + $0x58] sm:$0xff] %vm230, %v2624
      %2657 = vst.msk [vmem:[#allocation4 + $0x60] sm:$0xff] %vm230, %v2625
      %2658 = vst.msk [vmem:[#allocation4 + $0x68] sm:$0xff] %vm230, %v2626
      %2659 = vst.msk [vmem:[#allocation4 + $0x70] sm:$0xff] %vm230, %v2627
      %2660 = vst.msk [vmem:[#allocation4 + $0x78] sm:$0xff] %vm230, %v2628
      %2661 = vst.msk [vmem:[#allocation4 + $0x80] sm:$0xff] %vm230, %v2629
      %2662 = vst.msk [vmem:[#allocation4 + $0x88] sm:$0xff] %vm230, %v2630
      %2663 = vst.msk [vmem:[#allocation4 + $0x90] sm:$0xff] %vm230, %v2631
      %2664 = vst.msk [vmem:[#allocation4 + $0x98] sm:$0xff] %vm230, %v2632
      %2665 = vst.msk [vmem:[#allocation4 + $0xa0] sm:$0xff] %vm230, %v2633
      %2666 = vst.msk [vmem:[#allocation4 + $0xa8] sm:$0xff] %vm230, %v2634
      %2667 = vst.msk [vmem:[#allocation4 + $0xb0] sm:$0xff] %vm230, %v2635
      %2668 = vst.msk [vmem:[#allocation4 + $0xb8] sm:$0xff] %vm230, %v2636
      %2669 = vst.msk [vmem:[#allocation4 + $0xc0] sm:$0xff] %vm230, %v2637
      %2670 = vst.msk [vmem:[#allocation4 + $0xc8] sm:$0xff] %vm230, %v2638
      %2671 = vst.msk [vmem:[#allocation4 + $0xd0] sm:$0xff] %vm230, %v2639
      %2672 = vst.msk [vmem:[#allocation4 + $0xd8] sm:$0xff] %vm230, %v2640
      %2673 = vst.msk [vmem:[#allocation4 + $0xe0] sm:$0xff] %vm230, %v2641
      %2674 = vst.msk [vmem:[#allocation4 + $0xe8] sm:$0xff] %vm230, %v2642
      %2675 = vst.msk [vmem:[#allocation4 + $0xf0] sm:$0xff] %vm230, %v2643
      %2676 = vst.msk [vmem:[#allocation4 + $0xf8] sm:$0xff] %vm230, %v2644
      %v2677 = vld [vmem:[%s351 + $0x2] sm:$0xff]
      %v2678 = vld [vmem:[%s351 + $0xa] sm:$0xff]
      %v2679 = vld [vmem:[%s351 + $0x1a] sm:$0xff]
      %v2680 = vld [vmem:[%s351 + $0x22] sm:$0xff]
      %v2681 = vld [vmem:[%s351 + $0x32] sm:$0xff]
      %v2682 = vld [vmem:[%s351 + $0x3a] sm:$0xff]
      %v2683 = vld [vmem:[%s351 + $0x4a] sm:$0xff]
      %v2684 = vld [vmem:[%s351 + $0x52] sm:$0xff]
      %v2685 = vld [vmem:[%s351 + $0x62] sm:$0xff]
      %v2686 = vld [vmem:[%s351 + $0x6a] sm:$0xff]
      %v2687 = vld [vmem:[%s351 + $0x7a] sm:$0xff]
      %v2688 = vld [vmem:[%s351 + $0x82] sm:$0xff]
      %v2689 = vld [vmem:[%s351 + $0x92] sm:$0xff]
      %v2690 = vld [vmem:[%s351 + $0x9a] sm:$0xff]
      %v2691 = vld [vmem:[%s351 + $0xaa] sm:$0xff]
      %v2692 = vld [vmem:[%s351 + $0xb2] sm:$0xff]
      %v2693 = vld [vmem:[%s351 + $0xc2] sm:$0xff]
      %v2694 = vld [vmem:[%s351 + $0xca] sm:$0xff]
      %v2695 = vld [vmem:[%s351 + $0xda] sm:$0xff]
      %v2696 = vld [vmem:[%s351 + $0xe2] sm:$0xff]
      %v2697 = vld [vmem:[%s351 + $0xf2] sm:$0xff]
      %v2698 = vld [vmem:[%s351 + $0xfa] sm:$0xff]
      %v2699 = vld [vmem:[%s351 + $0x10a] sm:$0xff]
      %v2700 = vld [vmem:[%s351 + $0x112] sm:$0xff]
      %v2701 = vld [vmem:[%s351 + $0x122] sm:$0xff]
      %v2702 = vld [vmem:[%s351 + $0x12a] sm:$0xff]
      %v2703 = vld [vmem:[%s351 + $0x13a] sm:$0xff]
      %v2704 = vld [vmem:[%s351 + $0x142] sm:$0xff]
      %v2705 = vld [vmem:[%s351 + $0x152] sm:$0xff]
      %v2706 = vld [vmem:[%s351 + $0x15a] sm:$0xff]
      %v2707 = vld [vmem:[%s351 + $0x16a] sm:$0xff]
      %v2708 = vld [vmem:[%s351 + $0x172] sm:$0xff]
      %v2709 = vld [vmem:[#allocation4] sm:$0xff]
      %v2710 = vld [vmem:[#allocation4 + $0x8] sm:$0xff]
      %v2711 = vld [vmem:[#allocation4 + $0x10] sm:$0xff]
      %v2712 = vld [vmem:[#allocation4 + $0x18] sm:$0xff]
      %v2713 = vld [vmem:[#allocation4 + $0x20] sm:$0xff]
      %v2714 = vld [vmem:[#allocation4 + $0x28] sm:$0xff]
      %v2715 = vld [vmem:[#allocation4 + $0x30] sm:$0xff]
      %v2716 = vld [vmem:[#allocation4 + $0x38] sm:$0xff]
      %v2717 = vld [vmem:[#allocation4 + $0x40] sm:$0xff]
      %v2718 = vld [vmem:[#allocation4 + $0x48] sm:$0xff]
      %v2719 = vld [vmem:[#allocation4 + $0x50] sm:$0xff]
      %v2720 = vld [vmem:[#allocation4 + $0x58] sm:$0xff]
      %v2721 = vld [vmem:[#allocation4 + $0x60] sm:$0xff]
      %v2722 = vld [vmem:[#allocation4 + $0x68] sm:$0xff]
      %v2723 = vld [vmem:[#allocation4 + $0x70] sm:$0xff]
      %v2724 = vld [vmem:[#allocation4 + $0x78] sm:$0xff]
      %v2725 = vld [vmem:[#allocation4 + $0x80] sm:$0xff]
      %v2726 = vld [vmem:[#allocation4 + $0x88] sm:$0xff]
      %v2727 = vld [vmem:[#allocation4 + $0x90] sm:$0xff]
      %v2728 = vld [vmem:[#allocation4 + $0x98] sm:$0xff]
      %v2729 = vld [vmem:[#allocation4 + $0xa0] sm:$0xff]
      %v2730 = vld [vmem:[#allocation4 + $0xa8] sm:$0xff]
      %v2731 = vld [vmem:[#allocation4 + $0xb0] sm:$0xff]
      %v2732 = vld [vmem:[#allocation4 + $0xb8] sm:$0xff]
      %v2733 = vld [vmem:[#allocation4 + $0xc0] sm:$0xff]
      %v2734 = vld [vmem:[#allocation4 + $0xc8] sm:$0xff]
      %v2735 = vld [vmem:[#allocation4 + $0xd0] sm:$0xff]
      %v2736 = vld [vmem:[#allocation4 + $0xd8] sm:$0xff]
      %v2737 = vld [vmem:[#allocation4 + $0xe0] sm:$0xff]
      %v2738 = vld [vmem:[#allocation4 + $0xe8] sm:$0xff]
      %v2739 = vld [vmem:[#allocation4 + $0xf0] sm:$0xff]
      %v2740 = vld [vmem:[#allocation4 + $0xf8] sm:$0xff]
      %s2741 = scalar_lea.vmem %s1, 40
      %v2742 = vld [vmem:[%s2741] sm:$0xff]
      %v2744 = vsel %vm230, %v2677, 0
      %v2747 = vsel %vm230, %v2678, 0
      %v2750 = vsel %vm230, %v2679, 0
      %v2753 = vsel %vm230, %v2680, 0
      %v2756 = vsel %vm230, %v2681, 0
      %v2759 = vsel %vm230, %v2682, 0
      %v2762 = vsel %vm230, %v2683, 0
      %v2765 = vsel %vm230, %v2684, 0
      %v2768 = vsel %vm230, %v2685, 0
      %v2771 = vsel %vm230, %v2686, 0
      %v2774 = vsel %vm230, %v2687, 0
      %v2777 = vsel %vm230, %v2688, 0
      %v2780 = vsel %vm230, %v2689, 0
      %v2783 = vsel %vm230, %v2690, 0
      %v2786 = vsel %vm230, %v2691, 0
      %v2789 = vsel %vm230, %v2692, 0
      %v2792 = vsel %vm230, %v2693, 0
      %v2795 = vsel %vm230, %v2694, 0
      %v2798 = vsel %vm230, %v2695, 0
      %v2801 = vsel %vm230, %v2696, 0
      %v2804 = vsel %vm230, %v2697, 0
      %v2807 = vsel %vm230, %v2698, 0
      %v2810 = vsel %vm230, %v2699, 0
      %v2813 = vsel %vm230, %v2700, 0
      %v2816 = vsel %vm230, %v2701, 0
      %v2819 = vsel %vm230, %v2702, 0
      %v2822 = vsel %vm230, %v2703, 0
      %v2825 = vsel %vm230, %v2704, 0
      %v2828 = vsel %vm230, %v2705, 0
      %v2831 = vsel %vm230, %v2706, 0
      %v2834 = vsel %vm230, %v2707, 0
      %v2837 = vsel %vm230, %v2708, 0
      %2839 = vmatprep.subr.mxu0 0.0
      %2840 = vmatpush1.msra.mxu0 %v2742
      %2841 = vmatprep.subr.mxu0 0.0
      %2842 = vmatpush1.msra.mxu0 0.0
      %2843 = vmatprep.subr.mxu0 0.0
      %2844 = vmatpush1.msra.mxu0 0.0
      %2845 = vmatprep.subr.mxu0 0.0
      %2846 = vmatpush1.msra.mxu0 0.0
      %2847 = vmatprep.subr.mxu0 0.0
      %2848 = vmatpush1.msra.mxu0 0.0
      %2849 = vmatprep.subr.mxu0 0.0
      %2850 = vmatpush1.msra.mxu0 0.0
      %2851 = vmatprep.subr.mxu0 0.0
      %2852 = vmatpush1.msra.mxu0 0.0
      %2853 = vmatprep.subr.mxu0 0.0
      %2854 = vmatpush1.msra.mxu0 0.0
      %2855 = vmatprep.subr.mxu0 0.0
      %2856 = vmatpush1.msra.mxu0 0.0
      %2857 = vmatprep.subr.mxu0 0.0
      %2858 = vmatpush1.msra.mxu0 0.0
      %2859 = vmatprep.subr.mxu0 0.0
      %2860 = vmatpush1.msra.mxu0 0.0
      %2861 = vmatprep.subr.mxu0 0.0
      %2862 = vmatpush1.msra.mxu0 0.0
      %2863 = vmatprep.subr.mxu0 0.0
      %2864 = vmatpush1.msra.mxu0 0.0
      %2865 = vmatprep.subr.mxu0 0.0
      %2866 = vmatpush1.msra.mxu0 0.0
      %2867 = vmatprep.subr.mxu0 0.0
      %2868 = vmatpush1.msra.mxu0 0.0
      %2869 = vmatprep.subr.mxu0 0.0
      %2870 = vmatpush1.msra.mxu0 0.0
      %2871 = vmatprep.subr.mxu0 0.0
      %2872 = vmatpush1.msra.mxu0 0.0
      %2873 = vmatprep.subr.mxu0 0.0
      %2874 = vmatpush1.msra.mxu0 0.0
      %2875 = vmatprep.subr.mxu0 0.0
      %2876 = vmatpush1.msra.mxu0 0.0
      %2877 = vmatprep.subr.mxu0 0.0
      %2878 = vmatpush1.msra.mxu0 0.0
      %2879 = vmatprep.subr.mxu0 0.0
      %2880 = vmatpush1.msra.mxu0 0.0
      %2881 = vmatprep.subr.mxu0 0.0
      %2882 = vmatpush1.msra.mxu0 0.0
      %2883 = vmatprep.subr.mxu0 0.0
      %2884 = vmatpush1.msra.mxu0 0.0
      %2885 = vmatprep.subr.mxu0 0.0
      %2886 = vmatpush1.msra.mxu0 0.0
      %2887 = vmatprep.subr.mxu0 0.0
      %2888 = vmatpush1.msra.mxu0 0.0
      %2889 = vmatprep.subr.mxu0 0.0
      %2890 = vmatpush1.msra.mxu0 0.0
      %2891 = vmatprep.subr.mxu0 0.0
      %2892 = vmatpush1.msra.mxu0 0.0
      %2893 = vmatprep.subr.mxu0 0.0
      %2894 = vmatpush1.msra.mxu0 0.0
      %2895 = vmatprep.subr.mxu0 0.0
      %2896 = vmatpush1.msra.mxu0 0.0
      %2897 = vmatprep.subr.mxu0 0.0
      %2898 = vmatpush1.msra.mxu0 0.0
      %2899 = vmatprep.subr.mxu0 0.0
      %2900 = vmatpush1.msra.mxu0 0.0
      %2901 = vmatprep.subr.mxu0 0.0
      %2902 = vmatpush1.msra.mxu0 0.0
      %2903 = vmatprep.mubr.f32.mxu0 0.0
      %2904 = vmatmul.mubr.f32.gmra.mrb[0].mxu0 %v2744
      %v2905 = vpop.f32.mrb[0].mxu0
      %v2906 = vadd.f32 0.0, %v2905
      %v2907 = vpop.f32.mrb[0].mxu0
      %2908 = vmatprep.mubr.f32.mxu0 0.0
      %2909 = vmatmul.mubr.f32.gmra.mrb[0].mxu0 %v2747
      %v2910 = vpop.f32.mrb[0].mxu0
      %v2911 = vadd.f32 0.0, %v2910
      %v2912 = vpop.f32.mrb[0].mxu0
      %2913 = vmatprep.mubr.f32.mxu0 0.0
      %2914 = vmatmul.mubr.f32.gmra.mrb[0].mxu0 %v2750
      %v2915 = vpop.f32.mrb[0].mxu0
      %v2916 = vadd.f32 0.0, %v2915
      %v2917 = vpop.f32.mrb[0].mxu0
      %2918 = vmatprep.mubr.f32.mxu0 0.0
      %2919 = vmatmul.mubr.f32.gmra.mrb[0].mxu0 %v2753
      %v2920 = vpop.f32.mrb[0].mxu0
      %v2921 = vadd.f32 0.0, %v2920
      %v2922 = vpop.f32.mrb[0].mxu0
      %2923 = vmatprep.mubr.f32.mxu0 0.0
      %2924 = vmatmul.mubr.f32.gmra.mrb[0].mxu0 %v2756
      %v2925 = vpop.f32.mrb[0].mxu0
      %v2926 = vadd.f32 0.0, %v2925
      %v2927 = vpop.f32.mrb[0].mxu0
      %2928 = vmatprep.mubr.f32.mxu0 0.0
      %2929 = vmatmul.mubr.f32.gmra.mrb[0].mxu0 %v2759
      %v2930 = vpop.f32.mrb[0].mxu0
      %v2931 = vadd.f32 0.0, %v2930
      %v2932 = vpop.f32.mrb[0].mxu0
      %2933 = vmatprep.mubr.f32.mxu0 0.0
      %2934 = vmatmul.mubr.f32.gmra.mrb[0].mxu0 %v2762
      %v2935 = vpop.f32.mrb[0].mxu0
      %v2936 = vadd.f32 0.0, %v2935
      %v2937 = vpop.f32.mrb[0].mxu0
      %2938 = vmatprep.mubr.f32.mxu0 0.0
      %2939 = vmatmul.mubr.f32.gmra.mrb[0].mxu0 %v2765
      %v2940 = vpop.f32.mrb[0].mxu0
      %v2941 = vadd.f32 0.0, %v2940
      %v2942 = vpop.f32.mrb[0].mxu0
      %2943 = vmatprep.mubr.f32.mxu0 0.0
      %2944 = vmatmul.mubr.f32.gmra.mrb[0].mxu0 %v2768
      %v2945 = vpop.f32.mrb[0].mxu0
      %v2946 = vadd.f32 0.0, %v2945
      %v2947 = vpop.f32.mrb[0].mxu0
      %2948 = vmatprep.mubr.f32.mxu0 0.0
      %2949 = vmatmul.mubr.f32.gmra.mrb[0].mxu0 %v2771
      %v2950 = vpop.f32.mrb[0].mxu0
      %v2951 = vadd.f32 0.0, %v2950
      %v2952 = vpop.f32.mrb[0].mxu0
      %2953 = vmatprep.mubr.f32.mxu0 0.0
      %2954 = vmatmul.mubr.f32.gmra.mrb[0].mxu0 %v2774
      %v2955 = vpop.f32.mrb[0].mxu0
      %v2956 = vadd.f32 0.0, %v2955
      %v2957 = vpop.f32.mrb[0].mxu0
      %2958 = vmatprep.mubr.f32.mxu0 0.0
      %2959 = vmatmul.mubr.f32.gmra.mrb[0].mxu0 %v2777
      %v2960 = vpop.f32.mrb[0].mxu0
      %v2961 = vadd.f32 0.0, %v2960
      %v2962 = vpop.f32.mrb[0].mxu0
      %2963 = vmatprep.mubr.f32.mxu0 0.0
      %2964 = vmatmul.mubr.f32.gmra.mrb[0].mxu0 %v2780
      %v2965 = vpop.f32.mrb[0].mxu0
      %v2966 = vadd.f32 0.0, %v2965
      %v2967 = vpop.f32.mrb[0].mxu0
      %2968 = vmatprep.mubr.f32.mxu0 0.0
      %2969 = vmatmul.mubr.f32.gmra.mrb[0].mxu0 %v2783
      %v2970 = vpop.f32.mrb[0].mxu0
      %v2971 = vadd.f32 0.0, %v2970
      %v2972 = vpop.f32.mrb[0].mxu0
      %2973 = vmatprep.mubr.f32.mxu0 0.0
      %2974 = vmatmul.mubr.f32.gmra.mrb[0].mxu0 %v2786
      %v2975 = vpop.f32.mrb[0].mxu0
      %v2976 = vadd.f32 0.0, %v2975
      %v2977 = vpop.f32.mrb[0].mxu0
      %2978 = vmatprep.mubr.f32.mxu0 0.0
      %2979 = vmatmul.mubr.f32.gmra.mrb[0].mxu0 %v2789
      %v2980 = vpop.f32.mrb[0].mxu0
      %v2981 = vadd.f32 0.0, %v2980
      %v2982 = vpop.f32.mrb[0].mxu0
      %2983 = vmatprep.mubr.f32.mxu0 0.0
      %2984 = vmatmul.mubr.f32.gmra.mrb[0].mxu0 %v2792
      %v2985 = vpop.f32.mrb[0].mxu0
      %v2986 = vadd.f32 0.0, %v2985
      %v2987 = vpop.f32.mrb[0].mxu0
      %2988 = vmatprep.mubr.f32.mxu0 0.0
      %2989 = vmatmul.mubr.f32.gmra.mrb[0].mxu0 %v2795
      %v2990 = vpop.f32.mrb[0].mxu0
      %v2991 = vadd.f32 0.0, %v2990
      %v2992 = vpop.f32.mrb[0].mxu0
      %2993 = vmatprep.mubr.f32.mxu0 0.0
      %2994 = vmatmul.mubr.f32.gmra.mrb[0].mxu0 %v2798
      %v2995 = vpop.f32.mrb[0].mxu0
      %v2996 = vadd.f32 0.0, %v2995
      %v2997 = vpop.f32.mrb[0].mxu0
      %2998 = vmatprep.mubr.f32.mxu0 0.0
      %2999 = vmatmul.mubr.f32.gmra.mrb[0].mxu0 %v2801
      %v3000 = vpop.f32.mrb[0].mxu0
      %v3001 = vadd.f32 0.0, %v3000
      %v3002 = vpop.f32.mrb[0].mxu0
      %3003 = vmatprep.mubr.f32.mxu0 0.0
      %3004 = vmatmul.mubr.f32.gmra.mrb[0].mxu0 %v2804
      %v3005 = vpop.f32.mrb[0].mxu0
      %v3006 = vadd.f32 0.0, %v3005
      %v3007 = vpop.f32.mrb[0].mxu0
      %3008 = vmatprep.mubr.f32.mxu0 0.0
      %3009 = vmatmul.mubr.f32.gmra.mrb[0].mxu0 %v2807
      %v3010 = vpop.f32.mrb[0].mxu0
      %v3011 = vadd.f32 0.0, %v3010
      %v3012 = vpop.f32.mrb[0].mxu0
      %3013 = vmatprep.mubr.f32.mxu0 0.0
      %3014 = vmatmul.mubr.f32.gmra.mrb[0].mxu0 %v2810
      %v3015 = vpop.f32.mrb[0].mxu0
      %v3016 = vadd.f32 0.0, %v3015
      %v3017 = vpop.f32.mrb[0].mxu0
      %3018 = vmatprep.mubr.f32.mxu0 0.0
      %3019 = vmatmul.mubr.f32.gmra.mrb[0].mxu0 %v2813
      %v3020 = vpop.f32.mrb[0].mxu0
      %v3021 = vadd.f32 0.0, %v3020
      %v3022 = vpop.f32.mrb[0].mxu0
      %3023 = vmatprep.mubr.f32.mxu0 0.0
      %3024 = vmatmul.mubr.f32.gmra.mrb[0].mxu0 %v2816
      %v3025 = vpop.f32.mrb[0].mxu0
      %v3026 = vadd.f32 0.0, %v3025
      %v3027 = vpop.f32.mrb[0].mxu0
      %3028 = vmatprep.mubr.f32.mxu0 0.0
      %3029 = vmatmul.mubr.f32.gmra.mrb[0].mxu0 %v2819
      %v3030 = vpop.f32.mrb[0].mxu0
      %v3031 = vadd.f32 0.0, %v3030
      %v3032 = vpop.f32.mrb[0].mxu0
      %3033 = vmatprep.mubr.f32.mxu0 0.0
      %3034 = vmatmul.mubr.f32.gmra.mrb[0].mxu0 %v2822
      %v3035 = vpop.f32.mrb[0].mxu0
      %v3036 = vadd.f32 0.0, %v3035
      %v3037 = vpop.f32.mrb[0].mxu0
      %3038 = vmatprep.mubr.f32.mxu0 0.0
      %3039 = vmatmul.mubr.f32.gmra.mrb[0].mxu0 %v2825
      %v3040 = vpop.f32.mrb[0].mxu0
      %v3041 = vadd.f32 0.0, %v3040
      %v3042 = vpop.f32.mrb[0].mxu0
      %3043 = vmatprep.mubr.f32.mxu0 0.0
      %3044 = vmatmul.mubr.f32.gmra.mrb[0].mxu0 %v2828
      %v3045 = vpop.f32.mrb[0].mxu0
      %v3046 = vadd.f32 0.0, %v3045
      %v3047 = vpop.f32.mrb[0].mxu0
      %3048 = vmatprep.mubr.f32.mxu0 0.0
      %3049 = vmatmul.mubr.f32.gmra.mrb[0].mxu0 %v2831
      %v3050 = vpop.f32.mrb[0].mxu0
      %v3051 = vadd.f32 0.0, %v3050
      %v3052 = vpop.f32.mrb[0].mxu0
      %3053 = vmatprep.mubr.f32.mxu0 0.0
      %3054 = vmatmul.mubr.f32.gmra.mrb[0].mxu0 %v2834
      %v3055 = vpop.f32.mrb[0].mxu0
      %v3056 = vadd.f32 0.0, %v3055
      %v3057 = vpop.f32.mrb[0].mxu0
      %3058 = vmatprep.mubr.f32.mxu0 0.0
      %3059 = vmatmul.mubr.f32.gmra.mrb[0].mxu0 %v2837
      %v3060 = vpop.f32.mrb[0].mxu0
      %v3061 = vadd.f32 0.0, %v3060
      %v3062 = vpop.f32.mrb[0].mxu0
      %3063 = vdwg.mxu0
      %v3064 = vadd.f32 %v2709, %v2906
      %v3065 = vadd.f32 %v2710, %v2911
      %v3066 = vadd.f32 %v2711, %v2916
      %v3067 = vadd.f32 %v2712, %v2921
      %v3068 = vadd.f32 %v2713, %v2926
      %v3069 = vadd.f32 %v2714, %v2931
      %v3070 = vadd.f32 %v2715, %v2936
      %v3071 = vadd.f32 %v2716, %v2941
      %v3072 = vadd.f32 %v2717, %v2946
      %v3073 = vadd.f32 %v2718, %v2951
      %v3074 = vadd.f32 %v2719, %v2956
      %v3075 = vadd.f32 %v2720, %v2961
      %v3076 = vadd.f32 %v2721, %v2966
      %v3077 = vadd.f32 %v2722, %v2971
      %v3078 = vadd.f32 %v2723, %v2976
      %v3079 = vadd.f32 %v2724, %v2981
      %v3080 = vadd.f32 %v2725, %v2986
      %v3081 = vadd.f32 %v2726, %v2991
      %v3082 = vadd.f32 %v2727, %v2996
      %v3083 = vadd.f32 %v2728, %v3001
      %v3084 = vadd.f32 %v2729, %v3006
      %v3085 = vadd.f32 %v2730, %v3011
      %v3086 = vadd.f32 %v2731, %v3016
      %v3087 = vadd.f32 %v2732, %v3021
      %v3088 = vadd.f32 %v2733, %v3026
      %v3089 = vadd.f32 %v2734, %v3031
      %v3090 = vadd.f32 %v2735, %v3036
      %v3091 = vadd.f32 %v2736, %v3041
      %v3092 = vadd.f32 %v2737, %v3046
      %v3093 = vadd.f32 %v2738, %v3051
      %v3094 = vadd.f32 %v2739, %v3056
      %v3095 = vadd.f32 %v2740, %v3061
      %3096 = vst.msk [vmem:[#allocation4] sm:$0xff] %vm230, %v3064
      %3097 = vst.msk [vmem:[#allocation4 + $0x8] sm:$0xff] %vm230, %v3065
      %3098 = vst.msk [vmem:[#allocation4 + $0x10] sm:$0xff] %vm230, %v3066
      %3099 = vst.msk [vmem:[#allocation4 + $0x18] sm:$0xff] %vm230, %v3067
      %3100 = vst.msk [vmem:[#allocation4 + $0x20] sm:$0xff] %vm230, %v3068
      %3101 = vst.msk [vmem:[#allocation4 + $0x28] sm:$0xff] %vm230, %v3069
      %3102 = vst.msk [vmem:[#allocation4 + $0x30] sm:$0xff] %vm230, %v3070
      %3103 = vst.msk [vmem:[#allocation4 + $0x38] sm:$0xff] %vm230, %v3071
      %3104 = vst.msk [vmem:[#allocation4 + $0x40] sm:$0xff] %vm230, %v3072
      %3105 = vst.msk [vmem:[#allocation4 + $0x48] sm:$0xff] %vm230, %v3073
      %3106 = vst.msk [vmem:[#allocation4 + $0x50] sm:$0xff] %vm230, %v3074
      %3107 = vst.msk [vmem:[#allocation4 + $0x58] sm:$0xff] %vm230, %v3075
      %3108 = vst.msk [vmem:[#allocation4 + $0x60] sm:$0xff] %vm230, %v3076
      %3109 = vst.msk [vmem:[#allocation4 + $0x68] sm:$0xff] %vm230, %v3077
      %3110 = vst.msk [vmem:[#allocation4 + $0x70] sm:$0xff] %vm230, %v3078
      %3111 = vst.msk [vmem:[#allocation4 + $0x78] sm:$0xff] %vm230, %v3079
      %3112 = vst.msk [vmem:[#allocation4 + $0x80] sm:$0xff] %vm230, %v3080
      %3113 = vst.msk [vmem:[#allocation4 + $0x88] sm:$0xff] %vm230, %v3081
      %3114 = vst.msk [vmem:[#allocation4 + $0x90] sm:$0xff] %vm230, %v3082
      %3115 = vst.msk [vmem:[#allocation4 + $0x98] sm:$0xff] %vm230, %v3083
      %3116 = vst.msk [vmem:[#allocation4 + $0xa0] sm:$0xff] %vm230, %v3084
      %3117 = vst.msk [vmem:[#allocation4 + $0xa8] sm:$0xff] %vm230, %v3085
      %3118 = vst.msk [vmem:[#allocation4 + $0xb0] sm:$0xff] %vm230, %v3086
      %3119 = vst.msk [vmem:[#allocation4 + $0xb8] sm:$0xff] %vm230, %v3087
      %3120 = vst.msk [vmem:[#allocation4 + $0xc0] sm:$0xff] %vm230, %v3088
      %3121 = vst.msk [vmem:[#allocation4 + $0xc8] sm:$0xff] %vm230, %v3089
      %3122 = vst.msk [vmem:[#allocation4 + $0xd0] sm:$0xff] %vm230, %v3090
      %3123 = vst.msk [vmem:[#allocation4 + $0xd8] sm:$0xff] %vm230, %v3091
      %3124 = vst.msk [vmem:[#allocation4 + $0xe0] sm:$0xff] %vm230, %v3092
      %3125 = vst.msk [vmem:[#allocation4 + $0xe8] sm:$0xff] %vm230, %v3093
      %3126 = vst.msk [vmem:[#allocation4 + $0xf0] sm:$0xff] %vm230, %v3094
      %3127 = vst.msk [vmem:[#allocation4 + $0xf8] sm:$0xff] %vm230, %v3095
      %s3128 = scalar_lea.vmem [#allocation2], 48
      %v3129 = vld [vmem:[%s3128] sm:$0xff]
      %v3130 = vld [vmem:[%s3128 + $0x8] sm:$0xff]
      %v3131 = vld [vmem:[%s3128 + $0x18] sm:$0xff]
      %v3132 = vld [vmem:[%s3128 + $0x20] sm:$0xff]
      %v3133 = vld [vmem:[%s3128 + $0x30] sm:$0xff]
      %v3134 = vld [vmem:[%s3128 + $0x38] sm:$0xff]
      %v3135 = vld [vmem:[%s3128 + $0x48] sm:$0xff]
      %v3136 = vld [vmem:[%s3128 + $0x50] sm:$0xff]
      %v3137 = vld [vmem:[%s3128 + $0x60] sm:$0xff]
      %v3138 = vld [vmem:[%s3128 + $0x68] sm:$0xff]
      %v3139 = vld [vmem:[%s3128 + $0x78] sm:$0xff]
      %v3140 = vld [vmem:[%s3128 + $0x80] sm:$0xff]
      %v3141 = vld [vmem:[%s3128 + $0x90] sm:$0xff]
      %v3142 = vld [vmem:[%s3128 + $0x98] sm:$0xff]
      %v3143 = vld [vmem:[%s3128 + $0xa8] sm:$0xff]
      %v3144 = vld [vmem:[%s3128 + $0xb0] sm:$0xff]
      %v3145 = vld [vmem:[%s3128 + $0xc0] sm:$0xff]
      %v3146 = vld [vmem:[%s3128 + $0xc8] sm:$0xff]
      %v3147 = vld [vmem:[%s3128 + $0xd8] sm:$0xff]
      %v3148 = vld [vmem:[%s3128 + $0xe0] sm:$0xff]
      %v3149 = vld [vmem:[%s3128 + $0xf0] sm:$0xff]
      %v3150 = vld [vmem:[%s3128 + $0xf8] sm:$0xff]
      %v3151 = vld [vmem:[%s3128 + $0x108] sm:$0xff]
      %v3152 = vld [vmem:[%s3128 + $0x110] sm:$0xff]
      %v3153 = vld [vmem:[%s3128 + $0x120] sm:$0xff]
      %v3154 = vld [vmem:[%s3128 + $0x128] sm:$0xff]
      %v3155 = vld [vmem:[%s3128 + $0x138] sm:$0xff]
      %v3156 = vld [vmem:[%s3128 + $0x140] sm:$0xff]
      %v3157 = vld [vmem:[%s3128 + $0x150] sm:$0xff]
      %v3158 = vld [vmem:[%s3128 + $0x158] sm:$0xff]
      %v3159 = vld [vmem:[%s3128 + $0x168] sm:$0xff]
      %v3160 = vld [vmem:[%s3128 + $0x170] sm:$0xff]
      %v3161 = vld [vmem:[#allocation4] sm:$0xff]
      %v3162 = vld [vmem:[#allocation4 + $0x8] sm:$0xff]
      %v3163 = vld [vmem:[#allocation4 + $0x10] sm:$0xff]
      %v3164 = vld [vmem:[#allocation4 + $0x18] sm:$0xff]
      %v3165 = vld [vmem:[#allocation4 + $0x20] sm:$0xff]
      %v3166 = vld [vmem:[#allocation4 + $0x28] sm:$0xff]
      %v3167 = vld [vmem:[#allocation4 + $0x30] sm:$0xff]
      %v3168 = vld [vmem:[#allocation4 + $0x38] sm:$0xff]
      %v3169 = vld [vmem:[#allocation4 + $0x40] sm:$0xff]
      %v3170 = vld [vmem:[#allocation4 + $0x48] sm:$0xff]
      %v3171 = vld [vmem:[#allocation4 + $0x50] sm:$0xff]
      %v3172 = vld [vmem:[#allocation4 + $0x58] sm:$0xff]
      %v3173 = vld [vmem:[#allocation4 + $0x60] sm:$0xff]
      %v3174 = vld [vmem:[#allocation4 + $0x68] sm:$0xff]
      %v3175 = vld [vmem:[#allocation4 + $0x70] sm:$0xff]
      %v3176 = vld [vmem:[#allocation4 + $0x78] sm:$0xff]
      %v3177 = vld [vmem:[#allocation4 + $0x80] sm:$0xff]
      %v3178 = vld [vmem:[#allocation4 + $0x88] sm:$0xff]
      %v3179 = vld [vmem:[#allocation4 + $0x90] sm:$0xff]
      %v3180 = vld [vmem:[#allocation4 + $0x98] sm:$0xff]
      %v3181 = vld [vmem:[#allocation4 + $0xa0] sm:$0xff]
      %v3182 = vld [vmem:[#allocation4 + $0xa8] sm:$0xff]
      %v3183 = vld [vmem:[#allocation4 + $0xb0] sm:$0xff]
      %v3184 = vld [vmem:[#allocation4 + $0xb8] sm:$0xff]
      %v3185 = vld [vmem:[#allocation4 + $0xc0] sm:$0xff]
      %v3186 = vld [vmem:[#allocation4 + $0xc8] sm:$0xff]
      %v3187 = vld [vmem:[#allocation4 + $0xd0] sm:$0xff]
      %v3188 = vld [vmem:[#allocation4 + $0xd8] sm:$0xff]
      %v3189 = vld [vmem:[#allocation4 + $0xe0] sm:$0xff]
      %v3190 = vld [vmem:[#allocation4 + $0xe8] sm:$0xff]
      %v3191 = vld [vmem:[#allocation4 + $0xf0] sm:$0xff]
      %v3192 = vld [vmem:[#allocation4 + $0xf8] sm:$0xff]
      %s3193 = scalar_lea.vmem %s1, 48
      %v3194 = vld [vmem:[%s3193] sm:$0xff]
      %v3196 = vsel %vm230, %v3129, 0
      %v3199 = vsel %vm230, %v3130, 0
      %v3202 = vsel %vm230, %v3131, 0
      %v3205 = vsel %vm230, %v3132, 0
      %v3208 = vsel %vm230, %v3133, 0
      %v3211 = vsel %vm230, %v3134, 0
      %v3214 = vsel %vm230, %v3135, 0
      %v3217 = vsel %vm230, %v3136, 0
      %v3220 = vsel %vm230, %v3137, 0
      %v3223 = vsel %vm230, %v3138, 0
      %v3226 = vsel %vm230, %v3139, 0
      %v3229 = vsel %vm230, %v3140, 0
      %v3232 = vsel %vm230, %v3141, 0
      %v3235 = vsel %vm230, %v3142, 0
      %v3238 = vsel %vm230, %v3143, 0
      %v3241 = vsel %vm230, %v3144, 0
      %v3244 = vsel %vm230, %v3145, 0
      %v3247 = vsel %vm230, %v3146, 0
      %v3250 = vsel %vm230, %v3147, 0
      %v3253 = vsel %vm230, %v3148, 0
      %v3256 = vsel %vm230, %v3149, 0
      %v3259 = vsel %vm230, %v3150, 0
      %v3262 = vsel %vm230, %v3151, 0
      %v3265 = vsel %vm230, %v3152, 0
      %v3268 = vsel %vm230, %v3153, 0
      %v3271 = vsel %vm230, %v3154, 0
      %v3274 = vsel %vm230, %v3155, 0
      %v3277 = vsel %vm230, %v3156, 0
      %v3280 = vsel %vm230, %v3157, 0
      %v3283 = vsel %vm230, %v3158, 0
      %v3286 = vsel %vm230, %v3159, 0
      %v3289 = vsel %vm230, %v3160, 0
      %3291 = vmatprep.subr.mxu0 0.0
      %3292 = vmatpush1.msra.mxu0 %v3194
      %3293 = vmatprep.subr.mxu0 0.0
      %3294 = vmatpush1.msra.mxu0 0.0
      %3295 = vmatprep.subr.mxu0 0.0
      %3296 = vmatpush1.msra.mxu0 0.0
      %3297 = vmatprep.subr.mxu0 0.0
      %3298 = vmatpush1.msra.mxu0 0.0
      %3299 = vmatprep.subr.mxu0 0.0
      %3300 = vmatpush1.msra.mxu0 0.0
      %3301 = vmatprep.subr.mxu0 0.0
      %3302 = vmatpush1.msra.mxu0 0.0
      %3303 = vmatprep.subr.mxu0 0.0
      %3304 = vmatpush1.msra.mxu0 0.0
      %3305 = vmatprep.subr.mxu0 0.0
      %3306 = vmatpush1.msra.mxu0 0.0
      %3307 = vmatprep.subr.mxu0 0.0
      %3308 = vmatpush1.msra.mxu0 0.0
      %3309 = vmatprep.subr.mxu0 0.0
      %3310 = vmatpush1.msra.mxu0 0.0
      %3311 = vmatprep.subr.mxu0 0.0
      %3312 = vmatpush1.msra.mxu0 0.0
      %3313 = vmatprep.subr.mxu0 0.0
      %3314 = vmatpush1.msra.mxu0 0.0
      %3315 = vmatprep.subr.mxu0 0.0
      %3316 = vmatpush1.msra.mxu0 0.0
      %3317 = vmatprep.subr.mxu0 0.0
      %3318 = vmatpush1.msra.mxu0 0.0
      %3319 = vmatprep.subr.mxu0 0.0
      %3320 = vmatpush1.msra.mxu0 0.0
      %3321 = vmatprep.subr.mxu0 0.0
      %3322 = vmatpush1.msra.mxu0 0.0
      %3323 = vmatprep.subr.mxu0 0.0
      %3324 = vmatpush1.msra.mxu0 0.0
      %3325 = vmatprep.subr.mxu0 0.0
      %3326 = vmatpush1.msra.mxu0 0.0
      %3327 = vmatprep.subr.mxu0 0.0
      %3328 = vmatpush1.msra.mxu0 0.0
      %3329 = vmatprep.subr.mxu0 0.0
      %3330 = vmatpush1.msra.mxu0 0.0
      %3331 = vmatprep.subr.mxu0 0.0
      %3332 = vmatpush1.msra.mxu0 0.0
      %3333 = vmatprep.subr.mxu0 0.0
      %3334 = vmatpush1.msra.mxu0 0.0
      %3335 = vmatprep.subr.mxu0 0.0
      %3336 = vmatpush1.msra.mxu0 0.0
      %3337 = vmatprep.subr.mxu0 0.0
      %3338 = vmatpush1.msra.mxu0 0.0
      %3339 = vmatprep.subr.mxu0 0.0
      %3340 = vmatpush1.msra.mxu0 0.0
      %3341 = vmatprep.subr.mxu0 0.0
      %3342 = vmatpush1.msra.mxu0 0.0
      %3343 = vmatprep.subr.mxu0 0.0
      %3344 = vmatpush1.msra.mxu0 0.0
      %3345 = vmatprep.subr.mxu0 0.0
      %3346 = vmatpush1.msra.mxu0 0.0
      %3347 = vmatprep.subr.mxu0 0.0
      %3348 = vmatpush1.msra.mxu0 0.0
      %3349 = vmatprep.subr.mxu0 0.0
      %3350 = vmatpush1.msra.mxu0 0.0
      %3351 = vmatprep.subr.mxu0 0.0
      %3352 = vmatpush1.msra.mxu0 0.0
      %3353 = vmatprep.subr.mxu0 0.0
      %3354 = vmatpush1.msra.mxu0 0.0
      %3355 = vmatprep.mubr.f32.mxu0 0.0
      %3356 = vmatmul.mubr.f32.gmra.mrb[0].mxu0 %v3196
      %v3357 = vpop.f32.mrb[0].mxu0
      %v3358 = vadd.f32 0.0, %v3357
      %v3359 = vpop.f32.mrb[0].mxu0
      %3360 = vmatprep.mubr.f32.mxu0 0.0
      %3361 = vmatmul.mubr.f32.gmra.mrb[0].mxu0 %v3199
      %v3362 = vpop.f32.mrb[0].mxu0
      %v3363 = vadd.f32 0.0, %v3362
      %v3364 = vpop.f32.mrb[0].mxu0
      %3365 = vmatprep.mubr.f32.mxu0 0.0
      %3366 = vmatmul.mubr.f32.gmra.mrb[0].mxu0 %v3202
      %v3367 = vpop.f32.mrb[0].mxu0
      %v3368 = vadd.f32 0.0, %v3367
      %v3369 = vpop.f32.mrb[0].mxu0
      %3370 = vmatprep.mubr.f32.mxu0 0.0
      %3371 = vmatmul.mubr.f32.gmra.mrb[0].mxu0 %v3205
      %v3372 = vpop.f32.mrb[0].mxu0
      %v3373 = vadd.f32 0.0, %v3372
      %v3374 = vpop.f32.mrb[0].mxu0
      %3375 = vmatprep.mubr.f32.mxu0 0.0
      %3376 = vmatmul.mubr.f32.gmra.mrb[0].mxu0 %v3208
      %v3377 = vpop.f32.mrb[0].mxu0
      %v3378 = vadd.f32 0.0, %v3377
      %v3379 = vpop.f32.mrb[0].mxu0
      %3380 = vmatprep.mubr.f32.mxu0 0.0
      %3381 = vmatmul.mubr.f32.gmra.mrb[0].mxu0 %v3211
      %v3382 = vpop.f32.mrb[0].mxu0
      %v3383 = vadd.f32 0.0, %v3382
      %v3384 = vpop.f32.mrb[0].mxu0
      %3385 = vmatprep.mubr.f32.mxu0 0.0
      %3386 = vmatmul.mubr.f32.gmra.mrb[0].mxu0 %v3214
      %v3387 = vpop.f32.mrb[0].mxu0
      %v3388 = vadd.f32 0.0, %v3387
      %v3389 = vpop.f32.mrb[0].mxu0
      %3390 = vmatprep.mubr.f32.mxu0 0.0
      %3391 = vmatmul.mubr.f32.gmra.mrb[0].mxu0 %v3217
      %v3392 = vpop.f32.mrb[0].mxu0
      %v3393 = vadd.f32 0.0, %v3392
      %v3394 = vpop.f32.mrb[0].mxu0
      %3395 = vmatprep.mubr.f32.mxu0 0.0
      %3396 = vmatmul.mubr.f32.gmra.mrb[0].mxu0 %v3220
      %v3397 = vpop.f32.mrb[0].mxu0
      %v3398 = vadd.f32 0.0, %v3397
      %v3399 = vpop.f32.mrb[0].mxu0
      %3400 = vmatprep.mubr.f32.mxu0 0.0
      %3401 = vmatmul.mubr.f32.gmra.mrb[0].mxu0 %v3223
      %v3402 = vpop.f32.mrb[0].mxu0
      %v3403 = vadd.f32 0.0, %v3402
      %v3404 = vpop.f32.mrb[0].mxu0
      %3405 = vmatprep.mubr.f32.mxu0 0.0
      %3406 = vmatmul.mubr.f32.gmra.mrb[0].mxu0 %v3226
      %v3407 = vpop.f32.mrb[0].mxu0
      %v3408 = vadd.f32 0.0, %v3407
      %v3409 = vpop.f32.mrb[0].mxu0
      %3410 = vmatprep.mubr.f32.mxu0 0.0
      %3411 = vmatmul.mubr.f32.gmra.mrb[0].mxu0 %v3229
      %v3412 = vpop.f32.mrb[0].mxu0
      %v3413 = vadd.f32 0.0, %v3412
      %v3414 = vpop.f32.mrb[0].mxu0
      %3415 = vmatprep.mubr.f32.mxu0 0.0
      %3416 = vmatmul.mubr.f32.gmra.mrb[0].mxu0 %v3232
      %v3417 = vpop.f32.mrb[0].mxu0
      %v3418 = vadd.f32 0.0, %v3417
      %v3419 = vpop.f32.mrb[0].mxu0
      %3420 = vmatprep.mubr.f32.mxu0 0.0
      %3421 = vmatmul.mubr.f32.gmra.mrb[0].mxu0 %v3235
      %v3422 = vpop.f32.mrb[0].mxu0
      %v3423 = vadd.f32 0.0, %v3422
      %v3424 = vpop.f32.mrb[0].mxu0
      %3425 = vmatprep.mubr.f32.mxu0 0.0
      %3426 = vmatmul.mubr.f32.gmra.mrb[0].mxu0 %v3238
      %v3427 = vpop.f32.mrb[0].mxu0
      %v3428 = vadd.f32 0.0, %v3427
      %v3429 = vpop.f32.mrb[0].mxu0
      %3430 = vmatprep.mubr.f32.mxu0 0.0
      %3431 = vmatmul.mubr.f32.gmra.mrb[0].mxu0 %v3241
      %v3432 = vpop.f32.mrb[0].mxu0
      %v3433 = vadd.f32 0.0, %v3432
      %v3434 = vpop.f32.mrb[0].mxu0
      %3435 = vmatprep.mubr.f32.mxu0 0.0
      %3436 = vmatmul.mubr.f32.gmra.mrb[0].mxu0 %v3244
      %v3437 = vpop.f32.mrb[0].mxu0
      %v3438 = vadd.f32 0.0, %v3437
      %v3439 = vpop.f32.mrb[0].mxu0
      %3440 = vmatprep.mubr.f32.mxu0 0.0
      %3441 = vmatmul.mubr.f32.gmra.mrb[0].mxu0 %v3247
      %v3442 = vpop.f32.mrb[0].mxu0
      %v3443 = vadd.f32 0.0, %v3442
      %v3444 = vpop.f32.mrb[0].mxu0
      %3445 = vmatprep.mubr.f32.mxu0 0.0
      %3446 = vmatmul.mubr.f32.gmra.mrb[0].mxu0 %v3250
      %v3447 = vpop.f32.mrb[0].mxu0
      %v3448 = vadd.f32 0.0, %v3447
      %v3449 = vpop.f32.mrb[0].mxu0
      %3450 = vmatprep.mubr.f32.mxu0 0.0
      %3451 = vmatmul.mubr.f32.gmra.mrb[0].mxu0 %v3253
      %v3452 = vpop.f32.mrb[0].mxu0
      %v3453 = vadd.f32 0.0, %v3452
      %v3454 = vpop.f32.mrb[0].mxu0
      %3455 = vmatprep.mubr.f32.mxu0 0.0
      %3456 = vmatmul.mubr.f32.gmra.mrb[0].mxu0 %v3256
      %v3457 = vpop.f32.mrb[0].mxu0
      %v3458 = vadd.f32 0.0, %v3457
      %v3459 = vpop.f32.mrb[0].mxu0
      %3460 = vmatprep.mubr.f32.mxu0 0.0
      %3461 = vmatmul.mubr.f32.gmra.mrb[0].mxu0 %v3259
      %v3462 = vpop.f32.mrb[0].mxu0
      %v3463 = vadd.f32 0.0, %v3462
      %v3464 = vpop.f32.mrb[0].mxu0
      %3465 = vmatprep.mubr.f32.mxu0 0.0
      %3466 = vmatmul.mubr.f32.gmra.mrb[0].mxu0 %v3262
      %v3467 = vpop.f32.mrb[0].mxu0
      %v3468 = vadd.f32 0.0, %v3467
      %v3469 = vpop.f32.mrb[0].mxu0
      %3470 = vmatprep.mubr.f32.mxu0 0.0
      %3471 = vmatmul.mubr.f32.gmra.mrb[0].mxu0 %v3265
      %v3472 = vpop.f32.mrb[0].mxu0
      %v3473 = vadd.f32 0.0, %v3472
      %v3474 = vpop.f32.mrb[0].mxu0
      %3475 = vmatprep.mubr.f32.mxu0 0.0
      %3476 = vmatmul.mubr.f32.gmra.mrb[0].mxu0 %v3268
      %v3477 = vpop.f32.mrb[0].mxu0
      %v3478 = vadd.f32 0.0, %v3477
      %v3479 = vpop.f32.mrb[0].mxu0
      %3480 = vmatprep.mubr.f32.mxu0 0.0
      %3481 = vmatmul.mubr.f32.gmra.mrb[0].mxu0 %v3271
      %v3482 = vpop.f32.mrb[0].mxu0
      %v3483 = vadd.f32 0.0, %v3482
      %v3484 = vpop.f32.mrb[0].mxu0
      %3485 = vmatprep.mubr.f32.mxu0 0.0
      %3486 = vmatmul.mubr.f32.gmra.mrb[0].mxu0 %v3274
      %v3487 = vpop.f32.mrb[0].mxu0
      %v3488 = vadd.f32 0.0, %v3487
      %v3489 = vpop.f32.mrb[0].mxu0
      %3490 = vmatprep.mubr.f32.mxu0 0.0
      %3491 = vmatmul.mubr.f32.gmra.mrb[0].mxu0 %v3277
      %v3492 = vpop.f32.mrb[0].mxu0
      %v3493 = vadd.f32 0.0, %v3492
      %v3494 = vpop.f32.mrb[0].mxu0
      %3495 = vmatprep.mubr.f32.mxu0 0.0
      %3496 = vmatmul.mubr.f32.gmra.mrb[0].mxu0 %v3280
      %v3497 = vpop.f32.mrb[0].mxu0
      %v3498 = vadd.f32 0.0, %v3497
      %v3499 = vpop.f32.mrb[0].mxu0
      %3500 = vmatprep.mubr.f32.mxu0 0.0
      %3501 = vmatmul.mubr.f32.gmra.mrb[0].mxu0 %v3283
      %v3502 = vpop.f32.mrb[0].mxu0
      %v3503 = vadd.f32 0.0, %v3502
      %v3504 = vpop.f32.mrb[0].mxu0
      %3505 = vmatprep.mubr.f32.mxu0 0.0
      %3506 = vmatmul.mubr.f32.gmra.mrb[0].mxu0 %v3286
      %v3507 = vpop.f32.mrb[0].mxu0
      %v3508 = vadd.f32 0.0, %v3507
      %v3509 = vpop.f32.mrb[0].mxu0
      %3510 = vmatprep.mubr.f32.mxu0 0.0
      %3511 = vmatmul.mubr.f32.gmra.mrb[0].mxu0 %v3289
      %v3512 = vpop.f32.mrb[0].mxu0
      %v3513 = vadd.f32 0.0, %v3512
      %v3514 = vpop.f32.mrb[0].mxu0
      %3515 = vdwg.mxu0
      %v3516 = vadd.f32 %v3161, %v3358
      %v3517 = vadd.f32 %v3162, %v3363
      %v3518 = vadd.f32 %v3163, %v3368
      %v3519 = vadd.f32 %v3164, %v3373
      %v3520 = vadd.f32 %v3165, %v3378
      %v3521 = vadd.f32 %v3166, %v3383
      %v3522 = vadd.f32 %v3167, %v3388
      %v3523 = vadd.f32 %v3168, %v3393
      %v3524 = vadd.f32 %v3169, %v3398
      %v3525 = vadd.f32 %v3170, %v3403
      %v3526 = vadd.f32 %v3171, %v3408
      %v3527 = vadd.f32 %v3172, %v3413
      %v3528 = vadd.f32 %v3173, %v3418
      %v3529 = vadd.f32 %v3174, %v3423
      %v3530 = vadd.f32 %v3175, %v3428
      %v3531 = vadd.f32 %v3176, %v3433
      %v3532 = vadd.f32 %v3177, %v3438
      %v3533 = vadd.f32 %v3178, %v3443
      %v3534 = vadd.f32 %v3179, %v3448
      %v3535 = vadd.f32 %v3180, %v3453
      %v3536 = vadd.f32 %v3181, %v3458
      %v3537 = vadd.f32 %v3182, %v3463
      %v3538 = vadd.f32 %v3183, %v3468
      %v3539 = vadd.f32 %v3184, %v3473
      %v3540 = vadd.f32 %v3185, %v3478
      %v3541 = vadd.f32 %v3186, %v3483
      %v3542 = vadd.f32 %v3187, %v3488
      %v3543 = vadd.f32 %v3188, %v3493
      %v3544 = vadd.f32 %v3189, %v3498
      %v3545 = vadd.f32 %v3190, %v3503
      %v3546 = vadd.f32 %v3191, %v3508
      %v3547 = vadd.f32 %v3192, %v3513
      %3548 = vst.msk [vmem:[#allocation4] sm:$0xff] %vm230, %v3516
      %3549 = vst.msk [vmem:[#allocation4 + $0x8] sm:$0xff] %vm230, %v3517
      %3550 = vst.msk [vmem:[#allocation4 + $0x10] sm:$0xff] %vm230, %v3518
      %3551 = vst.msk [vmem:[#allocation4 + $0x18] sm:$0xff] %vm230, %v3519
      %3552 = vst.msk [vmem:[#allocation4 + $0x20] sm:$0xff] %vm230, %v3520
      %3553 = vst.msk [vmem:[#allocation4 + $0x28] sm:$0xff] %vm230, %v3521
      %3554 = vst.msk [vmem:[#allocation4 + $0x30] sm:$0xff] %vm230, %v3522
      %3555 = vst.msk [vmem:[#allocation4 + $0x38] sm:$0xff] %vm230, %v3523
      %3556 = vst.msk [vmem:[#allocation4 + $0x40] sm:$0xff] %vm230, %v3524
      %3557 = vst.msk [vmem:[#allocation4 + $0x48] sm:$0xff] %vm230, %v3525
      %3558 = vst.msk [vmem:[#allocation4 + $0x50] sm:$0xff] %vm230, %v3526
      %3559 = vst.msk [vmem:[#allocation4 + $0x58] sm:$0xff] %vm230, %v3527
      %3560 = vst.msk [vmem:[#allocation4 + $0x60] sm:$0xff] %vm230, %v3528
      %3561 = vst.msk [vmem:[#allocation4 + $0x68] sm:$0xff] %vm230, %v3529
      %3562 = vst.msk [vmem:[#allocation4 + $0x70] sm:$0xff] %vm230, %v3530
      %3563 = vst.msk [vmem:[#allocation4 + $0x78] sm:$0xff] %vm230, %v3531
      %3564 = vst.msk [vmem:[#allocation4 + $0x80] sm:$0xff] %vm230, %v3532
      %3565 = vst.msk [vmem:[#allocation4 + $0x88] sm:$0xff] %vm230, %v3533
      %3566 = vst.msk [vmem:[#allocation4 + $0x90] sm:$0xff] %vm230, %v3534
      %3567 = vst.msk [vmem:[#allocation4 + $0x98] sm:$0xff] %vm230, %v3535
      %3568 = vst.msk [vmem:[#allocation4 + $0xa0] sm:$0xff] %vm230, %v3536
      %3569 = vst.msk [vmem:[#allocation4 + $0xa8] sm:$0xff] %vm230, %v3537
      %3570 = vst.msk [vmem:[#allocation4 + $0xb0] sm:$0xff] %vm230, %v3538
      %3571 = vst.msk [vmem:[#allocation4 + $0xb8] sm:$0xff] %vm230, %v3539
      %3572 = vst.msk [vmem:[#allocation4 + $0xc0] sm:$0xff] %vm230, %v3540
      %3573 = vst.msk [vmem:[#allocation4 + $0xc8] sm:$0xff] %vm230, %v3541
      %3574 = vst.msk [vmem:[#allocation4 + $0xd0] sm:$0xff] %vm230, %v3542
      %3575 = vst.msk [vmem:[#allocation4 + $0xd8] sm:$0xff] %vm230, %v3543
      %3576 = vst.msk [vmem:[#allocation4 + $0xe0] sm:$0xff] %vm230, %v3544
      %3577 = vst.msk [vmem:[#allocation4 + $0xe8] sm:$0xff] %vm230, %v3545
      %3578 = vst.msk [vmem:[#allocation4 + $0xf0] sm:$0xff] %vm230, %v3546
      %3579 = vst.msk [vmem:[#allocation4 + $0xf8] sm:$0xff] %vm230, %v3547
      %v3580 = vld [vmem:[%s3128 + $0x1] sm:$0xff]
      %v3581 = vld [vmem:[%s3128 + $0x9] sm:$0xff]
      %v3582 = vld [vmem:[%s3128 + $0x19] sm:$0xff]
      %v3583 = vld [vmem:[%s3128 + $0x21] sm:$0xff]
      %v3584 = vld [vmem:[%s3128 + $0x31] sm:$0xff]
      %v3585 = vld [vmem:[%s3128 + $0x39] sm:$0xff]
      %v3586 = vld [vmem:[%s3128 + $0x49] sm:$0xff]
      %v3587 = vld [vmem:[%s3128 + $0x51] sm:$0xff]
      %v3588 = vld [vmem:[%s3128 + $0x61] sm:$0xff]
      %v3589 = vld [vmem:[%s3128 + $0x69] sm:$0xff]
      %v3590 = vld [vmem:[%s3128 + $0x79] sm:$0xff]
      %v3591 = vld [vmem:[%s3128 + $0x81] sm:$0xff]
      %v3592 = vld [vmem:[%s3128 + $0x91] sm:$0xff]
      %v3593 = vld [vmem:[%s3128 + $0x99] sm:$0xff]
      %v3594 = vld [vmem:[%s3128 + $0xa9] sm:$0xff]
      %v3595 = vld [vmem:[%s3128 + $0xb1] sm:$0xff]
      %v3596 = vld [vmem:[%s3128 + $0xc1] sm:$0xff]
      %v3597 = vld [vmem:[%s3128 + $0xc9] sm:$0xff]
      %v3598 = vld [vmem:[%s3128 + $0xd9] sm:$0xff]
      %v3599 = vld [vmem:[%s3128 + $0xe1] sm:$0xff]
      %v3600 = vld [vmem:[%s3128 + $0xf1] sm:$0xff]
      %v3601 = vld [vmem:[%s3128 + $0xf9] sm:$0xff]
      %v3602 = vld [vmem:[%s3128 + $0x109] sm:$0xff]
      %v3603 = vld [vmem:[%s3128 + $0x111] sm:$0xff]
      %v3604 = vld [vmem:[%s3128 + $0x121] sm:$0xff]
      %v3605 = vld [vmem:[%s3128 + $0x129] sm:$0xff]
      %v3606 = vld [vmem:[%s3128 + $0x139] sm:$0xff]
      %v3607 = vld [vmem:[%s3128 + $0x141] sm:$0xff]
      %v3608 = vld [vmem:[%s3128 + $0x151] sm:$0xff]
      %v3609 = vld [vmem:[%s3128 + $0x159] sm:$0xff]
      %v3610 = vld [vmem:[%s3128 + $0x169] sm:$0xff]
      %v3611 = vld [vmem:[%s3128 + $0x171] sm:$0xff]
      %v3612 = vld [vmem:[#allocation4] sm:$0xff]
      %v3613 = vld [vmem:[#allocation4 + $0x8] sm:$0xff]
      %v3614 = vld [vmem:[#allocation4 + $0x10] sm:$0xff]
      %v3615 = vld [vmem:[#allocation4 + $0x18] sm:$0xff]
      %v3616 = vld [vmem:[#allocation4 + $0x20] sm:$0xff]
      %v3617 = vld [vmem:[#allocation4 + $0x28] sm:$0xff]
      %v3618 = vld [vmem:[#allocation4 + $0x30] sm:$0xff]
      %v3619 = vld [vmem:[#allocation4 + $0x38] sm:$0xff]
      %v3620 = vld [vmem:[#allocation4 + $0x40] sm:$0xff]
      %v3621 = vld [vmem:[#allocation4 + $0x48] sm:$0xff]
      %v3622 = vld [vmem:[#allocation4 + $0x50] sm:$0xff]
      %v3623 = vld [vmem:[#allocation4 + $0x58] sm:$0xff]
      %v3624 = vld [vmem:[#allocation4 + $0x60] sm:$0xff]
      %v3625 = vld [vmem:[#allocation4 + $0x68] sm:$0xff]
      %v3626 = vld [vmem:[#allocation4 + $0x70] sm:$0xff]
      %v3627 = vld [vmem:[#allocation4 + $0x78] sm:$0xff]
      %v3628 = vld [vmem:[#allocation4 + $0x80] sm:$0xff]
      %v3629 = vld [vmem:[#allocation4 + $0x88] sm:$0xff]
      %v3630 = vld [vmem:[#allocation4 + $0x90] sm:$0xff]
      %v3631 = vld [vmem:[#allocation4 + $0x98] sm:$0xff]
      %v3632 = vld [vmem:[#allocation4 + $0xa0] sm:$0xff]
      %v3633 = vld [vmem:[#allocation4 + $0xa8] sm:$0xff]
      %v3634 = vld [vmem:[#allocation4 + $0xb0] sm:$0xff]
      %v3635 = vld [vmem:[#allocation4 + $0xb8] sm:$0xff]
      %v3636 = vld [vmem:[#allocation4 + $0xc0] sm:$0xff]
      %v3637 = vld [vmem:[#allocation4 + $0xc8] sm:$0xff]
      %v3638 = vld [vmem:[#allocation4 + $0xd0] sm:$0xff]
      %v3639 = vld [vmem:[#allocation4 + $0xd8] sm:$0xff]
      %v3640 = vld [vmem:[#allocation4 + $0xe0] sm:$0xff]
      %v3641 = vld [vmem:[#allocation4 + $0xe8] sm:$0xff]
      %v3642 = vld [vmem:[#allocation4 + $0xf0] sm:$0xff]
      %v3643 = vld [vmem:[#allocation4 + $0xf8] sm:$0xff]
      %s3644 = scalar_lea.vmem %s1, 56
      %v3645 = vld [vmem:[%s3644] sm:$0xff]
      %v3647 = vsel %vm230, %v3580, 0
      %v3650 = vsel %vm230, %v3581, 0
      %v3653 = vsel %vm230, %v3582, 0
      %v3656 = vsel %vm230, %v3583, 0
      %v3659 = vsel %vm230, %v3584, 0
      %v3662 = vsel %vm230, %v3585, 0
      %v3665 = vsel %vm230, %v3586, 0
      %v3668 = vsel %vm230, %v3587, 0
      %v3671 = vsel %vm230, %v3588, 0
      %v3674 = vsel %vm230, %v3589, 0
      %v3677 = vsel %vm230, %v3590, 0
      %v3680 = vsel %vm230, %v3591, 0
      %v3683 = vsel %vm230, %v3592, 0
      %v3686 = vsel %vm230, %v3593, 0
      %v3689 = vsel %vm230, %v3594, 0
      %v3692 = vsel %vm230, %v3595, 0
      %v3695 = vsel %vm230, %v3596, 0
      %v3698 = vsel %vm230, %v3597, 0
      %v3701 = vsel %vm230, %v3598, 0
      %v3704 = vsel %vm230, %v3599, 0
      %v3707 = vsel %vm230, %v3600, 0
      %v3710 = vsel %vm230, %v3601, 0
      %v3713 = vsel %vm230, %v3602, 0
      %v3716 = vsel %vm230, %v3603, 0
      %v3719 = vsel %vm230, %v3604, 0
      %v3722 = vsel %vm230, %v3605, 0
      %v3725 = vsel %vm230, %v3606, 0
      %v3728 = vsel %vm230, %v3607, 0
      %v3731 = vsel %vm230, %v3608, 0
      %v3734 = vsel %vm230, %v3609, 0
      %v3737 = vsel %vm230, %v3610, 0
      %v3740 = vsel %vm230, %v3611, 0
      %3742 = vmatprep.subr.mxu0 0.0
      %3743 = vmatpush1.msra.mxu0 %v3645
      %3744 = vmatprep.subr.mxu0 0.0
      %3745 = vmatpush1.msra.mxu0 0.0
      %3746 = vmatprep.subr.mxu0 0.0
      %3747 = vmatpush1.msra.mxu0 0.0
      %3748 = vmatprep.subr.mxu0 0.0
      %3749 = vmatpush1.msra.mxu0 0.0
      %3750 = vmatprep.subr.mxu0 0.0
      %3751 = vmatpush1.msra.mxu0 0.0
      %3752 = vmatprep.subr.mxu0 0.0
      %3753 = vmatpush1.msra.mxu0 0.0
      %3754 = vmatprep.subr.mxu0 0.0
      %3755 = vmatpush1.msra.mxu0 0.0
      %3756 = vmatprep.subr.mxu0 0.0
      %3757 = vmatpush1.msra.mxu0 0.0
      %3758 = vmatprep.subr.mxu0 0.0
      %3759 = vmatpush1.msra.mxu0 0.0
      %3760 = vmatprep.subr.mxu0 0.0
      %3761 = vmatpush1.msra.mxu0 0.0
      %3762 = vmatprep.subr.mxu0 0.0
      %3763 = vmatpush1.msra.mxu0 0.0
      %3764 = vmatprep.subr.mxu0 0.0
      %3765 = vmatpush1.msra.mxu0 0.0
      %3766 = vmatprep.subr.mxu0 0.0
      %3767 = vmatpush1.msra.mxu0 0.0
      %3768 = vmatprep.subr.mxu0 0.0
      %3769 = vmatpush1.msra.mxu0 0.0
      %3770 = vmatprep.subr.mxu0 0.0
      %3771 = vmatpush1.msra.mxu0 0.0
      %3772 = vmatprep.subr.mxu0 0.0
      %3773 = vmatpush1.msra.mxu0 0.0
      %3774 = vmatprep.subr.mxu0 0.0
      %3775 = vmatpush1.msra.mxu0 0.0
      %3776 = vmatprep.subr.mxu0 0.0
      %3777 = vmatpush1.msra.mxu0 0.0
      %3778 = vmatprep.subr.mxu0 0.0
      %3779 = vmatpush1.msra.mxu0 0.0
      %3780 = vmatprep.subr.mxu0 0.0
      %3781 = vmatpush1.msra.mxu0 0.0
      %3782 = vmatprep.subr.mxu0 0.0
      %3783 = vmatpush1.msra.mxu0 0.0
      %3784 = vmatprep.subr.mxu0 0.0
      %3785 = vmatpush1.msra.mxu0 0.0
      %3786 = vmatprep.subr.mxu0 0.0
      %3787 = vmatpush1.msra.mxu0 0.0
      %3788 = vmatprep.subr.mxu0 0.0
      %3789 = vmatpush1.msra.mxu0 0.0
      %3790 = vmatprep.subr.mxu0 0.0
      %3791 = vmatpush1.msra.mxu0 0.0
      %3792 = vmatprep.subr.mxu0 0.0
      %3793 = vmatpush1.msra.mxu0 0.0
      %3794 = vmatprep.subr.mxu0 0.0
      %3795 = vmatpush1.msra.mxu0 0.0
      %3796 = vmatprep.subr.mxu0 0.0
      %3797 = vmatpush1.msra.mxu0 0.0
      %3798 = vmatprep.subr.mxu0 0.0
      %3799 = vmatpush1.msra.mxu0 0.0
      %3800 = vmatprep.subr.mxu0 0.0
      %3801 = vmatpush1.msra.mxu0 0.0
      %3802 = vmatprep.subr.mxu0 0.0
      %3803 = vmatpush1.msra.mxu0 0.0
      %3804 = vmatprep.subr.mxu0 0.0
      %3805 = vmatpush1.msra.mxu0 0.0
      %3806 = vmatprep.mubr.f32.mxu0 0.0
      %3807 = vmatmul.mubr.f32.gmra.mrb[0].mxu0 %v3647
      %v3808 = vpop.f32.mrb[0].mxu0
      %v3809 = vadd.f32 0.0, %v3808
      %v3810 = vpop.f32.mrb[0].mxu0
      %3811 = vmatprep.mubr.f32.mxu0 0.0
      %3812 = vmatmul.mubr.f32.gmra.mrb[0].mxu0 %v3650
      %v3813 = vpop.f32.mrb[0].mxu0
      %v3814 = vadd.f32 0.0, %v3813
      %v3815 = vpop.f32.mrb[0].mxu0
      %3816 = vmatprep.mubr.f32.mxu0 0.0
      %3817 = vmatmul.mubr.f32.gmra.mrb[0].mxu0 %v3653
      %v3818 = vpop.f32.mrb[0].mxu0
      %v3819 = vadd.f32 0.0, %v3818
      %v3820 = vpop.f32.mrb[0].mxu0
      %3821 = vmatprep.mubr.f32.mxu0 0.0
      %3822 = vmatmul.mubr.f32.gmra.mrb[0].mxu0 %v3656
      %v3823 = vpop.f32.mrb[0].mxu0
      %v3824 = vadd.f32 0.0, %v3823
      %v3825 = vpop.f32.mrb[0].mxu0
      %3826 = vmatprep.mubr.f32.mxu0 0.0
      %3827 = vmatmul.mubr.f32.gmra.mrb[0].mxu0 %v3659
      %v3828 = vpop.f32.mrb[0].mxu0
      %v3829 = vadd.f32 0.0, %v3828
      %v3830 = vpop.f32.mrb[0].mxu0
      %3831 = vmatprep.mubr.f32.mxu0 0.0
      %3832 = vmatmul.mubr.f32.gmra.mrb[0].mxu0 %v3662
      %v3833 = vpop.f32.mrb[0].mxu0
      %v3834 = vadd.f32 0.0, %v3833
      %v3835 = vpop.f32.mrb[0].mxu0
      %3836 = vmatprep.mubr.f32.mxu0 0.0
      %3837 = vmatmul.mubr.f32.gmra.mrb[0].mxu0 %v3665
      %v3838 = vpop.f32.mrb[0].mxu0
      %v3839 = vadd.f32 0.0, %v3838
      %v3840 = vpop.f32.mrb[0].mxu0
      %3841 = vmatprep.mubr.f32.mxu0 0.0
      %3842 = vmatmul.mubr.f32.gmra.mrb[0].mxu0 %v3668
      %v3843 = vpop.f32.mrb[0].mxu0
      %v3844 = vadd.f32 0.0, %v3843
      %v3845 = vpop.f32.mrb[0].mxu0
      %3846 = vmatprep.mubr.f32.mxu0 0.0
      %3847 = vmatmul.mubr.f32.gmra.mrb[0].mxu0 %v3671
      %v3848 = vpop.f32.mrb[0].mxu0
      %v3849 = vadd.f32 0.0, %v3848
      %v3850 = vpop.f32.mrb[0].mxu0
      %3851 = vmatprep.mubr.f32.mxu0 0.0
      %3852 = vmatmul.mubr.f32.gmra.mrb[0].mxu0 %v3674
      %v3853 = vpop.f32.mrb[0].mxu0
      %v3854 = vadd.f32 0.0, %v3853
      %v3855 = vpop.f32.mrb[0].mxu0
      %3856 = vmatprep.mubr.f32.mxu0 0.0
      %3857 = vmatmul.mubr.f32.gmra.mrb[0].mxu0 %v3677
      %v3858 = vpop.f32.mrb[0].mxu0
      %v3859 = vadd.f32 0.0, %v3858
      %v3860 = vpop.f32.mrb[0].mxu0
      %3861 = vmatprep.mubr.f32.mxu0 0.0
      %3862 = vmatmul.mubr.f32.gmra.mrb[0].mxu0 %v3680
      %v3863 = vpop.f32.mrb[0].mxu0
      %v3864 = vadd.f32 0.0, %v3863
      %v3865 = vpop.f32.mrb[0].mxu0
      %3866 = vmatprep.mubr.f32.mxu0 0.0
      %3867 = vmatmul.mubr.f32.gmra.mrb[0].mxu0 %v3683
      %v3868 = vpop.f32.mrb[0].mxu0
      %v3869 = vadd.f32 0.0, %v3868
      %v3870 = vpop.f32.mrb[0].mxu0
      %3871 = vmatprep.mubr.f32.mxu0 0.0
      %3872 = vmatmul.mubr.f32.gmra.mrb[0].mxu0 %v3686
      %v3873 = vpop.f32.mrb[0].mxu0
      %v3874 = vadd.f32 0.0, %v3873
      %v3875 = vpop.f32.mrb[0].mxu0
      %3876 = vmatprep.mubr.f32.mxu0 0.0
      %3877 = vmatmul.mubr.f32.gmra.mrb[0].mxu0 %v3689
      %v3878 = vpop.f32.mrb[0].mxu0
      %v3879 = vadd.f32 0.0, %v3878
      %v3880 = vpop.f32.mrb[0].mxu0
      %3881 = vmatprep.mubr.f32.mxu0 0.0
      %3882 = vmatmul.mubr.f32.gmra.mrb[0].mxu0 %v3692
      %v3883 = vpop.f32.mrb[0].mxu0
      %v3884 = vadd.f32 0.0, %v3883
      %v3885 = vpop.f32.mrb[0].mxu0
      %3886 = vmatprep.mubr.f32.mxu0 0.0
      %3887 = vmatmul.mubr.f32.gmra.mrb[0].mxu0 %v3695
      %v3888 = vpop.f32.mrb[0].mxu0
      %v3889 = vadd.f32 0.0, %v3888
      %v3890 = vpop.f32.mrb[0].mxu0
      %3891 = vmatprep.mubr.f32.mxu0 0.0
      %3892 = vmatmul.mubr.f32.gmra.mrb[0].mxu0 %v3698
      %v3893 = vpop.f32.mrb[0].mxu0
      %v3894 = vadd.f32 0.0, %v3893
      %v3895 = vpop.f32.mrb[0].mxu0
      %3896 = vmatprep.mubr.f32.mxu0 0.0
      %3897 = vmatmul.mubr.f32.gmra.mrb[0].mxu0 %v3701
      %v3898 = vpop.f32.mrb[0].mxu0
      %v3899 = vadd.f32 0.0, %v3898
      %v3900 = vpop.f32.mrb[0].mxu0
      %3901 = vmatprep.mubr.f32.mxu0 0.0
      %3902 = vmatmul.mubr.f32.gmra.mrb[0].mxu0 %v3704
      %v3903 = vpop.f32.mrb[0].mxu0
      %v3904 = vadd.f32 0.0, %v3903
      %v3905 = vpop.f32.mrb[0].mxu0
      %3906 = vmatprep.mubr.f32.mxu0 0.0
      %3907 = vmatmul.mubr.f32.gmra.mrb[0].mxu0 %v3707
      %v3908 = vpop.f32.mrb[0].mxu0
      %v3909 = vadd.f32 0.0, %v3908
      %v3910 = vpop.f32.mrb[0].mxu0
      %3911 = vmatprep.mubr.f32.mxu0 0.0
      %3912 = vmatmul.mubr.f32.gmra.mrb[0].mxu0 %v3710
      %v3913 = vpop.f32.mrb[0].mxu0
      %v3914 = vadd.f32 0.0, %v3913
      %v3915 = vpop.f32.mrb[0].mxu0
      %3916 = vmatprep.mubr.f32.mxu0 0.0
      %3917 = vmatmul.mubr.f32.gmra.mrb[0].mxu0 %v3713
      %v3918 = vpop.f32.mrb[0].mxu0
      %v3919 = vadd.f32 0.0, %v3918
      %v3920 = vpop.f32.mrb[0].mxu0
      %3921 = vmatprep.mubr.f32.mxu0 0.0
      %3922 = vmatmul.mubr.f32.gmra.mrb[0].mxu0 %v3716
      %v3923 = vpop.f32.mrb[0].mxu0
      %v3924 = vadd.f32 0.0, %v3923
      %v3925 = vpop.f32.mrb[0].mxu0
      %3926 = vmatprep.mubr.f32.mxu0 0.0
      %3927 = vmatmul.mubr.f32.gmra.mrb[0].mxu0 %v3719
      %v3928 = vpop.f32.mrb[0].mxu0
      %v3929 = vadd.f32 0.0, %v3928
      %v3930 = vpop.f32.mrb[0].mxu0
      %3931 = vmatprep.mubr.f32.mxu0 0.0
      %3932 = vmatmul.mubr.f32.gmra.mrb[0].mxu0 %v3722
      %v3933 = vpop.f32.mrb[0].mxu0
      %v3934 = vadd.f32 0.0, %v3933
      %v3935 = vpop.f32.mrb[0].mxu0
      %3936 = vmatprep.mubr.f32.mxu0 0.0
      %3937 = vmatmul.mubr.f32.gmra.mrb[0].mxu0 %v3725
      %v3938 = vpop.f32.mrb[0].mxu0
      %v3939 = vadd.f32 0.0, %v3938
      %v3940 = vpop.f32.mrb[0].mxu0
      %3941 = vmatprep.mubr.f32.mxu0 0.0
      %3942 = vmatmul.mubr.f32.gmra.mrb[0].mxu0 %v3728
      %v3943 = vpop.f32.mrb[0].mxu0
      %v3944 = vadd.f32 0.0, %v3943
      %v3945 = vpop.f32.mrb[0].mxu0
      %3946 = vmatprep.mubr.f32.mxu0 0.0
      %3947 = vmatmul.mubr.f32.gmra.mrb[0].mxu0 %v3731
      %v3948 = vpop.f32.mrb[0].mxu0
      %v3949 = vadd.f32 0.0, %v3948
      %v3950 = vpop.f32.mrb[0].mxu0
      %3951 = vmatprep.mubr.f32.mxu0 0.0
      %3952 = vmatmul.mubr.f32.gmra.mrb[0].mxu0 %v3734
      %v3953 = vpop.f32.mrb[0].mxu0
      %v3954 = vadd.f32 0.0, %v3953
      %v3955 = vpop.f32.mrb[0].mxu0
      %3956 = vmatprep.mubr.f32.mxu0 0.0
      %3957 = vmatmul.mubr.f32.gmra.mrb[0].mxu0 %v3737
      %v3958 = vpop.f32.mrb[0].mxu0
      %v3959 = vadd.f32 0.0, %v3958
      %v3960 = vpop.f32.mrb[0].mxu0
      %3961 = vmatprep.mubr.f32.mxu0 0.0
      %3962 = vmatmul.mubr.f32.gmra.mrb[0].mxu0 %v3740
      %v3963 = vpop.f32.mrb[0].mxu0
      %v3964 = vadd.f32 0.0, %v3963
      %v3965 = vpop.f32.mrb[0].mxu0
      %3966 = vdwg.mxu0
      %v3967 = vadd.f32 %v3612, %v3809
      %v3968 = vadd.f32 %v3613, %v3814
      %v3969 = vadd.f32 %v3614, %v3819
      %v3970 = vadd.f32 %v3615, %v3824
      %v3971 = vadd.f32 %v3616, %v3829
      %v3972 = vadd.f32 %v3617, %v3834
      %v3973 = vadd.f32 %v3618, %v3839
      %v3974 = vadd.f32 %v3619, %v3844
      %v3975 = vadd.f32 %v3620, %v3849
      %v3976 = vadd.f32 %v3621, %v3854
      %v3977 = vadd.f32 %v3622, %v3859
      %v3978 = vadd.f32 %v3623, %v3864
      %v3979 = vadd.f32 %v3624, %v3869
      %v3980 = vadd.f32 %v3625, %v3874
      %v3981 = vadd.f32 %v3626, %v3879
      %v3982 = vadd.f32 %v3627, %v3884
      %v3983 = vadd.f32 %v3628, %v3889
      %v3984 = vadd.f32 %v3629, %v3894
      %v3985 = vadd.f32 %v3630, %v3899
      %v3986 = vadd.f32 %v3631, %v3904
      %v3987 = vadd.f32 %v3632, %v3909
      %v3988 = vadd.f32 %v3633, %v3914
      %v3989 = vadd.f32 %v3634, %v3919
      %v3990 = vadd.f32 %v3635, %v3924
      %v3991 = vadd.f32 %v3636, %v3929
      %v3992 = vadd.f32 %v3637, %v3934
      %v3993 = vadd.f32 %v3638, %v3939
      %v3994 = vadd.f32 %v3639, %v3944
      %v3995 = vadd.f32 %v3640, %v3949
      %v3996 = vadd.f32 %v3641, %v3954
      %v3997 = vadd.f32 %v3642, %v3959
      %v3998 = vadd.f32 %v3643, %v3964
      %3999 = vst.msk [vmem:[#allocation4] sm:$0xff] %vm230, %v3967
      %4000 = vst.msk [vmem:[#allocation4 + $0x8] sm:$0xff] %vm230, %v3968
      %4001 = vst.msk [vmem:[#allocation4 + $0x10] sm:$0xff] %vm230, %v3969
      %4002 = vst.msk [vmem:[#allocation4 + $0x18] sm:$0xff] %vm230, %v3970
      %4003 = vst.msk [vmem:[#allocation4 + $0x20] sm:$0xff] %vm230, %v3971
      %4004 = vst.msk [vmem:[#allocation4 + $0x28] sm:$0xff] %vm230, %v3972
      %4005 = vst.msk [vmem:[#allocation4 + $0x30] sm:$0xff] %vm230, %v3973
      %4006 = vst.msk [vmem:[#allocation4 + $0x38] sm:$0xff] %vm230, %v3974
      %4007 = vst.msk [vmem:[#allocation4 + $0x40] sm:$0xff] %vm230, %v3975
      %4008 = vst.msk [vmem:[#allocation4 + $0x48] sm:$0xff] %vm230, %v3976
      %4009 = vst.msk [vmem:[#allocation4 + $0x50] sm:$0xff] %vm230, %v3977
      %4010 = vst.msk [vmem:[#allocation4 + $0x58] sm:$0xff] %vm230, %v3978
      %4011 = vst.msk [vmem:[#allocation4 + $0x60] sm:$0xff] %vm230, %v3979
      %4012 = vst.msk [vmem:[#allocation4 + $0x68] sm:$0xff] %vm230, %v3980
      %4013 = vst.msk [vmem:[#allocation4 + $0x70] sm:$0xff] %vm230, %v3981
      %4014 = vst.msk [vmem:[#allocation4 + $0x78] sm:$0xff] %vm230, %v3982
      %4015 = vst.msk [vmem:[#allocation4 + $0x80] sm:$0xff] %vm230, %v3983
      %4016 = vst.msk [vmem:[#allocation4 + $0x88] sm:$0xff] %vm230, %v3984
      %4017 = vst.msk [vmem:[#allocation4 + $0x90] sm:$0xff] %vm230, %v3985
      %4018 = vst.msk [vmem:[#allocation4 + $0x98] sm:$0xff] %vm230, %v3986
      %4019 = vst.msk [vmem:[#allocation4 + $0xa0] sm:$0xff] %vm230, %v3987
      %4020 = vst.msk [vmem:[#allocation4 + $0xa8] sm:$0xff] %vm230, %v3988
      %4021 = vst.msk [vmem:[#allocation4 + $0xb0] sm:$0xff] %vm230, %v3989
      %4022 = vst.msk [vmem:[#allocation4 + $0xb8] sm:$0xff] %vm230, %v3990
      %4023 = vst.msk [vmem:[#allocation4 + $0xc0] sm:$0xff] %vm230, %v3991
      %4024 = vst.msk [vmem:[#allocation4 + $0xc8] sm:$0xff] %vm230, %v3992
      %4025 = vst.msk [vmem:[#allocation4 + $0xd0] sm:$0xff] %vm230, %v3993
      %4026 = vst.msk [vmem:[#allocation4 + $0xd8] sm:$0xff] %vm230, %v3994
      %4027 = vst.msk [vmem:[#allocation4 + $0xe0] sm:$0xff] %vm230, %v3995
      %4028 = vst.msk [vmem:[#allocation4 + $0xe8] sm:$0xff] %vm230, %v3996
      %4029 = vst.msk [vmem:[#allocation4 + $0xf0] sm:$0xff] %vm230, %v3997
      %4030 = vst.msk [vmem:[#allocation4 + $0xf8] sm:$0xff] %vm230, %v3998
      %v4031 = vld [vmem:[%s3128 + $0x2] sm:$0xff]
      %v4032 = vld [vmem:[%s3128 + $0xa] sm:$0xff]
      %v4033 = vld [vmem:[%s3128 + $0x1a] sm:$0xff]
      %v4034 = vld [vmem:[%s3128 + $0x22] sm:$0xff]
      %v4035 = vld [vmem:[%s3128 + $0x32] sm:$0xff]
      %v4036 = vld [vmem:[%s3128 + $0x3a] sm:$0xff]
      %v4037 = vld [vmem:[%s3128 + $0x4a] sm:$0xff]
      %v4038 = vld [vmem:[%s3128 + $0x52] sm:$0xff]
      %v4039 = vld [vmem:[%s3128 + $0x62] sm:$0xff]
      %v4040 = vld [vmem:[%s3128 + $0x6a] sm:$0xff]
      %v4041 = vld [vmem:[%s3128 + $0x7a] sm:$0xff]
      %v4042 = vld [vmem:[%s3128 + $0x82] sm:$0xff]
      %v4043 = vld [vmem:[%s3128 + $0x92] sm:$0xff]
      %v4044 = vld [vmem:[%s3128 + $0x9a] sm:$0xff]
      %v4045 = vld [vmem:[%s3128 + $0xaa] sm:$0xff]
      %v4046 = vld [vmem:[%s3128 + $0xb2] sm:$0xff]
      %v4047 = vld [vmem:[%s3128 + $0xc2] sm:$0xff]
      %v4048 = vld [vmem:[%s3128 + $0xca] sm:$0xff]
      %v4049 = vld [vmem:[%s3128 + $0xda] sm:$0xff]
      %v4050 = vld [vmem:[%s3128 + $0xe2] sm:$0xff]
      %v4051 = vld [vmem:[%s3128 + $0xf2] sm:$0xff]
      %v4052 = vld [vmem:[%s3128 + $0xfa] sm:$0xff]
      %v4053 = vld [vmem:[%s3128 + $0x10a] sm:$0xff]
      %v4054 = vld [vmem:[%s3128 + $0x112] sm:$0xff]
      %v4055 = vld [vmem:[%s3128 + $0x122] sm:$0xff]
      %v4056 = vld [vmem:[%s3128 + $0x12a] sm:$0xff]
      %v4057 = vld [vmem:[%s3128 + $0x13a] sm:$0xff]
      %v4058 = vld [vmem:[%s3128 + $0x142] sm:$0xff]
      %v4059 = vld [vmem:[%s3128 + $0x152] sm:$0xff]
      %v4060 = vld [vmem:[%s3128 + $0x15a] sm:$0xff]
      %v4061 = vld [vmem:[%s3128 + $0x16a] sm:$0xff]
      %v4062 = vld [vmem:[%s3128 + $0x172] sm:$0xff]
      %v4063 = vld [vmem:[#allocation4] sm:$0xff]
      %v4064 = vld [vmem:[#allocation4 + $0x8] sm:$0xff]
      %v4065 = vld [vmem:[#allocation4 + $0x10] sm:$0xff]
      %v4066 = vld [vmem:[#allocation4 + $0x18] sm:$0xff]
      %v4067 = vld [vmem:[#allocation4 + $0x20] sm:$0xff]
      %v4068 = vld [vmem:[#allocation4 + $0x28] sm:$0xff]
      %v4069 = vld [vmem:[#allocation4 + $0x30] sm:$0xff]
      %v4070 = vld [vmem:[#allocation4 + $0x38] sm:$0xff]
      %v4071 = vld [vmem:[#allocation4 + $0x40] sm:$0xff]
      %v4072 = vld [vmem:[#allocation4 + $0x48] sm:$0xff]
      %v4073 = vld [vmem:[#allocation4 + $0x50] sm:$0xff]
      %v4074 = vld [vmem:[#allocation4 + $0x58] sm:$0xff]
      %v4075 = vld [vmem:[#allocation4 + $0x60] sm:$0xff]
      %v4076 = vld [vmem:[#allocation4 + $0x68] sm:$0xff]
      %v4077 = vld [vmem:[#allocation4 + $0x70] sm:$0xff]
      %v4078 = vld [vmem:[#allocation4 + $0x78] sm:$0xff]
      %v4079 = vld [vmem:[#allocation4 + $0x80] sm:$0xff]
      %v4080 = vld [vmem:[#allocation4 + $0x88] sm:$0xff]
      %v4081 = vld [vmem:[#allocation4 + $0x90] sm:$0xff]
      %v4082 = vld [vmem:[#allocation4 + $0x98] sm:$0xff]
      %v4083 = vld [vmem:[#allocation4 + $0xa0] sm:$0xff]
      %v4084 = vld [vmem:[#allocation4 + $0xa8] sm:$0xff]
      %v4085 = vld [vmem:[#allocation4 + $0xb0] sm:$0xff]
      %v4086 = vld [vmem:[#allocation4 + $0xb8] sm:$0xff]
      %v4087 = vld [vmem:[#allocation4 + $0xc0] sm:$0xff]
      %v4088 = vld [vmem:[#allocation4 + $0xc8] sm:$0xff]
      %v4089 = vld [vmem:[#allocation4 + $0xd0] sm:$0xff]
      %v4090 = vld [vmem:[#allocation4 + $0xd8] sm:$0xff]
      %v4091 = vld [vmem:[#allocation4 + $0xe0] sm:$0xff]
      %v4092 = vld [vmem:[#allocation4 + $0xe8] sm:$0xff]
      %v4093 = vld [vmem:[#allocation4 + $0xf0] sm:$0xff]
      %v4094 = vld [vmem:[#allocation4 + $0xf8] sm:$0xff]
      %s4095 = scalar_lea.vmem %s1, 64
      %v4096 = vld [vmem:[%s4095] sm:$0xff]
      %v4098 = vsel %vm230, %v4031, 0
      %v4101 = vsel %vm230, %v4032, 0
      %v4104 = vsel %vm230, %v4033, 0
      %v4107 = vsel %vm230, %v4034, 0
      %v4110 = vsel %vm230, %v4035, 0
      %v4113 = vsel %vm230, %v4036, 0
      %v4116 = vsel %vm230, %v4037, 0
      %v4119 = vsel %vm230, %v4038, 0
      %v4122 = vsel %vm230, %v4039, 0
      %v4125 = vsel %vm230, %v4040, 0
      %v4128 = vsel %vm230, %v4041, 0
      %v4131 = vsel %vm230, %v4042, 0
      %v4134 = vsel %vm230, %v4043, 0
      %v4137 = vsel %vm230, %v4044, 0
      %v4140 = vsel %vm230, %v4045, 0
      %v4143 = vsel %vm230, %v4046, 0
      %v4146 = vsel %vm230, %v4047, 0
      %v4149 = vsel %vm230, %v4048, 0
      %v4152 = vsel %vm230, %v4049, 0
      %v4155 = vsel %vm230, %v4050, 0
      %v4158 = vsel %vm230, %v4051, 0
      %v4161 = vsel %vm230, %v4052, 0
      %v4164 = vsel %vm230, %v4053, 0
      %v4167 = vsel %vm230, %v4054, 0
      %v4170 = vsel %vm230, %v4055, 0
      %v4173 = vsel %vm230, %v4056, 0
      %v4176 = vsel %vm230, %v4057, 0
      %v4179 = vsel %vm230, %v4058, 0
      %v4182 = vsel %vm230, %v4059, 0
      %v4185 = vsel %vm230, %v4060, 0
      %v4188 = vsel %vm230, %v4061, 0
      %v4191 = vsel %vm230, %v4062, 0
      %4193 = vmatprep.subr.mxu0 0.0
      %4194 = vmatpush1.msra.mxu0 %v4096
      %4195 = vmatprep.subr.mxu0 0.0
      %4196 = vmatpush1.msra.mxu0 0.0
      %4197 = vmatprep.subr.mxu0 0.0
      %4198 = vmatpush1.msra.mxu0 0.0
      %4199 = vmatprep.subr.mxu0 0.0
      %4200 = vmatpush1.msra.mxu0 0.0
      %4201 = vmatprep.subr.mxu0 0.0
      %4202 = vmatpush1.msra.mxu0 0.0
      %4203 = vmatprep.subr.mxu0 0.0
      %4204 = vmatpush1.msra.mxu0 0.0
      %4205 = vmatprep.subr.mxu0 0.0
      %4206 = vmatpush1.msra.mxu0 0.0
      %4207 = vmatprep.subr.mxu0 0.0
      %4208 = vmatpush1.msra.mxu0 0.0
      %4209 = vmatprep.subr.mxu0 0.0
      %4210 = vmatpush1.msra.mxu0 0.0
      %4211 = vmatprep.subr.mxu0 0.0
      %4212 = vmatpush1.msra.mxu0 0.0
      %4213 = vmatprep.subr.mxu0 0.0
      %4214 = vmatpush1.msra.mxu0 0.0
      %4215 = vmatprep.subr.mxu0 0.0
      %4216 = vmatpush1.msra.mxu0 0.0
      %4217 = vmatprep.subr.mxu0 0.0
      %4218 = vmatpush1.msra.mxu0 0.0
      %4219 = vmatprep.subr.mxu0 0.0
      %4220 = vmatpush1.msra.mxu0 0.0
      %4221 = vmatprep.subr.mxu0 0.0
      %4222 = vmatpush1.msra.mxu0 0.0
      %4223 = vmatprep.subr.mxu0 0.0
      %4224 = vmatpush1.msra.mxu0 0.0
      %4225 = vmatprep.subr.mxu0 0.0
      %4226 = vmatpush1.msra.mxu0 0.0
      %4227 = vmatprep.subr.mxu0 0.0
      %4228 = vmatpush1.msra.mxu0 0.0
      %4229 = vmatprep.subr.mxu0 0.0
      %4230 = vmatpush1.msra.mxu0 0.0
      %4231 = vmatprep.subr.mxu0 0.0
      %4232 = vmatpush1.msra.mxu0 0.0
      %4233 = vmatprep.subr.mxu0 0.0
      %4234 = vmatpush1.msra.mxu0 0.0
      %4235 = vmatprep.subr.mxu0 0.0
      %4236 = vmatpush1.msra.mxu0 0.0
      %4237 = vmatprep.subr.mxu0 0.0
      %4238 = vmatpush1.msra.mxu0 0.0
      %4239 = vmatprep.subr.mxu0 0.0
      %4240 = vmatpush1.msra.mxu0 0.0
      %4241 = vmatprep.subr.mxu0 0.0
      %4242 = vmatpush1.msra.mxu0 0.0
      %4243 = vmatprep.subr.mxu0 0.0
      %4244 = vmatpush1.msra.mxu0 0.0
      %4245 = vmatprep.subr.mxu0 0.0
      %4246 = vmatpush1.msra.mxu0 0.0
      %4247 = vmatprep.subr.mxu0 0.0
      %4248 = vmatpush1.msra.mxu0 0.0
      %4249 = vmatprep.subr.mxu0 0.0
      %4250 = vmatpush1.msra.mxu0 0.0
      %4251 = vmatprep.subr.mxu0 0.0
      %4252 = vmatpush1.msra.mxu0 0.0
      %4253 = vmatprep.subr.mxu0 0.0
      %4254 = vmatpush1.msra.mxu0 0.0
      %4255 = vmatprep.subr.mxu0 0.0
      %4256 = vmatpush1.msra.mxu0 0.0
      %4257 = vmatprep.mubr.f32.mxu0 0.0
      %4258 = vmatmul.mubr.f32.gmra.mrb[0].mxu0 %v4098
      %v4259 = vpop.f32.mrb[0].mxu0
      %v4260 = vadd.f32 0.0, %v4259
      %v4261 = vpop.f32.mrb[0].mxu0
      %4262 = vmatprep.mubr.f32.mxu0 0.0
      %4263 = vmatmul.mubr.f32.gmra.mrb[0].mxu0 %v4101
      %v4264 = vpop.f32.mrb[0].mxu0
      %v4265 = vadd.f32 0.0, %v4264
      %v4266 = vpop.f32.mrb[0].mxu0
      %4267 = vmatprep.mubr.f32.mxu0 0.0
      %4268 = vmatmul.mubr.f32.gmra.mrb[0].mxu0 %v4104
      %v4269 = vpop.f32.mrb[0].mxu0
      %v4270 = vadd.f32 0.0, %v4269
      %v4271 = vpop.f32.mrb[0].mxu0
      %4272 = vmatprep.mubr.f32.mxu0 0.0
      %4273 = vmatmul.mubr.f32.gmra.mrb[0].mxu0 %v4107
      %v4274 = vpop.f32.mrb[0].mxu0
      %v4275 = vadd.f32 0.0, %v4274
      %v4276 = vpop.f32.mrb[0].mxu0
      %4277 = vmatprep.mubr.f32.mxu0 0.0
      %4278 = vmatmul.mubr.f32.gmra.mrb[0].mxu0 %v4110
      %v4279 = vpop.f32.mrb[0].mxu0
      %v4280 = vadd.f32 0.0, %v4279
      %v4281 = vpop.f32.mrb[0].mxu0
      %4282 = vmatprep.mubr.f32.mxu0 0.0
      %4283 = vmatmul.mubr.f32.gmra.mrb[0].mxu0 %v4113
      %v4284 = vpop.f32.mrb[0].mxu0
      %v4285 = vadd.f32 0.0, %v4284
      %v4286 = vpop.f32.mrb[0].mxu0
      %4287 = vmatprep.mubr.f32.mxu0 0.0
      %4288 = vmatmul.mubr.f32.gmra.mrb[0].mxu0 %v4116
      %v4289 = vpop.f32.mrb[0].mxu0
      %v4290 = vadd.f32 0.0, %v4289
      %v4291 = vpop.f32.mrb[0].mxu0
      %4292 = vmatprep.mubr.f32.mxu0 0.0
      %4293 = vmatmul.mubr.f32.gmra.mrb[0].mxu0 %v4119
      %v4294 = vpop.f32.mrb[0].mxu0
      %v4295 = vadd.f32 0.0, %v4294
      %v4296 = vpop.f32.mrb[0].mxu0
      %4297 = vmatprep.mubr.f32.mxu0 0.0
      %4298 = vmatmul.mubr.f32.gmra.mrb[0].mxu0 %v4122
      %v4299 = vpop.f32.mrb[0].mxu0
      %v4300 = vadd.f32 0.0, %v4299
      %v4301 = vpop.f32.mrb[0].mxu0
      %4302 = vmatprep.mubr.f32.mxu0 0.0
      %4303 = vmatmul.mubr.f32.gmra.mrb[0].mxu0 %v4125
      %v4304 = vpop.f32.mrb[0].mxu0
      %v4305 = vadd.f32 0.0, %v4304
      %v4306 = vpop.f32.mrb[0].mxu0
      %4307 = vmatprep.mubr.f32.mxu0 0.0
      %4308 = vmatmul.mubr.f32.gmra.mrb[0].mxu0 %v4128
      %v4309 = vpop.f32.mrb[0].mxu0
      %v4310 = vadd.f32 0.0, %v4309
      %v4311 = vpop.f32.mrb[0].mxu0
      %4312 = vmatprep.mubr.f32.mxu0 0.0
      %4313 = vmatmul.mubr.f32.gmra.mrb[0].mxu0 %v4131
      %v4314 = vpop.f32.mrb[0].mxu0
      %v4315 = vadd.f32 0.0, %v4314
      %v4316 = vpop.f32.mrb[0].mxu0
      %4317 = vmatprep.mubr.f32.mxu0 0.0
      %4318 = vmatmul.mubr.f32.gmra.mrb[0].mxu0 %v4134
      %v4319 = vpop.f32.mrb[0].mxu0
      %v4320 = vadd.f32 0.0, %v4319
      %v4321 = vpop.f32.mrb[0].mxu0
      %4322 = vmatprep.mubr.f32.mxu0 0.0
      %4323 = vmatmul.mubr.f32.gmra.mrb[0].mxu0 %v4137
      %v4324 = vpop.f32.mrb[0].mxu0
      %v4325 = vadd.f32 0.0, %v4324
      %v4326 = vpop.f32.mrb[0].mxu0
      %4327 = vmatprep.mubr.f32.mxu0 0.0
      %4328 = vmatmul.mubr.f32.gmra.mrb[0].mxu0 %v4140
      %v4329 = vpop.f32.mrb[0].mxu0
      %v4330 = vadd.f32 0.0, %v4329
      %v4331 = vpop.f32.mrb[0].mxu0
      %4332 = vmatprep.mubr.f32.mxu0 0.0
      %4333 = vmatmul.mubr.f32.gmra.mrb[0].mxu0 %v4143
      %v4334 = vpop.f32.mrb[0].mxu0
      %v4335 = vadd.f32 0.0, %v4334
      %v4336 = vpop.f32.mrb[0].mxu0
      %4337 = vmatprep.mubr.f32.mxu0 0.0
      %4338 = vmatmul.mubr.f32.gmra.mrb[0].mxu0 %v4146
      %v4339 = vpop.f32.mrb[0].mxu0
      %v4340 = vadd.f32 0.0, %v4339
      %v4341 = vpop.f32.mrb[0].mxu0
      %4342 = vmatprep.mubr.f32.mxu0 0.0
      %4343 = vmatmul.mubr.f32.gmra.mrb[0].mxu0 %v4149
      %v4344 = vpop.f32.mrb[0].mxu0
      %v4345 = vadd.f32 0.0, %v4344
      %v4346 = vpop.f32.mrb[0].mxu0
      %4347 = vmatprep.mubr.f32.mxu0 0.0
      %4348 = vmatmul.mubr.f32.gmra.mrb[0].mxu0 %v4152
      %v4349 = vpop.f32.mrb[0].mxu0
      %v4350 = vadd.f32 0.0, %v4349
      %v4351 = vpop.f32.mrb[0].mxu0
      %4352 = vmatprep.mubr.f32.mxu0 0.0
      %4353 = vmatmul.mubr.f32.gmra.mrb[0].mxu0 %v4155
      %v4354 = vpop.f32.mrb[0].mxu0
      %v4355 = vadd.f32 0.0, %v4354
      %v4356 = vpop.f32.mrb[0].mxu0
      %4357 = vmatprep.mubr.f32.mxu0 0.0
      %4358 = vmatmul.mubr.f32.gmra.mrb[0].mxu0 %v4158
      %v4359 = vpop.f32.mrb[0].mxu0
      %v4360 = vadd.f32 0.0, %v4359
      %v4361 = vpop.f32.mrb[0].mxu0
      %4362 = vmatprep.mubr.f32.mxu0 0.0
      %4363 = vmatmul.mubr.f32.gmra.mrb[0].mxu0 %v4161
      %v4364 = vpop.f32.mrb[0].mxu0
      %v4365 = vadd.f32 0.0, %v4364
      %v4366 = vpop.f32.mrb[0].mxu0
      %4367 = vmatprep.mubr.f32.mxu0 0.0
      %4368 = vmatmul.mubr.f32.gmra.mrb[0].mxu0 %v4164
      %v4369 = vpop.f32.mrb[0].mxu0
      %v4370 = vadd.f32 0.0, %v4369
      %v4371 = vpop.f32.mrb[0].mxu0
      %4372 = vmatprep.mubr.f32.mxu0 0.0
      %4373 = vmatmul.mubr.f32.gmra.mrb[0].mxu0 %v4167
      %v4374 = vpop.f32.mrb[0].mxu0
      %v4375 = vadd.f32 0.0, %v4374
      %v4376 = vpop.f32.mrb[0].mxu0
      %4377 = vmatprep.mubr.f32.mxu0 0.0
      %4378 = vmatmul.mubr.f32.gmra.mrb[0].mxu0 %v4170
      %v4379 = vpop.f32.mrb[0].mxu0
      %v4380 = vadd.f32 0.0, %v4379
      %v4381 = vpop.f32.mrb[0].mxu0
      %4382 = vmatprep.mubr.f32.mxu0 0.0
      %4383 = vmatmul.mubr.f32.gmra.mrb[0].mxu0 %v4173
      %v4384 = vpop.f32.mrb[0].mxu0
      %v4385 = vadd.f32 0.0, %v4384
      %v4386 = vpop.f32.mrb[0].mxu0
      %4387 = vmatprep.mubr.f32.mxu0 0.0
      %4388 = vmatmul.mubr.f32.gmra.mrb[0].mxu0 %v4176
      %v4389 = vpop.f32.mrb[0].mxu0
      %v4390 = vadd.f32 0.0, %v4389
      %v4391 = vpop.f32.mrb[0].mxu0
      %4392 = vmatprep.mubr.f32.mxu0 0.0
      %4393 = vmatmul.mubr.f32.gmra.mrb[0].mxu0 %v4179
      %v4394 = vpop.f32.mrb[0].mxu0
      %v4395 = vadd.f32 0.0, %v4394
      %v4396 = vpop.f32.mrb[0].mxu0
      %4397 = vmatprep.mubr.f32.mxu0 0.0
      %4398 = vmatmul.mubr.f32.gmra.mrb[0].mxu0 %v4182
      %v4399 = vpop.f32.mrb[0].mxu0
      %v4400 = vadd.f32 0.0, %v4399
      %v4401 = vpop.f32.mrb[0].mxu0
      %4402 = vmatprep.mubr.f32.mxu0 0.0
      %4403 = vmatmul.mubr.f32.gmra.mrb[0].mxu0 %v4185
      %v4404 = vpop.f32.mrb[0].mxu0
      %v4405 = vadd.f32 0.0, %v4404
      %v4406 = vpop.f32.mrb[0].mxu0
      %4407 = vmatprep.mubr.f32.mxu0 0.0
      %4408 = vmatmul.mubr.f32.gmra.mrb[0].mxu0 %v4188
      %v4409 = vpop.f32.mrb[0].mxu0
      %v4410 = vadd.f32 0.0, %v4409
      %v4411 = vpop.f32.mrb[0].mxu0
      %4412 = vmatprep.mubr.f32.mxu0 0.0
      %4413 = vmatmul.mubr.f32.gmra.mrb[0].mxu0 %v4191
      %v4414 = vpop.f32.mrb[0].mxu0
      %v4415 = vadd.f32 0.0, %v4414
      %v4416 = vpop.f32.mrb[0].mxu0
      %4417 = vdwg.mxu0
      %v4418 = vadd.f32 %v4063, %v4260
      %v4419 = vadd.f32 %v4064, %v4265
      %v4420 = vadd.f32 %v4065, %v4270
      %v4421 = vadd.f32 %v4066, %v4275
      %v4422 = vadd.f32 %v4067, %v4280
      %v4423 = vadd.f32 %v4068, %v4285
      %v4424 = vadd.f32 %v4069, %v4290
      %v4425 = vadd.f32 %v4070, %v4295
      %v4426 = vadd.f32 %v4071, %v4300
      %v4427 = vadd.f32 %v4072, %v4305
      %v4428 = vadd.f32 %v4073, %v4310
      %v4429 = vadd.f32 %v4074, %v4315
      %v4430 = vadd.f32 %v4075, %v4320
      %v4431 = vadd.f32 %v4076, %v4325
      %v4432 = vadd.f32 %v4077, %v4330
      %v4433 = vadd.f32 %v4078, %v4335
      %v4434 = vadd.f32 %v4079, %v4340
      %v4435 = vadd.f32 %v4080, %v4345
      %v4436 = vadd.f32 %v4081, %v4350
      %v4437 = vadd.f32 %v4082, %v4355
      %v4438 = vadd.f32 %v4083, %v4360
      %v4439 = vadd.f32 %v4084, %v4365
      %v4440 = vadd.f32 %v4085, %v4370
      %v4441 = vadd.f32 %v4086, %v4375
      %v4442 = vadd.f32 %v4087, %v4380
      %v4443 = vadd.f32 %v4088, %v4385
      %v4444 = vadd.f32 %v4089, %v4390
      %v4445 = vadd.f32 %v4090, %v4395
      %v4446 = vadd.f32 %v4091, %v4400
      %v4447 = vadd.f32 %v4092, %v4405
      %v4448 = vadd.f32 %v4093, %v4410
      %v4449 = vadd.f32 %v4094, %v4415
      %4450 = vst.msk [vmem:[#allocation4] sm:$0xff] %vm230, %v4418
      %4451 = vst.msk [vmem:[#allocation4 + $0x8] sm:$0xff] %vm230, %v4419
      %4452 = vst.msk [vmem:[#allocation4 + $0x10] sm:$0xff] %vm230, %v4420
      %4453 = vst.msk [vmem:[#allocation4 + $0x18] sm:$0xff] %vm230, %v4421
      %4454 = vst.msk [vmem:[#allocation4 + $0x20] sm:$0xff] %vm230, %v4422
      %4455 = vst.msk [vmem:[#allocation4 + $0x28] sm:$0xff] %vm230, %v4423
      %4456 = vst.msk [vmem:[#allocation4 + $0x30] sm:$0xff] %vm230, %v4424
      %4457 = vst.msk [vmem:[#allocation4 + $0x38] sm:$0xff] %vm230, %v4425
      %4458 = vst.msk [vmem:[#allocation4 + $0x40] sm:$0xff] %vm230, %v4426
      %4459 = vst.msk [vmem:[#allocation4 + $0x48] sm:$0xff] %vm230, %v4427
      %4460 = vst.msk [vmem:[#allocation4 + $0x50] sm:$0xff] %vm230, %v4428
      %4461 = vst.msk [vmem:[#allocation4 + $0x58] sm:$0xff] %vm230, %v4429
      %4462 = vst.msk [vmem:[#allocation4 + $0x60] sm:$0xff] %vm230, %v4430
      %4463 = vst.msk [vmem:[#allocation4 + $0x68] sm:$0xff] %vm230, %v4431
      %4464 = vst.msk [vmem:[#allocation4 + $0x70] sm:$0xff] %vm230, %v4432
      %4465 = vst.msk [vmem:[#allocation4 + $0x78] sm:$0xff] %vm230, %v4433
      %4466 = vst.msk [vmem:[#allocation4 + $0x80] sm:$0xff] %vm230, %v4434
      %4467 = vst.msk [vmem:[#allocation4 + $0x88] sm:$0xff] %vm230, %v4435
      %4468 = vst.msk [vmem:[#allocation4 + $0x90] sm:$0xff] %vm230, %v4436
      %4469 = vst.msk [vmem:[#allocation4 + $0x98] sm:$0xff] %vm230, %v4437
      %4470 = vst.msk [vmem:[#allocation4 + $0xa0] sm:$0xff] %vm230, %v4438
      %4471 = vst.msk [vmem:[#allocation4 + $0xa8] sm:$0xff] %vm230, %v4439
      %4472 = vst.msk [vmem:[#allocation4 + $0xb0] sm:$0xff] %vm230, %v4440
      %4473 = vst.msk [vmem:[#allocation4 + $0xb8] sm:$0xff] %vm230, %v4441
      %4474 = vst.msk [vmem:[#allocation4 + $0xc0] sm:$0xff] %vm230, %v4442
      %4475 = vst.msk [vmem:[#allocation4 + $0xc8] sm:$0xff] %vm230, %v4443
      %4476 = vst.msk [vmem:[#allocation4 + $0xd0] sm:$0xff] %vm230, %v4444
      %4477 = vst.msk [vmem:[#allocation4 + $0xd8] sm:$0xff] %vm230, %v4445
      %4478 = vst.msk [vmem:[#allocation4 + $0xe0] sm:$0xff] %vm230, %v4446
      %4479 = vst.msk [vmem:[#allocation4 + $0xe8] sm:$0xff] %vm230, %v4447
      %4480 = vst.msk [vmem:[#allocation4 + $0xf0] sm:$0xff] %vm230, %v4448
      %4481 = vst.msk [vmem:[#allocation4 + $0xf8] sm:$0xff] %vm230, %v4449
      %v4482 = vld [vmem:[#allocation4] sm:$0xff]
      %v4483 = vld [vmem:[#allocation4 + $0x8] sm:$0xff]
      %v4484 = vld [vmem:[#allocation4 + $0x10] sm:$0xff]
      %v4485 = vld [vmem:[#allocation4 + $0x18] sm:$0xff]
      %v4486 = vld [vmem:[#allocation4 + $0x20] sm:$0xff]
      %v4487 = vld [vmem:[#allocation4 + $0x28] sm:$0xff]
      %v4488 = vld [vmem:[#allocation4 + $0x30] sm:$0xff]
      %v4489 = vld [vmem:[#allocation4 + $0x38] sm:$0xff]
      %v4490 = vld [vmem:[#allocation4 + $0x40] sm:$0xff]
      %v4491 = vld [vmem:[#allocation4 + $0x48] sm:$0xff]
      %v4492 = vld [vmem:[#allocation4 + $0x50] sm:$0xff]
      %v4493 = vld [vmem:[#allocation4 + $0x58] sm:$0xff]
      %v4494 = vld [vmem:[#allocation4 + $0x60] sm:$0xff]
      %v4495 = vld [vmem:[#allocation4 + $0x68] sm:$0xff]
      %v4496 = vld [vmem:[#allocation4 + $0x70] sm:$0xff]
      %v4497 = vld [vmem:[#allocation4 + $0x78] sm:$0xff]
      %v4498 = vld [vmem:[#allocation4 + $0x80] sm:$0xff]
      %v4499 = vld [vmem:[#allocation4 + $0x88] sm:$0xff]
      %v4500 = vld [vmem:[#allocation4 + $0x90] sm:$0xff]
      %v4501 = vld [vmem:[#allocation4 + $0x98] sm:$0xff]
      %v4502 = vld [vmem:[#allocation4 + $0xa0] sm:$0xff]
      %v4503 = vld [vmem:[#allocation4 + $0xa8] sm:$0xff]
      %v4504 = vld [vmem:[#allocation4 + $0xb0] sm:$0xff]
      %v4505 = vld [vmem:[#allocation4 + $0xb8] sm:$0xff]
      %v4506 = vld [vmem:[#allocation4 + $0xc0] sm:$0xff]
      %v4507 = vld [vmem:[#allocation4 + $0xc8] sm:$0xff]
      %v4508 = vld [vmem:[#allocation4 + $0xd0] sm:$0xff]
      %v4509 = vld [vmem:[#allocation4 + $0xd8] sm:$0xff]
      %v4510 = vld [vmem:[#allocation4 + $0xe0] sm:$0xff]
      %v4511 = vld [vmem:[#allocation4 + $0xe8] sm:$0xff]
      %v4512 = vld [vmem:[#allocation4 + $0xf0] sm:$0xff]
      %v4513 = vld [vmem:[#allocation4 + $0xf8] sm:$0xff]
      %v4514 = vmax.f32 %v4482, 0.0
      %v4515 = vmax.f32 %v4483, 0.0
      %v4516 = vmax.f32 %v4484, 0.0
      %v4517 = vmax.f32 %v4485, 0.0
      %v4518 = vmax.f32 %v4486, 0.0
      %v4519 = vmax.f32 %v4487, 0.0
      %v4520 = vmax.f32 %v4488, 0.0
      %v4521 = vmax.f32 %v4489, 0.0
      %v4522 = vmax.f32 %v4490, 0.0
      %v4523 = vmax.f32 %v4491, 0.0
      %v4524 = vmax.f32 %v4492, 0.0
      %v4525 = vmax.f32 %v4493, 0.0
      %v4526 = vmax.f32 %v4494, 0.0
      %v4527 = vmax.f32 %v4495, 0.0
      %v4528 = vmax.f32 %v4496, 0.0
      %v4529 = vmax.f32 %v4497, 0.0
      %v4530 = vmax.f32 %v4498, 0.0
      %v4531 = vmax.f32 %v4499, 0.0
      %v4532 = vmax.f32 %v4500, 0.0
      %v4533 = vmax.f32 %v4501, 0.0
      %v4534 = vmax.f32 %v4502, 0.0
      %v4535 = vmax.f32 %v4503, 0.0
      %v4536 = vmax.f32 %v4504, 0.0
      %v4537 = vmax.f32 %v4505, 0.0
      %v4538 = vmax.f32 %v4506, 0.0
      %v4539 = vmax.f32 %v4507, 0.0
      %v4540 = vmax.f32 %v4508, 0.0
      %v4541 = vmax.f32 %v4509, 0.0
      %v4542 = vmax.f32 %v4510, 0.0
      %v4543 = vmax.f32 %v4511, 0.0
      %v4544 = vmax.f32 %v4512, 0.0
      %v4545 = vmax.f32 %v4513, 0.0
      %s4546 = scalar_lea.vmem [#allocation3], 24
      %4547 = vst.msk [vmem:[%s4546 + $0x1] sm:$0xff] %vm230, %v4514
      %4548 = vst.msk [vmem:[%s4546 + $0x9] sm:$0xff] %vm230, %v4515
      %4549 = vst.msk [vmem:[%s4546 + $0x19] sm:$0xff] %vm230, %v4516
      %4550 = vst.msk [vmem:[%s4546 + $0x21] sm:$0xff] %vm230, %v4517
      %4551 = vst.msk [vmem:[%s4546 + $0x31] sm:$0xff] %vm230, %v4518
      %4552 = vst.msk [vmem:[%s4546 + $0x39] sm:$0xff] %vm230, %v4519
      %4553 = vst.msk [vmem:[%s4546 + $0x49] sm:$0xff] %vm230, %v4520
      %4554 = vst.msk [vmem:[%s4546 + $0x51] sm:$0xff] %vm230, %v4521
      %4555 = vst.msk [vmem:[%s4546 + $0x61] sm:$0xff] %vm230, %v4522
      %4556 = vst.msk [vmem:[%s4546 + $0x69] sm:$0xff] %vm230, %v4523
      %4557 = vst.msk [vmem:[%s4546 + $0x79] sm:$0xff] %vm230, %v4524
      %4558 = vst.msk [vmem:[%s4546 + $0x81] sm:$0xff] %vm230, %v4525
      %4559 = vst.msk [vmem:[%s4546 + $0x91] sm:$0xff] %vm230, %v4526
      %4560 = vst.msk [vmem:[%s4546 + $0x99] sm:$0xff] %vm230, %v4527
      %4561 = vst.msk [vmem:[%s4546 + $0xa9] sm:$0xff] %vm230, %v4528
      %4562 = vst.msk [vmem:[%s4546 + $0xb1] sm:$0xff] %vm230, %v4529
      %4563 = vst.msk [vmem:[%s4546 + $0xc1] sm:$0xff] %vm230, %v4530
      %4564 = vst.msk [vmem:[%s4546 + $0xc9] sm:$0xff] %vm230, %v4531
      %4565 = vst.msk [vmem:[%s4546 + $0xd9] sm:$0xff] %vm230, %v4532
      %4566 = vst.msk [vmem:[%s4546 + $0xe1] sm:$0xff] %vm230, %v4533
      %4567 = vst.msk [vmem:[%s4546 + $0xf1] sm:$0xff] %vm230, %v4534
      %4568 = vst.msk [vmem:[%s4546 + $0xf9] sm:$0xff] %vm230, %v4535
      %4569 = vst.msk [vmem:[%s4546 + $0x109] sm:$0xff] %vm230, %v4536
      %4570 = vst.msk [vmem:[%s4546 + $0x111] sm:$0xff] %vm230, %v4537
      %4571 = vst.msk [vmem:[%s4546 + $0x121] sm:$0xff] %vm230, %v4538
      %4572 = vst.msk [vmem:[%s4546 + $0x129] sm:$0xff] %vm230, %v4539
      %4573 = vst.msk [vmem:[%s4546 + $0x139] sm:$0xff] %vm230, %v4540
      %4574 = vst.msk [vmem:[%s4546 + $0x141] sm:$0xff] %vm230, %v4541
      %4575 = vst.msk [vmem:[%s4546 + $0x151] sm:$0xff] %vm230, %v4542
      %4576 = vst.msk [vmem:[%s4546 + $0x159] sm:$0xff] %vm230, %v4543
      %4577 = vst.msk [vmem:[%s4546 + $0x169] sm:$0xff] %vm230, %v4544
      %4578 = vst.msk [vmem:[%s4546 + $0x171] sm:$0xff] %vm230, %v4545
      %4579 = vst.msk [vmem:[#allocation4] sm:$0xff] %vm230, %v198
      %4580 = vst.msk [vmem:[#allocation4 + $0x8] sm:$0xff] %vm230, %v199
      %4581 = vst.msk [vmem:[#allocation4 + $0x10] sm:$0xff] %vm230, %v200
      %4582 = vst.msk [vmem:[#allocation4 + $0x18] sm:$0xff] %vm230, %v201
      %4583 = vst.msk [vmem:[#allocation4 + $0x20] sm:$0xff] %vm230, %v202
      %4584 = vst.msk [vmem:[#allocation4 + $0x28] sm:$0xff] %vm230, %v203
      %4585 = vst.msk [vmem:[#allocation4 + $0x30] sm:$0xff] %vm230, %v204
      %4586 = vst.msk [vmem:[#allocation4 + $0x38] sm:$0xff] %vm230, %v205
      %4587 = vst.msk [vmem:[#allocation4 + $0x40] sm:$0xff] %vm230, %v206
      %4588 = vst.msk [vmem:[#allocation4 + $0x48] sm:$0xff] %vm230, %v207
      %4589 = vst.msk [vmem:[#allocation4 + $0x50] sm:$0xff] %vm230, %v208
      %4590 = vst.msk [vmem:[#allocation4 + $0x58] sm:$0xff] %vm230, %v209
      %4591 = vst.msk [vmem:[#allocation4 + $0x60] sm:$0xff] %vm230, %v210
      %4592 = vst.msk [vmem:[#allocation4 + $0x68] sm:$0xff] %vm230, %v211
      %4593 = vst.msk [vmem:[#allocation4 + $0x70] sm:$0xff] %vm230, %v212
      %4594 = vst.msk [vmem:[#allocation4 + $0x78] sm:$0xff] %vm230, %v213
      %4595 = vst.msk [vmem:[#allocation4 + $0x80] sm:$0xff] %vm230, %v214
      %4596 = vst.msk [vmem:[#allocation4 + $0x88] sm:$0xff] %vm230, %v215
      %4597 = vst.msk [vmem:[#allocation4 + $0x90] sm:$0xff] %vm230, %v216
      %4598 = vst.msk [vmem:[#allocation4 + $0x98] sm:$0xff] %vm230, %v217
      %4599 = vst.msk [vmem:[#allocation4 + $0xa0] sm:$0xff] %vm230, %v218
      %4600 = vst.msk [vmem:[#allocation4 + $0xa8] sm:$0xff] %vm230, %v219
      %4601 = vst.msk [vmem:[#allocation4 + $0xb0] sm:$0xff] %vm230, %v220
      %4602 = vst.msk [vmem:[#allocation4 + $0xb8] sm:$0xff] %vm230, %v221
      %4603 = vst.msk [vmem:[#allocation4 + $0xc0] sm:$0xff] %vm230, %v222
      %4604 = vst.msk [vmem:[#allocation4 + $0xc8] sm:$0xff] %vm230, %v223
      %4605 = vst.msk [vmem:[#allocation4 + $0xd0] sm:$0xff] %vm230, %v224
      %4606 = vst.msk [vmem:[#allocation4 + $0xd8] sm:$0xff] %vm230, %v225
      %4607 = vst.msk [vmem:[#allocation4 + $0xe0] sm:$0xff] %vm230, %v226
      %4608 = vst.msk [vmem:[#allocation4 + $0xe8] sm:$0xff] %vm230, %v227
      %4609 = vst.msk [vmem:[#allocation4 + $0xf0] sm:$0xff] %vm230, %v228
      %4610 = vst.msk [vmem:[#allocation4 + $0xf8] sm:$0xff] %vm230, %v229
      %v4611 = vld [vmem:[#allocation3] sm:$0xff]
      %v4612 = vld [vmem:[#allocation3 + $0x8] sm:$0xff]
      %v4613 = vld [vmem:[#allocation3 + $0x18] sm:$0xff]
      %v4614 = vld [vmem:[#allocation3 + $0x20] sm:$0xff]
      %v4615 = vld [vmem:[#allocation3 + $0x30] sm:$0xff]
      %v4616 = vld [vmem:[#allocation3 + $0x38] sm:$0xff]
      %v4617 = vld [vmem:[#allocation3 + $0x48] sm:$0xff]
      %v4618 = vld [vmem:[#allocation3 + $0x50] sm:$0xff]
      %v4619 = vld [vmem:[#allocation3 + $0x60] sm:$0xff]
      %v4620 = vld [vmem:[#allocation3 + $0x68] sm:$0xff]
      %v4621 = vld [vmem:[#allocation3 + $0x78] sm:$0xff]
      %v4622 = vld [vmem:[#allocation3 + $0x80] sm:$0xff]
      %v4623 = vld [vmem:[#allocation3 + $0x90] sm:$0xff]
      %v4624 = vld [vmem:[#allocation3 + $0x98] sm:$0xff]
      %v4625 = vld [vmem:[#allocation3 + $0xa8] sm:$0xff]
      %v4626 = vld [vmem:[#allocation3 + $0xb0] sm:$0xff]
      %v4627 = vld [vmem:[#allocation3 + $0xc0] sm:$0xff]
      %v4628 = vld [vmem:[#allocation3 + $0xc8] sm:$0xff]
      %v4629 = vld [vmem:[#allocation3 + $0xd8] sm:$0xff]
      %v4630 = vld [vmem:[#allocation3 + $0xe0] sm:$0xff]
      %v4631 = vld [vmem:[#allocation3 + $0xf0] sm:$0xff]
      %v4632 = vld [vmem:[#allocation3 + $0xf8] sm:$0xff]
      %v4633 = vld [vmem:[#allocation3 + $0x108] sm:$0xff]
      %v4634 = vld [vmem:[#allocation3 + $0x110] sm:$0xff]
      %v4635 = vld [vmem:[#allocation3 + $0x120] sm:$0xff]
      %v4636 = vld [vmem:[#allocation3 + $0x128] sm:$0xff]
      %v4637 = vld [vmem:[#allocation3 + $0x138] sm:$0xff]
      %v4638 = vld [vmem:[#allocation3 + $0x140] sm:$0xff]
      %v4639 = vld [vmem:[#allocation3 + $0x150] sm:$0xff]
      %v4640 = vld [vmem:[#allocation3 + $0x158] sm:$0xff]
      %v4641 = vld [vmem:[#allocation3 + $0x168] sm:$0xff]
      %v4642 = vld [vmem:[#allocation3 + $0x170] sm:$0xff]
      %v4643 = vld [vmem:[#allocation4] sm:$0xff]
      %v4644 = vld [vmem:[#allocation4 + $0x8] sm:$0xff]
      %v4645 = vld [vmem:[#allocation4 + $0x10] sm:$0xff]
      %v4646 = vld [vmem:[#allocation4 + $0x18] sm:$0xff]
      %v4647 = vld [vmem:[#allocation4 + $0x20] sm:$0xff]
      %v4648 = vld [vmem:[#allocation4 + $0x28] sm:$0xff]
      %v4649 = vld [vmem:[#allocation4 + $0x30] sm:$0xff]
      %v4650 = vld [vmem:[#allocation4 + $0x38] sm:$0xff]
      %v4651 = vld [vmem:[#allocation4 + $0x40] sm:$0xff]
      %v4652 = vld [vmem:[#allocation4 + $0x48] sm:$0xff]
      %v4653 = vld [vmem:[#allocation4 + $0x50] sm:$0xff]
      %v4654 = vld [vmem:[#allocation4 + $0x58] sm:$0xff]
      %v4655 = vld [vmem:[#allocation4 + $0x60] sm:$0xff]
      %v4656 = vld [vmem:[#allocation4 + $0x68] sm:$0xff]
      %v4657 = vld [vmem:[#allocation4 + $0x70] sm:$0xff]
      %v4658 = vld [vmem:[#allocation4 + $0x78] sm:$0xff]
      %v4659 = vld [vmem:[#allocation4 + $0x80] sm:$0xff]
      %v4660 = vld [vmem:[#allocation4 + $0x88] sm:$0xff]
      %v4661 = vld [vmem:[#allocation4 + $0x90] sm:$0xff]
      %v4662 = vld [vmem:[#allocation4 + $0x98] sm:$0xff]
      %v4663 = vld [vmem:[#allocation4 + $0xa0] sm:$0xff]
      %v4664 = vld [vmem:[#allocation4 + $0xa8] sm:$0xff]
      %v4665 = vld [vmem:[#allocation4 + $0xb0] sm:$0xff]
      %v4666 = vld [vmem:[#allocation4 + $0xb8] sm:$0xff]
      %v4667 = vld [vmem:[#allocation4 + $0xc0] sm:$0xff]
      %v4668 = vld [vmem:[#allocation4 + $0xc8] sm:$0xff]
      %v4669 = vld [vmem:[#allocation4 + $0xd0] sm:$0xff]
      %v4670 = vld [vmem:[#allocation4 + $0xd8] sm:$0xff]
      %v4671 = vld [vmem:[#allocation4 + $0xe0] sm:$0xff]
      %v4672 = vld [vmem:[#allocation4 + $0xe8] sm:$0xff]
      %v4673 = vld [vmem:[#allocation4 + $0xf0] sm:$0xff]
      %v4674 = vld [vmem:[#allocation4 + $0xf8] sm:$0xff]
      %v4675 = vld [vmem:[%s3] sm:$0xff]
      %v4677 = vsel %vm230, %v4611, 0
      %v4680 = vsel %vm230, %v4612, 0
      %v4683 = vsel %vm230, %v4613, 0
      %v4686 = vsel %vm230, %v4614, 0
      %v4689 = vsel %vm230, %v4615, 0
      %v4692 = vsel %vm230, %v4616, 0
      %v4695 = vsel %vm230, %v4617, 0
      %v4698 = vsel %vm230, %v4618, 0
      %v4701 = vsel %vm230, %v4619, 0
      %v4704 = vsel %vm230, %v4620, 0
      %v4707 = vsel %vm230, %v4621, 0
      %v4710 = vsel %vm230, %v4622, 0
      %v4713 = vsel %vm230, %v4623, 0
      %v4716 = vsel %vm230, %v4624, 0
      %v4719 = vsel %vm230, %v4625, 0
      %v4722 = vsel %vm230, %v4626, 0
      %v4725 = vsel %vm230, %v4627, 0
      %v4728 = vsel %vm230, %v4628, 0
      %v4731 = vsel %vm230, %v4629, 0
      %v4734 = vsel %vm230, %v4630, 0
      %v4737 = vsel %vm230, %v4631, 0
      %v4740 = vsel %vm230, %v4632, 0
      %v4743 = vsel %vm230, %v4633, 0
      %v4746 = vsel %vm230, %v4634, 0
      %v4749 = vsel %vm230, %v4635, 0
      %v4752 = vsel %vm230, %v4636, 0
      %v4755 = vsel %vm230, %v4637, 0
      %v4758 = vsel %vm230, %v4638, 0
      %v4761 = vsel %vm230, %v4639, 0
      %v4764 = vsel %vm230, %v4640, 0
      %v4767 = vsel %vm230, %v4641, 0
      %v4770 = vsel %vm230, %v4642, 0
      %4772 = vmatprep.subr.mxu0 0.0
      %4773 = vmatpush1.msra.mxu0 %v4675
      %4774 = vmatprep.subr.mxu0 0.0
      %4775 = vmatpush1.msra.mxu0 0.0
      %4776 = vmatprep.subr.mxu0 0.0
      %4777 = vmatpush1.msra.mxu0 0.0
      %4778 = vmatprep.subr.mxu0 0.0
      %4779 = vmatpush1.msra.mxu0 0.0
      %4780 = vmatprep.subr.mxu0 0.0
      %4781 = vmatpush1.msra.mxu0 0.0
      %4782 = vmatprep.subr.mxu0 0.0
      %4783 = vmatpush1.msra.mxu0 0.0
      %4784 = vmatprep.subr.mxu0 0.0
      %4785 = vmatpush1.msra.mxu0 0.0
      %4786 = vmatprep.subr.mxu0 0.0
      %4787 = vmatpush1.msra.mxu0 0.0
      %4788 = vmatprep.subr.mxu0 0.0
      %4789 = vmatpush1.msra.mxu0 0.0
      %4790 = vmatprep.subr.mxu0 0.0
      %4791 = vmatpush1.msra.mxu0 0.0
      %4792 = vmatprep.subr.mxu0 0.0
      %4793 = vmatpush1.msra.mxu0 0.0
      %4794 = vmatprep.subr.mxu0 0.0
      %4795 = vmatpush1.msra.mxu0 0.0
      %4796 = vmatprep.subr.mxu0 0.0
      %4797 = vmatpush1.msra.mxu0 0.0
      %4798 = vmatprep.subr.mxu0 0.0
      %4799 = vmatpush1.msra.mxu0 0.0
      %4800 = vmatprep.subr.mxu0 0.0
      %4801 = vmatpush1.msra.mxu0 0.0
      %4802 = vmatprep.subr.mxu0 0.0
      %4803 = vmatpush1.msra.mxu0 0.0
      %4804 = vmatprep.subr.mxu0 0.0
      %4805 = vmatpush1.msra.mxu0 0.0
      %4806 = vmatprep.subr.mxu0 0.0
      %4807 = vmatpush1.msra.mxu0 0.0
      %4808 = vmatprep.subr.mxu0 0.0
      %4809 = vmatpush1.msra.mxu0 0.0
      %4810 = vmatprep.subr.mxu0 0.0
      %4811 = vmatpush1.msra.mxu0 0.0
      %4812 = vmatprep.subr.mxu0 0.0
      %4813 = vmatpush1.msra.mxu0 0.0
      %4814 = vmatprep.subr.mxu0 0.0
      %4815 = vmatpush1.msra.mxu0 0.0
      %4816 = vmatprep.subr.mxu0 0.0
      %4817 = vmatpush1.msra.mxu0 0.0
      %4818 = vmatprep.subr.mxu0 0.0
      %4819 = vmatpush1.msra.mxu0 0.0
      %4820 = vmatprep.subr.mxu0 0.0
      %4821 = vmatpush1.msra.mxu0 0.0
      %4822 = vmatprep.subr.mxu0 0.0
      %4823 = vmatpush1.msra.mxu0 0.0
      %4824 = vmatprep.subr.mxu0 0.0
      %4825 = vmatpush1.msra.mxu0 0.0
      %4826 = vmatprep.subr.mxu0 0.0
      %4827 = vmatpush1.msra.mxu0 0.0
      %4828 = vmatprep.subr.mxu0 0.0
      %4829 = vmatpush1.msra.mxu0 0.0
      %4830 = vmatprep.subr.mxu0 0.0
      %4831 = vmatpush1.msra.mxu0 0.0
      %4832 = vmatprep.subr.mxu0 0.0
      %4833 = vmatpush1.msra.mxu0 0.0
      %4834 = vmatprep.subr.mxu0 0.0
      %4835 = vmatpush1.msra.mxu0 0.0
      %4836 = vmatprep.mubr.f32.mxu0 0.0
      %4837 = vmatmul.mubr.f32.gmra.mrb[0].mxu0 %v4677
      %v4838 = vpop.f32.mrb[0].mxu0
      %v4839 = vadd.f32 0.0, %v4838
      %v4840 = vpop.f32.mrb[0].mxu0
      %4841 = vmatprep.mubr.f32.mxu0 0.0
      %4842 = vmatmul.mubr.f32.gmra.mrb[0].mxu0 %v4680
      %v4843 = vpop.f32.mrb[0].mxu0
      %v4844 = vadd.f32 0.0, %v4843
      %v4845 = vpop.f32.mrb[0].mxu0
      %4846 = vmatprep.mubr.f32.mxu0 0.0
      %4847 = vmatmul.mubr.f32.gmra.mrb[0].mxu0 %v4683
      %v4848 = vpop.f32.mrb[0].mxu0
      %v4849 = vadd.f32 0.0, %v4848
      %v4850 = vpop.f32.mrb[0].mxu0
      %4851 = vmatprep.mubr.f32.mxu0 0.0
      %4852 = vmatmul.mubr.f32.gmra.mrb[0].mxu0 %v4686
      %v4853 = vpop.f32.mrb[0].mxu0
      %v4854 = vadd.f32 0.0, %v4853
      %v4855 = vpop.f32.mrb[0].mxu0
      %4856 = vmatprep.mubr.f32.mxu0 0.0
      %4857 = vmatmul.mubr.f32.gmra.mrb[0].mxu0 %v4689
      %v4858 = vpop.f32.mrb[0].mxu0
      %v4859 = vadd.f32 0.0, %v4858
      %v4860 = vpop.f32.mrb[0].mxu0
      %4861 = vmatprep.mubr.f32.mxu0 0.0
      %4862 = vmatmul.mubr.f32.gmra.mrb[0].mxu0 %v4692
      %v4863 = vpop.f32.mrb[0].mxu0
      %v4864 = vadd.f32 0.0, %v4863
      %v4865 = vpop.f32.mrb[0].mxu0
      %4866 = vmatprep.mubr.f32.mxu0 0.0
      %4867 = vmatmul.mubr.f32.gmra.mrb[0].mxu0 %v4695
      %v4868 = vpop.f32.mrb[0].mxu0
      %v4869 = vadd.f32 0.0, %v4868
      %v4870 = vpop.f32.mrb[0].mxu0
      %4871 = vmatprep.mubr.f32.mxu0 0.0
      %4872 = vmatmul.mubr.f32.gmra.mrb[0].mxu0 %v4698
      %v4873 = vpop.f32.mrb[0].mxu0
      %v4874 = vadd.f32 0.0, %v4873
      %v4875 = vpop.f32.mrb[0].mxu0
      %4876 = vmatprep.mubr.f32.mxu0 0.0
      %4877 = vmatmul.mubr.f32.gmra.mrb[0].mxu0 %v4701
      %v4878 = vpop.f32.mrb[0].mxu0
      %v4879 = vadd.f32 0.0, %v4878
      %v4880 = vpop.f32.mrb[0].mxu0
      %4881 = vmatprep.mubr.f32.mxu0 0.0
      %4882 = vmatmul.mubr.f32.gmra.mrb[0].mxu0 %v4704
      %v4883 = vpop.f32.mrb[0].mxu0
      %v4884 = vadd.f32 0.0, %v4883
      %v4885 = vpop.f32.mrb[0].mxu0
      %4886 = vmatprep.mubr.f32.mxu0 0.0
      %4887 = vmatmul.mubr.f32.gmra.mrb[0].mxu0 %v4707
      %v4888 = vpop.f32.mrb[0].mxu0
      %v4889 = vadd.f32 0.0, %v4888
      %v4890 = vpop.f32.mrb[0].mxu0
      %4891 = vmatprep.mubr.f32.mxu0 0.0
      %4892 = vmatmul.mubr.f32.gmra.mrb[0].mxu0 %v4710
      %v4893 = vpop.f32.mrb[0].mxu0
      %v4894 = vadd.f32 0.0, %v4893
      %v4895 = vpop.f32.mrb[0].mxu0
      %4896 = vmatprep.mubr.f32.mxu0 0.0
      %4897 = vmatmul.mubr.f32.gmra.mrb[0].mxu0 %v4713
      %v4898 = vpop.f32.mrb[0].mxu0
      %v4899 = vadd.f32 0.0, %v4898
      %v4900 = vpop.f32.mrb[0].mxu0
      %4901 = vmatprep.mubr.f32.mxu0 0.0
      %4902 = vmatmul.mubr.f32.gmra.mrb[0].mxu0 %v4716
      %v4903 = vpop.f32.mrb[0].mxu0
      %v4904 = vadd.f32 0.0, %v4903
      %v4905 = vpop.f32.mrb[0].mxu0
      %4906 = vmatprep.mubr.f32.mxu0 0.0
      %4907 = vmatmul.mubr.f32.gmra.mrb[0].mxu0 %v4719
      %v4908 = vpop.f32.mrb[0].mxu0
      %v4909 = vadd.f32 0.0, %v4908
      %v4910 = vpop.f32.mrb[0].mxu0
      %4911 = vmatprep.mubr.f32.mxu0 0.0
      %4912 = vmatmul.mubr.f32.gmra.mrb[0].mxu0 %v4722
      %v4913 = vpop.f32.mrb[0].mxu0
      %v4914 = vadd.f32 0.0, %v4913
      %v4915 = vpop.f32.mrb[0].mxu0
      %4916 = vmatprep.mubr.f32.mxu0 0.0
      %4917 = vmatmul.mubr.f32.gmra.mrb[0].mxu0 %v4725
      %v4918 = vpop.f32.mrb[0].mxu0
      %v4919 = vadd.f32 0.0, %v4918
      %v4920 = vpop.f32.mrb[0].mxu0
      %4921 = vmatprep.mubr.f32.mxu0 0.0
      %4922 = vmatmul.mubr.f32.gmra.mrb[0].mxu0 %v4728
      %v4923 = vpop.f32.mrb[0].mxu0
      %v4924 = vadd.f32 0.0, %v4923
      %v4925 = vpop.f32.mrb[0].mxu0
      %4926 = vmatprep.mubr.f32.mxu0 0.0
      %4927 = vmatmul.mubr.f32.gmra.mrb[0].mxu0 %v4731
      %v4928 = vpop.f32.mrb[0].mxu0
      %v4929 = vadd.f32 0.0, %v4928
      %v4930 = vpop.f32.mrb[0].mxu0
      %4931 = vmatprep.mubr.f32.mxu0 0.0
      %4932 = vmatmul.mubr.f32.gmra.mrb[0].mxu0 %v4734
      %v4933 = vpop.f32.mrb[0].mxu0
      %v4934 = vadd.f32 0.0, %v4933
      %v4935 = vpop.f32.mrb[0].mxu0
      %4936 = vmatprep.mubr.f32.mxu0 0.0
      %4937 = vmatmul.mubr.f32.gmra.mrb[0].mxu0 %v4737
      %v4938 = vpop.f32.mrb[0].mxu0
      %v4939 = vadd.f32 0.0, %v4938
      %v4940 = vpop.f32.mrb[0].mxu0
      %4941 = vmatprep.mubr.f32.mxu0 0.0
      %4942 = vmatmul.mubr.f32.gmra.mrb[0].mxu0 %v4740
      %v4943 = vpop.f32.mrb[0].mxu0
      %v4944 = vadd.f32 0.0, %v4943
      %v4945 = vpop.f32.mrb[0].mxu0
      %4946 = vmatprep.mubr.f32.mxu0 0.0
      %4947 = vmatmul.mubr.f32.gmra.mrb[0].mxu0 %v4743
      %v4948 = vpop.f32.mrb[0].mxu0
      %v4949 = vadd.f32 0.0, %v4948
      %v4950 = vpop.f32.mrb[0].mxu0
      %4951 = vmatprep.mubr.f32.mxu0 0.0
      %4952 = vmatmul.mubr.f32.gmra.mrb[0].mxu0 %v4746
      %v4953 = vpop.f32.mrb[0].mxu0
      %v4954 = vadd.f32 0.0, %v4953
      %v4955 = vpop.f32.mrb[0].mxu0
      %4956 = vmatprep.mubr.f32.mxu0 0.0
      %4957 = vmatmul.mubr.f32.gmra.mrb[0].mxu0 %v4749
      %v4958 = vpop.f32.mrb[0].mxu0
      %v4959 = vadd.f32 0.0, %v4958
      %v4960 = vpop.f32.mrb[0].mxu0
      %4961 = vmatprep.mubr.f32.mxu0 0.0
      %4962 = vmatmul.mubr.f32.gmra.mrb[0].mxu0 %v4752
      %v4963 = vpop.f32.mrb[0].mxu0
      %v4964 = vadd.f32 0.0, %v4963
      %v4965 = vpop.f32.mrb[0].mxu0
      %4966 = vmatprep.mubr.f32.mxu0 0.0
      %4967 = vmatmul.mubr.f32.gmra.mrb[0].mxu0 %v4755
      %v4968 = vpop.f32.mrb[0].mxu0
      %v4969 = vadd.f32 0.0, %v4968
      %v4970 = vpop.f32.mrb[0].mxu0
      %4971 = vmatprep.mubr.f32.mxu0 0.0
      %4972 = vmatmul.mubr.f32.gmra.mrb[0].mxu0 %v4758
      %v4973 = vpop.f32.mrb[0].mxu0
      %v4974 = vadd.f32 0.0, %v4973
      %v4975 = vpop.f32.mrb[0].mxu0
      %4976 = vmatprep.mubr.f32.mxu0 0.0
      %4977 = vmatmul.mubr.f32.gmra.mrb[0].mxu0 %v4761
      %v4978 = vpop.f32.mrb[0].mxu0
      %v4979 = vadd.f32 0.0, %v4978
      %v4980 = vpop.f32.mrb[0].mxu0
      %4981 = vmatprep.mubr.f32.mxu0 0.0
      %4982 = vmatmul.mubr.f32.gmra.mrb[0].mxu0 %v4764
      %v4983 = vpop.f32.mrb[0].mxu0
      %v4984 = vadd.f32 0.0, %v4983
      %v4985 = vpop.f32.mrb[0].mxu0
      %4986 = vmatprep.mubr.f32.mxu0 0.0
      %4987 = vmatmul.mubr.f32.gmra.mrb[0].mxu0 %v4767
      %v4988 = vpop.f32.mrb[0].mxu0
      %v4989 = vadd.f32 0.0, %v4988
      %v4990 = vpop.f32.mrb[0].mxu0
      %4991 = vmatprep.mubr.f32.mxu0 0.0
      %4992 = vmatmul.mubr.f32.gmra.mrb[0].mxu0 %v4770
      %v4993 = vpop.f32.mrb[0].mxu0
      %v4994 = vadd.f32 0.0, %v4993
      %v4995 = vpop.f32.mrb[0].mxu0
      %4996 = vdwg.mxu0
      %v4997 = vadd.f32 %v4643, %v4839
      %v4998 = vadd.f32 %v4644, %v4844
      %v4999 = vadd.f32 %v4645, %v4849
      %v5000 = vadd.f32 %v4646, %v4854
      %v5001 = vadd.f32 %v4647, %v4859
      %v5002 = vadd.f32 %v4648, %v4864
      %v5003 = vadd.f32 %v4649, %v4869
      %v5004 = vadd.f32 %v4650, %v4874
      %v5005 = vadd.f32 %v4651, %v4879
      %v5006 = vadd.f32 %v4652, %v4884
      %v5007 = vadd.f32 %v4653, %v4889
      %v5008 = vadd.f32 %v4654, %v4894
      %v5009 = vadd.f32 %v4655, %v4899
      %v5010 = vadd.f32 %v4656, %v4904
      %v5011 = vadd.f32 %v4657, %v4909
      %v5012 = vadd.f32 %v4658, %v4914
      %v5013 = vadd.f32 %v4659, %v4919
      %v5014 = vadd.f32 %v4660, %v4924
      %v5015 = vadd.f32 %v4661, %v4929
      %v5016 = vadd.f32 %v4662, %v4934
      %v5017 = vadd.f32 %v4663, %v4939
      %v5018 = vadd.f32 %v4664, %v4944
      %v5019 = vadd.f32 %v4665, %v4949
      %v5020 = vadd.f32 %v4666, %v4954
      %v5021 = vadd.f32 %v4667, %v4959
      %v5022 = vadd.f32 %v4668, %v4964
      %v5023 = vadd.f32 %v4669, %v4969
      %v5024 = vadd.f32 %v4670, %v4974
      %v5025 = vadd.f32 %v4671, %v4979
      %v5026 = vadd.f32 %v4672, %v4984
      %v5027 = vadd.f32 %v4673, %v4989
      %v5028 = vadd.f32 %v4674, %v4994
      %5029 = vst.msk [vmem:[#allocation4] sm:$0xff] %vm230, %v4997
      %5030 = vst.msk [vmem:[#allocation4 + $0x8] sm:$0xff] %vm230, %v4998
      %5031 = vst.msk [vmem:[#allocation4 + $0x10] sm:$0xff] %vm230, %v4999
      %5032 = vst.msk [vmem:[#allocation4 + $0x18] sm:$0xff] %vm230, %v5000
      %5033 = vst.msk [vmem:[#allocation4 + $0x20] sm:$0xff] %vm230, %v5001
      %5034 = vst.msk [vmem:[#allocation4 + $0x28] sm:$0xff] %vm230, %v5002
      %5035 = vst.msk [vmem:[#allocation4 + $0x30] sm:$0xff] %vm230, %v5003
      %5036 = vst.msk [vmem:[#allocation4 + $0x38] sm:$0xff] %vm230, %v5004
      %5037 = vst.msk [vmem:[#allocation4 + $0x40] sm:$0xff] %vm230, %v5005
      %5038 = vst.msk [vmem:[#allocation4 + $0x48] sm:$0xff] %vm230, %v5006
      %5039 = vst.msk [vmem:[#allocation4 + $0x50] sm:$0xff] %vm230, %v5007
      %5040 = vst.msk [vmem:[#allocation4 + $0x58] sm:$0xff] %vm230, %v5008
      %5041 = vst.msk [vmem:[#allocation4 + $0x60] sm:$0xff] %vm230, %v5009
      %5042 = vst.msk [vmem:[#allocation4 + $0x68] sm:$0xff] %vm230, %v5010
      %5043 = vst.msk [vmem:[#allocation4 + $0x70] sm:$0xff] %vm230, %v5011
      %5044 = vst.msk [vmem:[#allocation4 + $0x78] sm:$0xff] %vm230, %v5012
      %5045 = vst.msk [vmem:[#allocation4 + $0x80] sm:$0xff] %vm230, %v5013
      %5046 = vst.msk [vmem:[#allocation4 + $0x88] sm:$0xff] %vm230, %v5014
      %5047 = vst.msk [vmem:[#allocation4 + $0x90] sm:$0xff] %vm230, %v5015
      %5048 = vst.msk [vmem:[#allocation4 + $0x98] sm:$0xff] %vm230, %v5016
      %5049 = vst.msk [vmem:[#allocation4 + $0xa0] sm:$0xff] %vm230, %v5017
      %5050 = vst.msk [vmem:[#allocation4 + $0xa8] sm:$0xff] %vm230, %v5018
      %5051 = vst.msk [vmem:[#allocation4 + $0xb0] sm:$0xff] %vm230, %v5019
      %5052 = vst.msk [vmem:[#allocation4 + $0xb8] sm:$0xff] %vm230, %v5020
      %5053 = vst.msk [vmem:[#allocation4 + $0xc0] sm:$0xff] %vm230, %v5021
      %5054 = vst.msk [vmem:[#allocation4 + $0xc8] sm:$0xff] %vm230, %v5022
      %5055 = vst.msk [vmem:[#allocation4 + $0xd0] sm:$0xff] %vm230, %v5023
      %5056 = vst.msk [vmem:[#allocation4 + $0xd8] sm:$0xff] %vm230, %v5024
      %5057 = vst.msk [vmem:[#allocation4 + $0xe0] sm:$0xff] %vm230, %v5025
      %5058 = vst.msk [vmem:[#allocation4 + $0xe8] sm:$0xff] %vm230, %v5026
      %5059 = vst.msk [vmem:[#allocation4 + $0xf0] sm:$0xff] %vm230, %v5027
      %5060 = vst.msk [vmem:[#allocation4 + $0xf8] sm:$0xff] %vm230, %v5028
      %v5061 = vld [vmem:[#allocation3 + $0x1] sm:$0xff]
      %v5062 = vld [vmem:[#allocation3 + $0x9] sm:$0xff]
      %v5063 = vld [vmem:[#allocation3 + $0x19] sm:$0xff]
      %v5064 = vld [vmem:[#allocation3 + $0x21] sm:$0xff]
      %v5065 = vld [vmem:[#allocation3 + $0x31] sm:$0xff]
      %v5066 = vld [vmem:[#allocation3 + $0x39] sm:$0xff]
      %v5067 = vld [vmem:[#allocation3 + $0x49] sm:$0xff]
      %v5068 = vld [vmem:[#allocation3 + $0x51] sm:$0xff]
      %v5069 = vld [vmem:[#allocation3 + $0x61] sm:$0xff]
      %v5070 = vld [vmem:[#allocation3 + $0x69] sm:$0xff]
      %v5071 = vld [vmem:[#allocation3 + $0x79] sm:$0xff]
      %v5072 = vld [vmem:[#allocation3 + $0x81] sm:$0xff]
      %v5073 = vld [vmem:[#allocation3 + $0x91] sm:$0xff]
      %v5074 = vld [vmem:[#allocation3 + $0x99] sm:$0xff]
      %v5075 = vld [vmem:[#allocation3 + $0xa9] sm:$0xff]
      %v5076 = vld [vmem:[#allocation3 + $0xb1] sm:$0xff]
      %v5077 = vld [vmem:[#allocation3 + $0xc1] sm:$0xff]
      %v5078 = vld [vmem:[#allocation3 + $0xc9] sm:$0xff]
      %v5079 = vld [vmem:[#allocation3 + $0xd9] sm:$0xff]
      %v5080 = vld [vmem:[#allocation3 + $0xe1] sm:$0xff]
      %v5081 = vld [vmem:[#allocation3 + $0xf1] sm:$0xff]
      %v5082 = vld [vmem:[#allocation3 + $0xf9] sm:$0xff]
      %v5083 = vld [vmem:[#allocation3 + $0x109] sm:$0xff]
      %v5084 = vld [vmem:[#allocation3 + $0x111] sm:$0xff]
      %v5085 = vld [vmem:[#allocation3 + $0x121] sm:$0xff]
      %v5086 = vld [vmem:[#allocation3 + $0x129] sm:$0xff]
      %v5087 = vld [vmem:[#allocation3 + $0x139] sm:$0xff]
      %v5088 = vld [vmem:[#allocation3 + $0x141] sm:$0xff]
      %v5089 = vld [vmem:[#allocation3 + $0x151] sm:$0xff]
      %v5090 = vld [vmem:[#allocation3 + $0x159] sm:$0xff]
      %v5091 = vld [vmem:[#allocation3 + $0x169] sm:$0xff]
      %v5092 = vld [vmem:[#allocation3 + $0x171] sm:$0xff]
      %v5093 = vld [vmem:[#allocation4] sm:$0xff]
      %v5094 = vld [vmem:[#allocation4 + $0x8] sm:$0xff]
      %v5095 = vld [vmem:[#allocation4 + $0x10] sm:$0xff]
      %v5096 = vld [vmem:[#allocation4 + $0x18] sm:$0xff]
      %v5097 = vld [vmem:[#allocation4 + $0x20] sm:$0xff]
      %v5098 = vld [vmem:[#allocation4 + $0x28] sm:$0xff]
      %v5099 = vld [vmem:[#allocation4 + $0x30] sm:$0xff]
      %v5100 = vld [vmem:[#allocation4 + $0x38] sm:$0xff]
      %v5101 = vld [vmem:[#allocation4 + $0x40] sm:$0xff]
      %v5102 = vld [vmem:[#allocation4 + $0x48] sm:$0xff]
      %v5103 = vld [vmem:[#allocation4 + $0x50] sm:$0xff]
      %v5104 = vld [vmem:[#allocation4 + $0x58] sm:$0xff]
      %v5105 = vld [vmem:[#allocation4 + $0x60] sm:$0xff]
      %v5106 = vld [vmem:[#allocation4 + $0x68] sm:$0xff]
      %v5107 = vld [vmem:[#allocation4 + $0x70] sm:$0xff]
      %v5108 = vld [vmem:[#allocation4 + $0x78] sm:$0xff]
      %v5109 = vld [vmem:[#allocation4 + $0x80] sm:$0xff]
      %v5110 = vld [vmem:[#allocation4 + $0x88] sm:$0xff]
      %v5111 = vld [vmem:[#allocation4 + $0x90] sm:$0xff]
      %v5112 = vld [vmem:[#allocation4 + $0x98] sm:$0xff]
      %v5113 = vld [vmem:[#allocation4 + $0xa0] sm:$0xff]
      %v5114 = vld [vmem:[#allocation4 + $0xa8] sm:$0xff]
      %v5115 = vld [vmem:[#allocation4 + $0xb0] sm:$0xff]
      %v5116 = vld [vmem:[#allocation4 + $0xb8] sm:$0xff]
      %v5117 = vld [vmem:[#allocation4 + $0xc0] sm:$0xff]
      %v5118 = vld [vmem:[#allocation4 + $0xc8] sm:$0xff]
      %v5119 = vld [vmem:[#allocation4 + $0xd0] sm:$0xff]
      %v5120 = vld [vmem:[#allocation4 + $0xd8] sm:$0xff]
      %v5121 = vld [vmem:[#allocation4 + $0xe0] sm:$0xff]
      %v5122 = vld [vmem:[#allocation4 + $0xe8] sm:$0xff]
      %v5123 = vld [vmem:[#allocation4 + $0xf0] sm:$0xff]
      %v5124 = vld [vmem:[#allocation4 + $0xf8] sm:$0xff]
      %s5125 = scalar_lea.vmem %s3, 8
      %v5126 = vld [vmem:[%s5125] sm:$0xff]
      %v5128 = vsel %vm230, %v5061, 0
      %v5131 = vsel %vm230, %v5062, 0
      %v5134 = vsel %vm230, %v5063, 0
      %v5137 = vsel %vm230, %v5064, 0
      %v5140 = vsel %vm230, %v5065, 0
      %v5143 = vsel %vm230, %v5066, 0
      %v5146 = vsel %vm230, %v5067, 0
      %v5149 = vsel %vm230, %v5068, 0
      %v5152 = vsel %vm230, %v5069, 0
      %v5155 = vsel %vm230, %v5070, 0
      %v5158 = vsel %vm230, %v5071, 0
      %v5161 = vsel %vm230, %v5072, 0
      %v5164 = vsel %vm230, %v5073, 0
      %v5167 = vsel %vm230, %v5074, 0
      %v5170 = vsel %vm230, %v5075, 0
      %v5173 = vsel %vm230, %v5076, 0
      %v5176 = vsel %vm230, %v5077, 0
      %v5179 = vsel %vm230, %v5078, 0
      %v5182 = vsel %vm230, %v5079, 0
      %v5185 = vsel %vm230, %v5080, 0
      %v5188 = vsel %vm230, %v5081, 0
      %v5191 = vsel %vm230, %v5082, 0
      %v5194 = vsel %vm230, %v5083, 0
      %v5197 = vsel %vm230, %v5084, 0
      %v5200 = vsel %vm230, %v5085, 0
      %v5203 = vsel %vm230, %v5086, 0
      %v5206 = vsel %vm230, %v5087, 0
      %v5209 = vsel %vm230, %v5088, 0
      %v5212 = vsel %vm230, %v5089, 0
      %v5215 = vsel %vm230, %v5090, 0
      %v5218 = vsel %vm230, %v5091, 0
      %v5221 = vsel %vm230, %v5092, 0
      %5223 = vmatprep.subr.mxu0 0.0
      %5224 = vmatpush1.msra.mxu0 %v5126
      %5225 = vmatprep.subr.mxu0 0.0
      %5226 = vmatpush1.msra.mxu0 0.0
      %5227 = vmatprep.subr.mxu0 0.0
      %5228 = vmatpush1.msra.mxu0 0.0
      %5229 = vmatprep.subr.mxu0 0.0
      %5230 = vmatpush1.msra.mxu0 0.0
      %5231 = vmatprep.subr.mxu0 0.0
      %5232 = vmatpush1.msra.mxu0 0.0
      %5233 = vmatprep.subr.mxu0 0.0
      %5234 = vmatpush1.msra.mxu0 0.0
      %5235 = vmatprep.subr.mxu0 0.0
      %5236 = vmatpush1.msra.mxu0 0.0
      %5237 = vmatprep.subr.mxu0 0.0
      %5238 = vmatpush1.msra.mxu0 0.0
      %5239 = vmatprep.subr.mxu0 0.0
      %5240 = vmatpush1.msra.mxu0 0.0
      %5241 = vmatprep.subr.mxu0 0.0
      %5242 = vmatpush1.msra.mxu0 0.0
      %5243 = vmatprep.subr.mxu0 0.0
      %5244 = vmatpush1.msra.mxu0 0.0
      %5245 = vmatprep.subr.mxu0 0.0
      %5246 = vmatpush1.msra.mxu0 0.0
      %5247 = vmatprep.subr.mxu0 0.0
      %5248 = vmatpush1.msra.mxu0 0.0
      %5249 = vmatprep.subr.mxu0 0.0
      %5250 = vmatpush1.msra.mxu0 0.0
      %5251 = vmatprep.subr.mxu0 0.0
      %5252 = vmatpush1.msra.mxu0 0.0
      %5253 = vmatprep.subr.mxu0 0.0
      %5254 = vmatpush1.msra.mxu0 0.0
      %5255 = vmatprep.subr.mxu0 0.0
      %5256 = vmatpush1.msra.mxu0 0.0
      %5257 = vmatprep.subr.mxu0 0.0
      %5258 = vmatpush1.msra.mxu0 0.0
      %5259 = vmatprep.subr.mxu0 0.0
      %5260 = vmatpush1.msra.mxu0 0.0
      %5261 = vmatprep.subr.mxu0 0.0
      %5262 = vmatpush1.msra.mxu0 0.0
      %5263 = vmatprep.subr.mxu0 0.0
      %5264 = vmatpush1.msra.mxu0 0.0
      %5265 = vmatprep.subr.mxu0 0.0
      %5266 = vmatpush1.msra.mxu0 0.0
      %5267 = vmatprep.subr.mxu0 0.0
      %5268 = vmatpush1.msra.mxu0 0.0
      %5269 = vmatprep.subr.mxu0 0.0
      %5270 = vmatpush1.msra.mxu0 0.0
      %5271 = vmatprep.subr.mxu0 0.0
      %5272 = vmatpush1.msra.mxu0 0.0
      %5273 = vmatprep.subr.mxu0 0.0
      %5274 = vmatpush1.msra.mxu0 0.0
      %5275 = vmatprep.subr.mxu0 0.0
      %5276 = vmatpush1.msra.mxu0 0.0
      %5277 = vmatprep.subr.mxu0 0.0
      %5278 = vmatpush1.msra.mxu0 0.0
      %5279 = vmatprep.subr.mxu0 0.0
      %5280 = vmatpush1.msra.mxu0 0.0
      %5281 = vmatprep.subr.mxu0 0.0
      %5282 = vmatpush1.msra.mxu0 0.0
      %5283 = vmatprep.subr.mxu0 0.0
      %5284 = vmatpush1.msra.mxu0 0.0
      %5285 = vmatprep.subr.mxu0 0.0
      %5286 = vmatpush1.msra.mxu0 0.0
      %5287 = vmatprep.mubr.f32.mxu0 0.0
      %5288 = vmatmul.mubr.f32.gmra.mrb[0].mxu0 %v5128
      %v5289 = vpop.f32.mrb[0].mxu0
      %v5290 = vadd.f32 0.0, %v5289
      %v5291 = vpop.f32.mrb[0].mxu0
      %5292 = vmatprep.mubr.f32.mxu0 0.0
      %5293 = vmatmul.mubr.f32.gmra.mrb[0].mxu0 %v5131
      %v5294 = vpop.f32.mrb[0].mxu0
      %v5295 = vadd.f32 0.0, %v5294
      %v5296 = vpop.f32.mrb[0].mxu0
      %5297 = vmatprep.mubr.f32.mxu0 0.0
      %5298 = vmatmul.mubr.f32.gmra.mrb[0].mxu0 %v5134
      %v5299 = vpop.f32.mrb[0].mxu0
      %v5300 = vadd.f32 0.0, %v5299
      %v5301 = vpop.f32.mrb[0].mxu0
      %5302 = vmatprep.mubr.f32.mxu0 0.0
      %5303 = vmatmul.mubr.f32.gmra.mrb[0].mxu0 %v5137
      %v5304 = vpop.f32.mrb[0].mxu0
      %v5305 = vadd.f32 0.0, %v5304
      %v5306 = vpop.f32.mrb[0].mxu0
      %5307 = vmatprep.mubr.f32.mxu0 0.0
      %5308 = vmatmul.mubr.f32.gmra.mrb[0].mxu0 %v5140
      %v5309 = vpop.f32.mrb[0].mxu0
      %v5310 = vadd.f32 0.0, %v5309
      %v5311 = vpop.f32.mrb[0].mxu0
      %5312 = vmatprep.mubr.f32.mxu0 0.0
      %5313 = vmatmul.mubr.f32.gmra.mrb[0].mxu0 %v5143
      %v5314 = vpop.f32.mrb[0].mxu0
      %v5315 = vadd.f32 0.0, %v5314
      %v5316 = vpop.f32.mrb[0].mxu0
      %5317 = vmatprep.mubr.f32.mxu0 0.0
      %5318 = vmatmul.mubr.f32.gmra.mrb[0].mxu0 %v5146
      %v5319 = vpop.f32.mrb[0].mxu0
      %v5320 = vadd.f32 0.0, %v5319
      %v5321 = vpop.f32.mrb[0].mxu0
      %5322 = vmatprep.mubr.f32.mxu0 0.0
      %5323 = vmatmul.mubr.f32.gmra.mrb[0].mxu0 %v5149
      %v5324 = vpop.f32.mrb[0].mxu0
      %v5325 = vadd.f32 0.0, %v5324
      %v5326 = vpop.f32.mrb[0].mxu0
      %5327 = vmatprep.mubr.f32.mxu0 0.0
      %5328 = vmatmul.mubr.f32.gmra.mrb[0].mxu0 %v5152
      %v5329 = vpop.f32.mrb[0].mxu0
      %v5330 = vadd.f32 0.0, %v5329
      %v5331 = vpop.f32.mrb[0].mxu0
      %5332 = vmatprep.mubr.f32.mxu0 0.0
      %5333 = vmatmul.mubr.f32.gmra.mrb[0].mxu0 %v5155
      %v5334 = vpop.f32.mrb[0].mxu0
      %v5335 = vadd.f32 0.0, %v5334
      %v5336 = vpop.f32.mrb[0].mxu0
      %5337 = vmatprep.mubr.f32.mxu0 0.0
      %5338 = vmatmul.mubr.f32.gmra.mrb[0].mxu0 %v5158
      %v5339 = vpop.f32.mrb[0].mxu0
      %v5340 = vadd.f32 0.0, %v5339
      %v5341 = vpop.f32.mrb[0].mxu0
      %5342 = vmatprep.mubr.f32.mxu0 0.0
      %5343 = vmatmul.mubr.f32.gmra.mrb[0].mxu0 %v5161
      %v5344 = vpop.f32.mrb[0].mxu0
      %v5345 = vadd.f32 0.0, %v5344
      %v5346 = vpop.f32.mrb[0].mxu0
      %5347 = vmatprep.mubr.f32.mxu0 0.0
      %5348 = vmatmul.mubr.f32.gmra.mrb[0].mxu0 %v5164
      %v5349 = vpop.f32.mrb[0].mxu0
      %v5350 = vadd.f32 0.0, %v5349
      %v5351 = vpop.f32.mrb[0].mxu0
      %5352 = vmatprep.mubr.f32.mxu0 0.0
      %5353 = vmatmul.mubr.f32.gmra.mrb[0].mxu0 %v5167
      %v5354 = vpop.f32.mrb[0].mxu0
      %v5355 = vadd.f32 0.0, %v5354
      %v5356 = vpop.f32.mrb[0].mxu0
      %5357 = vmatprep.mubr.f32.mxu0 0.0
      %5358 = vmatmul.mubr.f32.gmra.mrb[0].mxu0 %v5170
      %v5359 = vpop.f32.mrb[0].mxu0
      %v5360 = vadd.f32 0.0, %v5359
      %v5361 = vpop.f32.mrb[0].mxu0
      %5362 = vmatprep.mubr.f32.mxu0 0.0
      %5363 = vmatmul.mubr.f32.gmra.mrb[0].mxu0 %v5173
      %v5364 = vpop.f32.mrb[0].mxu0
      %v5365 = vadd.f32 0.0, %v5364
      %v5366 = vpop.f32.mrb[0].mxu0
      %5367 = vmatprep.mubr.f32.mxu0 0.0
      %5368 = vmatmul.mubr.f32.gmra.mrb[0].mxu0 %v5176
      %v5369 = vpop.f32.mrb[0].mxu0
      %v5370 = vadd.f32 0.0, %v5369
      %v5371 = vpop.f32.mrb[0].mxu0
      %5372 = vmatprep.mubr.f32.mxu0 0.0
      %5373 = vmatmul.mubr.f32.gmra.mrb[0].mxu0 %v5179
      %v5374 = vpop.f32.mrb[0].mxu0
      %v5375 = vadd.f32 0.0, %v5374
      %v5376 = vpop.f32.mrb[0].mxu0
      %5377 = vmatprep.mubr.f32.mxu0 0.0
      %5378 = vmatmul.mubr.f32.gmra.mrb[0].mxu0 %v5182
      %v5379 = vpop.f32.mrb[0].mxu0
      %v5380 = vadd.f32 0.0, %v5379
      %v5381 = vpop.f32.mrb[0].mxu0
      %5382 = vmatprep.mubr.f32.mxu0 0.0
      %5383 = vmatmul.mubr.f32.gmra.mrb[0].mxu0 %v5185
      %v5384 = vpop.f32.mrb[0].mxu0
      %v5385 = vadd.f32 0.0, %v5384
      %v5386 = vpop.f32.mrb[0].mxu0
      %5387 = vmatprep.mubr.f32.mxu0 0.0
      %5388 = vmatmul.mubr.f32.gmra.mrb[0].mxu0 %v5188
      %v5389 = vpop.f32.mrb[0].mxu0
      %v5390 = vadd.f32 0.0, %v5389
      %v5391 = vpop.f32.mrb[0].mxu0
      %5392 = vmatprep.mubr.f32.mxu0 0.0
      %5393 = vmatmul.mubr.f32.gmra.mrb[0].mxu0 %v5191
      %v5394 = vpop.f32.mrb[0].mxu0
      %v5395 = vadd.f32 0.0, %v5394
      %v5396 = vpop.f32.mrb[0].mxu0
      %5397 = vmatprep.mubr.f32.mxu0 0.0
      %5398 = vmatmul.mubr.f32.gmra.mrb[0].mxu0 %v5194
      %v5399 = vpop.f32.mrb[0].mxu0
      %v5400 = vadd.f32 0.0, %v5399
      %v5401 = vpop.f32.mrb[0].mxu0
      %5402 = vmatprep.mubr.f32.mxu0 0.0
      %5403 = vmatmul.mubr.f32.gmra.mrb[0].mxu0 %v5197
      %v5404 = vpop.f32.mrb[0].mxu0
      %v5405 = vadd.f32 0.0, %v5404
      %v5406 = vpop.f32.mrb[0].mxu0
      %5407 = vmatprep.mubr.f32.mxu0 0.0
      %5408 = vmatmul.mubr.f32.gmra.mrb[0].mxu0 %v5200
      %v5409 = vpop.f32.mrb[0].mxu0
      %v5410 = vadd.f32 0.0, %v5409
      %v5411 = vpop.f32.mrb[0].mxu0
      %5412 = vmatprep.mubr.f32.mxu0 0.0
      %5413 = vmatmul.mubr.f32.gmra.mrb[0].mxu0 %v5203
      %v5414 = vpop.f32.mrb[0].mxu0
      %v5415 = vadd.f32 0.0, %v5414
      %v5416 = vpop.f32.mrb[0].mxu0
      %5417 = vmatprep.mubr.f32.mxu0 0.0
      %5418 = vmatmul.mubr.f32.gmra.mrb[0].mxu0 %v5206
      %v5419 = vpop.f32.mrb[0].mxu0
      %v5420 = vadd.f32 0.0, %v5419
      %v5421 = vpop.f32.mrb[0].mxu0
      %5422 = vmatprep.mubr.f32.mxu0 0.0
      %5423 = vmatmul.mubr.f32.gmra.mrb[0].mxu0 %v5209
      %v5424 = vpop.f32.mrb[0].mxu0
      %v5425 = vadd.f32 0.0, %v5424
      %v5426 = vpop.f32.mrb[0].mxu0
      %5427 = vmatprep.mubr.f32.mxu0 0.0
      %5428 = vmatmul.mubr.f32.gmra.mrb[0].mxu0 %v5212
      %v5429 = vpop.f32.mrb[0].mxu0
      %v5430 = vadd.f32 0.0, %v5429
      %v5431 = vpop.f32.mrb[0].mxu0
      %5432 = vmatprep.mubr.f32.mxu0 0.0
      %5433 = vmatmul.mubr.f32.gmra.mrb[0].mxu0 %v5215
      %v5434 = vpop.f32.mrb[0].mxu0
      %v5435 = vadd.f32 0.0, %v5434
      %v5436 = vpop.f32.mrb[0].mxu0
      %5437 = vmatprep.mubr.f32.mxu0 0.0
      %5438 = vmatmul.mubr.f32.gmra.mrb[0].mxu0 %v5218
      %v5439 = vpop.f32.mrb[0].mxu0
      %v5440 = vadd.f32 0.0, %v5439
      %v5441 = vpop.f32.mrb[0].mxu0
      %5442 = vmatprep.mubr.f32.mxu0 0.0
      %5443 = vmatmul.mubr.f32.gmra.mrb[0].mxu0 %v5221
      %v5444 = vpop.f32.mrb[0].mxu0
      %v5445 = vadd.f32 0.0, %v5444
      %v5446 = vpop.f32.mrb[0].mxu0
      %5447 = vdwg.mxu0
      %v5448 = vadd.f32 %v5093, %v5290
      %v5449 = vadd.f32 %v5094, %v5295
      %v5450 = vadd.f32 %v5095, %v5300
      %v5451 = vadd.f32 %v5096, %v5305
      %v5452 = vadd.f32 %v5097, %v5310
      %v5453 = vadd.f32 %v5098, %v5315
      %v5454 = vadd.f32 %v5099, %v5320
      %v5455 = vadd.f32 %v5100, %v5325
      %v5456 = vadd.f32 %v5101, %v5330
      %v5457 = vadd.f32 %v5102, %v5335
      %v5458 = vadd.f32 %v5103, %v5340
      %v5459 = vadd.f32 %v5104, %v5345
      %v5460 = vadd.f32 %v5105, %v5350
      %v5461 = vadd.f32 %v5106, %v5355
      %v5462 = vadd.f32 %v5107, %v5360
      %v5463 = vadd.f32 %v5108, %v5365
      %v5464 = vadd.f32 %v5109, %v5370
      %v5465 = vadd.f32 %v5110, %v5375
      %v5466 = vadd.f32 %v5111, %v5380
      %v5467 = vadd.f32 %v5112, %v5385
      %v5468 = vadd.f32 %v5113, %v5390
      %v5469 = vadd.f32 %v5114, %v5395
      %v5470 = vadd.f32 %v5115, %v5400
      %v5471 = vadd.f32 %v5116, %v5405
      %v5472 = vadd.f32 %v5117, %v5410
      %v5473 = vadd.f32 %v5118, %v5415
      %v5474 = vadd.f32 %v5119, %v5420
      %v5475 = vadd.f32 %v5120, %v5425
      %v5476 = vadd.f32 %v5121, %v5430
      %v5477 = vadd.f32 %v5122, %v5435
      %v5478 = vadd.f32 %v5123, %v5440
      %v5479 = vadd.f32 %v5124, %v5445
      %5480 = vst.msk [vmem:[#allocation4] sm:$0xff] %vm230, %v5448
      %5481 = vst.msk [vmem:[#allocation4 + $0x8] sm:$0xff] %vm230, %v5449
      %5482 = vst.msk [vmem:[#allocation4 + $0x10] sm:$0xff] %vm230, %v5450
      %5483 = vst.msk [vmem:[#allocation4 + $0x18] sm:$0xff] %vm230, %v5451
      %5484 = vst.msk [vmem:[#allocation4 + $0x20] sm:$0xff] %vm230, %v5452
      %5485 = vst.msk [vmem:[#allocation4 + $0x28] sm:$0xff] %vm230, %v5453
      %5486 = vst.msk [vmem:[#allocation4 + $0x30] sm:$0xff] %vm230, %v5454
      %5487 = vst.msk [vmem:[#allocation4 + $0x38] sm:$0xff] %vm230, %v5455
      %5488 = vst.msk [vmem:[#allocation4 + $0x40] sm:$0xff] %vm230, %v5456
      %5489 = vst.msk [vmem:[#allocation4 + $0x48] sm:$0xff] %vm230, %v5457
      %5490 = vst.msk [vmem:[#allocation4 + $0x50] sm:$0xff] %vm230, %v5458
      %5491 = vst.msk [vmem:[#allocation4 + $0x58] sm:$0xff] %vm230, %v5459
      %5492 = vst.msk [vmem:[#allocation4 + $0x60] sm:$0xff] %vm230, %v5460
      %5493 = vst.msk [vmem:[#allocation4 + $0x68] sm:$0xff] %vm230, %v5461
      %5494 = vst.msk [vmem:[#allocation4 + $0x70] sm:$0xff] %vm230, %v5462
      %5495 = vst.msk [vmem:[#allocation4 + $0x78] sm:$0xff] %vm230, %v5463
      %5496 = vst.msk [vmem:[#allocation4 + $0x80] sm:$0xff] %vm230, %v5464
      %5497 = vst.msk [vmem:[#allocation4 + $0x88] sm:$0xff] %vm230, %v5465
      %5498 = vst.msk [vmem:[#allocation4 + $0x90] sm:$0xff] %vm230, %v5466
      %5499 = vst.msk [vmem:[#allocation4 + $0x98] sm:$0xff] %vm230, %v5467
      %5500 = vst.msk [vmem:[#allocation4 + $0xa0] sm:$0xff] %vm230, %v5468
      %5501 = vst.msk [vmem:[#allocation4 + $0xa8] sm:$0xff] %vm230, %v5469
      %5502 = vst.msk [vmem:[#allocation4 + $0xb0] sm:$0xff] %vm230, %v5470
      %5503 = vst.msk [vmem:[#allocation4 + $0xb8] sm:$0xff] %vm230, %v5471
      %5504 = vst.msk [vmem:[#allocation4 + $0xc0] sm:$0xff] %vm230, %v5472
      %5505 = vst.msk [vmem:[#allocation4 + $0xc8] sm:$0xff] %vm230, %v5473
      %5506 = vst.msk [vmem:[#allocation4 + $0xd0] sm:$0xff] %vm230, %v5474
      %5507 = vst.msk [vmem:[#allocation4 + $0xd8] sm:$0xff] %vm230, %v5475
      %5508 = vst.msk [vmem:[#allocation4 + $0xe0] sm:$0xff] %vm230, %v5476
      %5509 = vst.msk [vmem:[#allocation4 + $0xe8] sm:$0xff] %vm230, %v5477
      %5510 = vst.msk [vmem:[#allocation4 + $0xf0] sm:$0xff] %vm230, %v5478
      %5511 = vst.msk [vmem:[#allocation4 + $0xf8] sm:$0xff] %vm230, %v5479
      %v5512 = vld [vmem:[#allocation3 + $0x2] sm:$0xff]
      %v5513 = vld [vmem:[#allocation3 + $0xa] sm:$0xff]
      %v5514 = vld [vmem:[#allocation3 + $0x1a] sm:$0xff]
      %v5515 = vld [vmem:[#allocation3 + $0x22] sm:$0xff]
      %v5516 = vld [vmem:[#allocation3 + $0x32] sm:$0xff]
      %v5517 = vld [vmem:[#allocation3 + $0x3a] sm:$0xff]
      %v5518 = vld [vmem:[#allocation3 + $0x4a] sm:$0xff]
      %v5519 = vld [vmem:[#allocation3 + $0x52] sm:$0xff]
      %v5520 = vld [vmem:[#allocation3 + $0x62] sm:$0xff]
      %v5521 = vld [vmem:[#allocation3 + $0x6a] sm:$0xff]
      %v5522 = vld [vmem:[#allocation3 + $0x7a] sm:$0xff]
      %v5523 = vld [vmem:[#allocation3 + $0x82] sm:$0xff]
      %v5524 = vld [vmem:[#allocation3 + $0x92] sm:$0xff]
      %v5525 = vld [vmem:[#allocation3 + $0x9a] sm:$0xff]
      %v5526 = vld [vmem:[#allocation3 + $0xaa] sm:$0xff]
      %v5527 = vld [vmem:[#allocation3 + $0xb2] sm:$0xff]
      %v5528 = vld [vmem:[#allocation3 + $0xc2] sm:$0xff]
      %v5529 = vld [vmem:[#allocation3 + $0xca] sm:$0xff]
      %v5530 = vld [vmem:[#allocation3 + $0xda] sm:$0xff]
      %v5531 = vld [vmem:[#allocation3 + $0xe2] sm:$0xff]
      %v5532 = vld [vmem:[#allocation3 + $0xf2] sm:$0xff]
      %v5533 = vld [vmem:[#allocation3 + $0xfa] sm:$0xff]
      %v5534 = vld [vmem:[#allocation3 + $0x10a] sm:$0xff]
      %v5535 = vld [vmem:[#allocation3 + $0x112] sm:$0xff]
      %v5536 = vld [vmem:[#allocation3 + $0x122] sm:$0xff]
      %v5537 = vld [vmem:[#allocation3 + $0x12a] sm:$0xff]
      %v5538 = vld [vmem:[#allocation3 + $0x13a] sm:$0xff]
      %v5539 = vld [vmem:[#allocation3 + $0x142] sm:$0xff]
      %v5540 = vld [vmem:[#allocation3 + $0x152] sm:$0xff]
      %v5541 = vld [vmem:[#allocation3 + $0x15a] sm:$0xff]
      %v5542 = vld [vmem:[#allocation3 + $0x16a] sm:$0xff]
      %v5543 = vld [vmem:[#allocation3 + $0x172] sm:$0xff]
      %v5544 = vld [vmem:[#allocation4] sm:$0xff]
      %v5545 = vld [vmem:[#allocation4 + $0x8] sm:$0xff]
      %v5546 = vld [vmem:[#allocation4 + $0x10] sm:$0xff]
      %v5547 = vld [vmem:[#allocation4 + $0x18] sm:$0xff]
      %v5548 = vld [vmem:[#allocation4 + $0x20] sm:$0xff]
      %v5549 = vld [vmem:[#allocation4 + $0x28] sm:$0xff]
      %v5550 = vld [vmem:[#allocation4 + $0x30] sm:$0xff]
      %v5551 = vld [vmem:[#allocation4 + $0x38] sm:$0xff]
      %v5552 = vld [vmem:[#allocation4 + $0x40] sm:$0xff]
      %v5553 = vld [vmem:[#allocation4 + $0x48] sm:$0xff]
      %v5554 = vld [vmem:[#allocation4 + $0x50] sm:$0xff]
      %v5555 = vld [vmem:[#allocation4 + $0x58] sm:$0xff]
      %v5556 = vld [vmem:[#allocation4 + $0x60] sm:$0xff]
      %v5557 = vld [vmem:[#allocation4 + $0x68] sm:$0xff]
      %v5558 = vld [vmem:[#allocation4 + $0x70] sm:$0xff]
      %v5559 = vld [vmem:[#allocation4 + $0x78] sm:$0xff]
      %v5560 = vld [vmem:[#allocation4 + $0x80] sm:$0xff]
      %v5561 = vld [vmem:[#allocation4 + $0x88] sm:$0xff]
      %v5562 = vld [vmem:[#allocation4 + $0x90] sm:$0xff]
      %v5563 = vld [vmem:[#allocation4 + $0x98] sm:$0xff]
      %v5564 = vld [vmem:[#allocation4 + $0xa0] sm:$0xff]
      %v5565 = vld [vmem:[#allocation4 + $0xa8] sm:$0xff]
      %v5566 = vld [vmem:[#allocation4 + $0xb0] sm:$0xff]
      %v5567 = vld [vmem:[#allocation4 + $0xb8] sm:$0xff]
      %v5568 = vld [vmem:[#allocation4 + $0xc0] sm:$0xff]
      %v5569 = vld [vmem:[#allocation4 + $0xc8] sm:$0xff]
      %v5570 = vld [vmem:[#allocation4 + $0xd0] sm:$0xff]
      %v5571 = vld [vmem:[#allocation4 + $0xd8] sm:$0xff]
      %v5572 = vld [vmem:[#allocation4 + $0xe0] sm:$0xff]
      %v5573 = vld [vmem:[#allocation4 + $0xe8] sm:$0xff]
      %v5574 = vld [vmem:[#allocation4 + $0xf0] sm:$0xff]
      %v5575 = vld [vmem:[#allocation4 + $0xf8] sm:$0xff]
      %s5576 = scalar_lea.vmem %s3, 16
      %v5577 = vld [vmem:[%s5576] sm:$0xff]
      %v5579 = vsel %vm230, %v5512, 0
      %v5582 = vsel %vm230, %v5513, 0
      %v5585 = vsel %vm230, %v5514, 0
      %v5588 = vsel %vm230, %v5515, 0
      %v5591 = vsel %vm230, %v5516, 0
      %v5594 = vsel %vm230, %v5517, 0
      %v5597 = vsel %vm230, %v5518, 0
      %v5600 = vsel %vm230, %v5519, 0
      %v5603 = vsel %vm230, %v5520, 0
      %v5606 = vsel %vm230, %v5521, 0
      %v5609 = vsel %vm230, %v5522, 0
      %v5612 = vsel %vm230, %v5523, 0
      %v5615 = vsel %vm230, %v5524, 0
      %v5618 = vsel %vm230, %v5525, 0
      %v5621 = vsel %vm230, %v5526, 0
      %v5624 = vsel %vm230, %v5527, 0
      %v5627 = vsel %vm230, %v5528, 0
      %v5630 = vsel %vm230, %v5529, 0
      %v5633 = vsel %vm230, %v5530, 0
      %v5636 = vsel %vm230, %v5531, 0
      %v5639 = vsel %vm230, %v5532, 0
      %v5642 = vsel %vm230, %v5533, 0
      %v5645 = vsel %vm230, %v5534, 0
      %v5648 = vsel %vm230, %v5535, 0
      %v5651 = vsel %vm230, %v5536, 0
      %v5654 = vsel %vm230, %v5537, 0
      %v5657 = vsel %vm230, %v5538, 0
      %v5660 = vsel %vm230, %v5539, 0
      %v5663 = vsel %vm230, %v5540, 0
      %v5666 = vsel %vm230, %v5541, 0
      %v5669 = vsel %vm230, %v5542, 0
      %v5672 = vsel %vm230, %v5543, 0
      %5674 = vmatprep.subr.mxu0 0.0
      %5675 = vmatpush1.msra.mxu0 %v5577
      %5676 = vmatprep.subr.mxu0 0.0
      %5677 = vmatpush1.msra.mxu0 0.0
      %5678 = vmatprep.subr.mxu0 0.0
      %5679 = vmatpush1.msra.mxu0 0.0
      %5680 = vmatprep.subr.mxu0 0.0
      %5681 = vmatpush1.msra.mxu0 0.0
      %5682 = vmatprep.subr.mxu0 0.0
      %5683 = vmatpush1.msra.mxu0 0.0
      %5684 = vmatprep.subr.mxu0 0.0
      %5685 = vmatpush1.msra.mxu0 0.0
      %5686 = vmatprep.subr.mxu0 0.0
      %5687 = vmatpush1.msra.mxu0 0.0
      %5688 = vmatprep.subr.mxu0 0.0
      %5689 = vmatpush1.msra.mxu0 0.0
      %5690 = vmatprep.subr.mxu0 0.0
      %5691 = vmatpush1.msra.mxu0 0.0
      %5692 = vmatprep.subr.mxu0 0.0
      %5693 = vmatpush1.msra.mxu0 0.0
      %5694 = vmatprep.subr.mxu0 0.0
      %5695 = vmatpush1.msra.mxu0 0.0
      %5696 = vmatprep.subr.mxu0 0.0
      %5697 = vmatpush1.msra.mxu0 0.0
      %5698 = vmatprep.subr.mxu0 0.0
      %5699 = vmatpush1.msra.mxu0 0.0
      %5700 = vmatprep.subr.mxu0 0.0
      %5701 = vmatpush1.msra.mxu0 0.0
      %5702 = vmatprep.subr.mxu0 0.0
      %5703 = vmatpush1.msra.mxu0 0.0
      %5704 = vmatprep.subr.mxu0 0.0
      %5705 = vmatpush1.msra.mxu0 0.0
      %5706 = vmatprep.subr.mxu0 0.0
      %5707 = vmatpush1.msra.mxu0 0.0
      %5708 = vmatprep.subr.mxu0 0.0
      %5709 = vmatpush1.msra.mxu0 0.0
      %5710 = vmatprep.subr.mxu0 0.0
      %5711 = vmatpush1.msra.mxu0 0.0
      %5712 = vmatprep.subr.mxu0 0.0
      %5713 = vmatpush1.msra.mxu0 0.0
      %5714 = vmatprep.subr.mxu0 0.0
      %5715 = vmatpush1.msra.mxu0 0.0
      %5716 = vmatprep.subr.mxu0 0.0
      %5717 = vmatpush1.msra.mxu0 0.0
      %5718 = vmatprep.subr.mxu0 0.0
      %5719 = vmatpush1.msra.mxu0 0.0
      %5720 = vmatprep.subr.mxu0 0.0
      %5721 = vmatpush1.msra.mxu0 0.0
      %5722 = vmatprep.subr.mxu0 0.0
      %5723 = vmatpush1.msra.mxu0 0.0
      %5724 = vmatprep.subr.mxu0 0.0
      %5725 = vmatpush1.msra.mxu0 0.0
      %5726 = vmatprep.subr.mxu0 0.0
      %5727 = vmatpush1.msra.mxu0 0.0
      %5728 = vmatprep.subr.mxu0 0.0
      %5729 = vmatpush1.msra.mxu0 0.0
      %5730 = vmatprep.subr.mxu0 0.0
      %5731 = vmatpush1.msra.mxu0 0.0
      %5732 = vmatprep.subr.mxu0 0.0
      %5733 = vmatpush1.msra.mxu0 0.0
      %5734 = vmatprep.subr.mxu0 0.0
      %5735 = vmatpush1.msra.mxu0 0.0
      %5736 = vmatprep.subr.mxu0 0.0
      %5737 = vmatpush1.msra.mxu0 0.0
      %5738 = vmatprep.mubr.f32.mxu0 0.0
      %5739 = vmatmul.mubr.f32.gmra.mrb[0].mxu0 %v5579
      %v5740 = vpop.f32.mrb[0].mxu0
      %v5741 = vadd.f32 0.0, %v5740
      %v5742 = vpop.f32.mrb[0].mxu0
      %5743 = vmatprep.mubr.f32.mxu0 0.0
      %5744 = vmatmul.mubr.f32.gmra.mrb[0].mxu0 %v5582
      %v5745 = vpop.f32.mrb[0].mxu0
      %v5746 = vadd.f32 0.0, %v5745
      %v5747 = vpop.f32.mrb[0].mxu0
      %5748 = vmatprep.mubr.f32.mxu0 0.0
      %5749 = vmatmul.mubr.f32.gmra.mrb[0].mxu0 %v5585
      %v5750 = vpop.f32.mrb[0].mxu0
      %v5751 = vadd.f32 0.0, %v5750
      %v5752 = vpop.f32.mrb[0].mxu0
      %5753 = vmatprep.mubr.f32.mxu0 0.0
      %5754 = vmatmul.mubr.f32.gmra.mrb[0].mxu0 %v5588
      %v5755 = vpop.f32.mrb[0].mxu0
      %v5756 = vadd.f32 0.0, %v5755
      %v5757 = vpop.f32.mrb[0].mxu0
      %5758 = vmatprep.mubr.f32.mxu0 0.0
      %5759 = vmatmul.mubr.f32.gmra.mrb[0].mxu0 %v5591
      %v5760 = vpop.f32.mrb[0].mxu0
      %v5761 = vadd.f32 0.0, %v5760
      %v5762 = vpop.f32.mrb[0].mxu0
      %5763 = vmatprep.mubr.f32.mxu0 0.0
      %5764 = vmatmul.mubr.f32.gmra.mrb[0].mxu0 %v5594
      %v5765 = vpop.f32.mrb[0].mxu0
      %v5766 = vadd.f32 0.0, %v5765
      %v5767 = vpop.f32.mrb[0].mxu0
      %5768 = vmatprep.mubr.f32.mxu0 0.0
      %5769 = vmatmul.mubr.f32.gmra.mrb[0].mxu0 %v5597
      %v5770 = vpop.f32.mrb[0].mxu0
      %v5771 = vadd.f32 0.0, %v5770
      %v5772 = vpop.f32.mrb[0].mxu0
      %5773 = vmatprep.mubr.f32.mxu0 0.0
      %5774 = vmatmul.mubr.f32.gmra.mrb[0].mxu0 %v5600
      %v5775 = vpop.f32.mrb[0].mxu0
      %v5776 = vadd.f32 0.0, %v5775
      %v5777 = vpop.f32.mrb[0].mxu0
      %5778 = vmatprep.mubr.f32.mxu0 0.0
      %5779 = vmatmul.mubr.f32.gmra.mrb[0].mxu0 %v5603
      %v5780 = vpop.f32.mrb[0].mxu0
      %v5781 = vadd.f32 0.0, %v5780
      %v5782 = vpop.f32.mrb[0].mxu0
      %5783 = vmatprep.mubr.f32.mxu0 0.0
      %5784 = vmatmul.mubr.f32.gmra.mrb[0].mxu0 %v5606
      %v5785 = vpop.f32.mrb[0].mxu0
      %v5786 = vadd.f32 0.0, %v5785
      %v5787 = vpop.f32.mrb[0].mxu0
      %5788 = vmatprep.mubr.f32.mxu0 0.0
      %5789 = vmatmul.mubr.f32.gmra.mrb[0].mxu0 %v5609
      %v5790 = vpop.f32.mrb[0].mxu0
      %v5791 = vadd.f32 0.0, %v5790
      %v5792 = vpop.f32.mrb[0].mxu0
      %5793 = vmatprep.mubr.f32.mxu0 0.0
      %5794 = vmatmul.mubr.f32.gmra.mrb[0].mxu0 %v5612
      %v5795 = vpop.f32.mrb[0].mxu0
      %v5796 = vadd.f32 0.0, %v5795
      %v5797 = vpop.f32.mrb[0].mxu0
      %5798 = vmatprep.mubr.f32.mxu0 0.0
      %5799 = vmatmul.mubr.f32.gmra.mrb[0].mxu0 %v5615
      %v5800 = vpop.f32.mrb[0].mxu0
      %v5801 = vadd.f32 0.0, %v5800
      %v5802 = vpop.f32.mrb[0].mxu0
      %5803 = vmatprep.mubr.f32.mxu0 0.0
      %5804 = vmatmul.mubr.f32.gmra.mrb[0].mxu0 %v5618
      %v5805 = vpop.f32.mrb[0].mxu0
      %v5806 = vadd.f32 0.0, %v5805
      %v5807 = vpop.f32.mrb[0].mxu0
      %5808 = vmatprep.mubr.f32.mxu0 0.0
      %5809 = vmatmul.mubr.f32.gmra.mrb[0].mxu0 %v5621
      %v5810 = vpop.f32.mrb[0].mxu0
      %v5811 = vadd.f32 0.0, %v5810
      %v5812 = vpop.f32.mrb[0].mxu0
      %5813 = vmatprep.mubr.f32.mxu0 0.0
      %5814 = vmatmul.mubr.f32.gmra.mrb[0].mxu0 %v5624
      %v5815 = vpop.f32.mrb[0].mxu0
      %v5816 = vadd.f32 0.0, %v5815
      %v5817 = vpop.f32.mrb[0].mxu0
      %5818 = vmatprep.mubr.f32.mxu0 0.0
      %5819 = vmatmul.mubr.f32.gmra.mrb[0].mxu0 %v5627
      %v5820 = vpop.f32.mrb[0].mxu0
      %v5821 = vadd.f32 0.0, %v5820
      %v5822 = vpop.f32.mrb[0].mxu0
      %5823 = vmatprep.mubr.f32.mxu0 0.0
      %5824 = vmatmul.mubr.f32.gmra.mrb[0].mxu0 %v5630
      %v5825 = vpop.f32.mrb[0].mxu0
      %v5826 = vadd.f32 0.0, %v5825
      %v5827 = vpop.f32.mrb[0].mxu0
      %5828 = vmatprep.mubr.f32.mxu0 0.0
      %5829 = vmatmul.mubr.f32.gmra.mrb[0].mxu0 %v5633
      %v5830 = vpop.f32.mrb[0].mxu0
      %v5831 = vadd.f32 0.0, %v5830
      %v5832 = vpop.f32.mrb[0].mxu0
      %5833 = vmatprep.mubr.f32.mxu0 0.0
      %5834 = vmatmul.mubr.f32.gmra.mrb[0].mxu0 %v5636
      %v5835 = vpop.f32.mrb[0].mxu0
      %v5836 = vadd.f32 0.0, %v5835
      %v5837 = vpop.f32.mrb[0].mxu0
      %5838 = vmatprep.mubr.f32.mxu0 0.0
      %5839 = vmatmul.mubr.f32.gmra.mrb[0].mxu0 %v5639
      %v5840 = vpop.f32.mrb[0].mxu0
      %v5841 = vadd.f32 0.0, %v5840
      %v5842 = vpop.f32.mrb[0].mxu0
      %5843 = vmatprep.mubr.f32.mxu0 0.0
      %5844 = vmatmul.mubr.f32.gmra.mrb[0].mxu0 %v5642
      %v5845 = vpop.f32.mrb[0].mxu0
      %v5846 = vadd.f32 0.0, %v5845
      %v5847 = vpop.f32.mrb[0].mxu0
      %5848 = vmatprep.mubr.f32.mxu0 0.0
      %5849 = vmatmul.mubr.f32.gmra.mrb[0].mxu0 %v5645
      %v5850 = vpop.f32.mrb[0].mxu0
      %v5851 = vadd.f32 0.0, %v5850
      %v5852 = vpop.f32.mrb[0].mxu0
      %5853 = vmatprep.mubr.f32.mxu0 0.0
      %5854 = vmatmul.mubr.f32.gmra.mrb[0].mxu0 %v5648
      %v5855 = vpop.f32.mrb[0].mxu0
      %v5856 = vadd.f32 0.0, %v5855
      %v5857 = vpop.f32.mrb[0].mxu0
      %5858 = vmatprep.mubr.f32.mxu0 0.0
      %5859 = vmatmul.mubr.f32.gmra.mrb[0].mxu0 %v5651
      %v5860 = vpop.f32.mrb[0].mxu0
      %v5861 = vadd.f32 0.0, %v5860
      %v5862 = vpop.f32.mrb[0].mxu0
      %5863 = vmatprep.mubr.f32.mxu0 0.0
      %5864 = vmatmul.mubr.f32.gmra.mrb[0].mxu0 %v5654
      %v5865 = vpop.f32.mrb[0].mxu0
      %v5866 = vadd.f32 0.0, %v5865
      %v5867 = vpop.f32.mrb[0].mxu0
      %5868 = vmatprep.mubr.f32.mxu0 0.0
      %5869 = vmatmul.mubr.f32.gmra.mrb[0].mxu0 %v5657
      %v5870 = vpop.f32.mrb[0].mxu0
      %v5871 = vadd.f32 0.0, %v5870
      %v5872 = vpop.f32.mrb[0].mxu0
      %5873 = vmatprep.mubr.f32.mxu0 0.0
      %5874 = vmatmul.mubr.f32.gmra.mrb[0].mxu0 %v5660
      %v5875 = vpop.f32.mrb[0].mxu0
      %v5876 = vadd.f32 0.0, %v5875
      %v5877 = vpop.f32.mrb[0].mxu0
      %5878 = vmatprep.mubr.f32.mxu0 0.0
      %5879 = vmatmul.mubr.f32.gmra.mrb[0].mxu0 %v5663
      %v5880 = vpop.f32.mrb[0].mxu0
      %v5881 = vadd.f32 0.0, %v5880
      %v5882 = vpop.f32.mrb[0].mxu0
      %5883 = vmatprep.mubr.f32.mxu0 0.0
      %5884 = vmatmul.mubr.f32.gmra.mrb[0].mxu0 %v5666
      %v5885 = vpop.f32.mrb[0].mxu0
      %v5886 = vadd.f32 0.0, %v5885
      %v5887 = vpop.f32.mrb[0].mxu0
      %5888 = vmatprep.mubr.f32.mxu0 0.0
      %5889 = vmatmul.mubr.f32.gmra.mrb[0].mxu0 %v5669
      %v5890 = vpop.f32.mrb[0].mxu0
      %v5891 = vadd.f32 0.0, %v5890
      %v5892 = vpop.f32.mrb[0].mxu0
      %5893 = vmatprep.mubr.f32.mxu0 0.0
      %5894 = vmatmul.mubr.f32.gmra.mrb[0].mxu0 %v5672
      %v5895 = vpop.f32.mrb[0].mxu0
      %v5896 = vadd.f32 0.0, %v5895
      %v5897 = vpop.f32.mrb[0].mxu0
      %5898 = vdwg.mxu0
      %v5899 = vadd.f32 %v5544, %v5741
      %v5900 = vadd.f32 %v5545, %v5746
      %v5901 = vadd.f32 %v5546, %v5751
      %v5902 = vadd.f32 %v5547, %v5756
      %v5903 = vadd.f32 %v5548, %v5761
      %v5904 = vadd.f32 %v5549, %v5766
      %v5905 = vadd.f32 %v5550, %v5771
      %v5906 = vadd.f32 %v5551, %v5776
      %v5907 = vadd.f32 %v5552, %v5781
      %v5908 = vadd.f32 %v5553, %v5786
      %v5909 = vadd.f32 %v5554, %v5791
      %v5910 = vadd.f32 %v5555, %v5796
      %v5911 = vadd.f32 %v5556, %v5801
      %v5912 = vadd.f32 %v5557, %v5806
      %v5913 = vadd.f32 %v5558, %v5811
      %v5914 = vadd.f32 %v5559, %v5816
      %v5915 = vadd.f32 %v5560, %v5821
      %v5916 = vadd.f32 %v5561, %v5826
      %v5917 = vadd.f32 %v5562, %v5831
      %v5918 = vadd.f32 %v5563, %v5836
      %v5919 = vadd.f32 %v5564, %v5841
      %v5920 = vadd.f32 %v5565, %v5846
      %v5921 = vadd.f32 %v5566, %v5851
      %v5922 = vadd.f32 %v5567, %v5856
      %v5923 = vadd.f32 %v5568, %v5861
      %v5924 = vadd.f32 %v5569, %v5866
      %v5925 = vadd.f32 %v5570, %v5871
      %v5926 = vadd.f32 %v5571, %v5876
      %v5927 = vadd.f32 %v5572, %v5881
      %v5928 = vadd.f32 %v5573, %v5886
      %v5929 = vadd.f32 %v5574, %v5891
      %v5930 = vadd.f32 %v5575, %v5896
      %5931 = vst.msk [vmem:[#allocation4] sm:$0xff] %vm230, %v5899
      %5932 = vst.msk [vmem:[#allocation4 + $0x8] sm:$0xff] %vm230, %v5900
      %5933 = vst.msk [vmem:[#allocation4 + $0x10] sm:$0xff] %vm230, %v5901
      %5934 = vst.msk [vmem:[#allocation4 + $0x18] sm:$0xff] %vm230, %v5902
      %5935 = vst.msk [vmem:[#allocation4 + $0x20] sm:$0xff] %vm230, %v5903
      %5936 = vst.msk [vmem:[#allocation4 + $0x28] sm:$0xff] %vm230, %v5904
      %5937 = vst.msk [vmem:[#allocation4 + $0x30] sm:$0xff] %vm230, %v5905
      %5938 = vst.msk [vmem:[#allocation4 + $0x38] sm:$0xff] %vm230, %v5906
      %5939 = vst.msk [vmem:[#allocation4 + $0x40] sm:$0xff] %vm230, %v5907
      %5940 = vst.msk [vmem:[#allocation4 + $0x48] sm:$0xff] %vm230, %v5908
      %5941 = vst.msk [vmem:[#allocation4 + $0x50] sm:$0xff] %vm230, %v5909
      %5942 = vst.msk [vmem:[#allocation4 + $0x58] sm:$0xff] %vm230, %v5910
      %5943 = vst.msk [vmem:[#allocation4 + $0x60] sm:$0xff] %vm230, %v5911
      %5944 = vst.msk [vmem:[#allocation4 + $0x68] sm:$0xff] %vm230, %v5912
      %5945 = vst.msk [vmem:[#allocation4 + $0x70] sm:$0xff] %vm230, %v5913
      %5946 = vst.msk [vmem:[#allocation4 + $0x78] sm:$0xff] %vm230, %v5914
      %5947 = vst.msk [vmem:[#allocation4 + $0x80] sm:$0xff] %vm230, %v5915
      %5948 = vst.msk [vmem:[#allocation4 + $0x88] sm:$0xff] %vm230, %v5916
      %5949 = vst.msk [vmem:[#allocation4 + $0x90] sm:$0xff] %vm230, %v5917
      %5950 = vst.msk [vmem:[#allocation4 + $0x98] sm:$0xff] %vm230, %v5918
      %5951 = vst.msk [vmem:[#allocation4 + $0xa0] sm:$0xff] %vm230, %v5919
      %5952 = vst.msk [vmem:[#allocation4 + $0xa8] sm:$0xff] %vm230, %v5920
      %5953 = vst.msk [vmem:[#allocation4 + $0xb0] sm:$0xff] %vm230, %v5921
      %5954 = vst.msk [vmem:[#allocation4 + $0xb8] sm:$0xff] %vm230, %v5922
      %5955 = vst.msk [vmem:[#allocation4 + $0xc0] sm:$0xff] %vm230, %v5923
      %5956 = vst.msk [vmem:[#allocation4 + $0xc8] sm:$0xff] %vm230, %v5924
      %5957 = vst.msk [vmem:[#allocation4 + $0xd0] sm:$0xff] %vm230, %v5925
      %5958 = vst.msk [vmem:[#allocation4 + $0xd8] sm:$0xff] %vm230, %v5926
      %5959 = vst.msk [vmem:[#allocation4 + $0xe0] sm:$0xff] %vm230, %v5927
      %5960 = vst.msk [vmem:[#allocation4 + $0xe8] sm:$0xff] %vm230, %v5928
      %5961 = vst.msk [vmem:[#allocation4 + $0xf0] sm:$0xff] %vm230, %v5929
      %5962 = vst.msk [vmem:[#allocation4 + $0xf8] sm:$0xff] %vm230, %v5930
      %v5963 = vld [vmem:[%s4546] sm:$0xff]
      %v5964 = vld [vmem:[%s4546 + $0x8] sm:$0xff]
      %v5965 = vld [vmem:[%s4546 + $0x18] sm:$0xff]
      %v5966 = vld [vmem:[%s4546 + $0x20] sm:$0xff]
      %v5967 = vld [vmem:[%s4546 + $0x30] sm:$0xff]
      %v5968 = vld [vmem:[%s4546 + $0x38] sm:$0xff]
      %v5969 = vld [vmem:[%s4546 + $0x48] sm:$0xff]
      %v5970 = vld [vmem:[%s4546 + $0x50] sm:$0xff]
      %v5971 = vld [vmem:[%s4546 + $0x60] sm:$0xff]
      %v5972 = vld [vmem:[%s4546 + $0x68] sm:$0xff]
      %v5973 = vld [vmem:[%s4546 + $0x78] sm:$0xff]
      %v5974 = vld [vmem:[%s4546 + $0x80] sm:$0xff]
      %v5975 = vld [vmem:[%s4546 + $0x90] sm:$0xff]
      %v5976 = vld [vmem:[%s4546 + $0x98] sm:$0xff]
      %v5977 = vld [vmem:[%s4546 + $0xa8] sm:$0xff]
      %v5978 = vld [vmem:[%s4546 + $0xb0] sm:$0xff]
      %v5979 = vld [vmem:[%s4546 + $0xc0] sm:$0xff]
      %v5980 = vld [vmem:[%s4546 + $0xc8] sm:$0xff]
      %v5981 = vld [vmem:[%s4546 + $0xd8] sm:$0xff]
      %v5982 = vld [vmem:[%s4546 + $0xe0] sm:$0xff]
      %v5983 = vld [vmem:[%s4546 + $0xf0] sm:$0xff]
      %v5984 = vld [vmem:[%s4546 + $0xf8] sm:$0xff]
      %v5985 = vld [vmem:[%s4546 + $0x108] sm:$0xff]
      %v5986 = vld [vmem:[%s4546 + $0x110] sm:$0xff]
      %v5987 = vld [vmem:[%s4546 + $0x120] sm:$0xff]
      %v5988 = vld [vmem:[%s4546 + $0x128] sm:$0xff]
      %v5989 = vld [vmem:[%s4546 + $0x138] sm:$0xff]
      %v5990 = vld [vmem:[%s4546 + $0x140] sm:$0xff]
      %v5991 = vld [vmem:[%s4546 + $0x150] sm:$0xff]
      %v5992 = vld [vmem:[%s4546 + $0x158] sm:$0xff]
      %v5993 = vld [vmem:[%s4546 + $0x168] sm:$0xff]
      %v5994 = vld [vmem:[%s4546 + $0x170] sm:$0xff]
      %v5995 = vld [vmem:[#allocation4] sm:$0xff]
      %v5996 = vld [vmem:[#allocation4 + $0x8] sm:$0xff]
      %v5997 = vld [vmem:[#allocation4 + $0x10] sm:$0xff]
      %v5998 = vld [vmem:[#allocation4 + $0x18] sm:$0xff]
      %v5999 = vld [vmem:[#allocation4 + $0x20] sm:$0xff]
      %v6000 = vld [vmem:[#allocation4 + $0x28] sm:$0xff]
      %v6001 = vld [vmem:[#allocation4 + $0x30] sm:$0xff]
      %v6002 = vld [vmem:[#allocation4 + $0x38] sm:$0xff]
      %v6003 = vld [vmem:[#allocation4 + $0x40] sm:$0xff]
      %v6004 = vld [vmem:[#allocation4 + $0x48] sm:$0xff]
      %v6005 = vld [vmem:[#allocation4 + $0x50] sm:$0xff]
      %v6006 = vld [vmem:[#allocation4 + $0x58] sm:$0xff]
      %v6007 = vld [vmem:[#allocation4 + $0x60] sm:$0xff]
      %v6008 = vld [vmem:[#allocation4 + $0x68] sm:$0xff]
      %v6009 = vld [vmem:[#allocation4 + $0x70] sm:$0xff]
      %v6010 = vld [vmem:[#allocation4 + $0x78] sm:$0xff]
      %v6011 = vld [vmem:[#allocation4 + $0x80] sm:$0xff]
      %v6012 = vld [vmem:[#allocation4 + $0x88] sm:$0xff]
      %v6013 = vld [vmem:[#allocation4 + $0x90] sm:$0xff]
      %v6014 = vld [vmem:[#allocation4 + $0x98] sm:$0xff]
      %v6015 = vld [vmem:[#allocation4 + $0xa0] sm:$0xff]
      %v6016 = vld [vmem:[#allocation4 + $0xa8] sm:$0xff]
      %v6017 = vld [vmem:[#allocation4 + $0xb0] sm:$0xff]
      %v6018 = vld [vmem:[#allocation4 + $0xb8] sm:$0xff]
      %v6019 = vld [vmem:[#allocation4 + $0xc0] sm:$0xff]
      %v6020 = vld [vmem:[#allocation4 + $0xc8] sm:$0xff]
      %v6021 = vld [vmem:[#allocation4 + $0xd0] sm:$0xff]
      %v6022 = vld [vmem:[#allocation4 + $0xd8] sm:$0xff]
      %v6023 = vld [vmem:[#allocation4 + $0xe0] sm:$0xff]
      %v6024 = vld [vmem:[#allocation4 + $0xe8] sm:$0xff]
      %v6025 = vld [vmem:[#allocation4 + $0xf0] sm:$0xff]
      %v6026 = vld [vmem:[#allocation4 + $0xf8] sm:$0xff]
      %s6027 = scalar_lea.vmem %s3, 24
      %v6028 = vld [vmem:[%s6027] sm:$0xff]
      %v6030 = vsel %vm230, %v5963, 0
      %v6033 = vsel %vm230, %v5964, 0
      %v6036 = vsel %vm230, %v5965, 0
      %v6039 = vsel %vm230, %v5966, 0
      %v6042 = vsel %vm230, %v5967, 0
      %v6045 = vsel %vm230, %v5968, 0
      %v6048 = vsel %vm230, %v5969, 0
      %v6051 = vsel %vm230, %v5970, 0
      %v6054 = vsel %vm230, %v5971, 0
      %v6057 = vsel %vm230, %v5972, 0
      %v6060 = vsel %vm230, %v5973, 0
      %v6063 = vsel %vm230, %v5974, 0
      %v6066 = vsel %vm230, %v5975, 0
      %v6069 = vsel %vm230, %v5976, 0
      %v6072 = vsel %vm230, %v5977, 0
      %v6075 = vsel %vm230, %v5978, 0
      %v6078 = vsel %vm230, %v5979, 0
      %v6081 = vsel %vm230, %v5980, 0
      %v6084 = vsel %vm230, %v5981, 0
      %v6087 = vsel %vm230, %v5982, 0
      %v6090 = vsel %vm230, %v5983, 0
      %v6093 = vsel %vm230, %v5984, 0
      %v6096 = vsel %vm230, %v5985, 0
      %v6099 = vsel %vm230, %v5986, 0
      %v6102 = vsel %vm230, %v5987, 0
      %v6105 = vsel %vm230, %v5988, 0
      %v6108 = vsel %vm230, %v5989, 0
      %v6111 = vsel %vm230, %v5990, 0
      %v6114 = vsel %vm230, %v5991, 0
      %v6117 = vsel %vm230, %v5992, 0
      %v6120 = vsel %vm230, %v5993, 0
      %v6123 = vsel %vm230, %v5994, 0
      %6125 = vmatprep.subr.mxu0 0.0
      %6126 = vmatpush1.msra.mxu0 %v6028
      %6127 = vmatprep.subr.mxu0 0.0
      %6128 = vmatpush1.msra.mxu0 0.0
      %6129 = vmatprep.subr.mxu0 0.0
      %6130 = vmatpush1.msra.mxu0 0.0
      %6131 = vmatprep.subr.mxu0 0.0
      %6132 = vmatpush1.msra.mxu0 0.0
      %6133 = vmatprep.subr.mxu0 0.0
      %6134 = vmatpush1.msra.mxu0 0.0
      %6135 = vmatprep.subr.mxu0 0.0
      %6136 = vmatpush1.msra.mxu0 0.0
      %6137 = vmatprep.subr.mxu0 0.0
      %6138 = vmatpush1.msra.mxu0 0.0
      %6139 = vmatprep.subr.mxu0 0.0
      %6140 = vmatpush1.msra.mxu0 0.0
      %6141 = vmatprep.subr.mxu0 0.0
      %6142 = vmatpush1.msra.mxu0 0.0
      %6143 = vmatprep.subr.mxu0 0.0
      %6144 = vmatpush1.msra.mxu0 0.0
      %6145 = vmatprep.subr.mxu0 0.0
      %6146 = vmatpush1.msra.mxu0 0.0
      %6147 = vmatprep.subr.mxu0 0.0
      %6148 = vmatpush1.msra.mxu0 0.0
      %6149 = vmatprep.subr.mxu0 0.0
      %6150 = vmatpush1.msra.mxu0 0.0
      %6151 = vmatprep.subr.mxu0 0.0
      %6152 = vmatpush1.msra.mxu0 0.0
      %6153 = vmatprep.subr.mxu0 0.0
      %6154 = vmatpush1.msra.mxu0 0.0
      %6155 = vmatprep.subr.mxu0 0.0
      %6156 = vmatpush1.msra.mxu0 0.0
      %6157 = vmatprep.subr.mxu0 0.0
      %6158 = vmatpush1.msra.mxu0 0.0
      %6159 = vmatprep.subr.mxu0 0.0
      %6160 = vmatpush1.msra.mxu0 0.0
      %6161 = vmatprep.subr.mxu0 0.0
      %6162 = vmatpush1.msra.mxu0 0.0
      %6163 = vmatprep.subr.mxu0 0.0
      %6164 = vmatpush1.msra.mxu0 0.0
      %6165 = vmatprep.subr.mxu0 0.0
      %6166 = vmatpush1.msra.mxu0 0.0
      %6167 = vmatprep.subr.mxu0 0.0
      %6168 = vmatpush1.msra.mxu0 0.0
      %6169 = vmatprep.subr.mxu0 0.0
      %6170 = vmatpush1.msra.mxu0 0.0
      %6171 = vmatprep.subr.mxu0 0.0
      %6172 = vmatpush1.msra.mxu0 0.0
      %6173 = vmatprep.subr.mxu0 0.0
      %6174 = vmatpush1.msra.mxu0 0.0
      %6175 = vmatprep.subr.mxu0 0.0
      %6176 = vmatpush1.msra.mxu0 0.0
      %6177 = vmatprep.subr.mxu0 0.0
      %6178 = vmatpush1.msra.mxu0 0.0
      %6179 = vmatprep.subr.mxu0 0.0
      %6180 = vmatpush1.msra.mxu0 0.0
      %6181 = vmatprep.subr.mxu0 0.0
      %6182 = vmatpush1.msra.mxu0 0.0
      %6183 = vmatprep.subr.mxu0 0.0
      %6184 = vmatpush1.msra.mxu0 0.0
      %6185 = vmatprep.subr.mxu0 0.0
      %6186 = vmatpush1.msra.mxu0 0.0
      %6187 = vmatprep.subr.mxu0 0.0
      %6188 = vmatpush1.msra.mxu0 0.0
      %6189 = vmatprep.mubr.f32.mxu0 0.0
      %6190 = vmatmul.mubr.f32.gmra.mrb[0].mxu0 %v6030
      %v6191 = vpop.f32.mrb[0].mxu0
      %v6192 = vadd.f32 0.0, %v6191
      %v6193 = vpop.f32.mrb[0].mxu0
      %6194 = vmatprep.mubr.f32.mxu0 0.0
      %6195 = vmatmul.mubr.f32.gmra.mrb[0].mxu0 %v6033
      %v6196 = vpop.f32.mrb[0].mxu0
      %v6197 = vadd.f32 0.0, %v6196
      %v6198 = vpop.f32.mrb[0].mxu0
      %6199 = vmatprep.mubr.f32.mxu0 0.0
      %6200 = vmatmul.mubr.f32.gmra.mrb[0].mxu0 %v6036
      %v6201 = vpop.f32.mrb[0].mxu0
      %v6202 = vadd.f32 0.0, %v6201
      %v6203 = vpop.f32.mrb[0].mxu0
      %6204 = vmatprep.mubr.f32.mxu0 0.0
      %6205 = vmatmul.mubr.f32.gmra.mrb[0].mxu0 %v6039
      %v6206 = vpop.f32.mrb[0].mxu0
      %v6207 = vadd.f32 0.0, %v6206
      %v6208 = vpop.f32.mrb[0].mxu0
      %6209 = vmatprep.mubr.f32.mxu0 0.0
      %6210 = vmatmul.mubr.f32.gmra.mrb[0].mxu0 %v6042
      %v6211 = vpop.f32.mrb[0].mxu0
      %v6212 = vadd.f32 0.0, %v6211
      %v6213 = vpop.f32.mrb[0].mxu0
      %6214 = vmatprep.mubr.f32.mxu0 0.0
      %6215 = vmatmul.mubr.f32.gmra.mrb[0].mxu0 %v6045
      %v6216 = vpop.f32.mrb[0].mxu0
      %v6217 = vadd.f32 0.0, %v6216
      %v6218 = vpop.f32.mrb[0].mxu0
      %6219 = vmatprep.mubr.f32.mxu0 0.0
      %6220 = vmatmul.mubr.f32.gmra.mrb[0].mxu0 %v6048
      %v6221 = vpop.f32.mrb[0].mxu0
      %v6222 = vadd.f32 0.0, %v6221
      %v6223 = vpop.f32.mrb[0].mxu0
      %6224 = vmatprep.mubr.f32.mxu0 0.0
      %6225 = vmatmul.mubr.f32.gmra.mrb[0].mxu0 %v6051
      %v6226 = vpop.f32.mrb[0].mxu0
      %v6227 = vadd.f32 0.0, %v6226
      %v6228 = vpop.f32.mrb[0].mxu0
      %6229 = vmatprep.mubr.f32.mxu0 0.0
      %6230 = vmatmul.mubr.f32.gmra.mrb[0].mxu0 %v6054
      %v6231 = vpop.f32.mrb[0].mxu0
      %v6232 = vadd.f32 0.0, %v6231
      %v6233 = vpop.f32.mrb[0].mxu0
      %6234 = vmatprep.mubr.f32.mxu0 0.0
      %6235 = vmatmul.mubr.f32.gmra.mrb[0].mxu0 %v6057
      %v6236 = vpop.f32.mrb[0].mxu0
      %v6237 = vadd.f32 0.0, %v6236
      %v6238 = vpop.f32.mrb[0].mxu0
      %6239 = vmatprep.mubr.f32.mxu0 0.0
      %6240 = vmatmul.mubr.f32.gmra.mrb[0].mxu0 %v6060
      %v6241 = vpop.f32.mrb[0].mxu0
      %v6242 = vadd.f32 0.0, %v6241
      %v6243 = vpop.f32.mrb[0].mxu0
      %6244 = vmatprep.mubr.f32.mxu0 0.0
      %6245 = vmatmul.mubr.f32.gmra.mrb[0].mxu0 %v6063
      %v6246 = vpop.f32.mrb[0].mxu0
      %v6247 = vadd.f32 0.0, %v6246
      %v6248 = vpop.f32.mrb[0].mxu0
      %6249 = vmatprep.mubr.f32.mxu0 0.0
      %6250 = vmatmul.mubr.f32.gmra.mrb[0].mxu0 %v6066
      %v6251 = vpop.f32.mrb[0].mxu0
      %v6252 = vadd.f32 0.0, %v6251
      %v6253 = vpop.f32.mrb[0].mxu0
      %6254 = vmatprep.mubr.f32.mxu0 0.0
      %6255 = vmatmul.mubr.f32.gmra.mrb[0].mxu0 %v6069
      %v6256 = vpop.f32.mrb[0].mxu0
      %v6257 = vadd.f32 0.0, %v6256
      %v6258 = vpop.f32.mrb[0].mxu0
      %6259 = vmatprep.mubr.f32.mxu0 0.0
      %6260 = vmatmul.mubr.f32.gmra.mrb[0].mxu0 %v6072
      %v6261 = vpop.f32.mrb[0].mxu0
      %v6262 = vadd.f32 0.0, %v6261
      %v6263 = vpop.f32.mrb[0].mxu0
      %6264 = vmatprep.mubr.f32.mxu0 0.0
      %6265 = vmatmul.mubr.f32.gmra.mrb[0].mxu0 %v6075
      %v6266 = vpop.f32.mrb[0].mxu0
      %v6267 = vadd.f32 0.0, %v6266
      %v6268 = vpop.f32.mrb[0].mxu0
      %6269 = vmatprep.mubr.f32.mxu0 0.0
      %6270 = vmatmul.mubr.f32.gmra.mrb[0].mxu0 %v6078
      %v6271 = vpop.f32.mrb[0].mxu0
      %v6272 = vadd.f32 0.0, %v6271
      %v6273 = vpop.f32.mrb[0].mxu0
      %6274 = vmatprep.mubr.f32.mxu0 0.0
      %6275 = vmatmul.mubr.f32.gmra.mrb[0].mxu0 %v6081
      %v6276 = vpop.f32.mrb[0].mxu0
      %v6277 = vadd.f32 0.0, %v6276
      %v6278 = vpop.f32.mrb[0].mxu0
      %6279 = vmatprep.mubr.f32.mxu0 0.0
      %6280 = vmatmul.mubr.f32.gmra.mrb[0].mxu0 %v6084
      %v6281 = vpop.f32.mrb[0].mxu0
      %v6282 = vadd.f32 0.0, %v6281
      %v6283 = vpop.f32.mrb[0].mxu0
      %6284 = vmatprep.mubr.f32.mxu0 0.0
      %6285 = vmatmul.mubr.f32.gmra.mrb[0].mxu0 %v6087
      %v6286 = vpop.f32.mrb[0].mxu0
      %v6287 = vadd.f32 0.0, %v6286
      %v6288 = vpop.f32.mrb[0].mxu0
      %6289 = vmatprep.mubr.f32.mxu0 0.0
      %6290 = vmatmul.mubr.f32.gmra.mrb[0].mxu0 %v6090
      %v6291 = vpop.f32.mrb[0].mxu0
      %v6292 = vadd.f32 0.0, %v6291
      %v6293 = vpop.f32.mrb[0].mxu0
      %6294 = vmatprep.mubr.f32.mxu0 0.0
      %6295 = vmatmul.mubr.f32.gmra.mrb[0].mxu0 %v6093
      %v6296 = vpop.f32.mrb[0].mxu0
      %v6297 = vadd.f32 0.0, %v6296
      %v6298 = vpop.f32.mrb[0].mxu0
      %6299 = vmatprep.mubr.f32.mxu0 0.0
      %6300 = vmatmul.mubr.f32.gmra.mrb[0].mxu0 %v6096
      %v6301 = vpop.f32.mrb[0].mxu0
      %v6302 = vadd.f32 0.0, %v6301
      %v6303 = vpop.f32.mrb[0].mxu0
      %6304 = vmatprep.mubr.f32.mxu0 0.0
      %6305 = vmatmul.mubr.f32.gmra.mrb[0].mxu0 %v6099
      %v6306 = vpop.f32.mrb[0].mxu0
      %v6307 = vadd.f32 0.0, %v6306
      %v6308 = vpop.f32.mrb[0].mxu0
      %6309 = vmatprep.mubr.f32.mxu0 0.0
      %6310 = vmatmul.mubr.f32.gmra.mrb[0].mxu0 %v6102
      %v6311 = vpop.f32.mrb[0].mxu0
      %v6312 = vadd.f32 0.0, %v6311
      %v6313 = vpop.f32.mrb[0].mxu0
      %6314 = vmatprep.mubr.f32.mxu0 0.0
      %6315 = vmatmul.mubr.f32.gmra.mrb[0].mxu0 %v6105
      %v6316 = vpop.f32.mrb[0].mxu0
      %v6317 = vadd.f32 0.0, %v6316
      %v6318 = vpop.f32.mrb[0].mxu0
      %6319 = vmatprep.mubr.f32.mxu0 0.0
      %6320 = vmatmul.mubr.f32.gmra.mrb[0].mxu0 %v6108
      %v6321 = vpop.f32.mrb[0].mxu0
      %v6322 = vadd.f32 0.0, %v6321
      %v6323 = vpop.f32.mrb[0].mxu0
      %6324 = vmatprep.mubr.f32.mxu0 0.0
      %6325 = vmatmul.mubr.f32.gmra.mrb[0].mxu0 %v6111
      %v6326 = vpop.f32.mrb[0].mxu0
      %v6327 = vadd.f32 0.0, %v6326
      %v6328 = vpop.f32.mrb[0].mxu0
      %6329 = vmatprep.mubr.f32.mxu0 0.0
      %6330 = vmatmul.mubr.f32.gmra.mrb[0].mxu0 %v6114
      %v6331 = vpop.f32.mrb[0].mxu0
      %v6332 = vadd.f32 0.0, %v6331
      %v6333 = vpop.f32.mrb[0].mxu0
      %6334 = vmatprep.mubr.f32.mxu0 0.0
      %6335 = vmatmul.mubr.f32.gmra.mrb[0].mxu0 %v6117
      %v6336 = vpop.f32.mrb[0].mxu0
      %v6337 = vadd.f32 0.0, %v6336
      %v6338 = vpop.f32.mrb[0].mxu0
      %6339 = vmatprep.mubr.f32.mxu0 0.0
      %6340 = vmatmul.mubr.f32.gmra.mrb[0].mxu0 %v6120
      %v6341 = vpop.f32.mrb[0].mxu0
      %v6342 = vadd.f32 0.0, %v6341
      %v6343 = vpop.f32.mrb[0].mxu0
      %6344 = vmatprep.mubr.f32.mxu0 0.0
      %6345 = vmatmul.mubr.f32.gmra.mrb[0].mxu0 %v6123
      %v6346 = vpop.f32.mrb[0].mxu0
      %v6347 = vadd.f32 0.0, %v6346
      %v6348 = vpop.f32.mrb[0].mxu0
      %6349 = vdwg.mxu0
      %v6350 = vadd.f32 %v5995, %v6192
      %v6351 = vadd.f32 %v5996, %v6197
      %v6352 = vadd.f32 %v5997, %v6202
      %v6353 = vadd.f32 %v5998, %v6207
      %v6354 = vadd.f32 %v5999, %v6212
      %v6355 = vadd.f32 %v6000, %v6217
      %v6356 = vadd.f32 %v6001, %v6222
      %v6357 = vadd.f32 %v6002, %v6227
      %v6358 = vadd.f32 %v6003, %v6232
      %v6359 = vadd.f32 %v6004, %v6237
      %v6360 = vadd.f32 %v6005, %v6242
      %v6361 = vadd.f32 %v6006, %v6247
      %v6362 = vadd.f32 %v6007, %v6252
      %v6363 = vadd.f32 %v6008, %v6257
      %v6364 = vadd.f32 %v6009, %v6262
      %v6365 = vadd.f32 %v6010, %v6267
      %v6366 = vadd.f32 %v6011, %v6272
      %v6367 = vadd.f32 %v6012, %v6277
      %v6368 = vadd.f32 %v6013, %v6282
      %v6369 = vadd.f32 %v6014, %v6287
      %v6370 = vadd.f32 %v6015, %v6292
      %v6371 = vadd.f32 %v6016, %v6297
      %v6372 = vadd.f32 %v6017, %v6302
      %v6373 = vadd.f32 %v6018, %v6307
      %v6374 = vadd.f32 %v6019, %v6312
      %v6375 = vadd.f32 %v6020, %v6317
      %v6376 = vadd.f32 %v6021, %v6322
      %v6377 = vadd.f32 %v6022, %v6327
      %v6378 = vadd.f32 %v6023, %v6332
      %v6379 = vadd.f32 %v6024, %v6337
      %v6380 = vadd.f32 %v6025, %v6342
      %v6381 = vadd.f32 %v6026, %v6347
      %6382 = vst.msk [vmem:[#allocation4] sm:$0xff] %vm230, %v6350
      %6383 = vst.msk [vmem:[#allocation4 + $0x8] sm:$0xff] %vm230, %v6351
      %6384 = vst.msk [vmem:[#allocation4 + $0x10] sm:$0xff] %vm230, %v6352
      %6385 = vst.msk [vmem:[#allocation4 + $0x18] sm:$0xff] %vm230, %v6353
      %6386 = vst.msk [vmem:[#allocation4 + $0x20] sm:$0xff] %vm230, %v6354
      %6387 = vst.msk [vmem:[#allocation4 + $0x28] sm:$0xff] %vm230, %v6355
      %6388 = vst.msk [vmem:[#allocation4 + $0x30] sm:$0xff] %vm230, %v6356
      %6389 = vst.msk [vmem:[#allocation4 + $0x38] sm:$0xff] %vm230, %v6357
      %6390 = vst.msk [vmem:[#allocation4 + $0x40] sm:$0xff] %vm230, %v6358
      %6391 = vst.msk [vmem:[#allocation4 + $0x48] sm:$0xff] %vm230, %v6359
      %6392 = vst.msk [vmem:[#allocation4 + $0x50] sm:$0xff] %vm230, %v6360
      %6393 = vst.msk [vmem:[#allocation4 + $0x58] sm:$0xff] %vm230, %v6361
      %6394 = vst.msk [vmem:[#allocation4 + $0x60] sm:$0xff] %vm230, %v6362
      %6395 = vst.msk [vmem:[#allocation4 + $0x68] sm:$0xff] %vm230, %v6363
      %6396 = vst.msk [vmem:[#allocation4 + $0x70] sm:$0xff] %vm230, %v6364
      %6397 = vst.msk [vmem:[#allocation4 + $0x78] sm:$0xff] %vm230, %v6365
      %6398 = vst.msk [vmem:[#allocation4 + $0x80] sm:$0xff] %vm230, %v6366
      %6399 = vst.msk [vmem:[#allocation4 + $0x88] sm:$0xff] %vm230, %v6367
      %6400 = vst.msk [vmem:[#allocation4 + $0x90] sm:$0xff] %vm230, %v6368
      %6401 = vst.msk [vmem:[#allocation4 + $0x98] sm:$0xff] %vm230, %v6369
      %6402 = vst.msk [vmem:[#allocation4 + $0xa0] sm:$0xff] %vm230, %v6370
      %6403 = vst.msk [vmem:[#allocation4 + $0xa8] sm:$0xff] %vm230, %v6371
      %6404 = vst.msk [vmem:[#allocation4 + $0xb0] sm:$0xff] %vm230, %v6372
      %6405 = vst.msk [vmem:[#allocation4 + $0xb8] sm:$0xff] %vm230, %v6373
      %6406 = vst.msk [vmem:[#allocation4 + $0xc0] sm:$0xff] %vm230, %v6374
      %6407 = vst.msk [vmem:[#allocation4 + $0xc8] sm:$0xff] %vm230, %v6375
      %6408 = vst.msk [vmem:[#allocation4 + $0xd0] sm:$0xff] %vm230, %v6376
      %6409 = vst.msk [vmem:[#allocation4 + $0xd8] sm:$0xff] %vm230, %v6377
      %6410 = vst.msk [vmem:[#allocation4 + $0xe0] sm:$0xff] %vm230, %v6378
      %6411 = vst.msk [vmem:[#allocation4 + $0xe8] sm:$0xff] %vm230, %v6379
      %6412 = vst.msk [vmem:[#allocation4 + $0xf0] sm:$0xff] %vm230, %v6380
      %6413 = vst.msk [vmem:[#allocation4 + $0xf8] sm:$0xff] %vm230, %v6381
      %v6414 = vld [vmem:[%s4546 + $0x1] sm:$0xff]
      %v6415 = vld [vmem:[%s4546 + $0x9] sm:$0xff]
      %v6416 = vld [vmem:[%s4546 + $0x19] sm:$0xff]
      %v6417 = vld [vmem:[%s4546 + $0x21] sm:$0xff]
      %v6418 = vld [vmem:[%s4546 + $0x31] sm:$0xff]
      %v6419 = vld [vmem:[%s4546 + $0x39] sm:$0xff]
      %v6420 = vld [vmem:[%s4546 + $0x49] sm:$0xff]
      %v6421 = vld [vmem:[%s4546 + $0x51] sm:$0xff]
      %v6422 = vld [vmem:[%s4546 + $0x61] sm:$0xff]
      %v6423 = vld [vmem:[%s4546 + $0x69] sm:$0xff]
      %v6424 = vld [vmem:[%s4546 + $0x79] sm:$0xff]
      %v6425 = vld [vmem:[%s4546 + $0x81] sm:$0xff]
      %v6426 = vld [vmem:[%s4546 + $0x91] sm:$0xff]
      %v6427 = vld [vmem:[%s4546 + $0x99] sm:$0xff]
      %v6428 = vld [vmem:[%s4546 + $0xa9] sm:$0xff]
      %v6429 = vld [vmem:[%s4546 + $0xb1] sm:$0xff]
      %v6430 = vld [vmem:[%s4546 + $0xc1] sm:$0xff]
      %v6431 = vld [vmem:[%s4546 + $0xc9] sm:$0xff]
      %v6432 = vld [vmem:[%s4546 + $0xd9] sm:$0xff]
      %v6433 = vld [vmem:[%s4546 + $0xe1] sm:$0xff]
      %v6434 = vld [vmem:[%s4546 + $0xf1] sm:$0xff]
      %v6435 = vld [vmem:[%s4546 + $0xf9] sm:$0xff]
      %v6436 = vld [vmem:[%s4546 + $0x109] sm:$0xff]
      %v6437 = vld [vmem:[%s4546 + $0x111] sm:$0xff]
      %v6438 = vld [vmem:[%s4546 + $0x121] sm:$0xff]
      %v6439 = vld [vmem:[%s4546 + $0x129] sm:$0xff]
      %v6440 = vld [vmem:[%s4546 + $0x139] sm:$0xff]
      %v6441 = vld [vmem:[%s4546 + $0x141] sm:$0xff]
      %v6442 = vld [vmem:[%s4546 + $0x151] sm:$0xff]
      %v6443 = vld [vmem:[%s4546 + $0x159] sm:$0xff]
      %v6444 = vld [vmem:[%s4546 + $0x169] sm:$0xff]
      %v6445 = vld [vmem:[%s4546 + $0x171] sm:$0xff]
      %v6446 = vld [vmem:[#allocation4] sm:$0xff]
      %v6447 = vld [vmem:[#allocation4 + $0x8] sm:$0xff]
      %v6448 = vld [vmem:[#allocation4 + $0x10] sm:$0xff]
      %v6449 = vld [vmem:[#allocation4 + $0x18] sm:$0xff]
      %v6450 = vld [vmem:[#allocation4 + $0x20] sm:$0xff]
      %v6451 = vld [vmem:[#allocation4 + $0x28] sm:$0xff]
      %v6452 = vld [vmem:[#allocation4 + $0x30] sm:$0xff]
      %v6453 = vld [vmem:[#allocation4 + $0x38] sm:$0xff]
      %v6454 = vld [vmem:[#allocation4 + $0x40] sm:$0xff]
      %v6455 = vld [vmem:[#allocation4 + $0x48] sm:$0xff]
      %v6456 = vld [vmem:[#allocation4 + $0x50] sm:$0xff]
      %v6457 = vld [vmem:[#allocation4 + $0x58] sm:$0xff]
      %v6458 = vld [vmem:[#allocation4 + $0x60] sm:$0xff]
      %v6459 = vld [vmem:[#allocation4 + $0x68] sm:$0xff]
      %v6460 = vld [vmem:[#allocation4 + $0x70] sm:$0xff]
      %v6461 = vld [vmem:[#allocation4 + $0x78] sm:$0xff]
      %v6462 = vld [vmem:[#allocation4 + $0x80] sm:$0xff]
      %v6463 = vld [vmem:[#allocation4 + $0x88] sm:$0xff]
      %v6464 = vld [vmem:[#allocation4 + $0x90] sm:$0xff]
      %v6465 = vld [vmem:[#allocation4 + $0x98] sm:$0xff]
      %v6466 = vld [vmem:[#allocation4 + $0xa0] sm:$0xff]
      %v6467 = vld [vmem:[#allocation4 + $0xa8] sm:$0xff]
      %v6468 = vld [vmem:[#allocation4 + $0xb0] sm:$0xff]
      %v6469 = vld [vmem:[#allocation4 + $0xb8] sm:$0xff]
      %v6470 = vld [vmem:[#allocation4 + $0xc0] sm:$0xff]
      %v6471 = vld [vmem:[#allocation4 + $0xc8] sm:$0xff]
      %v6472 = vld [vmem:[#allocation4 + $0xd0] sm:$0xff]
      %v6473 = vld [vmem:[#allocation4 + $0xd8] sm:$0xff]
      %v6474 = vld [vmem:[#allocation4 + $0xe0] sm:$0xff]
      %v6475 = vld [vmem:[#allocation4 + $0xe8] sm:$0xff]
      %v6476 = vld [vmem:[#allocation4 + $0xf0] sm:$0xff]
      %v6477 = vld [vmem:[#allocation4 + $0xf8] sm:$0xff]
      %s6478 = scalar_lea.vmem %s3, 32
      %v6479 = vld [vmem:[%s6478] sm:$0xff]
      %v6481 = vsel %vm230, %v6414, 0
      %v6484 = vsel %vm230, %v6415, 0
      %v6487 = vsel %vm230, %v6416, 0
      %v6490 = vsel %vm230, %v6417, 0
      %v6493 = vsel %vm230, %v6418, 0
      %v6496 = vsel %vm230, %v6419, 0
      %v6499 = vsel %vm230, %v6420, 0
      %v6502 = vsel %vm230, %v6421, 0
      %v6505 = vsel %vm230, %v6422, 0
      %v6508 = vsel %vm230, %v6423, 0
      %v6511 = vsel %vm230, %v6424, 0
      %v6514 = vsel %vm230, %v6425, 0
      %v6517 = vsel %vm230, %v6426, 0
      %v6520 = vsel %vm230, %v6427, 0
      %v6523 = vsel %vm230, %v6428, 0
      %v6526 = vsel %vm230, %v6429, 0
      %v6529 = vsel %vm230, %v6430, 0
      %v6532 = vsel %vm230, %v6431, 0
      %v6535 = vsel %vm230, %v6432, 0
      %v6538 = vsel %vm230, %v6433, 0
      %v6541 = vsel %vm230, %v6434, 0
      %v6544 = vsel %vm230, %v6435, 0
      %v6547 = vsel %vm230, %v6436, 0
      %v6550 = vsel %vm230, %v6437, 0
      %v6553 = vsel %vm230, %v6438, 0
      %v6556 = vsel %vm230, %v6439, 0
      %v6559 = vsel %vm230, %v6440, 0
      %v6562 = vsel %vm230, %v6441, 0
      %v6565 = vsel %vm230, %v6442, 0
      %v6568 = vsel %vm230, %v6443, 0
      %v6571 = vsel %vm230, %v6444, 0
      %v6574 = vsel %vm230, %v6445, 0
      %6576 = vmatprep.subr.mxu0 0.0
      %6577 = vmatpush1.msra.mxu0 %v6479
      %6578 = vmatprep.subr.mxu0 0.0
      %6579 = vmatpush1.msra.mxu0 0.0
      %6580 = vmatprep.subr.mxu0 0.0
      %6581 = vmatpush1.msra.mxu0 0.0
      %6582 = vmatprep.subr.mxu0 0.0
      %6583 = vmatpush1.msra.mxu0 0.0
      %6584 = vmatprep.subr.mxu0 0.0
      %6585 = vmatpush1.msra.mxu0 0.0
      %6586 = vmatprep.subr.mxu0 0.0
      %6587 = vmatpush1.msra.mxu0 0.0
      %6588 = vmatprep.subr.mxu0 0.0
      %6589 = vmatpush1.msra.mxu0 0.0
      %6590 = vmatprep.subr.mxu0 0.0
      %6591 = vmatpush1.msra.mxu0 0.0
      %6592 = vmatprep.subr.mxu0 0.0
      %6593 = vmatpush1.msra.mxu0 0.0
      %6594 = vmatprep.subr.mxu0 0.0
      %6595 = vmatpush1.msra.mxu0 0.0
      %6596 = vmatprep.subr.mxu0 0.0
      %6597 = vmatpush1.msra.mxu0 0.0
      %6598 = vmatprep.subr.mxu0 0.0
      %6599 = vmatpush1.msra.mxu0 0.0
      %6600 = vmatprep.subr.mxu0 0.0
      %6601 = vmatpush1.msra.mxu0 0.0
      %6602 = vmatprep.subr.mxu0 0.0
      %6603 = vmatpush1.msra.mxu0 0.0
      %6604 = vmatprep.subr.mxu0 0.0
      %6605 = vmatpush1.msra.mxu0 0.0
      %6606 = vmatprep.subr.mxu0 0.0
      %6607 = vmatpush1.msra.mxu0 0.0
      %6608 = vmatprep.subr.mxu0 0.0
      %6609 = vmatpush1.msra.mxu0 0.0
      %6610 = vmatprep.subr.mxu0 0.0
      %6611 = vmatpush1.msra.mxu0 0.0
      %6612 = vmatprep.subr.mxu0 0.0
      %6613 = vmatpush1.msra.mxu0 0.0
      %6614 = vmatprep.subr.mxu0 0.0
      %6615 = vmatpush1.msra.mxu0 0.0
      %6616 = vmatprep.subr.mxu0 0.0
      %6617 = vmatpush1.msra.mxu0 0.0
      %6618 = vmatprep.subr.mxu0 0.0
      %6619 = vmatpush1.msra.mxu0 0.0
      %6620 = vmatprep.subr.mxu0 0.0
      %6621 = vmatpush1.msra.mxu0 0.0
      %6622 = vmatprep.subr.mxu0 0.0
      %6623 = vmatpush1.msra.mxu0 0.0
      %6624 = vmatprep.subr.mxu0 0.0
      %6625 = vmatpush1.msra.mxu0 0.0
      %6626 = vmatprep.subr.mxu0 0.0
      %6627 = vmatpush1.msra.mxu0 0.0
      %6628 = vmatprep.subr.mxu0 0.0
      %6629 = vmatpush1.msra.mxu0 0.0
      %6630 = vmatprep.subr.mxu0 0.0
      %6631 = vmatpush1.msra.mxu0 0.0
      %6632 = vmatprep.subr.mxu0 0.0
      %6633 = vmatpush1.msra.mxu0 0.0
      %6634 = vmatprep.subr.mxu0 0.0
      %6635 = vmatpush1.msra.mxu0 0.0
      %6636 = vmatprep.subr.mxu0 0.0
      %6637 = vmatpush1.msra.mxu0 0.0
      %6638 = vmatprep.subr.mxu0 0.0
      %6639 = vmatpush1.msra.mxu0 0.0
      %6640 = vmatprep.mubr.f32.mxu0 0.0
      %6641 = vmatmul.mubr.f32.gmra.mrb[0].mxu0 %v6481
      %v6642 = vpop.f32.mrb[0].mxu0
      %v6643 = vadd.f32 0.0, %v6642
      %v6644 = vpop.f32.mrb[0].mxu0
      %6645 = vmatprep.mubr.f32.mxu0 0.0
      %6646 = vmatmul.mubr.f32.gmra.mrb[0].mxu0 %v6484
      %v6647 = vpop.f32.mrb[0].mxu0
      %v6648 = vadd.f32 0.0, %v6647
      %v6649 = vpop.f32.mrb[0].mxu0
      %6650 = vmatprep.mubr.f32.mxu0 0.0
      %6651 = vmatmul.mubr.f32.gmra.mrb[0].mxu0 %v6487
      %v6652 = vpop.f32.mrb[0].mxu0
      %v6653 = vadd.f32 0.0, %v6652
      %v6654 = vpop.f32.mrb[0].mxu0
      %6655 = vmatprep.mubr.f32.mxu0 0.0
      %6656 = vmatmul.mubr.f32.gmra.mrb[0].mxu0 %v6490
      %v6657 = vpop.f32.mrb[0].mxu0
      %v6658 = vadd.f32 0.0, %v6657
      %v6659 = vpop.f32.mrb[0].mxu0
      %6660 = vmatprep.mubr.f32.mxu0 0.0
      %6661 = vmatmul.mubr.f32.gmra.mrb[0].mxu0 %v6493
      %v6662 = vpop.f32.mrb[0].mxu0
      %v6663 = vadd.f32 0.0, %v6662
      %v6664 = vpop.f32.mrb[0].mxu0
      %6665 = vmatprep.mubr.f32.mxu0 0.0
      %6666 = vmatmul.mubr.f32.gmra.mrb[0].mxu0 %v6496
      %v6667 = vpop.f32.mrb[0].mxu0
      %v6668 = vadd.f32 0.0, %v6667
      %v6669 = vpop.f32.mrb[0].mxu0
      %6670 = vmatprep.mubr.f32.mxu0 0.0
      %6671 = vmatmul.mubr.f32.gmra.mrb[0].mxu0 %v6499
      %v6672 = vpop.f32.mrb[0].mxu0
      %v6673 = vadd.f32 0.0, %v6672
      %v6674 = vpop.f32.mrb[0].mxu0
      %6675 = vmatprep.mubr.f32.mxu0 0.0
      %6676 = vmatmul.mubr.f32.gmra.mrb[0].mxu0 %v6502
      %v6677 = vpop.f32.mrb[0].mxu0
      %v6678 = vadd.f32 0.0, %v6677
      %v6679 = vpop.f32.mrb[0].mxu0
      %6680 = vmatprep.mubr.f32.mxu0 0.0
      %6681 = vmatmul.mubr.f32.gmra.mrb[0].mxu0 %v6505
      %v6682 = vpop.f32.mrb[0].mxu0
      %v6683 = vadd.f32 0.0, %v6682
      %v6684 = vpop.f32.mrb[0].mxu0
      %6685 = vmatprep.mubr.f32.mxu0 0.0
      %6686 = vmatmul.mubr.f32.gmra.mrb[0].mxu0 %v6508
      %v6687 = vpop.f32.mrb[0].mxu0
      %v6688 = vadd.f32 0.0, %v6687
      %v6689 = vpop.f32.mrb[0].mxu0
      %6690 = vmatprep.mubr.f32.mxu0 0.0
      %6691 = vmatmul.mubr.f32.gmra.mrb[0].mxu0 %v6511
      %v6692 = vpop.f32.mrb[0].mxu0
      %v6693 = vadd.f32 0.0, %v6692
      %v6694 = vpop.f32.mrb[0].mxu0
      %6695 = vmatprep.mubr.f32.mxu0 0.0
      %6696 = vmatmul.mubr.f32.gmra.mrb[0].mxu0 %v6514
      %v6697 = vpop.f32.mrb[0].mxu0
      %v6698 = vadd.f32 0.0, %v6697
      %v6699 = vpop.f32.mrb[0].mxu0
      %6700 = vmatprep.mubr.f32.mxu0 0.0
      %6701 = vmatmul.mubr.f32.gmra.mrb[0].mxu0 %v6517
      %v6702 = vpop.f32.mrb[0].mxu0
      %v6703 = vadd.f32 0.0, %v6702
      %v6704 = vpop.f32.mrb[0].mxu0
      %6705 = vmatprep.mubr.f32.mxu0 0.0
      %6706 = vmatmul.mubr.f32.gmra.mrb[0].mxu0 %v6520
      %v6707 = vpop.f32.mrb[0].mxu0
      %v6708 = vadd.f32 0.0, %v6707
      %v6709 = vpop.f32.mrb[0].mxu0
      %6710 = vmatprep.mubr.f32.mxu0 0.0
      %6711 = vmatmul.mubr.f32.gmra.mrb[0].mxu0 %v6523
      %v6712 = vpop.f32.mrb[0].mxu0
      %v6713 = vadd.f32 0.0, %v6712
      %v6714 = vpop.f32.mrb[0].mxu0
      %6715 = vmatprep.mubr.f32.mxu0 0.0
      %6716 = vmatmul.mubr.f32.gmra.mrb[0].mxu0 %v6526
      %v6717 = vpop.f32.mrb[0].mxu0
      %v6718 = vadd.f32 0.0, %v6717
      %v6719 = vpop.f32.mrb[0].mxu0
      %6720 = vmatprep.mubr.f32.mxu0 0.0
      %6721 = vmatmul.mubr.f32.gmra.mrb[0].mxu0 %v6529
      %v6722 = vpop.f32.mrb[0].mxu0
      %v6723 = vadd.f32 0.0, %v6722
      %v6724 = vpop.f32.mrb[0].mxu0
      %6725 = vmatprep.mubr.f32.mxu0 0.0
      %6726 = vmatmul.mubr.f32.gmra.mrb[0].mxu0 %v6532
      %v6727 = vpop.f32.mrb[0].mxu0
      %v6728 = vadd.f32 0.0, %v6727
      %v6729 = vpop.f32.mrb[0].mxu0
      %6730 = vmatprep.mubr.f32.mxu0 0.0
      %6731 = vmatmul.mubr.f32.gmra.mrb[0].mxu0 %v6535
      %v6732 = vpop.f32.mrb[0].mxu0
      %v6733 = vadd.f32 0.0, %v6732
      %v6734 = vpop.f32.mrb[0].mxu0
      %6735 = vmatprep.mubr.f32.mxu0 0.0
      %6736 = vmatmul.mubr.f32.gmra.mrb[0].mxu0 %v6538
      %v6737 = vpop.f32.mrb[0].mxu0
      %v6738 = vadd.f32 0.0, %v6737
      %v6739 = vpop.f32.mrb[0].mxu0
      %6740 = vmatprep.mubr.f32.mxu0 0.0
      %6741 = vmatmul.mubr.f32.gmra.mrb[0].mxu0 %v6541
      %v6742 = vpop.f32.mrb[0].mxu0
      %v6743 = vadd.f32 0.0, %v6742
      %v6744 = vpop.f32.mrb[0].mxu0
      %6745 = vmatprep.mubr.f32.mxu0 0.0
      %6746 = vmatmul.mubr.f32.gmra.mrb[0].mxu0 %v6544
      %v6747 = vpop.f32.mrb[0].mxu0
      %v6748 = vadd.f32 0.0, %v6747
      %v6749 = vpop.f32.mrb[0].mxu0
      %6750 = vmatprep.mubr.f32.mxu0 0.0
      %6751 = vmatmul.mubr.f32.gmra.mrb[0].mxu0 %v6547
      %v6752 = vpop.f32.mrb[0].mxu0
      %v6753 = vadd.f32 0.0, %v6752
      %v6754 = vpop.f32.mrb[0].mxu0
      %6755 = vmatprep.mubr.f32.mxu0 0.0
      %6756 = vmatmul.mubr.f32.gmra.mrb[0].mxu0 %v6550
      %v6757 = vpop.f32.mrb[0].mxu0
      %v6758 = vadd.f32 0.0, %v6757
      %v6759 = vpop.f32.mrb[0].mxu0
      %6760 = vmatprep.mubr.f32.mxu0 0.0
      %6761 = vmatmul.mubr.f32.gmra.mrb[0].mxu0 %v6553
      %v6762 = vpop.f32.mrb[0].mxu0
      %v6763 = vadd.f32 0.0, %v6762
      %v6764 = vpop.f32.mrb[0].mxu0
      %6765 = vmatprep.mubr.f32.mxu0 0.0
      %6766 = vmatmul.mubr.f32.gmra.mrb[0].mxu0 %v6556
      %v6767 = vpop.f32.mrb[0].mxu0
      %v6768 = vadd.f32 0.0, %v6767
      %v6769 = vpop.f32.mrb[0].mxu0
      %6770 = vmatprep.mubr.f32.mxu0 0.0
      %6771 = vmatmul.mubr.f32.gmra.mrb[0].mxu0 %v6559
      %v6772 = vpop.f32.mrb[0].mxu0
      %v6773 = vadd.f32 0.0, %v6772
      %v6774 = vpop.f32.mrb[0].mxu0
      %6775 = vmatprep.mubr.f32.mxu0 0.0
      %6776 = vmatmul.mubr.f32.gmra.mrb[0].mxu0 %v6562
      %v6777 = vpop.f32.mrb[0].mxu0
      %v6778 = vadd.f32 0.0, %v6777
      %v6779 = vpop.f32.mrb[0].mxu0
      %6780 = vmatprep.mubr.f32.mxu0 0.0
      %6781 = vmatmul.mubr.f32.gmra.mrb[0].mxu0 %v6565
      %v6782 = vpop.f32.mrb[0].mxu0
      %v6783 = vadd.f32 0.0, %v6782
      %v6784 = vpop.f32.mrb[0].mxu0
      %6785 = vmatprep.mubr.f32.mxu0 0.0
      %6786 = vmatmul.mubr.f32.gmra.mrb[0].mxu0 %v6568
      %v6787 = vpop.f32.mrb[0].mxu0
      %v6788 = vadd.f32 0.0, %v6787
      %v6789 = vpop.f32.mrb[0].mxu0
      %6790 = vmatprep.mubr.f32.mxu0 0.0
      %6791 = vmatmul.mubr.f32.gmra.mrb[0].mxu0 %v6571
      %v6792 = vpop.f32.mrb[0].mxu0
      %v6793 = vadd.f32 0.0, %v6792
      %v6794 = vpop.f32.mrb[0].mxu0
      %6795 = vmatprep.mubr.f32.mxu0 0.0
      %6796 = vmatmul.mubr.f32.gmra.mrb[0].mxu0 %v6574
      %v6797 = vpop.f32.mrb[0].mxu0
      %v6798 = vadd.f32 0.0, %v6797
      %v6799 = vpop.f32.mrb[0].mxu0
      %6800 = vdwg.mxu0
      %v6801 = vadd.f32 %v6446, %v6643
      %v6802 = vadd.f32 %v6447, %v6648
      %v6803 = vadd.f32 %v6448, %v6653
      %v6804 = vadd.f32 %v6449, %v6658
      %v6805 = vadd.f32 %v6450, %v6663
      %v6806 = vadd.f32 %v6451, %v6668
      %v6807 = vadd.f32 %v6452, %v6673
      %v6808 = vadd.f32 %v6453, %v6678
      %v6809 = vadd.f32 %v6454, %v6683
      %v6810 = vadd.f32 %v6455, %v6688
      %v6811 = vadd.f32 %v6456, %v6693
      %v6812 = vadd.f32 %v6457, %v6698
      %v6813 = vadd.f32 %v6458, %v6703
      %v6814 = vadd.f32 %v6459, %v6708
      %v6815 = vadd.f32 %v6460, %v6713
      %v6816 = vadd.f32 %v6461, %v6718
      %v6817 = vadd.f32 %v6462, %v6723
      %v6818 = vadd.f32 %v6463, %v6728
      %v6819 = vadd.f32 %v6464, %v6733
      %v6820 = vadd.f32 %v6465, %v6738
      %v6821 = vadd.f32 %v6466, %v6743
      %v6822 = vadd.f32 %v6467, %v6748
      %v6823 = vadd.f32 %v6468, %v6753
      %v6824 = vadd.f32 %v6469, %v6758
      %v6825 = vadd.f32 %v6470, %v6763
      %v6826 = vadd.f32 %v6471, %v6768
      %v6827 = vadd.f32 %v6472, %v6773
      %v6828 = vadd.f32 %v6473, %v6778
      %v6829 = vadd.f32 %v6474, %v6783
      %v6830 = vadd.f32 %v6475, %v6788
      %v6831 = vadd.f32 %v6476, %v6793
      %v6832 = vadd.f32 %v6477, %v6798
      %6833 = vst.msk [vmem:[#allocation4] sm:$0xff] %vm230, %v6801
      %6834 = vst.msk [vmem:[#allocation4 + $0x8] sm:$0xff] %vm230, %v6802
      %6835 = vst.msk [vmem:[#allocation4 + $0x10] sm:$0xff] %vm230, %v6803
      %6836 = vst.msk [vmem:[#allocation4 + $0x18] sm:$0xff] %vm230, %v6804
      %6837 = vst.msk [vmem:[#allocation4 + $0x20] sm:$0xff] %vm230, %v6805
      %6838 = vst.msk [vmem:[#allocation4 + $0x28] sm:$0xff] %vm230, %v6806
      %6839 = vst.msk [vmem:[#allocation4 + $0x30] sm:$0xff] %vm230, %v6807
      %6840 = vst.msk [vmem:[#allocation4 + $0x38] sm:$0xff] %vm230, %v6808
      %6841 = vst.msk [vmem:[#allocation4 + $0x40] sm:$0xff] %vm230, %v6809
      %6842 = vst.msk [vmem:[#allocation4 + $0x48] sm:$0xff] %vm230, %v6810
      %6843 = vst.msk [vmem:[#allocation4 + $0x50] sm:$0xff] %vm230, %v6811
      %6844 = vst.msk [vmem:[#allocation4 + $0x58] sm:$0xff] %vm230, %v6812
      %6845 = vst.msk [vmem:[#allocation4 + $0x60] sm:$0xff] %vm230, %v6813
      %6846 = vst.msk [vmem:[#allocation4 + $0x68] sm:$0xff] %vm230, %v6814
      %6847 = vst.msk [vmem:[#allocation4 + $0x70] sm:$0xff] %vm230, %v6815
      %6848 = vst.msk [vmem:[#allocation4 + $0x78] sm:$0xff] %vm230, %v6816
      %6849 = vst.msk [vmem:[#allocation4 + $0x80] sm:$0xff] %vm230, %v6817
      %6850 = vst.msk [vmem:[#allocation4 + $0x88] sm:$0xff] %vm230, %v6818
      %6851 = vst.msk [vmem:[#allocation4 + $0x90] sm:$0xff] %vm230, %v6819
      %6852 = vst.msk [vmem:[#allocation4 + $0x98] sm:$0xff] %vm230, %v6820
      %6853 = vst.msk [vmem:[#allocation4 + $0xa0] sm:$0xff] %vm230, %v6821
      %6854 = vst.msk [vmem:[#allocation4 + $0xa8] sm:$0xff] %vm230, %v6822
      %6855 = vst.msk [vmem:[#allocation4 + $0xb0] sm:$0xff] %vm230, %v6823
      %6856 = vst.msk [vmem:[#allocation4 + $0xb8] sm:$0xff] %vm230, %v6824
      %6857 = vst.msk [vmem:[#allocation4 + $0xc0] sm:$0xff] %vm230, %v6825
      %6858 = vst.msk [vmem:[#allocation4 + $0xc8] sm:$0xff] %vm230, %v6826
      %6859 = vst.msk [vmem:[#allocation4 + $0xd0] sm:$0xff] %vm230, %v6827
      %6860 = vst.msk [vmem:[#allocation4 + $0xd8] sm:$0xff] %vm230, %v6828
      %6861 = vst.msk [vmem:[#allocation4 + $0xe0] sm:$0xff] %vm230, %v6829
      %6862 = vst.msk [vmem:[#allocation4 + $0xe8] sm:$0xff] %vm230, %v6830
      %6863 = vst.msk [vmem:[#allocation4 + $0xf0] sm:$0xff] %vm230, %v6831
      %6864 = vst.msk [vmem:[#allocation4 + $0xf8] sm:$0xff] %vm230, %v6832
      %v6865 = vld [vmem:[%s4546 + $0x2] sm:$0xff]
      %v6866 = vld [vmem:[%s4546 + $0xa] sm:$0xff]
      %v6867 = vld [vmem:[%s4546 + $0x1a] sm:$0xff]
      %v6868 = vld [vmem:[%s4546 + $0x22] sm:$0xff]
      %v6869 = vld [vmem:[%s4546 + $0x32] sm:$0xff]
      %v6870 = vld [vmem:[%s4546 + $0x3a] sm:$0xff]
      %v6871 = vld [vmem:[%s4546 + $0x4a] sm:$0xff]
      %v6872 = vld [vmem:[%s4546 + $0x52] sm:$0xff]
      %v6873 = vld [vmem:[%s4546 + $0x62] sm:$0xff]
      %v6874 = vld [vmem:[%s4546 + $0x6a] sm:$0xff]
      %v6875 = vld [vmem:[%s4546 + $0x7a] sm:$0xff]
      %v6876 = vld [vmem:[%s4546 + $0x82] sm:$0xff]
      %v6877 = vld [vmem:[%s4546 + $0x92] sm:$0xff]
      %v6878 = vld [vmem:[%s4546 + $0x9a] sm:$0xff]
      %v6879 = vld [vmem:[%s4546 + $0xaa] sm:$0xff]
      %v6880 = vld [vmem:[%s4546 + $0xb2] sm:$0xff]
      %v6881 = vld [vmem:[%s4546 + $0xc2] sm:$0xff]
      %v6882 = vld [vmem:[%s4546 + $0xca] sm:$0xff]
      %v6883 = vld [vmem:[%s4546 + $0xda] sm:$0xff]
      %v6884 = vld [vmem:[%s4546 + $0xe2] sm:$0xff]
      %v6885 = vld [vmem:[%s4546 + $0xf2] sm:$0xff]
      %v6886 = vld [vmem:[%s4546 + $0xfa] sm:$0xff]
      %v6887 = vld [vmem:[%s4546 + $0x10a] sm:$0xff]
      %v6888 = vld [vmem:[%s4546 + $0x112] sm:$0xff]
      %v6889 = vld [vmem:[%s4546 + $0x122] sm:$0xff]
      %v6890 = vld [vmem:[%s4546 + $0x12a] sm:$0xff]
      %v6891 = vld [vmem:[%s4546 + $0x13a] sm:$0xff]
      %v6892 = vld [vmem:[%s4546 + $0x142] sm:$0xff]
      %v6893 = vld [vmem:[%s4546 + $0x152] sm:$0xff]
      %v6894 = vld [vmem:[%s4546 + $0x15a] sm:$0xff]
      %v6895 = vld [vmem:[%s4546 + $0x16a] sm:$0xff]
      %v6896 = vld [vmem:[%s4546 + $0x172] sm:$0xff]
      %v6897 = vld [vmem:[#allocation4] sm:$0xff]
      %v6898 = vld [vmem:[#allocation4 + $0x8] sm:$0xff]
      %v6899 = vld [vmem:[#allocation4 + $0x10] sm:$0xff]
      %v6900 = vld [vmem:[#allocation4 + $0x18] sm:$0xff]
      %v6901 = vld [vmem:[#allocation4 + $0x20] sm:$0xff]
      %v6902 = vld [vmem:[#allocation4 + $0x28] sm:$0xff]
      %v6903 = vld [vmem:[#allocation4 + $0x30] sm:$0xff]
      %v6904 = vld [vmem:[#allocation4 + $0x38] sm:$0xff]
      %v6905 = vld [vmem:[#allocation4 + $0x40] sm:$0xff]
      %v6906 = vld [vmem:[#allocation4 + $0x48] sm:$0xff]
      %v6907 = vld [vmem:[#allocation4 + $0x50] sm:$0xff]
      %v6908 = vld [vmem:[#allocation4 + $0x58] sm:$0xff]
      %v6909 = vld [vmem:[#allocation4 + $0x60] sm:$0xff]
      %v6910 = vld [vmem:[#allocation4 + $0x68] sm:$0xff]
      %v6911 = vld [vmem:[#allocation4 + $0x70] sm:$0xff]
      %v6912 = vld [vmem:[#allocation4 + $0x78] sm:$0xff]
      %v6913 = vld [vmem:[#allocation4 + $0x80] sm:$0xff]
      %v6914 = vld [vmem:[#allocation4 + $0x88] sm:$0xff]
      %v6915 = vld [vmem:[#allocation4 + $0x90] sm:$0xff]
      %v6916 = vld [vmem:[#allocation4 + $0x98] sm:$0xff]
      %v6917 = vld [vmem:[#allocation4 + $0xa0] sm:$0xff]
      %v6918 = vld [vmem:[#allocation4 + $0xa8] sm:$0xff]
      %v6919 = vld [vmem:[#allocation4 + $0xb0] sm:$0xff]
      %v6920 = vld [vmem:[#allocation4 + $0xb8] sm:$0xff]
      %v6921 = vld [vmem:[#allocation4 + $0xc0] sm:$0xff]
      %v6922 = vld [vmem:[#allocation4 + $0xc8] sm:$0xff]
      %v6923 = vld [vmem:[#allocation4 + $0xd0] sm:$0xff]
      %v6924 = vld [vmem:[#allocation4 + $0xd8] sm:$0xff]
      %v6925 = vld [vmem:[#allocation4 + $0xe0] sm:$0xff]
      %v6926 = vld [vmem:[#allocation4 + $0xe8] sm:$0xff]
      %v6927 = vld [vmem:[#allocation4 + $0xf0] sm:$0xff]
      %v6928 = vld [vmem:[#allocation4 + $0xf8] sm:$0xff]
      %s6929 = scalar_lea.vmem %s3, 40
      %v6930 = vld [vmem:[%s6929] sm:$0xff]
      %v6932 = vsel %vm230, %v6865, 0
      %v6935 = vsel %vm230, %v6866, 0
      %v6938 = vsel %vm230, %v6867, 0
      %v6941 = vsel %vm230, %v6868, 0
      %v6944 = vsel %vm230, %v6869, 0
      %v6947 = vsel %vm230, %v6870, 0
      %v6950 = vsel %vm230, %v6871, 0
      %v6953 = vsel %vm230, %v6872, 0
      %v6956 = vsel %vm230, %v6873, 0
      %v6959 = vsel %vm230, %v6874, 0
      %v6962 = vsel %vm230, %v6875, 0
      %v6965 = vsel %vm230, %v6876, 0
      %v6968 = vsel %vm230, %v6877, 0
      %v6971 = vsel %vm230, %v6878, 0
      %v6974 = vsel %vm230, %v6879, 0
      %v6977 = vsel %vm230, %v6880, 0
      %v6980 = vsel %vm230, %v6881, 0
      %v6983 = vsel %vm230, %v6882, 0
      %v6986 = vsel %vm230, %v6883, 0
      %v6989 = vsel %vm230, %v6884, 0
      %v6992 = vsel %vm230, %v6885, 0
      %v6995 = vsel %vm230, %v6886, 0
      %v6998 = vsel %vm230, %v6887, 0
      %v7001 = vsel %vm230, %v6888, 0
      %v7004 = vsel %vm230, %v6889, 0
      %v7007 = vsel %vm230, %v6890, 0
      %v7010 = vsel %vm230, %v6891, 0
      %v7013 = vsel %vm230, %v6892, 0
      %v7016 = vsel %vm230, %v6893, 0
      %v7019 = vsel %vm230, %v6894, 0
      %v7022 = vsel %vm230, %v6895, 0
      %v7025 = vsel %vm230, %v6896, 0
      %7027 = vmatprep.subr.mxu0 0.0
      %7028 = vmatpush1.msra.mxu0 %v6930
      %7029 = vmatprep.subr.mxu0 0.0
      %7030 = vmatpush1.msra.mxu0 0.0
      %7031 = vmatprep.subr.mxu0 0.0
      %7032 = vmatpush1.msra.mxu0 0.0
      %7033 = vmatprep.subr.mxu0 0.0
      %7034 = vmatpush1.msra.mxu0 0.0
      %7035 = vmatprep.subr.mxu0 0.0
      %7036 = vmatpush1.msra.mxu0 0.0
      %7037 = vmatprep.subr.mxu0 0.0
      %7038 = vmatpush1.msra.mxu0 0.0
      %7039 = vmatprep.subr.mxu0 0.0
      %7040 = vmatpush1.msra.mxu0 0.0
      %7041 = vmatprep.subr.mxu0 0.0
      %7042 = vmatpush1.msra.mxu0 0.0
      %7043 = vmatprep.subr.mxu0 0.0
      %7044 = vmatpush1.msra.mxu0 0.0
      %7045 = vmatprep.subr.mxu0 0.0
      %7046 = vmatpush1.msra.mxu0 0.0
      %7047 = vmatprep.subr.mxu0 0.0
      %7048 = vmatpush1.msra.mxu0 0.0
      %7049 = vmatprep.subr.mxu0 0.0
      %7050 = vmatpush1.msra.mxu0 0.0
      %7051 = vmatprep.subr.mxu0 0.0
      %7052 = vmatpush1.msra.mxu0 0.0
      %7053 = vmatprep.subr.mxu0 0.0
      %7054 = vmatpush1.msra.mxu0 0.0
      %7055 = vmatprep.subr.mxu0 0.0
      %7056 = vmatpush1.msra.mxu0 0.0
      %7057 = vmatprep.subr.mxu0 0.0
      %7058 = vmatpush1.msra.mxu0 0.0
      %7059 = vmatprep.subr.mxu0 0.0
      %7060 = vmatpush1.msra.mxu0 0.0
      %7061 = vmatprep.subr.mxu0 0.0
      %7062 = vmatpush1.msra.mxu0 0.0
      %7063 = vmatprep.subr.mxu0 0.0
      %7064 = vmatpush1.msra.mxu0 0.0
      %7065 = vmatprep.subr.mxu0 0.0
      %7066 = vmatpush1.msra.mxu0 0.0
      %7067 = vmatprep.subr.mxu0 0.0
      %7068 = vmatpush1.msra.mxu0 0.0
      %7069 = vmatprep.subr.mxu0 0.0
      %7070 = vmatpush1.msra.mxu0 0.0
      %7071 = vmatprep.subr.mxu0 0.0
      %7072 = vmatpush1.msra.mxu0 0.0
      %7073 = vmatprep.subr.mxu0 0.0
      %7074 = vmatpush1.msra.mxu0 0.0
      %7075 = vmatprep.subr.mxu0 0.0
      %7076 = vmatpush1.msra.mxu0 0.0
      %7077 = vmatprep.subr.mxu0 0.0
      %7078 = vmatpush1.msra.mxu0 0.0
      %7079 = vmatprep.subr.mxu0 0.0
      %7080 = vmatpush1.msra.mxu0 0.0
      %7081 = vmatprep.subr.mxu0 0.0
      %7082 = vmatpush1.msra.mxu0 0.0
      %7083 = vmatprep.subr.mxu0 0.0
      %7084 = vmatpush1.msra.mxu0 0.0
      %7085 = vmatprep.subr.mxu0 0.0
      %7086 = vmatpush1.msra.mxu0 0.0
      %7087 = vmatprep.subr.mxu0 0.0
      %7088 = vmatpush1.msra.mxu0 0.0
      %7089 = vmatprep.subr.mxu0 0.0
      %7090 = vmatpush1.msra.mxu0 0.0
      %7091 = vmatprep.mubr.f32.mxu0 0.0
      %7092 = vmatmul.mubr.f32.gmra.mrb[0].mxu0 %v6932
      %v7093 = vpop.f32.mrb[0].mxu0
      %v7094 = vadd.f32 0.0, %v7093
      %v7095 = vpop.f32.mrb[0].mxu0
      %7096 = vmatprep.mubr.f32.mxu0 0.0
      %7097 = vmatmul.mubr.f32.gmra.mrb[0].mxu0 %v6935
      %v7098 = vpop.f32.mrb[0].mxu0
      %v7099 = vadd.f32 0.0, %v7098
      %v7100 = vpop.f32.mrb[0].mxu0
      %7101 = vmatprep.mubr.f32.mxu0 0.0
      %7102 = vmatmul.mubr.f32.gmra.mrb[0].mxu0 %v6938
      %v7103 = vpop.f32.mrb[0].mxu0
      %v7104 = vadd.f32 0.0, %v7103
      %v7105 = vpop.f32.mrb[0].mxu0
      %7106 = vmatprep.mubr.f32.mxu0 0.0
      %7107 = vmatmul.mubr.f32.gmra.mrb[0].mxu0 %v6941
      %v7108 = vpop.f32.mrb[0].mxu0
      %v7109 = vadd.f32 0.0, %v7108
      %v7110 = vpop.f32.mrb[0].mxu0
      %7111 = vmatprep.mubr.f32.mxu0 0.0
      %7112 = vmatmul.mubr.f32.gmra.mrb[0].mxu0 %v6944
      %v7113 = vpop.f32.mrb[0].mxu0
      %v7114 = vadd.f32 0.0, %v7113
      %v7115 = vpop.f32.mrb[0].mxu0
      %7116 = vmatprep.mubr.f32.mxu0 0.0
      %7117 = vmatmul.mubr.f32.gmra.mrb[0].mxu0 %v6947
      %v7118 = vpop.f32.mrb[0].mxu0
      %v7119 = vadd.f32 0.0, %v7118
      %v7120 = vpop.f32.mrb[0].mxu0
      %7121 = vmatprep.mubr.f32.mxu0 0.0
      %7122 = vmatmul.mubr.f32.gmra.mrb[0].mxu0 %v6950
      %v7123 = vpop.f32.mrb[0].mxu0
      %v7124 = vadd.f32 0.0, %v7123
      %v7125 = vpop.f32.mrb[0].mxu0
      %7126 = vmatprep.mubr.f32.mxu0 0.0
      %7127 = vmatmul.mubr.f32.gmra.mrb[0].mxu0 %v6953
      %v7128 = vpop.f32.mrb[0].mxu0
      %v7129 = vadd.f32 0.0, %v7128
      %v7130 = vpop.f32.mrb[0].mxu0
      %7131 = vmatprep.mubr.f32.mxu0 0.0
      %7132 = vmatmul.mubr.f32.gmra.mrb[0].mxu0 %v6956
      %v7133 = vpop.f32.mrb[0].mxu0
      %v7134 = vadd.f32 0.0, %v7133
      %v7135 = vpop.f32.mrb[0].mxu0
      %7136 = vmatprep.mubr.f32.mxu0 0.0
      %7137 = vmatmul.mubr.f32.gmra.mrb[0].mxu0 %v6959
      %v7138 = vpop.f32.mrb[0].mxu0
      %v7139 = vadd.f32 0.0, %v7138
      %v7140 = vpop.f32.mrb[0].mxu0
      %7141 = vmatprep.mubr.f32.mxu0 0.0
      %7142 = vmatmul.mubr.f32.gmra.mrb[0].mxu0 %v6962
      %v7143 = vpop.f32.mrb[0].mxu0
      %v7144 = vadd.f32 0.0, %v7143
      %v7145 = vpop.f32.mrb[0].mxu0
      %7146 = vmatprep.mubr.f32.mxu0 0.0
      %7147 = vmatmul.mubr.f32.gmra.mrb[0].mxu0 %v6965
      %v7148 = vpop.f32.mrb[0].mxu0
      %v7149 = vadd.f32 0.0, %v7148
      %v7150 = vpop.f32.mrb[0].mxu0
      %7151 = vmatprep.mubr.f32.mxu0 0.0
      %7152 = vmatmul.mubr.f32.gmra.mrb[0].mxu0 %v6968
      %v7153 = vpop.f32.mrb[0].mxu0
      %v7154 = vadd.f32 0.0, %v7153
      %v7155 = vpop.f32.mrb[0].mxu0
      %7156 = vmatprep.mubr.f32.mxu0 0.0
      %7157 = vmatmul.mubr.f32.gmra.mrb[0].mxu0 %v6971
      %v7158 = vpop.f32.mrb[0].mxu0
      %v7159 = vadd.f32 0.0, %v7158
      %v7160 = vpop.f32.mrb[0].mxu0
      %7161 = vmatprep.mubr.f32.mxu0 0.0
      %7162 = vmatmul.mubr.f32.gmra.mrb[0].mxu0 %v6974
      %v7163 = vpop.f32.mrb[0].mxu0
      %v7164 = vadd.f32 0.0, %v7163
      %v7165 = vpop.f32.mrb[0].mxu0
      %7166 = vmatprep.mubr.f32.mxu0 0.0
      %7167 = vmatmul.mubr.f32.gmra.mrb[0].mxu0 %v6977
      %v7168 = vpop.f32.mrb[0].mxu0
      %v7169 = vadd.f32 0.0, %v7168
      %v7170 = vpop.f32.mrb[0].mxu0
      %7171 = vmatprep.mubr.f32.mxu0 0.0
      %7172 = vmatmul.mubr.f32.gmra.mrb[0].mxu0 %v6980
      %v7173 = vpop.f32.mrb[0].mxu0
      %v7174 = vadd.f32 0.0, %v7173
      %v7175 = vpop.f32.mrb[0].mxu0
      %7176 = vmatprep.mubr.f32.mxu0 0.0
      %7177 = vmatmul.mubr.f32.gmra.mrb[0].mxu0 %v6983
      %v7178 = vpop.f32.mrb[0].mxu0
      %v7179 = vadd.f32 0.0, %v7178
      %v7180 = vpop.f32.mrb[0].mxu0
      %7181 = vmatprep.mubr.f32.mxu0 0.0
      %7182 = vmatmul.mubr.f32.gmra.mrb[0].mxu0 %v6986
      %v7183 = vpop.f32.mrb[0].mxu0
      %v7184 = vadd.f32 0.0, %v7183
      %v7185 = vpop.f32.mrb[0].mxu0
      %7186 = vmatprep.mubr.f32.mxu0 0.0
      %7187 = vmatmul.mubr.f32.gmra.mrb[0].mxu0 %v6989
      %v7188 = vpop.f32.mrb[0].mxu0
      %v7189 = vadd.f32 0.0, %v7188
      %v7190 = vpop.f32.mrb[0].mxu0
      %7191 = vmatprep.mubr.f32.mxu0 0.0
      %7192 = vmatmul.mubr.f32.gmra.mrb[0].mxu0 %v6992
      %v7193 = vpop.f32.mrb[0].mxu0
      %v7194 = vadd.f32 0.0, %v7193
      %v7195 = vpop.f32.mrb[0].mxu0
      %7196 = vmatprep.mubr.f32.mxu0 0.0
      %7197 = vmatmul.mubr.f32.gmra.mrb[0].mxu0 %v6995
      %v7198 = vpop.f32.mrb[0].mxu0
      %v7199 = vadd.f32 0.0, %v7198
      %v7200 = vpop.f32.mrb[0].mxu0
      %7201 = vmatprep.mubr.f32.mxu0 0.0
      %7202 = vmatmul.mubr.f32.gmra.mrb[0].mxu0 %v6998
      %v7203 = vpop.f32.mrb[0].mxu0
      %v7204 = vadd.f32 0.0, %v7203
      %v7205 = vpop.f32.mrb[0].mxu0
      %7206 = vmatprep.mubr.f32.mxu0 0.0
      %7207 = vmatmul.mubr.f32.gmra.mrb[0].mxu0 %v7001
      %v7208 = vpop.f32.mrb[0].mxu0
      %v7209 = vadd.f32 0.0, %v7208
      %v7210 = vpop.f32.mrb[0].mxu0
      %7211 = vmatprep.mubr.f32.mxu0 0.0
      %7212 = vmatmul.mubr.f32.gmra.mrb[0].mxu0 %v7004
      %v7213 = vpop.f32.mrb[0].mxu0
      %v7214 = vadd.f32 0.0, %v7213
      %v7215 = vpop.f32.mrb[0].mxu0
      %7216 = vmatprep.mubr.f32.mxu0 0.0
      %7217 = vmatmul.mubr.f32.gmra.mrb[0].mxu0 %v7007
      %v7218 = vpop.f32.mrb[0].mxu0
      %v7219 = vadd.f32 0.0, %v7218
      %v7220 = vpop.f32.mrb[0].mxu0
      %7221 = vmatprep.mubr.f32.mxu0 0.0
      %7222 = vmatmul.mubr.f32.gmra.mrb[0].mxu0 %v7010
      %v7223 = vpop.f32.mrb[0].mxu0
      %v7224 = vadd.f32 0.0, %v7223
      %v7225 = vpop.f32.mrb[0].mxu0
      %7226 = vmatprep.mubr.f32.mxu0 0.0
      %7227 = vmatmul.mubr.f32.gmra.mrb[0].mxu0 %v7013
      %v7228 = vpop.f32.mrb[0].mxu0
      %v7229 = vadd.f32 0.0, %v7228
      %v7230 = vpop.f32.mrb[0].mxu0
      %7231 = vmatprep.mubr.f32.mxu0 0.0
      %7232 = vmatmul.mubr.f32.gmra.mrb[0].mxu0 %v7016
      %v7233 = vpop.f32.mrb[0].mxu0
      %v7234 = vadd.f32 0.0, %v7233
      %v7235 = vpop.f32.mrb[0].mxu0
      %7236 = vmatprep.mubr.f32.mxu0 0.0
      %7237 = vmatmul.mubr.f32.gmra.mrb[0].mxu0 %v7019
      %v7238 = vpop.f32.mrb[0].mxu0
      %v7239 = vadd.f32 0.0, %v7238
      %v7240 = vpop.f32.mrb[0].mxu0
      %7241 = vmatprep.mubr.f32.mxu0 0.0
      %7242 = vmatmul.mubr.f32.gmra.mrb[0].mxu0 %v7022
      %v7243 = vpop.f32.mrb[0].mxu0
      %v7244 = vadd.f32 0.0, %v7243
      %v7245 = vpop.f32.mrb[0].mxu0
      %7246 = vmatprep.mubr.f32.mxu0 0.0
      %7247 = vmatmul.mubr.f32.gmra.mrb[0].mxu0 %v7025
      %v7248 = vpop.f32.mrb[0].mxu0
      %v7249 = vadd.f32 0.0, %v7248
      %v7250 = vpop.f32.mrb[0].mxu0
      %7251 = vdwg.mxu0
      %v7252 = vadd.f32 %v6897, %v7094
      %v7253 = vadd.f32 %v6898, %v7099
      %v7254 = vadd.f32 %v6899, %v7104
      %v7255 = vadd.f32 %v6900, %v7109
      %v7256 = vadd.f32 %v6901, %v7114
      %v7257 = vadd.f32 %v6902, %v7119
      %v7258 = vadd.f32 %v6903, %v7124
      %v7259 = vadd.f32 %v6904, %v7129
      %v7260 = vadd.f32 %v6905, %v7134
      %v7261 = vadd.f32 %v6906, %v7139
      %v7262 = vadd.f32 %v6907, %v7144
      %v7263 = vadd.f32 %v6908, %v7149
      %v7264 = vadd.f32 %v6909, %v7154
      %v7265 = vadd.f32 %v6910, %v7159
      %v7266 = vadd.f32 %v6911, %v7164
      %v7267 = vadd.f32 %v6912, %v7169
      %v7268 = vadd.f32 %v6913, %v7174
      %v7269 = vadd.f32 %v6914, %v7179
      %v7270 = vadd.f32 %v6915, %v7184
      %v7271 = vadd.f32 %v6916, %v7189
      %v7272 = vadd.f32 %v6917, %v7194
      %v7273 = vadd.f32 %v6918, %v7199
      %v7274 = vadd.f32 %v6919, %v7204
      %v7275 = vadd.f32 %v6920, %v7209
      %v7276 = vadd.f32 %v6921, %v7214
      %v7277 = vadd.f32 %v6922, %v7219
      %v7278 = vadd.f32 %v6923, %v7224
      %v7279 = vadd.f32 %v6924, %v7229
      %v7280 = vadd.f32 %v6925, %v7234
      %v7281 = vadd.f32 %v6926, %v7239
      %v7282 = vadd.f32 %v6927, %v7244
      %v7283 = vadd.f32 %v6928, %v7249
      %7284 = vst.msk [vmem:[#allocation4] sm:$0xff] %vm230, %v7252
      %7285 = vst.msk [vmem:[#allocation4 + $0x8] sm:$0xff] %vm230, %v7253
      %7286 = vst.msk [vmem:[#allocation4 + $0x10] sm:$0xff] %vm230, %v7254
      %7287 = vst.msk [vmem:[#allocation4 + $0x18] sm:$0xff] %vm230, %v7255
      %7288 = vst.msk [vmem:[#allocation4 + $0x20] sm:$0xff] %vm230, %v7256
      %7289 = vst.msk [vmem:[#allocation4 + $0x28] sm:$0xff] %vm230, %v7257
      %7290 = vst.msk [vmem:[#allocation4 + $0x30] sm:$0xff] %vm230, %v7258
      %7291 = vst.msk [vmem:[#allocation4 + $0x38] sm:$0xff] %vm230, %v7259
      %7292 = vst.msk [vmem:[#allocation4 + $0x40] sm:$0xff] %vm230, %v7260
      %7293 = vst.msk [vmem:[#allocation4 + $0x48] sm:$0xff] %vm230, %v7261
      %7294 = vst.msk [vmem:[#allocation4 + $0x50] sm:$0xff] %vm230, %v7262
      %7295 = vst.msk [vmem:[#allocation4 + $0x58] sm:$0xff] %vm230, %v7263
      %7296 = vst.msk [vmem:[#allocation4 + $0x60] sm:$0xff] %vm230, %v7264
      %7297 = vst.msk [vmem:[#allocation4 + $0x68] sm:$0xff] %vm230, %v7265
      %7298 = vst.msk [vmem:[#allocation4 + $0x70] sm:$0xff] %vm230, %v7266
      %7299 = vst.msk [vmem:[#allocation4 + $0x78] sm:$0xff] %vm230, %v7267
      %7300 = vst.msk [vmem:[#allocation4 + $0x80] sm:$0xff] %vm230, %v7268
      %7301 = vst.msk [vmem:[#allocation4 + $0x88] sm:$0xff] %vm230, %v7269
      %7302 = vst.msk [vmem:[#allocation4 + $0x90] sm:$0xff] %vm230, %v7270
      %7303 = vst.msk [vmem:[#allocation4 + $0x98] sm:$0xff] %vm230, %v7271
      %7304 = vst.msk [vmem:[#allocation4 + $0xa0] sm:$0xff] %vm230, %v7272
      %7305 = vst.msk [vmem:[#allocation4 + $0xa8] sm:$0xff] %vm230, %v7273
      %7306 = vst.msk [vmem:[#allocation4 + $0xb0] sm:$0xff] %vm230, %v7274
      %7307 = vst.msk [vmem:[#allocation4 + $0xb8] sm:$0xff] %vm230, %v7275
      %7308 = vst.msk [vmem:[#allocation4 + $0xc0] sm:$0xff] %vm230, %v7276
      %7309 = vst.msk [vmem:[#allocation4 + $0xc8] sm:$0xff] %vm230, %v7277
      %7310 = vst.msk [vmem:[#allocation4 + $0xd0] sm:$0xff] %vm230, %v7278
      %7311 = vst.msk [vmem:[#allocation4 + $0xd8] sm:$0xff] %vm230, %v7279
      %7312 = vst.msk [vmem:[#allocation4 + $0xe0] sm:$0xff] %vm230, %v7280
      %7313 = vst.msk [vmem:[#allocation4 + $0xe8] sm:$0xff] %vm230, %v7281
      %7314 = vst.msk [vmem:[#allocation4 + $0xf0] sm:$0xff] %vm230, %v7282
      %7315 = vst.msk [vmem:[#allocation4 + $0xf8] sm:$0xff] %vm230, %v7283
      %s7316 = scalar_lea.vmem [#allocation3], 48
      %v7317 = vld [vmem:[%s7316] sm:$0xff]
      %v7318 = vld [vmem:[%s7316 + $0x8] sm:$0xff]
      %v7319 = vld [vmem:[%s7316 + $0x18] sm:$0xff]
      %v7320 = vld [vmem:[%s7316 + $0x20] sm:$0xff]
      %v7321 = vld [vmem:[%s7316 + $0x30] sm:$0xff]
      %v7322 = vld [vmem:[%s7316 + $0x38] sm:$0xff]
      %v7323 = vld [vmem:[%s7316 + $0x48] sm:$0xff]
      %v7324 = vld [vmem:[%s7316 + $0x50] sm:$0xff]
      %v7325 = vld [vmem:[%s7316 + $0x60] sm:$0xff]
      %v7326 = vld [vmem:[%s7316 + $0x68] sm:$0xff]
      %v7327 = vld [vmem:[%s7316 + $0x78] sm:$0xff]
      %v7328 = vld [vmem:[%s7316 + $0x80] sm:$0xff]
      %v7329 = vld [vmem:[%s7316 + $0x90] sm:$0xff]
      %v7330 = vld [vmem:[%s7316 + $0x98] sm:$0xff]
      %v7331 = vld [vmem:[%s7316 + $0xa8] sm:$0xff]
      %v7332 = vld [vmem:[%s7316 + $0xb0] sm:$0xff]
      %v7333 = vld [vmem:[%s7316 + $0xc0] sm:$0xff]
      %v7334 = vld [vmem:[%s7316 + $0xc8] sm:$0xff]
      %v7335 = vld [vmem:[%s7316 + $0xd8] sm:$0xff]
      %v7336 = vld [vmem:[%s7316 + $0xe0] sm:$0xff]
      %v7337 = vld [vmem:[%s7316 + $0xf0] sm:$0xff]
      %v7338 = vld [vmem:[%s7316 + $0xf8] sm:$0xff]
      %v7339 = vld [vmem:[%s7316 + $0x108] sm:$0xff]
      %v7340 = vld [vmem:[%s7316 + $0x110] sm:$0xff]
      %v7341 = vld [vmem:[%s7316 + $0x120] sm:$0xff]
      %v7342 = vld [vmem:[%s7316 + $0x128] sm:$0xff]
      %v7343 = vld [vmem:[%s7316 + $0x138] sm:$0xff]
      %v7344 = vld [vmem:[%s7316 + $0x140] sm:$0xff]
      %v7345 = vld [vmem:[%s7316 + $0x150] sm:$0xff]
      %v7346 = vld [vmem:[%s7316 + $0x158] sm:$0xff]
      %v7347 = vld [vmem:[%s7316 + $0x168] sm:$0xff]
      %v7348 = vld [vmem:[%s7316 + $0x170] sm:$0xff]
      %v7349 = vld [vmem:[#allocation4] sm:$0xff]
      %v7350 = vld [vmem:[#allocation4 + $0x8] sm:$0xff]
      %v7351 = vld [vmem:[#allocation4 + $0x10] sm:$0xff]
      %v7352 = vld [vmem:[#allocation4 + $0x18] sm:$0xff]
      %v7353 = vld [vmem:[#allocation4 + $0x20] sm:$0xff]
      %v7354 = vld [vmem:[#allocation4 + $0x28] sm:$0xff]
      %v7355 = vld [vmem:[#allocation4 + $0x30] sm:$0xff]
      %v7356 = vld [vmem:[#allocation4 + $0x38] sm:$0xff]
      %v7357 = vld [vmem:[#allocation4 + $0x40] sm:$0xff]
      %v7358 = vld [vmem:[#allocation4 + $0x48] sm:$0xff]
      %v7359 = vld [vmem:[#allocation4 + $0x50] sm:$0xff]
      %v7360 = vld [vmem:[#allocation4 + $0x58] sm:$0xff]
      %v7361 = vld [vmem:[#allocation4 + $0x60] sm:$0xff]
      %v7362 = vld [vmem:[#allocation4 + $0x68] sm:$0xff]
      %v7363 = vld [vmem:[#allocation4 + $0x70] sm:$0xff]
      %v7364 = vld [vmem:[#allocation4 + $0x78] sm:$0xff]
      %v7365 = vld [vmem:[#allocation4 + $0x80] sm:$0xff]
      %v7366 = vld [vmem:[#allocation4 + $0x88] sm:$0xff]
      %v7367 = vld [vmem:[#allocation4 + $0x90] sm:$0xff]
      %v7368 = vld [vmem:[#allocation4 + $0x98] sm:$0xff]
      %v7369 = vld [vmem:[#allocation4 + $0xa0] sm:$0xff]
      %v7370 = vld [vmem:[#allocation4 + $0xa8] sm:$0xff]
      %v7371 = vld [vmem:[#allocation4 + $0xb0] sm:$0xff]
      %v7372 = vld [vmem:[#allocation4 + $0xb8] sm:$0xff]
      %v7373 = vld [vmem:[#allocation4 + $0xc0] sm:$0xff]
      %v7374 = vld [vmem:[#allocation4 + $0xc8] sm:$0xff]
      %v7375 = vld [vmem:[#allocation4 + $0xd0] sm:$0xff]
      %v7376 = vld [vmem:[#allocation4 + $0xd8] sm:$0xff]
      %v7377 = vld [vmem:[#allocation4 + $0xe0] sm:$0xff]
      %v7378 = vld [vmem:[#allocation4 + $0xe8] sm:$0xff]
      %v7379 = vld [vmem:[#allocation4 + $0xf0] sm:$0xff]
      %v7380 = vld [vmem:[#allocation4 + $0xf8] sm:$0xff]
      %s7381 = scalar_lea.vmem %s3, 48
      %v7382 = vld [vmem:[%s7381] sm:$0xff]
      %v7384 = vsel %vm230, %v7317, 0
      %v7387 = vsel %vm230, %v7318, 0
      %v7390 = vsel %vm230, %v7319, 0
      %v7393 = vsel %vm230, %v7320, 0
      %v7396 = vsel %vm230, %v7321, 0
      %v7399 = vsel %vm230, %v7322, 0
      %v7402 = vsel %vm230, %v7323, 0
      %v7405 = vsel %vm230, %v7324, 0
      %v7408 = vsel %vm230, %v7325, 0
      %v7411 = vsel %vm230, %v7326, 0
      %v7414 = vsel %vm230, %v7327, 0
      %v7417 = vsel %vm230, %v7328, 0
      %v7420 = vsel %vm230, %v7329, 0
      %v7423 = vsel %vm230, %v7330, 0
      %v7426 = vsel %vm230, %v7331, 0
      %v7429 = vsel %vm230, %v7332, 0
      %v7432 = vsel %vm230, %v7333, 0
      %v7435 = vsel %vm230, %v7334, 0
      %v7438 = vsel %vm230, %v7335, 0
      %v7441 = vsel %vm230, %v7336, 0
      %v7444 = vsel %vm230, %v7337, 0
      %v7447 = vsel %vm230, %v7338, 0
      %v7450 = vsel %vm230, %v7339, 0
      %v7453 = vsel %vm230, %v7340, 0
      %v7456 = vsel %vm230, %v7341, 0
      %v7459 = vsel %vm230, %v7342, 0
      %v7462 = vsel %vm230, %v7343, 0
      %v7465 = vsel %vm230, %v7344, 0
      %v7468 = vsel %vm230, %v7345, 0
      %v7471 = vsel %vm230, %v7346, 0
      %v7474 = vsel %vm230, %v7347, 0
      %v7477 = vsel %vm230, %v7348, 0
      %7479 = vmatprep.subr.mxu0 0.0
      %7480 = vmatpush1.msra.mxu0 %v7382
      %7481 = vmatprep.subr.mxu0 0.0
      %7482 = vmatpush1.msra.mxu0 0.0
      %7483 = vmatprep.subr.mxu0 0.0
      %7484 = vmatpush1.msra.mxu0 0.0
      %7485 = vmatprep.subr.mxu0 0.0
      %7486 = vmatpush1.msra.mxu0 0.0
      %7487 = vmatprep.subr.mxu0 0.0
      %7488 = vmatpush1.msra.mxu0 0.0
      %7489 = vmatprep.subr.mxu0 0.0
      %7490 = vmatpush1.msra.mxu0 0.0
      %7491 = vmatprep.subr.mxu0 0.0
      %7492 = vmatpush1.msra.mxu0 0.0
      %7493 = vmatprep.subr.mxu0 0.0
      %7494 = vmatpush1.msra.mxu0 0.0
      %7495 = vmatprep.subr.mxu0 0.0
      %7496 = vmatpush1.msra.mxu0 0.0
      %7497 = vmatprep.subr.mxu0 0.0
      %7498 = vmatpush1.msra.mxu0 0.0
      %7499 = vmatprep.subr.mxu0 0.0
      %7500 = vmatpush1.msra.mxu0 0.0
      %7501 = vmatprep.subr.mxu0 0.0
      %7502 = vmatpush1.msra.mxu0 0.0
      %7503 = vmatprep.subr.mxu0 0.0
      %7504 = vmatpush1.msra.mxu0 0.0
      %7505 = vmatprep.subr.mxu0 0.0
      %7506 = vmatpush1.msra.mxu0 0.0
      %7507 = vmatprep.subr.mxu0 0.0
      %7508 = vmatpush1.msra.mxu0 0.0
      %7509 = vmatprep.subr.mxu0 0.0
      %7510 = vmatpush1.msra.mxu0 0.0
      %7511 = vmatprep.subr.mxu0 0.0
      %7512 = vmatpush1.msra.mxu0 0.0
      %7513 = vmatprep.subr.mxu0 0.0
      %7514 = vmatpush1.msra.mxu0 0.0
      %7515 = vmatprep.subr.mxu0 0.0
      %7516 = vmatpush1.msra.mxu0 0.0
      %7517 = vmatprep.subr.mxu0 0.0
      %7518 = vmatpush1.msra.mxu0 0.0
      %7519 = vmatprep.subr.mxu0 0.0
      %7520 = vmatpush1.msra.mxu0 0.0
      %7521 = vmatprep.subr.mxu0 0.0
      %7522 = vmatpush1.msra.mxu0 0.0
      %7523 = vmatprep.subr.mxu0 0.0
      %7524 = vmatpush1.msra.mxu0 0.0
      %7525 = vmatprep.subr.mxu0 0.0
      %7526 = vmatpush1.msra.mxu0 0.0
      %7527 = vmatprep.subr.mxu0 0.0
      %7528 = vmatpush1.msra.mxu0 0.0
      %7529 = vmatprep.subr.mxu0 0.0
      %7530 = vmatpush1.msra.mxu0 0.0
      %7531 = vmatprep.subr.mxu0 0.0
      %7532 = vmatpush1.msra.mxu0 0.0
      %7533 = vmatprep.subr.mxu0 0.0
      %7534 = vmatpush1.msra.mxu0 0.0
      %7535 = vmatprep.subr.mxu0 0.0
      %7536 = vmatpush1.msra.mxu0 0.0
      %7537 = vmatprep.subr.mxu0 0.0
      %7538 = vmatpush1.msra.mxu0 0.0
      %7539 = vmatprep.subr.mxu0 0.0
      %7540 = vmatpush1.msra.mxu0 0.0
      %7541 = vmatprep.subr.mxu0 0.0
      %7542 = vmatpush1.msra.mxu0 0.0
      %7543 = vmatprep.mubr.f32.mxu0 0.0
      %7544 = vmatmul.mubr.f32.gmra.mrb[0].mxu0 %v7384
      %v7545 = vpop.f32.mrb[0].mxu0
      %v7546 = vadd.f32 0.0, %v7545
      %v7547 = vpop.f32.mrb[0].mxu0
      %7548 = vmatprep.mubr.f32.mxu0 0.0
      %7549 = vmatmul.mubr.f32.gmra.mrb[0].mxu0 %v7387
      %v7550 = vpop.f32.mrb[0].mxu0
      %v7551 = vadd.f32 0.0, %v7550
      %v7552 = vpop.f32.mrb[0].mxu0
      %7553 = vmatprep.mubr.f32.mxu0 0.0
      %7554 = vmatmul.mubr.f32.gmra.mrb[0].mxu0 %v7390
      %v7555 = vpop.f32.mrb[0].mxu0
      %v7556 = vadd.f32 0.0, %v7555
      %v7557 = vpop.f32.mrb[0].mxu0
      %7558 = vmatprep.mubr.f32.mxu0 0.0
      %7559 = vmatmul.mubr.f32.gmra.mrb[0].mxu0 %v7393
      %v7560 = vpop.f32.mrb[0].mxu0
      %v7561 = vadd.f32 0.0, %v7560
      %v7562 = vpop.f32.mrb[0].mxu0
      %7563 = vmatprep.mubr.f32.mxu0 0.0
      %7564 = vmatmul.mubr.f32.gmra.mrb[0].mxu0 %v7396
      %v7565 = vpop.f32.mrb[0].mxu0
      %v7566 = vadd.f32 0.0, %v7565
      %v7567 = vpop.f32.mrb[0].mxu0
      %7568 = vmatprep.mubr.f32.mxu0 0.0
      %7569 = vmatmul.mubr.f32.gmra.mrb[0].mxu0 %v7399
      %v7570 = vpop.f32.mrb[0].mxu0
      %v7571 = vadd.f32 0.0, %v7570
      %v7572 = vpop.f32.mrb[0].mxu0
      %7573 = vmatprep.mubr.f32.mxu0 0.0
      %7574 = vmatmul.mubr.f32.gmra.mrb[0].mxu0 %v7402
      %v7575 = vpop.f32.mrb[0].mxu0
      %v7576 = vadd.f32 0.0, %v7575
      %v7577 = vpop.f32.mrb[0].mxu0
      %7578 = vmatprep.mubr.f32.mxu0 0.0
      %7579 = vmatmul.mubr.f32.gmra.mrb[0].mxu0 %v7405
      %v7580 = vpop.f32.mrb[0].mxu0
      %v7581 = vadd.f32 0.0, %v7580
      %v7582 = vpop.f32.mrb[0].mxu0
      %7583 = vmatprep.mubr.f32.mxu0 0.0
      %7584 = vmatmul.mubr.f32.gmra.mrb[0].mxu0 %v7408
      %v7585 = vpop.f32.mrb[0].mxu0
      %v7586 = vadd.f32 0.0, %v7585
      %v7587 = vpop.f32.mrb[0].mxu0
      %7588 = vmatprep.mubr.f32.mxu0 0.0
      %7589 = vmatmul.mubr.f32.gmra.mrb[0].mxu0 %v7411
      %v7590 = vpop.f32.mrb[0].mxu0
      %v7591 = vadd.f32 0.0, %v7590
      %v7592 = vpop.f32.mrb[0].mxu0
      %7593 = vmatprep.mubr.f32.mxu0 0.0
      %7594 = vmatmul.mubr.f32.gmra.mrb[0].mxu0 %v7414
      %v7595 = vpop.f32.mrb[0].mxu0
      %v7596 = vadd.f32 0.0, %v7595
      %v7597 = vpop.f32.mrb[0].mxu0
      %7598 = vmatprep.mubr.f32.mxu0 0.0
      %7599 = vmatmul.mubr.f32.gmra.mrb[0].mxu0 %v7417
      %v7600 = vpop.f32.mrb[0].mxu0
      %v7601 = vadd.f32 0.0, %v7600
      %v7602 = vpop.f32.mrb[0].mxu0
      %7603 = vmatprep.mubr.f32.mxu0 0.0
      %7604 = vmatmul.mubr.f32.gmra.mrb[0].mxu0 %v7420
      %v7605 = vpop.f32.mrb[0].mxu0
      %v7606 = vadd.f32 0.0, %v7605
      %v7607 = vpop.f32.mrb[0].mxu0
      %7608 = vmatprep.mubr.f32.mxu0 0.0
      %7609 = vmatmul.mubr.f32.gmra.mrb[0].mxu0 %v7423
      %v7610 = vpop.f32.mrb[0].mxu0
      %v7611 = vadd.f32 0.0, %v7610
      %v7612 = vpop.f32.mrb[0].mxu0
      %7613 = vmatprep.mubr.f32.mxu0 0.0
      %7614 = vmatmul.mubr.f32.gmra.mrb[0].mxu0 %v7426
      %v7615 = vpop.f32.mrb[0].mxu0
      %v7616 = vadd.f32 0.0, %v7615
      %v7617 = vpop.f32.mrb[0].mxu0
      %7618 = vmatprep.mubr.f32.mxu0 0.0
      %7619 = vmatmul.mubr.f32.gmra.mrb[0].mxu0 %v7429
      %v7620 = vpop.f32.mrb[0].mxu0
      %v7621 = vadd.f32 0.0, %v7620
      %v7622 = vpop.f32.mrb[0].mxu0
      %7623 = vmatprep.mubr.f32.mxu0 0.0
      %7624 = vmatmul.mubr.f32.gmra.mrb[0].mxu0 %v7432
      %v7625 = vpop.f32.mrb[0].mxu0
      %v7626 = vadd.f32 0.0, %v7625
      %v7627 = vpop.f32.mrb[0].mxu0
      %7628 = vmatprep.mubr.f32.mxu0 0.0
      %7629 = vmatmul.mubr.f32.gmra.mrb[0].mxu0 %v7435
      %v7630 = vpop.f32.mrb[0].mxu0
      %v7631 = vadd.f32 0.0, %v7630
      %v7632 = vpop.f32.mrb[0].mxu0
      %7633 = vmatprep.mubr.f32.mxu0 0.0
      %7634 = vmatmul.mubr.f32.gmra.mrb[0].mxu0 %v7438
      %v7635 = vpop.f32.mrb[0].mxu0
      %v7636 = vadd.f32 0.0, %v7635
      %v7637 = vpop.f32.mrb[0].mxu0
      %7638 = vmatprep.mubr.f32.mxu0 0.0
      %7639 = vmatmul.mubr.f32.gmra.mrb[0].mxu0 %v7441
      %v7640 = vpop.f32.mrb[0].mxu0
      %v7641 = vadd.f32 0.0, %v7640
      %v7642 = vpop.f32.mrb[0].mxu0
      %7643 = vmatprep.mubr.f32.mxu0 0.0
      %7644 = vmatmul.mubr.f32.gmra.mrb[0].mxu0 %v7444
      %v7645 = vpop.f32.mrb[0].mxu0
      %v7646 = vadd.f32 0.0, %v7645
      %v7647 = vpop.f32.mrb[0].mxu0
      %7648 = vmatprep.mubr.f32.mxu0 0.0
      %7649 = vmatmul.mubr.f32.gmra.mrb[0].mxu0 %v7447
      %v7650 = vpop.f32.mrb[0].mxu0
      %v7651 = vadd.f32 0.0, %v7650
      %v7652 = vpop.f32.mrb[0].mxu0
      %7653 = vmatprep.mubr.f32.mxu0 0.0
      %7654 = vmatmul.mubr.f32.gmra.mrb[0].mxu0 %v7450
      %v7655 = vpop.f32.mrb[0].mxu0
      %v7656 = vadd.f32 0.0, %v7655
      %v7657 = vpop.f32.mrb[0].mxu0
      %7658 = vmatprep.mubr.f32.mxu0 0.0
      %7659 = vmatmul.mubr.f32.gmra.mrb[0].mxu0 %v7453
      %v7660 = vpop.f32.mrb[0].mxu0
      %v7661 = vadd.f32 0.0, %v7660
      %v7662 = vpop.f32.mrb[0].mxu0
      %7663 = vmatprep.mubr.f32.mxu0 0.0
      %7664 = vmatmul.mubr.f32.gmra.mrb[0].mxu0 %v7456
      %v7665 = vpop.f32.mrb[0].mxu0
      %v7666 = vadd.f32 0.0, %v7665
      %v7667 = vpop.f32.mrb[0].mxu0
      %7668 = vmatprep.mubr.f32.mxu0 0.0
      %7669 = vmatmul.mubr.f32.gmra.mrb[0].mxu0 %v7459
      %v7670 = vpop.f32.mrb[0].mxu0
      %v7671 = vadd.f32 0.0, %v7670
      %v7672 = vpop.f32.mrb[0].mxu0
      %7673 = vmatprep.mubr.f32.mxu0 0.0
      %7674 = vmatmul.mubr.f32.gmra.mrb[0].mxu0 %v7462
      %v7675 = vpop.f32.mrb[0].mxu0
      %v7676 = vadd.f32 0.0, %v7675
      %v7677 = vpop.f32.mrb[0].mxu0
      %7678 = vmatprep.mubr.f32.mxu0 0.0
      %7679 = vmatmul.mubr.f32.gmra.mrb[0].mxu0 %v7465
      %v7680 = vpop.f32.mrb[0].mxu0
      %v7681 = vadd.f32 0.0, %v7680
      %v7682 = vpop.f32.mrb[0].mxu0
      %7683 = vmatprep.mubr.f32.mxu0 0.0
      %7684 = vmatmul.mubr.f32.gmra.mrb[0].mxu0 %v7468
      %v7685 = vpop.f32.mrb[0].mxu0
      %v7686 = vadd.f32 0.0, %v7685
      %v7687 = vpop.f32.mrb[0].mxu0
      %7688 = vmatprep.mubr.f32.mxu0 0.0
      %7689 = vmatmul.mubr.f32.gmra.mrb[0].mxu0 %v7471
      %v7690 = vpop.f32.mrb[0].mxu0
      %v7691 = vadd.f32 0.0, %v7690
      %v7692 = vpop.f32.mrb[0].mxu0
      %7693 = vmatprep.mubr.f32.mxu0 0.0
      %7694 = vmatmul.mubr.f32.gmra.mrb[0].mxu0 %v7474
      %v7695 = vpop.f32.mrb[0].mxu0
      %v7696 = vadd.f32 0.0, %v7695
      %v7697 = vpop.f32.mrb[0].mxu0
      %7698 = vmatprep.mubr.f32.mxu0 0.0
      %7699 = vmatmul.mubr.f32.gmra.mrb[0].mxu0 %v7477
      %v7700 = vpop.f32.mrb[0].mxu0
      %v7701 = vadd.f32 0.0, %v7700
      %v7702 = vpop.f32.mrb[0].mxu0
      %7703 = vdwg.mxu0
      %v7704 = vadd.f32 %v7349, %v7546
      %v7705 = vadd.f32 %v7350, %v7551
      %v7706 = vadd.f32 %v7351, %v7556
      %v7707 = vadd.f32 %v7352, %v7561
      %v7708 = vadd.f32 %v7353, %v7566
      %v7709 = vadd.f32 %v7354, %v7571
      %v7710 = vadd.f32 %v7355, %v7576
      %v7711 = vadd.f32 %v7356, %v7581
      %v7712 = vadd.f32 %v7357, %v7586
      %v7713 = vadd.f32 %v7358, %v7591
      %v7714 = vadd.f32 %v7359, %v7596
      %v7715 = vadd.f32 %v7360, %v7601
      %v7716 = vadd.f32 %v7361, %v7606
      %v7717 = vadd.f32 %v7362, %v7611
      %v7718 = vadd.f32 %v7363, %v7616
      %v7719 = vadd.f32 %v7364, %v7621
      %v7720 = vadd.f32 %v7365, %v7626
      %v7721 = vadd.f32 %v7366, %v7631
      %v7722 = vadd.f32 %v7367, %v7636
      %v7723 = vadd.f32 %v7368, %v7641
      %v7724 = vadd.f32 %v7369, %v7646
      %v7725 = vadd.f32 %v7370, %v7651
      %v7726 = vadd.f32 %v7371, %v7656
      %v7727 = vadd.f32 %v7372, %v7661
      %v7728 = vadd.f32 %v7373, %v7666
      %v7729 = vadd.f32 %v7374, %v7671
      %v7730 = vadd.f32 %v7375, %v7676
      %v7731 = vadd.f32 %v7376, %v7681
      %v7732 = vadd.f32 %v7377, %v7686
      %v7733 = vadd.f32 %v7378, %v7691
      %v7734 = vadd.f32 %v7379, %v7696
      %v7735 = vadd.f32 %v7380, %v7701
      %7736 = vst.msk [vmem:[#allocation4] sm:$0xff] %vm230, %v7704
      %7737 = vst.msk [vmem:[#allocation4 + $0x8] sm:$0xff] %vm230, %v7705
      %7738 = vst.msk [vmem:[#allocation4 + $0x10] sm:$0xff] %vm230, %v7706
      %7739 = vst.msk [vmem:[#allocation4 + $0x18] sm:$0xff] %vm230, %v7707
      %7740 = vst.msk [vmem:[#allocation4 + $0x20] sm:$0xff] %vm230, %v7708
      %7741 = vst.msk [vmem:[#allocation4 + $0x28] sm:$0xff] %vm230, %v7709
      %7742 = vst.msk [vmem:[#allocation4 + $0x30] sm:$0xff] %vm230, %v7710
      %7743 = vst.msk [vmem:[#allocation4 + $0x38] sm:$0xff] %vm230, %v7711
      %7744 = vst.msk [vmem:[#allocation4 + $0x40] sm:$0xff] %vm230, %v7712
      %7745 = vst.msk [vmem:[#allocation4 + $0x48] sm:$0xff] %vm230, %v7713
      %7746 = vst.msk [vmem:[#allocation4 + $0x50] sm:$0xff] %vm230, %v7714
      %7747 = vst.msk [vmem:[#allocation4 + $0x58] sm:$0xff] %vm230, %v7715
      %7748 = vst.msk [vmem:[#allocation4 + $0x60] sm:$0xff] %vm230, %v7716
      %7749 = vst.msk [vmem:[#allocation4 + $0x68] sm:$0xff] %vm230, %v7717
      %7750 = vst.msk [vmem:[#allocation4 + $0x70] sm:$0xff] %vm230, %v7718
      %7751 = vst.msk [vmem:[#allocation4 + $0x78] sm:$0xff] %vm230, %v7719
      %7752 = vst.msk [vmem:[#allocation4 + $0x80] sm:$0xff] %vm230, %v7720
      %7753 = vst.msk [vmem:[#allocation4 + $0x88] sm:$0xff] %vm230, %v7721
      %7754 = vst.msk [vmem:[#allocation4 + $0x90] sm:$0xff] %vm230, %v7722
      %7755 = vst.msk [vmem:[#allocation4 + $0x98] sm:$0xff] %vm230, %v7723
      %7756 = vst.msk [vmem:[#allocation4 + $0xa0] sm:$0xff] %vm230, %v7724
      %7757 = vst.msk [vmem:[#allocation4 + $0xa8] sm:$0xff] %vm230, %v7725
      %7758 = vst.msk [vmem:[#allocation4 + $0xb0] sm:$0xff] %vm230, %v7726
      %7759 = vst.msk [vmem:[#allocation4 + $0xb8] sm:$0xff] %vm230, %v7727
      %7760 = vst.msk [vmem:[#allocation4 + $0xc0] sm:$0xff] %vm230, %v7728
      %7761 = vst.msk [vmem:[#allocation4 + $0xc8] sm:$0xff] %vm230, %v7729
      %7762 = vst.msk [vmem:[#allocation4 + $0xd0] sm:$0xff] %vm230, %v7730
      %7763 = vst.msk [vmem:[#allocation4 + $0xd8] sm:$0xff] %vm230, %v7731
      %7764 = vst.msk [vmem:[#allocation4 + $0xe0] sm:$0xff] %vm230, %v7732
      %7765 = vst.msk [vmem:[#allocation4 + $0xe8] sm:$0xff] %vm230, %v7733
      %7766 = vst.msk [vmem:[#allocation4 + $0xf0] sm:$0xff] %vm230, %v7734
      %7767 = vst.msk [vmem:[#allocation4 + $0xf8] sm:$0xff] %vm230, %v7735
      %v7768 = vld [vmem:[%s7316 + $0x1] sm:$0xff]
      %v7769 = vld [vmem:[%s7316 + $0x9] sm:$0xff]
      %v7770 = vld [vmem:[%s7316 + $0x19] sm:$0xff]
      %v7771 = vld [vmem:[%s7316 + $0x21] sm:$0xff]
      %v7772 = vld [vmem:[%s7316 + $0x31] sm:$0xff]
      %v7773 = vld [vmem:[%s7316 + $0x39] sm:$0xff]
      %v7774 = vld [vmem:[%s7316 + $0x49] sm:$0xff]
      %v7775 = vld [vmem:[%s7316 + $0x51] sm:$0xff]
      %v7776 = vld [vmem:[%s7316 + $0x61] sm:$0xff]
      %v7777 = vld [vmem:[%s7316 + $0x69] sm:$0xff]
      %v7778 = vld [vmem:[%s7316 + $0x79] sm:$0xff]
      %v7779 = vld [vmem:[%s7316 + $0x81] sm:$0xff]
      %v7780 = vld [vmem:[%s7316 + $0x91] sm:$0xff]
      %v7781 = vld [vmem:[%s7316 + $0x99] sm:$0xff]
      %v7782 = vld [vmem:[%s7316 + $0xa9] sm:$0xff]
      %v7783 = vld [vmem:[%s7316 + $0xb1] sm:$0xff]
      %v7784 = vld [vmem:[%s7316 + $0xc1] sm:$0xff]
      %v7785 = vld [vmem:[%s7316 + $0xc9] sm:$0xff]
      %v7786 = vld [vmem:[%s7316 + $0xd9] sm:$0xff]
      %v7787 = vld [vmem:[%s7316 + $0xe1] sm:$0xff]
      %v7788 = vld [vmem:[%s7316 + $0xf1] sm:$0xff]
      %v7789 = vld [vmem:[%s7316 + $0xf9] sm:$0xff]
      %v7790 = vld [vmem:[%s7316 + $0x109] sm:$0xff]
      %v7791 = vld [vmem:[%s7316 + $0x111] sm:$0xff]
      %v7792 = vld [vmem:[%s7316 + $0x121] sm:$0xff]
      %v7793 = vld [vmem:[%s7316 + $0x129] sm:$0xff]
      %v7794 = vld [vmem:[%s7316 + $0x139] sm:$0xff]
      %v7795 = vld [vmem:[%s7316 + $0x141] sm:$0xff]
      %v7796 = vld [vmem:[%s7316 + $0x151] sm:$0xff]
      %v7797 = vld [vmem:[%s7316 + $0x159] sm:$0xff]
      %v7798 = vld [vmem:[%s7316 + $0x169] sm:$0xff]
      %v7799 = vld [vmem:[%s7316 + $0x171] sm:$0xff]
      %v7800 = vld [vmem:[#allocation4] sm:$0xff]
      %v7801 = vld [vmem:[#allocation4 + $0x8] sm:$0xff]
      %v7802 = vld [vmem:[#allocation4 + $0x10] sm:$0xff]
      %v7803 = vld [vmem:[#allocation4 + $0x18] sm:$0xff]
      %v7804 = vld [vmem:[#allocation4 + $0x20] sm:$0xff]
      %v7805 = vld [vmem:[#allocation4 + $0x28] sm:$0xff]
      %v7806 = vld [vmem:[#allocation4 + $0x30] sm:$0xff]
      %v7807 = vld [vmem:[#allocation4 + $0x38] sm:$0xff]
      %v7808 = vld [vmem:[#allocation4 + $0x40] sm:$0xff]
      %v7809 = vld [vmem:[#allocation4 + $0x48] sm:$0xff]
      %v7810 = vld [vmem:[#allocation4 + $0x50] sm:$0xff]
      %v7811 = vld [vmem:[#allocation4 + $0x58] sm:$0xff]
      %v7812 = vld [vmem:[#allocation4 + $0x60] sm:$0xff]
      %v7813 = vld [vmem:[#allocation4 + $0x68] sm:$0xff]
      %v7814 = vld [vmem:[#allocation4 + $0x70] sm:$0xff]
      %v7815 = vld [vmem:[#allocation4 + $0x78] sm:$0xff]
      %v7816 = vld [vmem:[#allocation4 + $0x80] sm:$0xff]
      %v7817 = vld [vmem:[#allocation4 + $0x88] sm:$0xff]
      %v7818 = vld [vmem:[#allocation4 + $0x90] sm:$0xff]
      %v7819 = vld [vmem:[#allocation4 + $0x98] sm:$0xff]
      %v7820 = vld [vmem:[#allocation4 + $0xa0] sm:$0xff]
      %v7821 = vld [vmem:[#allocation4 + $0xa8] sm:$0xff]
      %v7822 = vld [vmem:[#allocation4 + $0xb0] sm:$0xff]
      %v7823 = vld [vmem:[#allocation4 + $0xb8] sm:$0xff]
      %v7824 = vld [vmem:[#allocation4 + $0xc0] sm:$0xff]
      %v7825 = vld [vmem:[#allocation4 + $0xc8] sm:$0xff]
      %v7826 = vld [vmem:[#allocation4 + $0xd0] sm:$0xff]
      %v7827 = vld [vmem:[#allocation4 + $0xd8] sm:$0xff]
      %v7828 = vld [vmem:[#allocation4 + $0xe0] sm:$0xff]
      %v7829 = vld [vmem:[#allocation4 + $0xe8] sm:$0xff]
      %v7830 = vld [vmem:[#allocation4 + $0xf0] sm:$0xff]
      %v7831 = vld [vmem:[#allocation4 + $0xf8] sm:$0xff]
      %s7832 = scalar_lea.vmem %s3, 56
      %v7833 = vld [vmem:[%s7832] sm:$0xff]
      %v7835 = vsel %vm230, %v7768, 0
      %v7838 = vsel %vm230, %v7769, 0
      %v7841 = vsel %vm230, %v7770, 0
      %v7844 = vsel %vm230, %v7771, 0
      %v7847 = vsel %vm230, %v7772, 0
      %v7850 = vsel %vm230, %v7773, 0
      %v7853 = vsel %vm230, %v7774, 0
      %v7856 = vsel %vm230, %v7775, 0
      %v7859 = vsel %vm230, %v7776, 0
      %v7862 = vsel %vm230, %v7777, 0
      %v7865 = vsel %vm230, %v7778, 0
      %v7868 = vsel %vm230, %v7779, 0
      %v7871 = vsel %vm230, %v7780, 0
      %v7874 = vsel %vm230, %v7781, 0
      %v7877 = vsel %vm230, %v7782, 0
      %v7880 = vsel %vm230, %v7783, 0
      %v7883 = vsel %vm230, %v7784, 0
      %v7886 = vsel %vm230, %v7785, 0
      %v7889 = vsel %vm230, %v7786, 0
      %v7892 = vsel %vm230, %v7787, 0
      %v7895 = vsel %vm230, %v7788, 0
      %v7898 = vsel %vm230, %v7789, 0
      %v7901 = vsel %vm230, %v7790, 0
      %v7904 = vsel %vm230, %v7791, 0
      %v7907 = vsel %vm230, %v7792, 0
      %v7910 = vsel %vm230, %v7793, 0
      %v7913 = vsel %vm230, %v7794, 0
      %v7916 = vsel %vm230, %v7795, 0
      %v7919 = vsel %vm230, %v7796, 0
      %v7922 = vsel %vm230, %v7797, 0
      %v7925 = vsel %vm230, %v7798, 0
      %v7928 = vsel %vm230, %v7799, 0
      %7930 = vmatprep.subr.mxu0 0.0
      %7931 = vmatpush1.msra.mxu0 %v7833
      %7932 = vmatprep.subr.mxu0 0.0
      %7933 = vmatpush1.msra.mxu0 0.0
      %7934 = vmatprep.subr.mxu0 0.0
      %7935 = vmatpush1.msra.mxu0 0.0
      %7936 = vmatprep.subr.mxu0 0.0
      %7937 = vmatpush1.msra.mxu0 0.0
      %7938 = vmatprep.subr.mxu0 0.0
      %7939 = vmatpush1.msra.mxu0 0.0
      %7940 = vmatprep.subr.mxu0 0.0
      %7941 = vmatpush1.msra.mxu0 0.0
      %7942 = vmatprep.subr.mxu0 0.0
      %7943 = vmatpush1.msra.mxu0 0.0
      %7944 = vmatprep.subr.mxu0 0.0
      %7945 = vmatpush1.msra.mxu0 0.0
      %7946 = vmatprep.subr.mxu0 0.0
      %7947 = vmatpush1.msra.mxu0 0.0
      %7948 = vmatprep.subr.mxu0 0.0
      %7949 = vmatpush1.msra.mxu0 0.0
      %7950 = vmatprep.subr.mxu0 0.0
      %7951 = vmatpush1.msra.mxu0 0.0
      %7952 = vmatprep.subr.mxu0 0.0
      %7953 = vmatpush1.msra.mxu0 0.0
      %7954 = vmatprep.subr.mxu0 0.0
      %7955 = vmatpush1.msra.mxu0 0.0
      %7956 = vmatprep.subr.mxu0 0.0
      %7957 = vmatpush1.msra.mxu0 0.0
      %7958 = vmatprep.subr.mxu0 0.0
      %7959 = vmatpush1.msra.mxu0 0.0
      %7960 = vmatprep.subr.mxu0 0.0
      %7961 = vmatpush1.msra.mxu0 0.0
      %7962 = vmatprep.subr.mxu0 0.0
      %7963 = vmatpush1.msra.mxu0 0.0
      %7964 = vmatprep.subr.mxu0 0.0
      %7965 = vmatpush1.msra.mxu0 0.0
      %7966 = vmatprep.subr.mxu0 0.0
      %7967 = vmatpush1.msra.mxu0 0.0
      %7968 = vmatprep.subr.mxu0 0.0
      %7969 = vmatpush1.msra.mxu0 0.0
      %7970 = vmatprep.subr.mxu0 0.0
      %7971 = vmatpush1.msra.mxu0 0.0
      %7972 = vmatprep.subr.mxu0 0.0
      %7973 = vmatpush1.msra.mxu0 0.0
      %7974 = vmatprep.subr.mxu0 0.0
      %7975 = vmatpush1.msra.mxu0 0.0
      %7976 = vmatprep.subr.mxu0 0.0
      %7977 = vmatpush1.msra.mxu0 0.0
      %7978 = vmatprep.subr.mxu0 0.0
      %7979 = vmatpush1.msra.mxu0 0.0
      %7980 = vmatprep.subr.mxu0 0.0
      %7981 = vmatpush1.msra.mxu0 0.0
      %7982 = vmatprep.subr.mxu0 0.0
      %7983 = vmatpush1.msra.mxu0 0.0
      %7984 = vmatprep.subr.mxu0 0.0
      %7985 = vmatpush1.msra.mxu0 0.0
      %7986 = vmatprep.subr.mxu0 0.0
      %7987 = vmatpush1.msra.mxu0 0.0
      %7988 = vmatprep.subr.mxu0 0.0
      %7989 = vmatpush1.msra.mxu0 0.0
      %7990 = vmatprep.subr.mxu0 0.0
      %7991 = vmatpush1.msra.mxu0 0.0
      %7992 = vmatprep.subr.mxu0 0.0
      %7993 = vmatpush1.msra.mxu0 0.0
      %7994 = vmatprep.mubr.f32.mxu0 0.0
      %7995 = vmatmul.mubr.f32.gmra.mrb[0].mxu0 %v7835
      %v7996 = vpop.f32.mrb[0].mxu0
      %v7997 = vadd.f32 0.0, %v7996
      %v7998 = vpop.f32.mrb[0].mxu0
      %7999 = vmatprep.mubr.f32.mxu0 0.0
      %8000 = vmatmul.mubr.f32.gmra.mrb[0].mxu0 %v7838
      %v8001 = vpop.f32.mrb[0].mxu0
      %v8002 = vadd.f32 0.0, %v8001
      %v8003 = vpop.f32.mrb[0].mxu0
      %8004 = vmatprep.mubr.f32.mxu0 0.0
      %8005 = vmatmul.mubr.f32.gmra.mrb[0].mxu0 %v7841
      %v8006 = vpop.f32.mrb[0].mxu0
      %v8007 = vadd.f32 0.0, %v8006
      %v8008 = vpop.f32.mrb[0].mxu0
      %8009 = vmatprep.mubr.f32.mxu0 0.0
      %8010 = vmatmul.mubr.f32.gmra.mrb[0].mxu0 %v7844
      %v8011 = vpop.f32.mrb[0].mxu0
      %v8012 = vadd.f32 0.0, %v8011
      %v8013 = vpop.f32.mrb[0].mxu0
      %8014 = vmatprep.mubr.f32.mxu0 0.0
      %8015 = vmatmul.mubr.f32.gmra.mrb[0].mxu0 %v7847
      %v8016 = vpop.f32.mrb[0].mxu0
      %v8017 = vadd.f32 0.0, %v8016
      %v8018 = vpop.f32.mrb[0].mxu0
      %8019 = vmatprep.mubr.f32.mxu0 0.0
      %8020 = vmatmul.mubr.f32.gmra.mrb[0].mxu0 %v7850
      %v8021 = vpop.f32.mrb[0].mxu0
      %v8022 = vadd.f32 0.0, %v8021
      %v8023 = vpop.f32.mrb[0].mxu0
      %8024 = vmatprep.mubr.f32.mxu0 0.0
      %8025 = vmatmul.mubr.f32.gmra.mrb[0].mxu0 %v7853
      %v8026 = vpop.f32.mrb[0].mxu0
      %v8027 = vadd.f32 0.0, %v8026
      %v8028 = vpop.f32.mrb[0].mxu0
      %8029 = vmatprep.mubr.f32.mxu0 0.0
      %8030 = vmatmul.mubr.f32.gmra.mrb[0].mxu0 %v7856
      %v8031 = vpop.f32.mrb[0].mxu0
      %v8032 = vadd.f32 0.0, %v8031
      %v8033 = vpop.f32.mrb[0].mxu0
      %8034 = vmatprep.mubr.f32.mxu0 0.0
      %8035 = vmatmul.mubr.f32.gmra.mrb[0].mxu0 %v7859
      %v8036 = vpop.f32.mrb[0].mxu0
      %v8037 = vadd.f32 0.0, %v8036
      %v8038 = vpop.f32.mrb[0].mxu0
      %8039 = vmatprep.mubr.f32.mxu0 0.0
      %8040 = vmatmul.mubr.f32.gmra.mrb[0].mxu0 %v7862
      %v8041 = vpop.f32.mrb[0].mxu0
      %v8042 = vadd.f32 0.0, %v8041
      %v8043 = vpop.f32.mrb[0].mxu0
      %8044 = vmatprep.mubr.f32.mxu0 0.0
      %8045 = vmatmul.mubr.f32.gmra.mrb[0].mxu0 %v7865
      %v8046 = vpop.f32.mrb[0].mxu0
      %v8047 = vadd.f32 0.0, %v8046
      %v8048 = vpop.f32.mrb[0].mxu0
      %8049 = vmatprep.mubr.f32.mxu0 0.0
      %8050 = vmatmul.mubr.f32.gmra.mrb[0].mxu0 %v7868
      %v8051 = vpop.f32.mrb[0].mxu0
      %v8052 = vadd.f32 0.0, %v8051
      %v8053 = vpop.f32.mrb[0].mxu0
      %8054 = vmatprep.mubr.f32.mxu0 0.0
      %8055 = vmatmul.mubr.f32.gmra.mrb[0].mxu0 %v7871
      %v8056 = vpop.f32.mrb[0].mxu0
      %v8057 = vadd.f32 0.0, %v8056
      %v8058 = vpop.f32.mrb[0].mxu0
      %8059 = vmatprep.mubr.f32.mxu0 0.0
      %8060 = vmatmul.mubr.f32.gmra.mrb[0].mxu0 %v7874
      %v8061 = vpop.f32.mrb[0].mxu0
      %v8062 = vadd.f32 0.0, %v8061
      %v8063 = vpop.f32.mrb[0].mxu0
      %8064 = vmatprep.mubr.f32.mxu0 0.0
      %8065 = vmatmul.mubr.f32.gmra.mrb[0].mxu0 %v7877
      %v8066 = vpop.f32.mrb[0].mxu0
      %v8067 = vadd.f32 0.0, %v8066
      %v8068 = vpop.f32.mrb[0].mxu0
      %8069 = vmatprep.mubr.f32.mxu0 0.0
      %8070 = vmatmul.mubr.f32.gmra.mrb[0].mxu0 %v7880
      %v8071 = vpop.f32.mrb[0].mxu0
      %v8072 = vadd.f32 0.0, %v8071
      %v8073 = vpop.f32.mrb[0].mxu0
      %8074 = vmatprep.mubr.f32.mxu0 0.0
      %8075 = vmatmul.mubr.f32.gmra.mrb[0].mxu0 %v7883
      %v8076 = vpop.f32.mrb[0].mxu0
      %v8077 = vadd.f32 0.0, %v8076
      %v8078 = vpop.f32.mrb[0].mxu0
      %8079 = vmatprep.mubr.f32.mxu0 0.0
      %8080 = vmatmul.mubr.f32.gmra.mrb[0].mxu0 %v7886
      %v8081 = vpop.f32.mrb[0].mxu0
      %v8082 = vadd.f32 0.0, %v8081
      %v8083 = vpop.f32.mrb[0].mxu0
      %8084 = vmatprep.mubr.f32.mxu0 0.0
      %8085 = vmatmul.mubr.f32.gmra.mrb[0].mxu0 %v7889
      %v8086 = vpop.f32.mrb[0].mxu0
      %v8087 = vadd.f32 0.0, %v8086
      %v8088 = vpop.f32.mrb[0].mxu0
      %8089 = vmatprep.mubr.f32.mxu0 0.0
      %8090 = vmatmul.mubr.f32.gmra.mrb[0].mxu0 %v7892
      %v8091 = vpop.f32.mrb[0].mxu0
      %v8092 = vadd.f32 0.0, %v8091
      %v8093 = vpop.f32.mrb[0].mxu0
      %8094 = vmatprep.mubr.f32.mxu0 0.0
      %8095 = vmatmul.mubr.f32.gmra.mrb[0].mxu0 %v7895
      %v8096 = vpop.f32.mrb[0].mxu0
      %v8097 = vadd.f32 0.0, %v8096
      %v8098 = vpop.f32.mrb[0].mxu0
      %8099 = vmatprep.mubr.f32.mxu0 0.0
      %8100 = vmatmul.mubr.f32.gmra.mrb[0].mxu0 %v7898
      %v8101 = vpop.f32.mrb[0].mxu0
      %v8102 = vadd.f32 0.0, %v8101
      %v8103 = vpop.f32.mrb[0].mxu0
      %8104 = vmatprep.mubr.f32.mxu0 0.0
      %8105 = vmatmul.mubr.f32.gmra.mrb[0].mxu0 %v7901
      %v8106 = vpop.f32.mrb[0].mxu0
      %v8107 = vadd.f32 0.0, %v8106
      %v8108 = vpop.f32.mrb[0].mxu0
      %8109 = vmatprep.mubr.f32.mxu0 0.0
      %8110 = vmatmul.mubr.f32.gmra.mrb[0].mxu0 %v7904
      %v8111 = vpop.f32.mrb[0].mxu0
      %v8112 = vadd.f32 0.0, %v8111
      %v8113 = vpop.f32.mrb[0].mxu0
      %8114 = vmatprep.mubr.f32.mxu0 0.0
      %8115 = vmatmul.mubr.f32.gmra.mrb[0].mxu0 %v7907
      %v8116 = vpop.f32.mrb[0].mxu0
      %v8117 = vadd.f32 0.0, %v8116
      %v8118 = vpop.f32.mrb[0].mxu0
      %8119 = vmatprep.mubr.f32.mxu0 0.0
      %8120 = vmatmul.mubr.f32.gmra.mrb[0].mxu0 %v7910
      %v8121 = vpop.f32.mrb[0].mxu0
      %v8122 = vadd.f32 0.0, %v8121
      %v8123 = vpop.f32.mrb[0].mxu0
      %8124 = vmatprep.mubr.f32.mxu0 0.0
      %8125 = vmatmul.mubr.f32.gmra.mrb[0].mxu0 %v7913
      %v8126 = vpop.f32.mrb[0].mxu0
      %v8127 = vadd.f32 0.0, %v8126
      %v8128 = vpop.f32.mrb[0].mxu0
      %8129 = vmatprep.mubr.f32.mxu0 0.0
      %8130 = vmatmul.mubr.f32.gmra.mrb[0].mxu0 %v7916
      %v8131 = vpop.f32.mrb[0].mxu0
      %v8132 = vadd.f32 0.0, %v8131
      %v8133 = vpop.f32.mrb[0].mxu0
      %8134 = vmatprep.mubr.f32.mxu0 0.0
      %8135 = vmatmul.mubr.f32.gmra.mrb[0].mxu0 %v7919
      %v8136 = vpop.f32.mrb[0].mxu0
      %v8137 = vadd.f32 0.0, %v8136
      %v8138 = vpop.f32.mrb[0].mxu0
      %8139 = vmatprep.mubr.f32.mxu0 0.0
      %8140 = vmatmul.mubr.f32.gmra.mrb[0].mxu0 %v7922
      %v8141 = vpop.f32.mrb[0].mxu0
      %v8142 = vadd.f32 0.0, %v8141
      %v8143 = vpop.f32.mrb[0].mxu0
      %8144 = vmatprep.mubr.f32.mxu0 0.0
      %8145 = vmatmul.mubr.f32.gmra.mrb[0].mxu0 %v7925
      %v8146 = vpop.f32.mrb[0].mxu0
      %v8147 = vadd.f32 0.0, %v8146
      %v8148 = vpop.f32.mrb[0].mxu0
      %8149 = vmatprep.mubr.f32.mxu0 0.0
      %8150 = vmatmul.mubr.f32.gmra.mrb[0].mxu0 %v7928
      %v8151 = vpop.f32.mrb[0].mxu0
      %v8152 = vadd.f32 0.0, %v8151
      %v8153 = vpop.f32.mrb[0].mxu0
      %8154 = vdwg.mxu0
      %v8155 = vadd.f32 %v7800, %v7997
      %v8156 = vadd.f32 %v7801, %v8002
      %v8157 = vadd.f32 %v7802, %v8007
      %v8158 = vadd.f32 %v7803, %v8012
      %v8159 = vadd.f32 %v7804, %v8017
      %v8160 = vadd.f32 %v7805, %v8022
      %v8161 = vadd.f32 %v7806, %v8027
      %v8162 = vadd.f32 %v7807, %v8032
      %v8163 = vadd.f32 %v7808, %v8037
      %v8164 = vadd.f32 %v7809, %v8042
      %v8165 = vadd.f32 %v7810, %v8047
      %v8166 = vadd.f32 %v7811, %v8052
      %v8167 = vadd.f32 %v7812, %v8057
      %v8168 = vadd.f32 %v7813, %v8062
      %v8169 = vadd.f32 %v7814, %v8067
      %v8170 = vadd.f32 %v7815, %v8072
      %v8171 = vadd.f32 %v7816, %v8077
      %v8172 = vadd.f32 %v7817, %v8082
      %v8173 = vadd.f32 %v7818, %v8087
      %v8174 = vadd.f32 %v7819, %v8092
      %v8175 = vadd.f32 %v7820, %v8097
      %v8176 = vadd.f32 %v7821, %v8102
      %v8177 = vadd.f32 %v7822, %v8107
      %v8178 = vadd.f32 %v7823, %v8112
      %v8179 = vadd.f32 %v7824, %v8117
      %v8180 = vadd.f32 %v7825, %v8122
      %v8181 = vadd.f32 %v7826, %v8127
      %v8182 = vadd.f32 %v7827, %v8132
      %v8183 = vadd.f32 %v7828, %v8137
      %v8184 = vadd.f32 %v7829, %v8142
      %v8185 = vadd.f32 %v7830, %v8147
      %v8186 = vadd.f32 %v7831, %v8152
      %8187 = vst.msk [vmem:[#allocation4] sm:$0xff] %vm230, %v8155
      %8188 = vst.msk [vmem:[#allocation4 + $0x8] sm:$0xff] %vm230, %v8156
      %8189 = vst.msk [vmem:[#allocation4 + $0x10] sm:$0xff] %vm230, %v8157
      %8190 = vst.msk [vmem:[#allocation4 + $0x18] sm:$0xff] %vm230, %v8158
      %8191 = vst.msk [vmem:[#allocation4 + $0x20] sm:$0xff] %vm230, %v8159
      %8192 = vst.msk [vmem:[#allocation4 + $0x28] sm:$0xff] %vm230, %v8160
      %8193 = vst.msk [vmem:[#allocation4 + $0x30] sm:$0xff] %vm230, %v8161
      %8194 = vst.msk [vmem:[#allocation4 + $0x38] sm:$0xff] %vm230, %v8162
      %8195 = vst.msk [vmem:[#allocation4 + $0x40] sm:$0xff] %vm230, %v8163
      %8196 = vst.msk [vmem:[#allocation4 + $0x48] sm:$0xff] %vm230, %v8164
      %8197 = vst.msk [vmem:[#allocation4 + $0x50] sm:$0xff] %vm230, %v8165
      %8198 = vst.msk [vmem:[#allocation4 + $0x58] sm:$0xff] %vm230, %v8166
      %8199 = vst.msk [vmem:[#allocation4 + $0x60] sm:$0xff] %vm230, %v8167
      %8200 = vst.msk [vmem:[#allocation4 + $0x68] sm:$0xff] %vm230, %v8168
      %8201 = vst.msk [vmem:[#allocation4 + $0x70] sm:$0xff] %vm230, %v8169
      %8202 = vst.msk [vmem:[#allocation4 + $0x78] sm:$0xff] %vm230, %v8170
      %8203 = vst.msk [vmem:[#allocation4 + $0x80] sm:$0xff] %vm230, %v8171
      %8204 = vst.msk [vmem:[#allocation4 + $0x88] sm:$0xff] %vm230, %v8172
      %8205 = vst.msk [vmem:[#allocation4 + $0x90] sm:$0xff] %vm230, %v8173
      %8206 = vst.msk [vmem:[#allocation4 + $0x98] sm:$0xff] %vm230, %v8174
      %8207 = vst.msk [vmem:[#allocation4 + $0xa0] sm:$0xff] %vm230, %v8175
      %8208 = vst.msk [vmem:[#allocation4 + $0xa8] sm:$0xff] %vm230, %v8176
      %8209 = vst.msk [vmem:[#allocation4 + $0xb0] sm:$0xff] %vm230, %v8177
      %8210 = vst.msk [vmem:[#allocation4 + $0xb8] sm:$0xff] %vm230, %v8178
      %8211 = vst.msk [vmem:[#allocation4 + $0xc0] sm:$0xff] %vm230, %v8179
      %8212 = vst.msk [vmem:[#allocation4 + $0xc8] sm:$0xff] %vm230, %v8180
      %8213 = vst.msk [vmem:[#allocation4 + $0xd0] sm:$0xff] %vm230, %v8181
      %8214 = vst.msk [vmem:[#allocation4 + $0xd8] sm:$0xff] %vm230, %v8182
      %8215 = vst.msk [vmem:[#allocation4 + $0xe0] sm:$0xff] %vm230, %v8183
      %8216 = vst.msk [vmem:[#allocation4 + $0xe8] sm:$0xff] %vm230, %v8184
      %8217 = vst.msk [vmem:[#allocation4 + $0xf0] sm:$0xff] %vm230, %v8185
      %8218 = vst.msk [vmem:[#allocation4 + $0xf8] sm:$0xff] %vm230, %v8186
      %v8219 = vld [vmem:[%s7316 + $0x2] sm:$0xff]
      %v8220 = vld [vmem:[%s7316 + $0xa] sm:$0xff]
      %v8221 = vld [vmem:[%s7316 + $0x1a] sm:$0xff]
      %v8222 = vld [vmem:[%s7316 + $0x22] sm:$0xff]
      %v8223 = vld [vmem:[%s7316 + $0x32] sm:$0xff]
      %v8224 = vld [vmem:[%s7316 + $0x3a] sm:$0xff]
      %v8225 = vld [vmem:[%s7316 + $0x4a] sm:$0xff]
      %v8226 = vld [vmem:[%s7316 + $0x52] sm:$0xff]
      %v8227 = vld [vmem:[%s7316 + $0x62] sm:$0xff]
      %v8228 = vld [vmem:[%s7316 + $0x6a] sm:$0xff]
      %v8229 = vld [vmem:[%s7316 + $0x7a] sm:$0xff]
      %v8230 = vld [vmem:[%s7316 + $0x82] sm:$0xff]
      %v8231 = vld [vmem:[%s7316 + $0x92] sm:$0xff]
      %v8232 = vld [vmem:[%s7316 + $0x9a] sm:$0xff]
      %v8233 = vld [vmem:[%s7316 + $0xaa] sm:$0xff]
      %v8234 = vld [vmem:[%s7316 + $0xb2] sm:$0xff]
      %v8235 = vld [vmem:[%s7316 + $0xc2] sm:$0xff]
      %v8236 = vld [vmem:[%s7316 + $0xca] sm:$0xff]
      %v8237 = vld [vmem:[%s7316 + $0xda] sm:$0xff]
      %v8238 = vld [vmem:[%s7316 + $0xe2] sm:$0xff]
      %v8239 = vld [vmem:[%s7316 + $0xf2] sm:$0xff]
      %v8240 = vld [vmem:[%s7316 + $0xfa] sm:$0xff]
      %v8241 = vld [vmem:[%s7316 + $0x10a] sm:$0xff]
      %v8242 = vld [vmem:[%s7316 + $0x112] sm:$0xff]
      %v8243 = vld [vmem:[%s7316 + $0x122] sm:$0xff]
      %v8244 = vld [vmem:[%s7316 + $0x12a] sm:$0xff]
      %v8245 = vld [vmem:[%s7316 + $0x13a] sm:$0xff]
      %v8246 = vld [vmem:[%s7316 + $0x142] sm:$0xff]
      %v8247 = vld [vmem:[%s7316 + $0x152] sm:$0xff]
      %v8248 = vld [vmem:[%s7316 + $0x15a] sm:$0xff]
      %v8249 = vld [vmem:[%s7316 + $0x16a] sm:$0xff]
      %v8250 = vld [vmem:[%s7316 + $0x172] sm:$0xff]
      %v8251 = vld [vmem:[#allocation4] sm:$0xff]
      %v8252 = vld [vmem:[#allocation4 + $0x8] sm:$0xff]
      %v8253 = vld [vmem:[#allocation4 + $0x10] sm:$0xff]
      %v8254 = vld [vmem:[#allocation4 + $0x18] sm:$0xff]
      %v8255 = vld [vmem:[#allocation4 + $0x20] sm:$0xff]
      %v8256 = vld [vmem:[#allocation4 + $0x28] sm:$0xff]
      %v8257 = vld [vmem:[#allocation4 + $0x30] sm:$0xff]
      %v8258 = vld [vmem:[#allocation4 + $0x38] sm:$0xff]
      %v8259 = vld [vmem:[#allocation4 + $0x40] sm:$0xff]
      %v8260 = vld [vmem:[#allocation4 + $0x48] sm:$0xff]
      %v8261 = vld [vmem:[#allocation4 + $0x50] sm:$0xff]
      %v8262 = vld [vmem:[#allocation4 + $0x58] sm:$0xff]
      %v8263 = vld [vmem:[#allocation4 + $0x60] sm:$0xff]
      %v8264 = vld [vmem:[#allocation4 + $0x68] sm:$0xff]
      %v8265 = vld [vmem:[#allocation4 + $0x70] sm:$0xff]
      %v8266 = vld [vmem:[#allocation4 + $0x78] sm:$0xff]
      %v8267 = vld [vmem:[#allocation4 + $0x80] sm:$0xff]
      %v8268 = vld [vmem:[#allocation4 + $0x88] sm:$0xff]
      %v8269 = vld [vmem:[#allocation4 + $0x90] sm:$0xff]
      %v8270 = vld [vmem:[#allocation4 + $0x98] sm:$0xff]
      %v8271 = vld [vmem:[#allocation4 + $0xa0] sm:$0xff]
      %v8272 = vld [vmem:[#allocation4 + $0xa8] sm:$0xff]
      %v8273 = vld [vmem:[#allocation4 + $0xb0] sm:$0xff]
      %v8274 = vld [vmem:[#allocation4 + $0xb8] sm:$0xff]
      %v8275 = vld [vmem:[#allocation4 + $0xc0] sm:$0xff]
      %v8276 = vld [vmem:[#allocation4 + $0xc8] sm:$0xff]
      %v8277 = vld [vmem:[#allocation4 + $0xd0] sm:$0xff]
      %v8278 = vld [vmem:[#allocation4 + $0xd8] sm:$0xff]
      %v8279 = vld [vmem:[#allocation4 + $0xe0] sm:$0xff]
      %v8280 = vld [vmem:[#allocation4 + $0xe8] sm:$0xff]
      %v8281 = vld [vmem:[#allocation4 + $0xf0] sm:$0xff]
      %v8282 = vld [vmem:[#allocation4 + $0xf8] sm:$0xff]
      %s8283 = scalar_lea.vmem %s3, 64
      %v8284 = vld [vmem:[%s8283] sm:$0xff]
      %v8286 = vsel %vm230, %v8219, 0
      %v8289 = vsel %vm230, %v8220, 0
      %v8292 = vsel %vm230, %v8221, 0
      %v8295 = vsel %vm230, %v8222, 0
      %v8298 = vsel %vm230, %v8223, 0
      %v8301 = vsel %vm230, %v8224, 0
      %v8304 = vsel %vm230, %v8225, 0
      %v8307 = vsel %vm230, %v8226, 0
      %v8310 = vsel %vm230, %v8227, 0
      %v8313 = vsel %vm230, %v8228, 0
      %v8316 = vsel %vm230, %v8229, 0
      %v8319 = vsel %vm230, %v8230, 0
      %v8322 = vsel %vm230, %v8231, 0
      %v8325 = vsel %vm230, %v8232, 0
      %v8328 = vsel %vm230, %v8233, 0
      %v8331 = vsel %vm230, %v8234, 0
      %v8334 = vsel %vm230, %v8235, 0
      %v8337 = vsel %vm230, %v8236, 0
      %v8340 = vsel %vm230, %v8237, 0
      %v8343 = vsel %vm230, %v8238, 0
      %v8346 = vsel %vm230, %v8239, 0
      %v8349 = vsel %vm230, %v8240, 0
      %v8352 = vsel %vm230, %v8241, 0
      %v8355 = vsel %vm230, %v8242, 0
      %v8358 = vsel %vm230, %v8243, 0
      %v8361 = vsel %vm230, %v8244, 0
      %v8364 = vsel %vm230, %v8245, 0
      %v8367 = vsel %vm230, %v8246, 0
      %v8370 = vsel %vm230, %v8247, 0
      %v8373 = vsel %vm230, %v8248, 0
      %v8376 = vsel %vm230, %v8249, 0
      %v8379 = vsel %vm230, %v8250, 0
      %8381 = vmatprep.subr.mxu0 0.0
      %8382 = vmatpush1.msra.mxu0 %v8284
      %8383 = vmatprep.subr.mxu0 0.0
      %8384 = vmatpush1.msra.mxu0 0.0
      %8385 = vmatprep.subr.mxu0 0.0
      %8386 = vmatpush1.msra.mxu0 0.0
      %8387 = vmatprep.subr.mxu0 0.0
      %8388 = vmatpush1.msra.mxu0 0.0
      %8389 = vmatprep.subr.mxu0 0.0
      %8390 = vmatpush1.msra.mxu0 0.0
      %8391 = vmatprep.subr.mxu0 0.0
      %8392 = vmatpush1.msra.mxu0 0.0
      %8393 = vmatprep.subr.mxu0 0.0
      %8394 = vmatpush1.msra.mxu0 0.0
      %8395 = vmatprep.subr.mxu0 0.0
      %8396 = vmatpush1.msra.mxu0 0.0
      %8397 = vmatprep.subr.mxu0 0.0
      %8398 = vmatpush1.msra.mxu0 0.0
      %8399 = vmatprep.subr.mxu0 0.0
      %8400 = vmatpush1.msra.mxu0 0.0
      %8401 = vmatprep.subr.mxu0 0.0
      %8402 = vmatpush1.msra.mxu0 0.0
      %8403 = vmatprep.subr.mxu0 0.0
      %8404 = vmatpush1.msra.mxu0 0.0
      %8405 = vmatprep.subr.mxu0 0.0
      %8406 = vmatpush1.msra.mxu0 0.0
      %8407 = vmatprep.subr.mxu0 0.0
      %8408 = vmatpush1.msra.mxu0 0.0
      %8409 = vmatprep.subr.mxu0 0.0
      %8410 = vmatpush1.msra.mxu0 0.0
      %8411 = vmatprep.subr.mxu0 0.0
      %8412 = vmatpush1.msra.mxu0 0.0
      %8413 = vmatprep.subr.mxu0 0.0
      %8414 = vmatpush1.msra.mxu0 0.0
      %8415 = vmatprep.subr.mxu0 0.0
      %8416 = vmatpush1.msra.mxu0 0.0
      %8417 = vmatprep.subr.mxu0 0.0
      %8418 = vmatpush1.msra.mxu0 0.0
      %8419 = vmatprep.subr.mxu0 0.0
      %8420 = vmatpush1.msra.mxu0 0.0
      %8421 = vmatprep.subr.mxu0 0.0
      %8422 = vmatpush1.msra.mxu0 0.0
      %8423 = vmatprep.subr.mxu0 0.0
      %8424 = vmatpush1.msra.mxu0 0.0
      %8425 = vmatprep.subr.mxu0 0.0
      %8426 = vmatpush1.msra.mxu0 0.0
      %8427 = vmatprep.subr.mxu0 0.0
      %8428 = vmatpush1.msra.mxu0 0.0
      %8429 = vmatprep.subr.mxu0 0.0
      %8430 = vmatpush1.msra.mxu0 0.0
      %8431 = vmatprep.subr.mxu0 0.0
      %8432 = vmatpush1.msra.mxu0 0.0
      %8433 = vmatprep.subr.mxu0 0.0
      %8434 = vmatpush1.msra.mxu0 0.0
      %8435 = vmatprep.subr.mxu0 0.0
      %8436 = vmatpush1.msra.mxu0 0.0
      %8437 = vmatprep.subr.mxu0 0.0
      %8438 = vmatpush1.msra.mxu0 0.0
      %8439 = vmatprep.subr.mxu0 0.0
      %8440 = vmatpush1.msra.mxu0 0.0
      %8441 = vmatprep.subr.mxu0 0.0
      %8442 = vmatpush1.msra.mxu0 0.0
      %8443 = vmatprep.subr.mxu0 0.0
      %8444 = vmatpush1.msra.mxu0 0.0
      %8445 = vmatprep.mubr.f32.mxu0 0.0
      %8446 = vmatmul.mubr.f32.gmra.mrb[0].mxu0 %v8286
      %v8447 = vpop.f32.mrb[0].mxu0
      %v8448 = vadd.f32 0.0, %v8447
      %v8449 = vpop.f32.mrb[0].mxu0
      %8450 = vmatprep.mubr.f32.mxu0 0.0
      %8451 = vmatmul.mubr.f32.gmra.mrb[0].mxu0 %v8289
      %v8452 = vpop.f32.mrb[0].mxu0
      %v8453 = vadd.f32 0.0, %v8452
      %v8454 = vpop.f32.mrb[0].mxu0
      %8455 = vmatprep.mubr.f32.mxu0 0.0
      %8456 = vmatmul.mubr.f32.gmra.mrb[0].mxu0 %v8292
      %v8457 = vpop.f32.mrb[0].mxu0
      %v8458 = vadd.f32 0.0, %v8457
      %v8459 = vpop.f32.mrb[0].mxu0
      %8460 = vmatprep.mubr.f32.mxu0 0.0
      %8461 = vmatmul.mubr.f32.gmra.mrb[0].mxu0 %v8295
      %v8462 = vpop.f32.mrb[0].mxu0
      %v8463 = vadd.f32 0.0, %v8462
      %v8464 = vpop.f32.mrb[0].mxu0
      %8465 = vmatprep.mubr.f32.mxu0 0.0
      %8466 = vmatmul.mubr.f32.gmra.mrb[0].mxu0 %v8298
      %v8467 = vpop.f32.mrb[0].mxu0
      %v8468 = vadd.f32 0.0, %v8467
      %v8469 = vpop.f32.mrb[0].mxu0
      %8470 = vmatprep.mubr.f32.mxu0 0.0
      %8471 = vmatmul.mubr.f32.gmra.mrb[0].mxu0 %v8301
      %v8472 = vpop.f32.mrb[0].mxu0
      %v8473 = vadd.f32 0.0, %v8472
      %v8474 = vpop.f32.mrb[0].mxu0
      %8475 = vmatprep.mubr.f32.mxu0 0.0
      %8476 = vmatmul.mubr.f32.gmra.mrb[0].mxu0 %v8304
      %v8477 = vpop.f32.mrb[0].mxu0
      %v8478 = vadd.f32 0.0, %v8477
      %v8479 = vpop.f32.mrb[0].mxu0
      %8480 = vmatprep.mubr.f32.mxu0 0.0
      %8481 = vmatmul.mubr.f32.gmra.mrb[0].mxu0 %v8307
      %v8482 = vpop.f32.mrb[0].mxu0
      %v8483 = vadd.f32 0.0, %v8482
      %v8484 = vpop.f32.mrb[0].mxu0
      %8485 = vmatprep.mubr.f32.mxu0 0.0
      %8486 = vmatmul.mubr.f32.gmra.mrb[0].mxu0 %v8310
      %v8487 = vpop.f32.mrb[0].mxu0
      %v8488 = vadd.f32 0.0, %v8487
      %v8489 = vpop.f32.mrb[0].mxu0
      %8490 = vmatprep.mubr.f32.mxu0 0.0
      %8491 = vmatmul.mubr.f32.gmra.mrb[0].mxu0 %v8313
      %v8492 = vpop.f32.mrb[0].mxu0
      %v8493 = vadd.f32 0.0, %v8492
      %v8494 = vpop.f32.mrb[0].mxu0
      %8495 = vmatprep.mubr.f32.mxu0 0.0
      %8496 = vmatmul.mubr.f32.gmra.mrb[0].mxu0 %v8316
      %v8497 = vpop.f32.mrb[0].mxu0
      %v8498 = vadd.f32 0.0, %v8497
      %v8499 = vpop.f32.mrb[0].mxu0
      %8500 = vmatprep.mubr.f32.mxu0 0.0
      %8501 = vmatmul.mubr.f32.gmra.mrb[0].mxu0 %v8319
      %v8502 = vpop.f32.mrb[0].mxu0
      %v8503 = vadd.f32 0.0, %v8502
      %v8504 = vpop.f32.mrb[0].mxu0
      %8505 = vmatprep.mubr.f32.mxu0 0.0
      %8506 = vmatmul.mubr.f32.gmra.mrb[0].mxu0 %v8322
      %v8507 = vpop.f32.mrb[0].mxu0
      %v8508 = vadd.f32 0.0, %v8507
      %v8509 = vpop.f32.mrb[0].mxu0
      %8510 = vmatprep.mubr.f32.mxu0 0.0
      %8511 = vmatmul.mubr.f32.gmra.mrb[0].mxu0 %v8325
      %v8512 = vpop.f32.mrb[0].mxu0
      %v8513 = vadd.f32 0.0, %v8512
      %v8514 = vpop.f32.mrb[0].mxu0
      %8515 = vmatprep.mubr.f32.mxu0 0.0
      %8516 = vmatmul.mubr.f32.gmra.mrb[0].mxu0 %v8328
      %v8517 = vpop.f32.mrb[0].mxu0
      %v8518 = vadd.f32 0.0, %v8517
      %v8519 = vpop.f32.mrb[0].mxu0
      %8520 = vmatprep.mubr.f32.mxu0 0.0
      %8521 = vmatmul.mubr.f32.gmra.mrb[0].mxu0 %v8331
      %v8522 = vpop.f32.mrb[0].mxu0
      %v8523 = vadd.f32 0.0, %v8522
      %v8524 = vpop.f32.mrb[0].mxu0
      %8525 = vmatprep.mubr.f32.mxu0 0.0
      %8526 = vmatmul.mubr.f32.gmra.mrb[0].mxu0 %v8334
      %v8527 = vpop.f32.mrb[0].mxu0
      %v8528 = vadd.f32 0.0, %v8527
      %v8529 = vpop.f32.mrb[0].mxu0
      %8530 = vmatprep.mubr.f32.mxu0 0.0
      %8531 = vmatmul.mubr.f32.gmra.mrb[0].mxu0 %v8337
      %v8532 = vpop.f32.mrb[0].mxu0
      %v8533 = vadd.f32 0.0, %v8532
      %v8534 = vpop.f32.mrb[0].mxu0
      %8535 = vmatprep.mubr.f32.mxu0 0.0
      %8536 = vmatmul.mubr.f32.gmra.mrb[0].mxu0 %v8340
      %v8537 = vpop.f32.mrb[0].mxu0
      %v8538 = vadd.f32 0.0, %v8537
      %v8539 = vpop.f32.mrb[0].mxu0
      %8540 = vmatprep.mubr.f32.mxu0 0.0
      %8541 = vmatmul.mubr.f32.gmra.mrb[0].mxu0 %v8343
      %v8542 = vpop.f32.mrb[0].mxu0
      %v8543 = vadd.f32 0.0, %v8542
      %v8544 = vpop.f32.mrb[0].mxu0
      %8545 = vmatprep.mubr.f32.mxu0 0.0
      %8546 = vmatmul.mubr.f32.gmra.mrb[0].mxu0 %v8346
      %v8547 = vpop.f32.mrb[0].mxu0
      %v8548 = vadd.f32 0.0, %v8547
      %v8549 = vpop.f32.mrb[0].mxu0
      %8550 = vmatprep.mubr.f32.mxu0 0.0
      %8551 = vmatmul.mubr.f32.gmra.mrb[0].mxu0 %v8349
      %v8552 = vpop.f32.mrb[0].mxu0
      %v8553 = vadd.f32 0.0, %v8552
      %v8554 = vpop.f32.mrb[0].mxu0
      %8555 = vmatprep.mubr.f32.mxu0 0.0
      %8556 = vmatmul.mubr.f32.gmra.mrb[0].mxu0 %v8352
      %v8557 = vpop.f32.mrb[0].mxu0
      %v8558 = vadd.f32 0.0, %v8557
      %v8559 = vpop.f32.mrb[0].mxu0
      %8560 = vmatprep.mubr.f32.mxu0 0.0
      %8561 = vmatmul.mubr.f32.gmra.mrb[0].mxu0 %v8355
      %v8562 = vpop.f32.mrb[0].mxu0
      %v8563 = vadd.f32 0.0, %v8562
      %v8564 = vpop.f32.mrb[0].mxu0
      %8565 = vmatprep.mubr.f32.mxu0 0.0
      %8566 = vmatmul.mubr.f32.gmra.mrb[0].mxu0 %v8358
      %v8567 = vpop.f32.mrb[0].mxu0
      %v8568 = vadd.f32 0.0, %v8567
      %v8569 = vpop.f32.mrb[0].mxu0
      %8570 = vmatprep.mubr.f32.mxu0 0.0
      %8571 = vmatmul.mubr.f32.gmra.mrb[0].mxu0 %v8361
      %v8572 = vpop.f32.mrb[0].mxu0
      %v8573 = vadd.f32 0.0, %v8572
      %v8574 = vpop.f32.mrb[0].mxu0
      %8575 = vmatprep.mubr.f32.mxu0 0.0
      %8576 = vmatmul.mubr.f32.gmra.mrb[0].mxu0 %v8364
      %v8577 = vpop.f32.mrb[0].mxu0
      %v8578 = vadd.f32 0.0, %v8577
      %v8579 = vpop.f32.mrb[0].mxu0
      %8580 = vmatprep.mubr.f32.mxu0 0.0
      %8581 = vmatmul.mubr.f32.gmra.mrb[0].mxu0 %v8367
      %v8582 = vpop.f32.mrb[0].mxu0
      %v8583 = vadd.f32 0.0, %v8582
      %v8584 = vpop.f32.mrb[0].mxu0
      %8585 = vmatprep.mubr.f32.mxu0 0.0
      %8586 = vmatmul.mubr.f32.gmra.mrb[0].mxu0 %v8370
      %v8587 = vpop.f32.mrb[0].mxu0
      %v8588 = vadd.f32 0.0, %v8587
      %v8589 = vpop.f32.mrb[0].mxu0
      %8590 = vmatprep.mubr.f32.mxu0 0.0
      %8591 = vmatmul.mubr.f32.gmra.mrb[0].mxu0 %v8373
      %v8592 = vpop.f32.mrb[0].mxu0
      %v8593 = vadd.f32 0.0, %v8592
      %v8594 = vpop.f32.mrb[0].mxu0
      %8595 = vmatprep.mubr.f32.mxu0 0.0
      %8596 = vmatmul.mubr.f32.gmra.mrb[0].mxu0 %v8376
      %v8597 = vpop.f32.mrb[0].mxu0
      %v8598 = vadd.f32 0.0, %v8597
      %v8599 = vpop.f32.mrb[0].mxu0
      %8600 = vmatprep.mubr.f32.mxu0 0.0
      %8601 = vmatmul.mubr.f32.gmra.mrb[0].mxu0 %v8379
      %v8602 = vpop.f32.mrb[0].mxu0
      %v8603 = vadd.f32 0.0, %v8602
      %v8604 = vpop.f32.mrb[0].mxu0
      %8605 = vdwg.mxu0
      %v8606 = vadd.f32 %v8251, %v8448
      %v8607 = vadd.f32 %v8252, %v8453
      %v8608 = vadd.f32 %v8253, %v8458
      %v8609 = vadd.f32 %v8254, %v8463
      %v8610 = vadd.f32 %v8255, %v8468
      %v8611 = vadd.f32 %v8256, %v8473
      %v8612 = vadd.f32 %v8257, %v8478
      %v8613 = vadd.f32 %v8258, %v8483
      %v8614 = vadd.f32 %v8259, %v8488
      %v8615 = vadd.f32 %v8260, %v8493
      %v8616 = vadd.f32 %v8261, %v8498
      %v8617 = vadd.f32 %v8262, %v8503
      %v8618 = vadd.f32 %v8263, %v8508
      %v8619 = vadd.f32 %v8264, %v8513
      %v8620 = vadd.f32 %v8265, %v8518
      %v8621 = vadd.f32 %v8266, %v8523
      %v8622 = vadd.f32 %v8267, %v8528
      %v8623 = vadd.f32 %v8268, %v8533
      %v8624 = vadd.f32 %v8269, %v8538
      %v8625 = vadd.f32 %v8270, %v8543
      %v8626 = vadd.f32 %v8271, %v8548
      %v8627 = vadd.f32 %v8272, %v8553
      %v8628 = vadd.f32 %v8273, %v8558
      %v8629 = vadd.f32 %v8274, %v8563
      %v8630 = vadd.f32 %v8275, %v8568
      %v8631 = vadd.f32 %v8276, %v8573
      %v8632 = vadd.f32 %v8277, %v8578
      %v8633 = vadd.f32 %v8278, %v8583
      %v8634 = vadd.f32 %v8279, %v8588
      %v8635 = vadd.f32 %v8280, %v8593
      %v8636 = vadd.f32 %v8281, %v8598
      %v8637 = vadd.f32 %v8282, %v8603
      %8638 = vst.msk [vmem:[#allocation4] sm:$0xff] %vm230, %v8606
      %8639 = vst.msk [vmem:[#allocation4 + $0x8] sm:$0xff] %vm230, %v8607
      %8640 = vst.msk [vmem:[#allocation4 + $0x10] sm:$0xff] %vm230, %v8608
      %8641 = vst.msk [vmem:[#allocation4 + $0x18] sm:$0xff] %vm230, %v8609
      %8642 = vst.msk [vmem:[#allocation4 + $0x20] sm:$0xff] %vm230, %v8610
      %8643 = vst.msk [vmem:[#allocation4 + $0x28] sm:$0xff] %vm230, %v8611
      %8644 = vst.msk [vmem:[#allocation4 + $0x30] sm:$0xff] %vm230, %v8612
      %8645 = vst.msk [vmem:[#allocation4 + $0x38] sm:$0xff] %vm230, %v8613
      %8646 = vst.msk [vmem:[#allocation4 + $0x40] sm:$0xff] %vm230, %v8614
      %8647 = vst.msk [vmem:[#allocation4 + $0x48] sm:$0xff] %vm230, %v8615
      %8648 = vst.msk [vmem:[#allocation4 + $0x50] sm:$0xff] %vm230, %v8616
      %8649 = vst.msk [vmem:[#allocation4 + $0x58] sm:$0xff] %vm230, %v8617
      %8650 = vst.msk [vmem:[#allocation4 + $0x60] sm:$0xff] %vm230, %v8618
      %8651 = vst.msk [vmem:[#allocation4 + $0x68] sm:$0xff] %vm230, %v8619
      %8652 = vst.msk [vmem:[#allocation4 + $0x70] sm:$0xff] %vm230, %v8620
      %8653 = vst.msk [vmem:[#allocation4 + $0x78] sm:$0xff] %vm230, %v8621
      %8654 = vst.msk [vmem:[#allocation4 + $0x80] sm:$0xff] %vm230, %v8622
      %8655 = vst.msk [vmem:[#allocation4 + $0x88] sm:$0xff] %vm230, %v8623
      %8656 = vst.msk [vmem:[#allocation4 + $0x90] sm:$0xff] %vm230, %v8624
      %8657 = vst.msk [vmem:[#allocation4 + $0x98] sm:$0xff] %vm230, %v8625
      %8658 = vst.msk [vmem:[#allocation4 + $0xa0] sm:$0xff] %vm230, %v8626
      %8659 = vst.msk [vmem:[#allocation4 + $0xa8] sm:$0xff] %vm230, %v8627
      %8660 = vst.msk [vmem:[#allocation4 + $0xb0] sm:$0xff] %vm230, %v8628
      %8661 = vst.msk [vmem:[#allocation4 + $0xb8] sm:$0xff] %vm230, %v8629
      %8662 = vst.msk [vmem:[#allocation4 + $0xc0] sm:$0xff] %vm230, %v8630
      %8663 = vst.msk [vmem:[#allocation4 + $0xc8] sm:$0xff] %vm230, %v8631
      %8664 = vst.msk [vmem:[#allocation4 + $0xd0] sm:$0xff] %vm230, %v8632
      %8665 = vst.msk [vmem:[#allocation4 + $0xd8] sm:$0xff] %vm230, %v8633
      %8666 = vst.msk [vmem:[#allocation4 + $0xe0] sm:$0xff] %vm230, %v8634
      %8667 = vst.msk [vmem:[#allocation4 + $0xe8] sm:$0xff] %vm230, %v8635
      %8668 = vst.msk [vmem:[#allocation4 + $0xf0] sm:$0xff] %vm230, %v8636
      %8669 = vst.msk [vmem:[#allocation4 + $0xf8] sm:$0xff] %vm230, %v8637
      %v8670 = vld [vmem:[#allocation4] sm:$0xff]
      %v8671 = vld [vmem:[#allocation4 + $0x8] sm:$0xff]
      %v8672 = vld [vmem:[#allocation4 + $0x10] sm:$0xff]
      %v8673 = vld [vmem:[#allocation4 + $0x18] sm:$0xff]
      %v8674 = vld [vmem:[#allocation4 + $0x20] sm:$0xff]
      %v8675 = vld [vmem:[#allocation4 + $0x28] sm:$0xff]
      %v8676 = vld [vmem:[#allocation4 + $0x30] sm:$0xff]
      %v8677 = vld [vmem:[#allocation4 + $0x38] sm:$0xff]
      %v8678 = vld [vmem:[#allocation4 + $0x40] sm:$0xff]
      %v8679 = vld [vmem:[#allocation4 + $0x48] sm:$0xff]
      %v8680 = vld [vmem:[#allocation4 + $0x50] sm:$0xff]
      %v8681 = vld [vmem:[#allocation4 + $0x58] sm:$0xff]
      %v8682 = vld [vmem:[#allocation4 + $0x60] sm:$0xff]
      %v8683 = vld [vmem:[#allocation4 + $0x68] sm:$0xff]
      %v8684 = vld [vmem:[#allocation4 + $0x70] sm:$0xff]
      %v8685 = vld [vmem:[#allocation4 + $0x78] sm:$0xff]
      %v8686 = vld [vmem:[#allocation4 + $0x80] sm:$0xff]
      %v8687 = vld [vmem:[#allocation4 + $0x88] sm:$0xff]
      %v8688 = vld [vmem:[#allocation4 + $0x90] sm:$0xff]
      %v8689 = vld [vmem:[#allocation4 + $0x98] sm:$0xff]
      %v8690 = vld [vmem:[#allocation4 + $0xa0] sm:$0xff]
      %v8691 = vld [vmem:[#allocation4 + $0xa8] sm:$0xff]
      %v8692 = vld [vmem:[#allocation4 + $0xb0] sm:$0xff]
      %v8693 = vld [vmem:[#allocation4 + $0xb8] sm:$0xff]
      %v8694 = vld [vmem:[#allocation4 + $0xc0] sm:$0xff]
      %v8695 = vld [vmem:[#allocation4 + $0xc8] sm:$0xff]
      %v8696 = vld [vmem:[#allocation4 + $0xd0] sm:$0xff]
      %v8697 = vld [vmem:[#allocation4 + $0xd8] sm:$0xff]
      %v8698 = vld [vmem:[#allocation4 + $0xe0] sm:$0xff]
      %v8699 = vld [vmem:[#allocation4 + $0xe8] sm:$0xff]
      %v8700 = vld [vmem:[#allocation4 + $0xf0] sm:$0xff]
      %v8701 = vld [vmem:[#allocation4 + $0xf8] sm:$0xff]
      %8702 = vst.msk [vmem:[%s197] sm:$0xff] %vm230, %v8670
      %8703 = vst.msk [vmem:[%s197 + $0x8] sm:$0xff] %vm230, %v8671
      %8704 = vst.msk [vmem:[%s197 + $0x10] sm:$0xff] %vm230, %v8672
      %8705 = vst.msk [vmem:[%s197 + $0x18] sm:$0xff] %vm230, %v8673
      %8706 = vst.msk [vmem:[%s197 + $0x20] sm:$0xff] %vm230, %v8674
      %8707 = vst.msk [vmem:[%s197 + $0x28] sm:$0xff] %vm230, %v8675
      %8708 = vst.msk [vmem:[%s197 + $0x30] sm:$0xff] %vm230, %v8676
      %8709 = vst.msk [vmem:[%s197 + $0x38] sm:$0xff] %vm230, %v8677
      %8710 = vst.msk [vmem:[%s197 + $0x40] sm:$0xff] %vm230, %v8678
      %8711 = vst.msk [vmem:[%s197 + $0x48] sm:$0xff] %vm230, %v8679
      %8712 = vst.msk [vmem:[%s197 + $0x50] sm:$0xff] %vm230, %v8680
      %8713 = vst.msk [vmem:[%s197 + $0x58] sm:$0xff] %vm230, %v8681
      %8714 = vst.msk [vmem:[%s197 + $0x60] sm:$0xff] %vm230, %v8682
      %8715 = vst.msk [vmem:[%s197 + $0x68] sm:$0xff] %vm230, %v8683
      %8716 = vst.msk [vmem:[%s197 + $0x70] sm:$0xff] %vm230, %v8684
      %8717 = vst.msk [vmem:[%s197 + $0x78] sm:$0xff] %vm230, %v8685
      %8718 = vst.msk [vmem:[%s197 + $0x80] sm:$0xff] %vm230, %v8686
      %8719 = vst.msk [vmem:[%s197 + $0x88] sm:$0xff] %vm230, %v8687
      %8720 = vst.msk [vmem:[%s197 + $0x90] sm:$0xff] %vm230, %v8688
      %8721 = vst.msk [vmem:[%s197 + $0x98] sm:$0xff] %vm230, %v8689
      %8722 = vst.msk [vmem:[%s197 + $0xa0] sm:$0xff] %vm230, %v8690
      %8723 = vst.msk [vmem:[%s197 + $0xa8] sm:$0xff] %vm230, %v8691
      %8724 = vst.msk [vmem:[%s197 + $0xb0] sm:$0xff] %vm230, %v8692
      %8725 = vst.msk [vmem:[%s197 + $0xb8] sm:$0xff] %vm230, %v8693
      %8726 = vst.msk [vmem:[%s197 + $0xc0] sm:$0xff] %vm230, %v8694
      %8727 = vst.msk [vmem:[%s197 + $0xc8] sm:$0xff] %vm230, %v8695
      %8728 = vst.msk [vmem:[%s197 + $0xd0] sm:$0xff] %vm230, %v8696
      %8729 = vst.msk [vmem:[%s197 + $0xd8] sm:$0xff] %vm230, %v8697
      %8730 = vst.msk [vmem:[%s197 + $0xe0] sm:$0xff] %vm230, %v8698
      %8731 = vst.msk [vmem:[%s197 + $0xe8] sm:$0xff] %vm230, %v8699
      %8732 = vst.msk [vmem:[%s197 + $0xf0] sm:$0xff] %vm230, %v8700
      %8733 = vst.msk [vmem:[%s197 + $0xf8] sm:$0xff] %vm230, %v8701
      %p8734 = scmp.lt.s32.totalorder %s15, 1
      %s8735 = scalar_select %p8734, %s15, 1
      %s8736 = smul.addr %s8735, 32
      %s8737 = smul.addr %s8736, 8
      %s8738 = scalar_lea.vmem %s4, %s8737
      // Predicated region
      $region37: #{tpu_custom_call.1} parent=35 // pred_check
        %p8739 = pneg %p122
      $region38: #{tpu_custom_call.1} parent=35 // pred_check_branch
        %8741 = sbr.rel (%p8739) target = $region40
      $region39: #{tpu_custom_call.1} parent=35 // pred_region
        _
      $region40: #{tpu_custom_call.1} parent=35 // pred_fallthru
        _
    $region36: #{tpu_custom_call.1} parent=5 // pred_fallthru
      _
    %p8742 = scmp.le.s32.totalorder 2, %s10
    // Predicated region
    $region41: #{tpu_custom_call.1} parent=5 // pred_check
      %p8743 = pneg %p8742
    $region42: #{tpu_custom_call.1} parent=5 // pred_check_branch
      %8745 = sbr.rel (%p8743) target = $region44
    $region43: #{tpu_custom_call.1} parent=5 // pred_region
      %s8746 = ssub.s32 %s10, 2
      // Predicated region
      $region45: #{tpu_custom_call.1} parent=43 // pred_check
        %p8747 = pneg %p128
      $region46: #{tpu_custom_call.1} parent=43 // pred_check_branch
        %8749 = sbr.rel (%p8747) target = $region48
      $region47: #{tpu_custom_call.1} parent=43 // pred_region
        %p8750 = scmp.lt.s32.totalorder %s16, 1
        %s8751 = scalar_select %p8750, %s16, 1
        %s8752 = smul.addr %s8751, 32
        %s8753 = smul.addr %s8752, 8
        %s8754 = scalar_lea.vmem %s4, %s8753
      $region48: #{tpu_custom_call.1} parent=43 // pred_fallthru
        _
    $region44: #{tpu_custom_call.1} parent=5 // pred_fallthru
      _
  $region6: #{tpu_custom_call.1} parent=0 // loop_footer
    %s14 = sadd.s32 1, %s10
  $region7: #{tpu_custom_call.1} parent=0 // loop_footer_branch
    %9 = sbr.rel target = $region3
  $region8: #{tpu_custom_call.1} parent=0 // loop_exit
    _

</llo_original>
